<compile_context>
chip_gen: v7x
topology: tpu7x:2x2x1
jax: 0.10.0
libtpu: 0.0.40
codegen_flags: <defaults>
</compile_context>

<pallas_src>
import functools
import math

import jax
import jax.numpy as jnp
import numpy as np
from jax.experimental import pallas as pl
from jax.experimental.pallas import tpu as pltpu  # noqa: F401  (TPU backend assumed)

_LANE = 128   # lane padding unit (lane-dense outputs, review item)
_HALO = 128   # aligned zero halo so every 3x3 tap slice stays in bounds


def _round_up(x, m):
    return (x + m - 1) // m * m


def _tap_shifts(row_stride):
    """Flat-index offsets of the 9 taps of a 3x3 kernel (row stride = image W)."""
    return tuple(dh * row_stride + dw for dh in (-1, 0, 1) for dw in (-1, 0, 1))


def _tap_masks(n, h, w_valid, row_stride, l_pad):
    """(9, 1, l_pad) f32 validity masks for 3x3 taps on a lane-flattened (b,h,w)
    axis.  A tap is valid iff its source pixel lies inside the same image
    (implements the conv's zero padding, prevents batch/row leakage and masks
    the lane-padding tail).  Pure numpy: static, baked as constants."""
    s = h * row_stride
    t = np.arange(l_pad)
    in_img = t < n * s
    hh = (t % s) // row_stride
    ww = t % row_stride
    masks = []
    for dh in (-1, 0, 1):
        for dw in (-1, 0, 1):
            ok = (in_img & (ww < w_valid)
                  & (hh + dh >= 0) & (hh + dh < h)
                  & (ww + dw >= 0) & (ww + dw < w_valid))
            masks.append(ok)
    return jnp.asarray(np.stack(masks)[:, None, :].astype(np.float32))


# ----------------------------- in-kernel helpers -----------------------------

def _conv3x3_taps_matmul(xp, w_ref, b_ref, m_ref, *, shifts, out_len):
    """3x3 conv on a lane-flattened, zero-haloed image held in VMEM.

    xp:    (Ci, HALO + out_len + HALO) f32 value, data at lane offset HALO.
    w_ref: (9, Co, Ci) tap-major weights;  b_ref: (Co, 1);
    m_ref: (9, 1, out_len) precomputed boundary masks.
    Returns (Co, out_len) f32.  Taps are shifted slices of the haloed tile
    (no HBM im2col -> 9x fewer bytes read from HBM per conv).
    """
    acc = None
    for k, sh in enumerate(shifts):
        tap = xp[:, _HALO + sh:_HALO + sh + out_len] * m_ref[k]
        part = jnp.dot(w_ref[k], tap, preferred_element_type=jnp.float32)
        acc = part if acc is None else acc + part
    return acc + b_ref[...]


# ----------------------------- Pallas kernels -----------------------------

def _front_kernel(x_ref, m_ref, wc_ref, bc_ref, w1_ref, b1_ref, w2_ref, b2_ref,
                  o_ref, *, n_batch, seg, shifts):
    """Fused: xc = conv3x3(x);  gate = sigmoid(du(avgpool(xc)));  out = x + xc*gate.

    Keeps xc resident in VMEM (no HBM round trip between the conv and the
    channel attention).  Per-batch squeeze-excite handled by a static unrolled
    loop over the N lane segments."""
    ld = o_ref.shape[1]
    x = x_ref[...]                                              # (C, HALO+LD+HALO)
    xc = _conv3x3_taps_matmul(x, wc_ref, bc_ref, m_ref, shifts=shifts, out_len=ld)
    xd = x[:, _HALO:_HALO + ld]                                 # un-haloed x_org
    for b in range(n_batch):                                    # N is tiny & static
        lo, hi = b * seg, (b + 1) * seg
        xc_b = xc[:, lo:hi]
        y = jnp.mean(xc_b, axis=1, keepdims=True)               # adaptive avg pool (C,1)
        y = jnp.maximum(
            jnp.dot(w1_ref[...], y, preferred_element_type=jnp.float32) + b1_ref[...],
            0.0)                                                # 1x1 conv + ReLU
        gate = jax.nn.sigmoid(
            jnp.dot(w2_ref[...], y, preferred_element_type=jnp.float32) + b2_ref[...])
        o_ref[:, lo:hi] = (xd[:, lo:hi] + xc_b * gate).astype(o_ref.dtype)


def _freq_kernel(amp_ref, pha_ref, m_ref,
                 wa1_ref, ba1_ref, wa2_ref, ba2_ref,
                 wp1_ref, bp1_ref, wp2_ref, bp2_ref,
                 re_ref, im_ref, *, shifts):
    """Fused amp & pha branches in ONE launch:
       t = conv3x3(leaky(conv3x3(x))) + x  for both amp and pha, then
       real = amp_t*cos(pha_t), imag = amp_t*sin(pha_t).
    Only real/imag touch HBM (a1/p1/a2/p2 stay in VMEM)."""
    ld = re_ref.shape[1]
    c = re_ref.shape[0]

    def leaky(v):                                               # LeakyReLU(0.1)
        return jnp.where(v >= 0, v, jnp.float32(0.1) * v)

    def branch(x_ref_, w1_, b1_, w2_, b2_):
        xh = x_ref_[...]                                        # (C, HALO+LD+HALO)
        h1 = leaky(_conv3x3_taps_matmul(xh, w1_, b1_, m_ref,
                                        shifts=shifts, out_len=ld))
        halo = jnp.zeros((c, _HALO), jnp.float32)
        h1h = jnp.concatenate([halo, h1, halo], axis=1)         # aligned re-halo
        h2 = _conv3x3_taps_matmul(h1h, w2_, b2_, m_ref, shifts=shifts, out_len=ld)
        return h2 + xh[:, _HALO:_HALO + ld]                     # residual add

    amp_t = branch(amp_ref, wa1_ref, ba1_ref, wa2_ref, ba2_ref)
    pha_t = branch(pha_ref, wp1_ref, bp1_ref, wp2_ref, bp2_ref)
    re_ref[...] = (amp_t * jnp.cos(pha_t)).astype(re_ref.dtype)
    im_ref[...] = (amp_t * jnp.sin(pha_t)).astype(im_ref.dtype)


def _post_kernel(rec_ref, xh_ref, w_ref, b_ref, scale_ref, o_ref):
    """|irfft| -> 1x1 conv -> + scale * x_org -> nan_to_num(1e-5)."""
    ld = o_ref.shape[1]
    rec = jnp.abs(rec_ref[...])                                 # (C, LD)
    out = jnp.dot(w_ref[...], rec, preferred_element_type=jnp.float32) + b_ref[...]
    xd = xh_ref[...][:, _HALO:_HALO + ld]
    out = out + scale_ref[...] * xd                             # Scale(1) * x_org
    finite = (out == out) & (jnp.abs(out) <= jnp.float32(jnp.finfo(jnp.float32).max))
    o_ref[...] = jnp.where(finite, out, jnp.float32(1e-5)).astype(o_ref.dtype)


# ----------------------------- layout glue -----------------------------

def _flatten_nchw(x):
    """(N, C, H, W) -> (C, N*H*W): batch folded into the lane axis."""
    n, c, h, w = x.shape
    return jnp.transpose(x, (1, 0, 2, 3)).reshape(c, n * h * w)


def _unflatten_nchw(flat, n, c, h, w):
    return jnp.transpose(flat[:, :n * h * w].reshape(c, n, h, w), (1, 0, 2, 3))


def _halo_pad(flat, ld):
    """(C, L) -> (C, HALO + ld + HALO): zero halo + lane-dense tail padding."""
    c, l = flat.shape
    return jnp.pad(flat, ((0, 0), (_HALO, ld - l + _HALO)))


# ----------------------------- full forward -----------------------------

def freblock_chaattn_pallas(x_org, params):
    n, c, h, w = x_org.shape
    wf = w // 2 + 1
    ld_sp = _round_up(n * h * w, _LANE)          # lane-dense spatial length
    ld_fr = _round_up(n * h * wf, _LANE)         # lane-dense rFFT-domain length

    masks_sp = _tap_masks(n, h, w, w, ld_sp)
    masks_fr = _tap_masks(n, h, wf, wf, ld_fr)
    shifts_sp = _tap_shifts(w)
    shifts_fr = _tap_shifts(wf)

    def taps(name):   # (Co, Ci, 3, 3) -> (9, Co, Ci), tap k = (dh+1)*3 + (dw+1)
        return params[name].transpose(2, 3, 0, 1).reshape(9, c, c)

    x_haloed = _halo_pad(_flatten_nchw(x_org), ld_sp)            # (C, 128+LD+128)

    # --- kernel 1: fused conv3x3 + channel attention (single launch, N in lanes) ---
    x_attn = pl.pallas_call(
        functools.partial(_front_kernel, n_batch=n, seg=h * w, shifts=shifts_sp),
        out_shape=jax.ShapeDtypeStruct((c, ld_sp), jnp.float32),
    )(x_haloed, masks_sp, taps('conv_w'), params['conv_b'].reshape(c, 1),
      params['du_w1'].reshape(-1, c), params['du_b1'].reshape(-1, 1),
      params['du_w2'].reshape(c, -1), params['du_b2'].reshape(c, 1))

    x_sp = _unflatten_nchw(x_attn, n, c, h, w)

    # TODO(synk): torch.fft.rfft2 / irfft2 and torch.angle have no Pallas
    # primitive; they are computed with jnp.fft / jnp.angle in the wrapper.
    msf = jnp.fft.rfft2(x_sp + 1e-8, axes=(-2, -1))              # (N, C, H, Wf)
    amp = jnp.abs(msf).astype(jnp.float32)
    pha = jnp.angle(msf).astype(jnp.float32)

    amp_haloed = _halo_pad(_flatten_nchw(amp), ld_fr)
    pha_haloed = _halo_pad(_flatten_nchw(pha), ld_fr)

    # --- kernel 2: fused amp & pha fuse branches + recombine (one launch) ---
    real_f, imag_f = pl.pallas_call(
        functools.partial(_freq_kernel, shifts=shifts_fr),
        out_shape=(jax.ShapeDtypeStruct((c, ld_fr), jnp.float32),
                   jax.ShapeDtypeStruct((c, ld_fr), jnp.float32)),
    )(amp_haloed, pha_haloed, masks_fr,
      taps('amp_w1'), params['amp_b1'].reshape(c, 1),
      taps('amp_w2'), params['amp_b2'].reshape(c, 1),
      taps('pha_w1'), params['pha_b1'].reshape(c, 1),
      taps('pha_w2'), params['pha_b2'].reshape(c, 1))

    real = _unflatten_nchw(real_f, n, c, h, wf)
    imag = _unflatten_nchw(imag_f, n, c, h, wf)
    recon = jnp.fft.irfft2(real + 1j * imag + 1e-8, s=(h, w),
                           axes=(-2, -1)).astype(jnp.float32)

    rec_flat = _flatten_nchw(recon)
    if rec_flat.shape[1] != ld_sp:
        rec_flat = jnp.pad(rec_flat, ((0, 0), (0, ld_sp - rec_flat.shape[1])))

    # --- kernel 3: |irfft| -> 1x1 conv -> + scale * x_org -> nan_to_num ---
    out_flat = pl.pallas_call(
        _post_kernel,
        out_shape=jax.ShapeDtypeStruct((c, ld_sp), jnp.float32),
    )(rec_flat, x_haloed, params['post_w'].reshape(c, c),
      params['post_b'].reshape(c, 1), params['scale'].reshape(1, 1))

    return _unflatten_nchw(out_flat, n, c, h, w)


# ----------------------------- params & pure-JAX reference -----------------------------

def init_params(key, c, cmid):
    ks = jax.random.split(key, 8)

    def conv_init(k, co, ci, kh, kw):
        fan_in = ci * kh * kw
        bound = 1.0 / math.sqrt(fan_in)
        kw_, kb_ = jax.random.split(k)
        wgt = jax.random.uniform(kw_, (co, ci, kh, kw), jnp.float32, -bound, bound)
        bias = jax.random.uniform(kb_, (co,), jnp.float32, -bound, bound)
        return wgt, bias

    p = {}
    p['conv_w'], p['conv_b'] = conv_init(ks[0], c, c, 3, 3)
    p['du_w1'], p['du_b1'] = conv_init(ks[1], cmid, c, 1, 1)
    p['du_w2'], p['du_b2'] = conv_init(ks[2], c, cmid, 1, 1)
    p['amp_w1'], p['amp_b1'] = conv_init(ks[3], c, c, 3, 3)
    p['amp_w2'], p['amp_b2'] = conv_init(ks[4], c, c, 3, 3)
    p['pha_w1'], p['pha_b1'] = conv_init(ks[5], c, c, 3, 3)
    p['pha_w2'], p['pha_b2'] = conv_init(ks[6], c, c, 3, 3)
    p['post_w'], p['post_b'] = conv_init(ks[7], c, c, 1, 1)
    p['scale'] = jnp.ones((1,), jnp.float32)                     # Scale(1)
    return p


def reference_forward(x_org, params):
    """Pure-JAX replica of the PyTorch forward (NCHW), for correctness checking."""
    n, c, h, w = x_org.shape
    prec = jax.lax.Precision.HIGHEST

    def conv(x, wgt, bias, pad):
        out = jax.lax.conv_general_dilated(
            x, wgt, (1, 1), ((pad, pad), (pad, pad)),
            dimension_numbers=('NCHW', 'OIHW', 'NCHW'), precision=prec)
        return out + bias[None, :, None, None]

    x = conv(x_org, params['conv_w'], params['conv_b'], 1)
    y = jnp.mean(x, axis=(2, 3), keepdims=True)
    y = jax.nn.relu(conv(y, params['du_w1'], params['du_b1'], 0))
    y = jax.nn.sigmoid(conv(y, params['du_w2'], params['du_b2'], 0))
    x = x_org + x * y

    msf = jnp.fft.rfft2(x + 1e-8, axes=(-2, -1))
    amp = jnp.abs(msf)
    pha = jnp.angle(msf)

    def fuse(a, w1, b1, w2, b2):
        hdn = conv(a, w1, b1, 1)
        hdn = jnp.where(hdn >= 0, hdn, 0.1 * hdn)
        return conv(hdn, w2, b2, 1)

    amp_t = fuse(amp, params['amp_w1'], params['amp_b1'],
                 params['amp_w2'], params['amp_b2']) + amp
    pha_t = fuse(pha, params['pha_w1'], params['pha_b1'],
                 params['pha_w2'], params['pha_b2']) + pha
    real = amp_t * jnp.cos(pha_t)
    imag = amp_t * jnp.sin(pha_t)
    out = jnp.abs(jnp.fft.irfft2(real + 1j * imag + 1e-8, s=(h, w), axes=(-2, -1)))
    out = conv(out, params['post_w'], params['post_b'], 0)
    out = out + params['scale'][0] * x_org
    return jnp.nan_to_num(out, nan=1e-5, posinf=1e-5, neginf=1e-5)


# ----------------------------- main -----------------------------

if __name__ == "__main__":
    key = jax.random.PRNGKey(0)
    N, C, H, W = 2, 16, 16, 16
    reduction = 4                       # channels // reduction = 4
    pkey, xkey = jax.random.split(key)

    params = init_params(pkey, C, C // reduction)
    x = jax.random.normal(xkey, (N, C, H, W), jnp.float32)

    out = jax.jit(freblock_chaattn_pallas)(x, params)
    out = jax.block_until_ready(out)

    ref = jax.block_until_ready(reference_forward(x, params))
    assert out.shape == (N, C, H, W)
    np.testing.assert_allclose(np.asarray(out), np.asarray(ref), rtol=5e-2, atol=5e-2)

    print("KERNEL_OK")
</pallas_src>

<mosaic_0001>
module attributes {stable_mosaic.version = 11 : i64} {
  func.func @_front_kernel(%arg0: memref<16x768xf32, #tpu.memory_space<vmem>>, %arg1: memref<9x1x512xf32, #tpu.memory_space<vmem>>, %arg2: memref<9x16x16xf32, #tpu.memory_space<vmem>>, %arg3: memref<16x1xf32, #tpu.memory_space<vmem>>, %arg4: memref<4x16xf32, #tpu.memory_space<vmem>>, %arg5: memref<4x1xf32, #tpu.memory_space<vmem>>, %arg6: memref<16x4xf32, #tpu.memory_space<vmem>>, %arg7: memref<16x1xf32, #tpu.memory_space<vmem>>, %arg8: memref<16x512xf32, #tpu.memory_space<vmem>>) attributes {dimension_semantics = [], scalar_prefetch = 0 : i64, scratch_operands = 0 : i64, tpu.core_type = #tpu.core_type<tc>} {
    %c0 = arith.constant 0 : index
    %c0_0 = arith.constant 0 : index
    %0 = vector.load %arg0[%c0, %c0_0] : memref<16x768xf32, #tpu.memory_space<vmem>>, vector<16x768xf32>
    %1 = vector.extract_strided_slice %0 {offsets = [0, 111], sizes = [16, 512], strides = [1, 1]} : vector<16x768xf32> to vector<16x512xf32>
    %c0_1 = arith.constant 0 : index
    %c0_2 = arith.constant 0 : index
    %c0_3 = arith.constant 0 : index
    %2 = vector.load %arg1[%c0_1, %c0_2, %c0_3] : memref<9x1x512xf32, #tpu.memory_space<vmem>>, vector<1x1x512xf32>
    %3 = vector.shape_cast %2 : vector<1x1x512xf32> to vector<1x512xf32>
    %4 = vector.broadcast %3 : vector<1x512xf32> to vector<16x512xf32>
    %5 = arith.mulf %1, %4 : vector<16x512xf32>
    %c0_4 = arith.constant 0 : index
    %c0_5 = arith.constant 0 : index
    %c0_6 = arith.constant 0 : index
    %6 = vector.load %arg2[%c0_4, %c0_5, %c0_6] : memref<9x16x16xf32, #tpu.memory_space<vmem>>, vector<1x16x16xf32>
    %7 = vector.shape_cast %6 : vector<1x16x16xf32> to vector<16x16xf32>
    %cst = arith.constant dense<0.000000e+00> : vector<16x512xf32>
    %8 = tpu.matmul %7, %5, %cst {dimension_numbers = #tpu.dot_dimension_numbers<[1], [0], [0], [1], [0, 0, 1, 1], [], []>} : vector<16x16xf32>, vector<16x512xf32>, vector<16x512xf32> -> vector<16x512xf32>
    %9 = vector.extract_strided_slice %0 {offsets = [0, 112], sizes = [16, 512], strides = [1, 1]} : vector<16x768xf32> to vector<16x512xf32>
    %c1 = arith.constant 1 : index
    %c0_7 = arith.constant 0 : index
    %c0_8 = arith.constant 0 : index
    %10 = vector.load %arg1[%c1, %c0_7, %c0_8] : memref<9x1x512xf32, #tpu.memory_space<vmem>>, vector<1x1x512xf32>
    %11 = vector.shape_cast %10 : vector<1x1x512xf32> to vector<1x512xf32>
    %12 = vector.broadcast %11 : vector<1x512xf32> to vector<16x512xf32>
    %13 = arith.mulf %9, %12 : vector<16x512xf32>
    %c1_9 = arith.constant 1 : index
    %c0_10 = arith.constant 0 : index
    %c0_11 = arith.constant 0 : index
    %14 = vector.load %arg2[%c1_9, %c0_10, %c0_11] : memref<9x16x16xf32, #tpu.memory_space<vmem>>, vector<1x16x16xf32>
    %15 = vector.shape_cast %14 : vector<1x16x16xf32> to vector<16x16xf32>
    %cst_12 = arith.constant dense<0.000000e+00> : vector<16x512xf32>
    %16 = tpu.matmul %15, %13, %cst_12 {dimension_numbers = #tpu.dot_dimension_numbers<[1], [0], [0], [1], [0, 0, 1, 1], [], []>} : vector<16x16xf32>, vector<16x512xf32>, vector<16x512xf32> -> vector<16x512xf32>
    %17 = arith.addf %8, %16 : vector<16x512xf32>
    %18 = vector.extract_strided_slice %0 {offsets = [0, 113], sizes = [16, 512], strides = [1, 1]} : vector<16x768xf32> to vector<16x512xf32>
    %c2 = arith.constant 2 : index
    %c0_13 = arith.constant 0 : index
    %c0_14 = arith.constant 0 : index
    %19 = vector.load %arg1[%c2, %c0_13, %c0_14] : memref<9x1x512xf32, #tpu.memory_space<vmem>>, vector<1x1x512xf32>
    %20 = vector.shape_cast %19 : vector<1x1x512xf32> to vector<1x512xf32>
    %21 = vector.broadcast %20 : vector<1x512xf32> to vector<16x512xf32>
    %22 = arith.mulf %18, %21 : vector<16x512xf32>
    %c2_15 = arith.constant 2 : index
    %c0_16 = arith.constant 0 : index
    %c0_17 = arith.constant 0 : index
    %23 = vector.load %arg2[%c2_15, %c0_16, %c0_17] : memref<9x16x16xf32, #tpu.memory_space<vmem>>, vector<1x16x16xf32>
    %24 = vector.shape_cast %23 : vector<1x16x16xf32> to vector<16x16xf32>
    %cst_18 = arith.constant dense<0.000000e+00> : vector<16x512xf32>
    %25 = tpu.matmul %24, %22, %cst_18 {dimension_numbers = #tpu.dot_dimension_numbers<[1], [0], [0], [1], [0, 0, 1, 1], [], []>} : vector<16x16xf32>, vector<16x512xf32>, vector<16x512xf32> -> vector<16x512xf32>
    %26 = arith.addf %17, %25 : vector<16x512xf32>
    %27 = vector.extract_strided_slice %0 {offsets = [0, 127], sizes = [16, 512], strides = [1, 1]} : vector<16x768xf32> to vector<16x512xf32>
    %c3 = arith.constant 3 : index
    %c0_19 = arith.constant 0 : index
    %c0_20 = arith.constant 0 : index
    %28 = vector.load %arg1[%c3, %c0_19, %c0_20] : memref<9x1x512xf32, #tpu.memory_space<vmem>>, vector<1x1x512xf32>
    %29 = vector.shape_cast %28 : vector<1x1x512xf32> to vector<1x512xf32>
    %30 = vector.broadcast %29 : vector<1x512xf32> to vector<16x512xf32>
    %31 = arith.mulf %27, %30 : vector<16x512xf32>
    %c3_21 = arith.constant 3 : index
    %c0_22 = arith.constant 0 : index
    %c0_23 = arith.constant 0 : index
    %32 = vector.load %arg2[%c3_21, %c0_22, %c0_23] : memref<9x16x16xf32, #tpu.memory_space<vmem>>, vector<1x16x16xf32>
    %33 = vector.shape_cast %32 : vector<1x16x16xf32> to vector<16x16xf32>
    %cst_24 = arith.constant dense<0.000000e+00> : vector<16x512xf32>
    %34 = tpu.matmul %33, %31, %cst_24 {dimension_numbers = #tpu.dot_dimension_numbers<[1], [0], [0], [1], [0, 0, 1, 1], [], []>} : vector<16x16xf32>, vector<16x512xf32>, vector<16x512xf32> -> vector<16x512xf32>
    %35 = arith.addf %26, %34 : vector<16x512xf32>
    %36 = vector.extract_strided_slice %0 {offsets = [0, 128], sizes = [16, 512], strides = [1, 1]} : vector<16x768xf32> to vector<16x512xf32>
    %c4 = arith.constant 4 : index
    %c0_25 = arith.constant 0 : index
    %c0_26 = arith.constant 0 : index
    %37 = vector.load %arg1[%c4, %c0_25, %c0_26] : memref<9x1x512xf32, #tpu.memory_space<vmem>>, vector<1x1x512xf32>
    %38 = vector.shape_cast %37 : vector<1x1x512xf32> to vector<1x512xf32>
    %39 = vector.broadcast %38 : vector<1x512xf32> to vector<16x512xf32>
    %40 = arith.mulf %36, %39 : vector<16x512xf32>
    %c4_27 = arith.constant 4 : index
    %c0_28 = arith.constant 0 : index
    %c0_29 = arith.constant 0 : index
    %41 = vector.load %arg2[%c4_27, %c0_28, %c0_29] : memref<9x16x16xf32, #tpu.memory_space<vmem>>, vector<1x16x16xf32>
    %42 = vector.shape_cast %41 : vector<1x16x16xf32> to vector<16x16xf32>
    %cst_30 = arith.constant dense<0.000000e+00> : vector<16x512xf32>
    %43 = tpu.matmul %42, %40, %cst_30 {dimension_numbers = #tpu.dot_dimension_numbers<[1], [0], [0], [1], [0, 0, 1, 1], [], []>} : vector<16x16xf32>, vector<16x512xf32>, vector<16x512xf32> -> vector<16x512xf32>
    %44 = arith.addf %35, %43 : vector<16x512xf32>
    %45 = vector.extract_strided_slice %0 {offsets = [0, 129], sizes = [16, 512], strides = [1, 1]} : vector<16x768xf32> to vector<16x512xf32>
    %c5 = arith.constant 5 : index
    %c0_31 = arith.constant 0 : index
    %c0_32 = arith.constant 0 : index
    %46 = vector.load %arg1[%c5, %c0_31, %c0_32] : memref<9x1x512xf32, #tpu.memory_space<vmem>>, vector<1x1x512xf32>
    %47 = vector.shape_cast %46 : vector<1x1x512xf32> to vector<1x512xf32>
    %48 = vector.broadcast %47 : vector<1x512xf32> to vector<16x512xf32>
    %49 = arith.mulf %45, %48 : vector<16x512xf32>
    %c5_33 = arith.constant 5 : index
    %c0_34 = arith.constant 0 : index
    %c0_35 = arith.constant 0 : index
    %50 = vector.load %arg2[%c5_33, %c0_34, %c0_35] : memref<9x16x16xf32, #tpu.memory_space<vmem>>, vector<1x16x16xf32>
    %51 = vector.shape_cast %50 : vector<1x16x16xf32> to vector<16x16xf32>
    %cst_36 = arith.constant dense<0.000000e+00> : vector<16x512xf32>
    %52 = tpu.matmul %51, %49, %cst_36 {dimension_numbers = #tpu.dot_dimension_numbers<[1], [0], [0], [1], [0, 0, 1, 1], [], []>} : vector<16x16xf32>, vector<16x512xf32>, vector<16x512xf32> -> vector<16x512xf32>
    %53 = arith.addf %44, %52 : vector<16x512xf32>
    %54 = vector.extract_strided_slice %0 {offsets = [0, 143], sizes = [16, 512], strides = [1, 1]} : vector<16x768xf32> to vector<16x512xf32>
    %c6 = arith.constant 6 : index
    %c0_37 = arith.constant 0 : index
    %c0_38 = arith.constant 0 : index
    %55 = vector.load %arg1[%c6, %c0_37, %c0_38] : memref<9x1x512xf32, #tpu.memory_space<vmem>>, vector<1x1x512xf32>
    %56 = vector.shape_cast %55 : vector<1x1x512xf32> to vector<1x512xf32>
    %57 = vector.broadcast %56 : vector<1x512xf32> to vector<16x512xf32>
    %58 = arith.mulf %54, %57 : vector<16x512xf32>
    %c6_39 = arith.constant 6 : index
    %c0_40 = arith.constant 0 : index
    %c0_41 = arith.constant 0 : index
    %59 = vector.load %arg2[%c6_39, %c0_40, %c0_41] : memref<9x16x16xf32, #tpu.memory_space<vmem>>, vector<1x16x16xf32>
    %60 = vector.shape_cast %59 : vector<1x16x16xf32> to vector<16x16xf32>
    %cst_42 = arith.constant dense<0.000000e+00> : vector<16x512xf32>
    %61 = tpu.matmul %60, %58, %cst_42 {dimension_numbers = #tpu.dot_dimension_numbers<[1], [0], [0], [1], [0, 0, 1, 1], [], []>} : vector<16x16xf32>, vector<16x512xf32>, vector<16x512xf32> -> vector<16x512xf32>
    %62 = arith.addf %53, %61 : vector<16x512xf32>
    %63 = vector.extract_strided_slice %0 {offsets = [0, 144], sizes = [16, 512], strides = [1, 1]} : vector<16x768xf32> to vector<16x512xf32>
    %c7 = arith.constant 7 : index
    %c0_43 = arith.constant 0 : index
    %c0_44 = arith.constant 0 : index
    %64 = vector.load %arg1[%c7, %c0_43, %c0_44] : memref<9x1x512xf32, #tpu.memory_space<vmem>>, vector<1x1x512xf32>
    %65 = vector.shape_cast %64 : vector<1x1x512xf32> to vector<1x512xf32>
    %66 = vector.broadcast %65 : vector<1x512xf32> to vector<16x512xf32>
    %67 = arith.mulf %63, %66 : vector<16x512xf32>
    %c7_45 = arith.constant 7 : index
    %c0_46 = arith.constant 0 : index
    %c0_47 = arith.constant 0 : index
    %68 = vector.load %arg2[%c7_45, %c0_46, %c0_47] : memref<9x16x16xf32, #tpu.memory_space<vmem>>, vector<1x16x16xf32>
    %69 = vector.shape_cast %68 : vector<1x16x16xf32> to vector<16x16xf32>
    %cst_48 = arith.constant dense<0.000000e+00> : vector<16x512xf32>
    %70 = tpu.matmul %69, %67, %cst_48 {dimension_numbers = #tpu.dot_dimension_numbers<[1], [0], [0], [1], [0, 0, 1, 1], [], []>} : vector<16x16xf32>, vector<16x512xf32>, vector<16x512xf32> -> vector<16x512xf32>
    %71 = arith.addf %62, %70 : vector<16x512xf32>
    %72 = vector.extract_strided_slice %0 {offsets = [0, 145], sizes = [16, 512], strides = [1, 1]} : vector<16x768xf32> to vector<16x512xf32>
    %c8 = arith.constant 8 : index
    %c0_49 = arith.constant 0 : index
    %c0_50 = arith.constant 0 : index
    %73 = vector.load %arg1[%c8, %c0_49, %c0_50] : memref<9x1x512xf32, #tpu.memory_space<vmem>>, vector<1x1x512xf32>
    %74 = vector.shape_cast %73 : vector<1x1x512xf32> to vector<1x512xf32>
    %75 = vector.broadcast %74 : vector<1x512xf32> to vector<16x512xf32>
    %76 = arith.mulf %72, %75 : vector<16x512xf32>
    %c8_51 = arith.constant 8 : index
    %c0_52 = arith.constant 0 : index
    %c0_53 = arith.constant 0 : index
    %77 = vector.load %arg2[%c8_51, %c0_52, %c0_53] : memref<9x16x16xf32, #tpu.memory_space<vmem>>, vector<1x16x16xf32>
    %78 = vector.shape_cast %77 : vector<1x16x16xf32> to vector<16x16xf32>
    %cst_54 = arith.constant dense<0.000000e+00> : vector<16x512xf32>
    %79 = tpu.matmul %78, %76, %cst_54 {dimension_numbers = #tpu.dot_dimension_numbers<[1], [0], [0], [1], [0, 0, 1, 1], [], []>} : vector<16x16xf32>, vector<16x512xf32>, vector<16x512xf32> -> vector<16x512xf32>
    %80 = arith.addf %71, %79 : vector<16x512xf32>
    %c0_55 = arith.constant 0 : index
    %c0_56 = arith.constant 0 : index
    %81 = vector.load %arg3[%c0_55, %c0_56] : memref<16x1xf32, #tpu.memory_space<vmem>>, vector<16x1xf32>
    %82 = vector.broadcast %81 : vector<16x1xf32> to vector<16x512xf32>
    %83 = arith.addf %80, %82 : vector<16x512xf32>
    %84 = vector.extract_strided_slice %0 {offsets = [0, 128], sizes = [16, 512], strides = [1, 1]} : vector<16x768xf32> to vector<16x512xf32>
    %85 = vector.extract_strided_slice %83 {offsets = [0, 0], sizes = [16, 256], strides = [1, 1]} : vector<16x512xf32> to vector<16x256xf32>
    %cst_57 = arith.constant dense<0.000000e+00> : vector<16xf32>
    %86 = vector.multi_reduction <add>, %85, %cst_57 [1] : vector<16x256xf32> to vector<16xf32>
    %87 = vector.shape_cast %86 : vector<16xf32> to vector<16x1xf32>
    %cst_58 = arith.constant 2.560000e+02 : f32
    %88 = vector.broadcast %cst_58 : f32 to vector<16x1xf32>
    %89 = arith.divf %87, %88 : vector<16x1xf32>
    %c0_59 = arith.constant 0 : index
    %c0_60 = arith.constant 0 : index
    %90 = vector.load %arg4[%c0_59, %c0_60] : memref<4x16xf32, #tpu.memory_space<vmem>>, vector<4x16xf32>
    %cst_61 = arith.constant dense<0.000000e+00> : vector<4x1xf32>
    %91 = tpu.matmul %90, %89, %cst_61 {dimension_numbers = #tpu.dot_dimension_numbers<[1], [0], [0], [1], [0, 0, 1, 1], [], []>} : vector<4x16xf32>, vector<16x1xf32>, vector<4x1xf32> -> vector<4x1xf32>
    %c0_62 = arith.constant 0 : index
    %c0_63 = arith.constant 0 : index
    %92 = vector.load %arg5[%c0_62, %c0_63] : memref<4x1xf32, #tpu.memory_space<vmem>>, vector<4x1xf32>
    %93 = arith.addf %91, %92 : vector<4x1xf32>
    %cst_64 = arith.constant 0.000000e+00 : f32
    %94 = vector.broadcast %cst_64 : f32 to vector<4x1xf32>
    %95 = arith.maximumf %93, %94 : vector<4x1xf32>
    %c0_65 = arith.constant 0 : index
    %c0_66 = arith.constant 0 : index
    %96 = vector.load %arg6[%c0_65, %c0_66] : memref<16x4xf32, #tpu.memory_space<vmem>>, vector<16x4xf32>
    %cst_67 = arith.constant dense<0.000000e+00> : vector<16x1xf32>
    %97 = tpu.matmul %96, %95, %cst_67 {dimension_numbers = #tpu.dot_dimension_numbers<[1], [0], [0], [1], [0, 0, 1, 1], [], []>} : vector<16x4xf32>, vector<4x1xf32>, vector<16x1xf32> -> vector<16x1xf32>
    %c0_68 = arith.constant 0 : index
    %c0_69 = arith.constant 0 : index
    %98 = vector.load %arg7[%c0_68, %c0_69] : memref<16x1xf32, #tpu.memory_space<vmem>>, vector<16x1xf32>
    %99 = arith.addf %97, %98 : vector<16x1xf32>
    %100 = arith.negf %99 : vector<16x1xf32>
    %101 = math.exp %100 : vector<16x1xf32>
    %cst_70 = arith.constant 1.000000e+00 : f32
    %102 = vector.broadcast %cst_70 : f32 to vector<16x1xf32>
    %103 = arith.addf %102, %101 : vector<16x1xf32>
    %104 = arith.divf %102, %103 : vector<16x1xf32>
    %105 = vector.extract_strided_slice %84 {offsets = [0, 0], sizes = [16, 256], strides = [1, 1]} : vector<16x512xf32> to vector<16x256xf32>
    %106 = vector.broadcast %104 : vector<16x1xf32> to vector<16x256xf32>
    %107 = arith.mulf %85, %106 : vector<16x256xf32>
    %108 = arith.addf %105, %107 : vector<16x256xf32>
    %c0_71 = arith.constant 0 : index
    %c0_72 = arith.constant 0 : index
    %109 = vector.load %arg8[%c0_71, %c0_72] : memref<16x512xf32, #tpu.memory_space<vmem>>, vector<16x256xf32>
    tpu.vector_store %arg8[%c0_71, %c0_72], %108 {strides = array<i32>} : memref<16x512xf32, #tpu.memory_space<vmem>>, vector<16x256xf32>,
    %110 = vector.extract_strided_slice %83 {offsets = [0, 256], sizes = [16, 256], strides = [1, 1]} : vector<16x512xf32> to vector<16x256xf32>
    %cst_73 = arith.constant dense<0.000000e+00> : vector<16xf32>
    %111 = vector.multi_reduction <add>, %110, %cst_73 [1] : vector<16x256xf32> to vector<16xf32>
    %112 = vector.shape_cast %111 : vector<16xf32> to vector<16x1xf32>
    %cst_74 = arith.constant 2.560000e+02 : f32
    %113 = vector.broadcast %cst_74 : f32 to vector<16x1xf32>
    %114 = arith.divf %112, %113 : vector<16x1xf32>
    %c0_75 = arith.constant 0 : index
    %c0_76 = arith.constant 0 : index
    %115 = vector.load %arg4[%c0_75, %c0_76] : memref<4x16xf32, #tpu.memory_space<vmem>>, vector<4x16xf32>
    %cst_77 = arith.constant dense<0.000000e+00> : vector<4x1xf32>
    %116 = tpu.matmul %115, %114, %cst_77 {dimension_numbers = #tpu.dot_dimension_numbers<[1], [0], [0], [1], [0, 0, 1, 1], [], []>} : vector<4x16xf32>, vector<16x1xf32>, vector<4x1xf32> -> vector<4x1xf32>
    %c0_78 = arith.constant 0 : index
    %c0_79 = arith.constant 0 : index
    %117 = vector.load %arg5[%c0_78, %c0_79] : memref<4x1xf32, #tpu.memory_space<vmem>>, vector<4x1xf32>
    %118 = arith.addf %116, %117 : vector<4x1xf32>
    %cst_80 = arith.constant 0.000000e+00 : f32
    %119 = vector.broadcast %cst_80 : f32 to vector<4x1xf32>
    %120 = arith.maximumf %118, %119 : vector<4x1xf32>
    %c0_81 = arith.constant 0 : index
    %c0_82 = arith.constant 0 : index
    %121 = vector.load %arg6[%c0_81, %c0_82] : memref<16x4xf32, #tpu.memory_space<vmem>>, vector<16x4xf32>
    %cst_83 = arith.constant dense<0.000000e+00> : vector<16x1xf32>
    %122 = tpu.matmul %121, %120, %cst_83 {dimension_numbers = #tpu.dot_dimension_numbers<[1], [0], [0], [1], [0, 0, 1, 1], [], []>} : vector<16x4xf32>, vector<4x1xf32>, vector<16x1xf32> -> vector<16x1xf32>
    %c0_84 = arith.constant 0 : index
    %c0_85 = arith.constant 0 : index
    %123 = vector.load %arg7[%c0_84, %c0_85] : memref<16x1xf32, #tpu.memory_space<vmem>>, vector<16x1xf32>
    %124 = arith.addf %122, %123 : vector<16x1xf32>
    %125 = arith.negf %124 : vector<16x1xf32>
    %126 = math.exp %125 : vector<16x1xf32>
    %cst_86 = arith.constant 1.000000e+00 : f32
    %127 = vector.broadcast %cst_86 : f32 to vector<16x1xf32>
    %128 = arith.addf %127, %126 : vector<16x1xf32>
    %129 = arith.divf %127, %128 : vector<16x1xf32>
    %130 = vector.extract_strided_slice %84 {offsets = [0, 256], sizes = [16, 256], strides = [1, 1]} : vector<16x512xf32> to vector<16x256xf32>
    %131 = vector.broadcast %129 : vector<16x1xf32> to vector<16x256xf32>
    %132 = arith.mulf %110, %131 : vector<16x256xf32>
    %133 = arith.addf %130, %132 : vector<16x256xf32>
    %c0_87 = arith.constant 0 : index
    %c256 = arith.constant 256 : index
    %134 = vector.load %arg8[%c0_87, %c256] : memref<16x512xf32, #tpu.memory_space<vmem>>, vector<16x256xf32>
    tpu.vector_store %arg8[%c0_87, %c256], %133 {strides = array<i32>} : memref<16x512xf32, #tpu.memory_space<vmem>>, vector<16x256xf32>,
    return
  }
}

module attributes {stable_mosaic.version = 11 : i64} {
  func.func @_freq_kernel(%arg0: memref<16x640xf32, #tpu.memory_space<vmem>>, %arg1: memref<16x640xf32, #tpu.memory_space<vmem>>, %arg2: memref<9x1x384xf32, #tpu.memory_space<vmem>>, %arg3: memref<9x16x16xf32, #tpu.memory_space<vmem>>, %arg4: memref<16x1xf32, #tpu.memory_space<vmem>>, %arg5: memref<9x16x16xf32, #tpu.memory_space<vmem>>, %arg6: memref<16x1xf32, #tpu.memory_space<vmem>>, %arg7: memref<9x16x16xf32, #tpu.memory_space<vmem>>, %arg8: memref<16x1xf32, #tpu.memory_space<vmem>>, %arg9: memref<9x16x16xf32, #tpu.memory_space<vmem>>, %arg10: memref<16x1xf32, #tpu.memory_space<vmem>>, %arg11: memref<16x384xf32, #tpu.memory_space<vmem>>, %arg12: memref<16x384xf32, #tpu.memory_space<vmem>>) attributes {dimension_semantics = [], scalar_prefetch = 0 : i64, scratch_operands = 0 : i64, tpu.core_type = #tpu.core_type<tc>} {
    %c0 = arith.constant 0 : index
    %c0_0 = arith.constant 0 : index
    %0 = vector.load %arg0[%c0, %c0_0] : memref<16x640xf32, #tpu.memory_space<vmem>>, vector<16x640xf32>
    %1 = vector.extract_strided_slice %0 {offsets = [0, 118], sizes = [16, 384], strides = [1, 1]} : vector<16x640xf32> to vector<16x384xf32>
    %c0_1 = arith.constant 0 : index
    %c0_2 = arith.constant 0 : index
    %c0_3 = arith.constant 0 : index
    %2 = vector.load %arg2[%c0_1, %c0_2, %c0_3] : memref<9x1x384xf32, #tpu.memory_space<vmem>>, vector<1x1x384xf32>
    %3 = vector.shape_cast %2 : vector<1x1x384xf32> to vector<1x384xf32>
    %4 = vector.broadcast %3 : vector<1x384xf32> to vector<16x384xf32>
    %5 = arith.mulf %1, %4 : vector<16x384xf32>
    %c0_4 = arith.constant 0 : index
    %c0_5 = arith.constant 0 : index
    %c0_6 = arith.constant 0 : index
    %6 = vector.load %arg3[%c0_4, %c0_5, %c0_6] : memref<9x16x16xf32, #tpu.memory_space<vmem>>, vector<1x16x16xf32>
    %7 = vector.shape_cast %6 : vector<1x16x16xf32> to vector<16x16xf32>
    %cst = arith.constant dense<0.000000e+00> : vector<16x384xf32>
    %8 = tpu.matmul %7, %5, %cst {dimension_numbers = #tpu.dot_dimension_numbers<[1], [0], [0], [1], [0, 0, 1, 1], [], []>} : vector<16x16xf32>, vector<16x384xf32>, vector<16x384xf32> -> vector<16x384xf32>
    %9 = vector.extract_strided_slice %0 {offsets = [0, 119], sizes = [16, 384], strides = [1, 1]} : vector<16x640xf32> to vector<16x384xf32>
    %c1 = arith.constant 1 : index
    %c0_7 = arith.constant 0 : index
    %c0_8 = arith.constant 0 : index
    %10 = vector.load %arg2[%c1, %c0_7, %c0_8] : memref<9x1x384xf32, #tpu.memory_space<vmem>>, vector<1x1x384xf32>
    %11 = vector.shape_cast %10 : vector<1x1x384xf32> to vector<1x384xf32>
    %12 = vector.broadcast %11 : vector<1x384xf32> to vector<16x384xf32>
    %13 = arith.mulf %9, %12 : vector<16x384xf32>
    %c1_9 = arith.constant 1 : index
    %c0_10 = arith.constant 0 : index
    %c0_11 = arith.constant 0 : index
    %14 = vector.load %arg3[%c1_9, %c0_10, %c0_11] : memref<9x16x16xf32, #tpu.memory_space<vmem>>, vector<1x16x16xf32>
    %15 = vector.shape_cast %14 : vector<1x16x16xf32> to vector<16x16xf32>
    %cst_12 = arith.constant dense<0.000000e+00> : vector<16x384xf32>
    %16 = tpu.matmul %15, %13, %cst_12 {dimension_numbers = #tpu.dot_dimension_numbers<[1], [0], [0], [1], [0, 0, 1, 1], [], []>} : vector<16x16xf32>, vector<16x384xf32>, vector<16x384xf32> -> vector<16x384xf32>
    %17 = arith.addf %8, %16 : vector<16x384xf32>
    %18 = vector.extract_strided_slice %0 {offsets = [0, 120], sizes = [16, 384], strides = [1, 1]} : vector<16x640xf32> to vector<16x384xf32>
    %c2 = arith.constant 2 : index
    %c0_13 = arith.constant 0 : index
    %c0_14 = arith.constant 0 : index
    %19 = vector.load %arg2[%c2, %c0_13, %c0_14] : memref<9x1x384xf32, #tpu.memory_space<vmem>>, vector<1x1x384xf32>
    %20 = vector.shape_cast %19 : vector<1x1x384xf32> to vector<1x384xf32>
    %21 = vector.broadcast %20 : vector<1x384xf32> to vector<16x384xf32>
    %22 = arith.mulf %18, %21 : vector<16x384xf32>
    %c2_15 = arith.constant 2 : index
    %c0_16 = arith.constant 0 : index
    %c0_17 = arith.constant 0 : index
    %23 = vector.load %arg3[%c2_15, %c0_16, %c0_17] : memref<9x16x16xf32, #tpu.memory_space<vmem>>, vector<1x16x16xf32>
    %24 = vector.shape_cast %23 : vector<1x16x16xf32> to vector<16x16xf32>
    %cst_18 = arith.constant dense<0.000000e+00> : vector<16x384xf32>
    %25 = tpu.matmul %24, %22, %cst_18 {dimension_numbers = #tpu.dot_dimension_numbers<[1], [0], [0], [1], [0, 0, 1, 1], [], []>} : vector<16x16xf32>, vector<16x384xf32>, vector<16x384xf32> -> vector<16x384xf32>
    %26 = arith.addf %17, %25 : vector<16x384xf32>
    %27 = vector.extract_strided_slice %0 {offsets = [0, 127], sizes = [16, 384], strides = [1, 1]} : vector<16x640xf32> to vector<16x384xf32>
    %c3 = arith.constant 3 : index
    %c0_19 = arith.constant 0 : index
    %c0_20 = arith.constant 0 : index
    %28 = vector.load %arg2[%c3, %c0_19, %c0_20] : memref<9x1x384xf32, #tpu.memory_space<vmem>>, vector<1x1x384xf32>
    %29 = vector.shape_cast %28 : vector<1x1x384xf32> to vector<1x384xf32>
    %30 = vector.broadcast %29 : vector<1x384xf32> to vector<16x384xf32>
    %31 = arith.mulf %27, %30 : vector<16x384xf32>
    %c3_21 = arith.constant 3 : index
    %c0_22 = arith.constant 0 : index
    %c0_23 = arith.constant 0 : index
    %32 = vector.load %arg3[%c3_21, %c0_22, %c0_23] : memref<9x16x16xf32, #tpu.memory_space<vmem>>, vector<1x16x16xf32>
    %33 = vector.shape_cast %32 : vector<1x16x16xf32> to vector<16x16xf32>
    %cst_24 = arith.constant dense<0.000000e+00> : vector<16x384xf32>
    %34 = tpu.matmul %33, %31, %cst_24 {dimension_numbers = #tpu.dot_dimension_numbers<[1], [0], [0], [1], [0, 0, 1, 1], [], []>} : vector<16x16xf32>, vector<16x384xf32>, vector<16x384xf32> -> vector<16x384xf32>
    %35 = arith.addf %26, %34 : vector<16x384xf32>
    %36 = vector.extract_strided_slice %0 {offsets = [0, 128], sizes = [16, 384], strides = [1, 1]} : vector<16x640xf32> to vector<16x384xf32>
    %c4 = arith.constant 4 : index
    %c0_25 = arith.constant 0 : index
    %c0_26 = arith.constant 0 : index
    %37 = vector.load %arg2[%c4, %c0_25, %c0_26] : memref<9x1x384xf32, #tpu.memory_space<vmem>>, vector<1x1x384xf32>
    %38 = vector.shape_cast %37 : vector<1x1x384xf32> to vector<1x384xf32>
    %39 = vector.broadcast %38 : vector<1x384xf32> to vector<16x384xf32>
    %40 = arith.mulf %36, %39 : vector<16x384xf32>
    %c4_27 = arith.constant 4 : index
    %c0_28 = arith.constant 0 : index
    %c0_29 = arith.constant 0 : index
    %41 = vector.load %arg3[%c4_27, %c0_28, %c0_29] : memref<9x16x16xf32, #tpu.memory_space<vmem>>, vector<1x16x16xf32>
    %42 = vector.shape_cast %41 : vector<1x16x16xf32> to vector<16x16xf32>
    %cst_30 = arith.constant dense<0.000000e+00> : vector<16x384xf32>
    %43 = tpu.matmul %42, %40, %cst_30 {dimension_numbers = #tpu.dot_dimension_numbers<[1], [0], [0], [1], [0, 0, 1, 1], [], []>} : vector<16x16xf32>, vector<16x384xf32>, vector<16x384xf32> -> vector<16x384xf32>
    %44 = arith.addf %35, %43 : vector<16x384xf32>
    %45 = vector.extract_strided_slice %0 {offsets = [0, 129], sizes = [16, 384], strides = [1, 1]} : vector<16x640xf32> to vector<16x384xf32>
    %c5 = arith.constant 5 : index
    %c0_31 = arith.constant 0 : index
    %c0_32 = arith.constant 0 : index
    %46 = vector.load %arg2[%c5, %c0_31, %c0_32] : memref<9x1x384xf32, #tpu.memory_space<vmem>>, vector<1x1x384xf32>
    %47 = vector.shape_cast %46 : vector<1x1x384xf32> to vector<1x384xf32>
    %48 = vector.broadcast %47 : vector<1x384xf32> to vector<16x384xf32>
    %49 = arith.mulf %45, %48 : vector<16x384xf32>
    %c5_33 = arith.constant 5 : index
    %c0_34 = arith.constant 0 : index
    %c0_35 = arith.constant 0 : index
    %50 = vector.load %arg3[%c5_33, %c0_34, %c0_35] : memref<9x16x16xf32, #tpu.memory_space<vmem>>, vector<1x16x16xf32>
    %51 = vector.shape_cast %50 : vector<1x16x16xf32> to vector<16x16xf32>
    %cst_36 = arith.constant dense<0.000000e+00> : vector<16x384xf32>
    %52 = tpu.matmul %51, %49, %cst_36 {dimension_numbers = #tpu.dot_dimension_numbers<[1], [0], [0], [1], [0, 0, 1, 1], [], []>} : vector<16x16xf32>, vector<16x384xf32>, vector<16x384xf32> -> vector<16x384xf32>
    %53 = arith.addf %44, %52 : vector<16x384xf32>
    %54 = vector.extract_strided_slice %0 {offsets = [0, 136], sizes = [16, 384], strides = [1, 1]} : vector<16x640xf32> to vector<16x384xf32>
    %c6 = arith.constant 6 : index
    %c0_37 = arith.constant 0 : index
    %c0_38 = arith.constant 0 : index
    %55 = vector.load %arg2[%c6, %c0_37, %c0_38] : memref<9x1x384xf32, #tpu.memory_space<vmem>>, vector<1x1x384xf32>
    %56 = vector.shape_cast %55 : vector<1x1x384xf32> to vector<1x384xf32>
    %57 = vector.broadcast %56 : vector<1x384xf32> to vector<16x384xf32>
    %58 = arith.mulf %54, %57 : vector<16x384xf32>
    %c6_39 = arith.constant 6 : index
    %c0_40 = arith.constant 0 : index
    %c0_41 = arith.constant 0 : index
    %59 = vector.load %arg3[%c6_39, %c0_40, %c0_41] : memref<9x16x16xf32, #tpu.memory_space<vmem>>, vector<1x16x16xf32>
    %60 = vector.shape_cast %59 : vector<1x16x16xf32> to vector<16x16xf32>
    %cst_42 = arith.constant dense<0.000000e+00> : vector<16x384xf32>
    %61 = tpu.matmul %60, %58, %cst_42 {dimension_numbers = #tpu.dot_dimension_numbers<[1], [0], [0], [1], [0, 0, 1, 1], [], []>} : vector<16x16xf32>, vector<16x384xf32>, vector<16x384xf32> -> vector<16x384xf32>
    %62 = arith.addf %53, %61 : vector<16x384xf32>
    %63 = vector.extract_strided_slice %0 {offsets = [0, 137], sizes = [16, 384], strides = [1, 1]} : vector<16x640xf32> to vector<16x384xf32>
    %c7 = arith.constant 7 : index
    %c0_43 = arith.constant 0 : index
    %c0_44 = arith.constant 0 : index
    %64 = vector.load %arg2[%c7, %c0_43, %c0_44] : memref<9x1x384xf32, #tpu.memory_space<vmem>>, vector<1x1x384xf32>
    %65 = vector.shape_cast %64 : vector<1x1x384xf32> to vector<1x384xf32>
    %66 = vector.broadcast %65 : vector<1x384xf32> to vector<16x384xf32>
    %67 = arith.mulf %63, %66 : vector<16x384xf32>
    %c7_45 = arith.constant 7 : index
    %c0_46 = arith.constant 0 : index
    %c0_47 = arith.constant 0 : index
    %68 = vector.load %arg3[%c7_45, %c0_46, %c0_47] : memref<9x16x16xf32, #tpu.memory_space<vmem>>, vector<1x16x16xf32>
    %69 = vector.shape_cast %68 : vector<1x16x16xf32> to vector<16x16xf32>
    %cst_48 = arith.constant dense<0.000000e+00> : vector<16x384xf32>
    %70 = tpu.matmul %69, %67, %cst_48 {dimension_numbers = #tpu.dot_dimension_numbers<[1], [0], [0], [1], [0, 0, 1, 1], [], []>} : vector<16x16xf32>, vector<16x384xf32>, vector<16x384xf32> -> vector<16x384xf32>
    %71 = arith.addf %62, %70 : vector<16x384xf32>
    %72 = vector.extract_strided_slice %0 {offsets = [0, 138], sizes = [16, 384], strides = [1, 1]} : vector<16x640xf32> to vector<16x384xf32>
    %c8 = arith.constant 8 : index
    %c0_49 = arith.constant 0 : index
    %c0_50 = arith.constant 0 : index
    %73 = vector.load %arg2[%c8, %c0_49, %c0_50] : memref<9x1x384xf32, #tpu.memory_space<vmem>>, vector<1x1x384xf32>
    %74 = vector.shape_cast %73 : vector<1x1x384xf32> to vector<1x384xf32>
    %75 = vector.broadcast %74 : vector<1x384xf32> to vector<16x384xf32>
    %76 = arith.mulf %72, %75 : vector<16x384xf32>
    %c8_51 = arith.constant 8 : index
    %c0_52 = arith.constant 0 : index
    %c0_53 = arith.constant 0 : index
    %77 = vector.load %arg3[%c8_51, %c0_52, %c0_53] : memref<9x16x16xf32, #tpu.memory_space<vmem>>, vector<1x16x16xf32>
    %78 = vector.shape_cast %77 : vector<1x16x16xf32> to vector<16x16xf32>
    %cst_54 = arith.constant dense<0.000000e+00> : vector<16x384xf32>
    %79 = tpu.matmul %78, %76, %cst_54 {dimension_numbers = #tpu.dot_dimension_numbers<[1], [0], [0], [1], [0, 0, 1, 1], [], []>} : vector<16x16xf32>, vector<16x384xf32>, vector<16x384xf32> -> vector<16x384xf32>
    %80 = arith.addf %71, %79 : vector<16x384xf32>
    %c0_55 = arith.constant 0 : index
    %c0_56 = arith.constant 0 : index
    %81 = vector.load %arg4[%c0_55, %c0_56] : memref<16x1xf32, #tpu.memory_space<vmem>>, vector<16x1xf32>
    %82 = vector.broadcast %81 : vector<16x1xf32> to vector<16x384xf32>
    %83 = arith.addf %80, %82 : vector<16x384xf32>
    %cst_57 = arith.constant 0.000000e+00 : f32
    %84 = vector.broadcast %cst_57 : f32 to vector<16x384xf32>
    %85 = arith.cmpf oge, %83, %84 : vector<16x384xf32>
    %cst_58 = arith.constant 1.000000e-01 : f32
    %86 = vector.broadcast %cst_58 : f32 to vector<16x384xf32>
    %87 = arith.mulf %86, %83 : vector<16x384xf32>
    %88 = arith.select %85, %83, %87 : vector<16x384xi1>, vector<16x384xf32>
    %cst_59 = arith.constant 0.000000e+00 : f32
    %89 = vector.broadcast %cst_59 : f32 to vector<16x128xf32>
    %90 = tpu.concatenate %89, %88, %89 in 1 : vector<16x128xf32>, vector<16x384xf32>, vector<16x128xf32> -> vector<16x640xf32>
    %91 = vector.extract_strided_slice %90 {offsets = [0, 118], sizes = [16, 384], strides = [1, 1]} : vector<16x640xf32> to vector<16x384xf32>
    %c0_60 = arith.constant 0 : index
    %c0_61 = arith.constant 0 : index
    %c0_62 = arith.constant 0 : index
    %92 = vector.load %arg2[%c0_60, %c0_61, %c0_62] : memref<9x1x384xf32, #tpu.memory_space<vmem>>, vector<1x1x384xf32>
    %93 = vector.shape_cast %92 : vector<1x1x384xf32> to vector<1x384xf32>
    %94 = vector.broadcast %93 : vector<1x384xf32> to vector<16x384xf32>
    %95 = arith.mulf %91, %94 : vector<16x384xf32>
    %c0_63 = arith.constant 0 : index
    %c0_64 = arith.constant 0 : index
    %c0_65 = arith.constant 0 : index
    %96 = vector.load %arg5[%c0_63, %c0_64, %c0_65] : memref<9x16x16xf32, #tpu.memory_space<vmem>>, vector<1x16x16xf32>
    %97 = vector.shape_cast %96 : vector<1x16x16xf32> to vector<16x16xf32>
    %cst_66 = arith.constant dense<0.000000e+00> : vector<16x384xf32>
    %98 = tpu.matmul %97, %95, %cst_66 {dimension_numbers = #tpu.dot_dimension_numbers<[1], [0], [0], [1], [0, 0, 1, 1], [], []>} : vector<16x16xf32>, vector<16x384xf32>, vector<16x384xf32> -> vector<16x384xf32>
    %99 = vector.extract_strided_slice %90 {offsets = [0, 119], sizes = [16, 384], strides = [1, 1]} : vector<16x640xf32> to vector<16x384xf32>
    %c1_67 = arith.constant 1 : index
    %c0_68 = arith.constant 0 : index
    %c0_69 = arith.constant 0 : index
    %100 = vector.load %arg2[%c1_67, %c0_68, %c0_69] : memref<9x1x384xf32, #tpu.memory_space<vmem>>, vector<1x1x384xf32>
    %101 = vector.shape_cast %100 : vector<1x1x384xf32> to vector<1x384xf32>
    %102 = vector.broadcast %101 : vector<1x384xf32> to vector<16x384xf32>
    %103 = arith.mulf %99, %102 : vector<16x384xf32>
    %c1_70 = arith.constant 1 : index
    %c0_71 = arith.constant 0 : index
    %c0_72 = arith.constant 0 : index
    %104 = vector.load %arg5[%c1_70, %c0_71, %c0_72] : memref<9x16x16xf32, #tpu.memory_space<vmem>>, vector<1x16x16xf32>
    %105 = vector.shape_cast %104 : vector<1x16x16xf32> to vector<16x16xf32>
    %cst_73 = arith.constant dense<0.000000e+00> : vector<16x384xf32>
    %106 = tpu.matmul %105, %103, %cst_73 {dimension_numbers = #tpu.dot_dimension_numbers<[1], [0], [0], [1], [0, 0, 1, 1], [], []>} : vector<16x16xf32>, vector<16x384xf32>, vector<16x384xf32> -> vector<16x384xf32>
    %107 = arith.addf %98, %106 : vector<16x384xf32>
    %108 = vector.extract_strided_slice %90 {offsets = [0, 120], sizes = [16, 384], strides = [1, 1]} : vector<16x640xf32> to vector<16x384xf32>
    %c2_74 = arith.constant 2 : index
    %c0_75 = arith.constant 0 : index
    %c0_76 = arith.constant 0 : index
    %109 = vector.load %arg2[%c2_74, %c0_75, %c0_76] : memref<9x1x384xf32, #tpu.memory_space<vmem>>, vector<1x1x384xf32>
    %110 = vector.shape_cast %109 : vector<1x1x384xf32> to vector<1x384xf32>
    %111 = vector.broadcast %110 : vector<1x384xf32> to vector<16x384xf32>
    %112 = arith.mulf %108, %111 : vector<16x384xf32>
    %c2_77 = arith.constant 2 : index
    %c0_78 = arith.constant 0 : index
    %c0_79 = arith.constant 0 : index
    %113 = vector.load %arg5[%c2_77, %c0_78, %c0_79] : memref<9x16x16xf32, #tpu.memory_space<vmem>>, vector<1x16x16xf32>
    %114 = vector.shape_cast %113 : vector<1x16x16xf32> to vector<16x16xf32>
    %cst_80 = arith.constant dense<0.000000e+00> : vector<16x384xf32>
    %115 = tpu.matmul %114, %112, %cst_80 {dimension_numbers = #tpu.dot_dimension_numbers<[1], [0], [0], [1], [0, 0, 1, 1], [], []>} : vector<16x16xf32>, vector<16x384xf32>, vector<16x384xf32> -> vector<16x384xf32>
    %116 = arith.addf %107, %115 : vector<16x384xf32>
    %117 = vector.extract_strided_slice %90 {offsets = [0, 127], sizes = [16, 384], strides = [1, 1]} : vector<16x640xf32> to vector<16x384xf32>
    %c3_81 = arith.constant 3 : index
    %c0_82 = arith.constant 0 : index
    %c0_83 = arith.constant 0 : index
    %118 = vector.load %arg2[%c3_81, %c0_82, %c0_83] : memref<9x1x384xf32, #tpu.memory_space<vmem>>, vector<1x1x384xf32>
    %119 = vector.shape_cast %118 : vector<1x1x384xf32> to vector<1x384xf32>
    %120 = vector.broadcast %119 : vector<1x384xf32> to vector<16x384xf32>
    %121 = arith.mulf %117, %120 : vector<16x384xf32>
    %c3_84 = arith.constant 3 : index
    %c0_85 = arith.constant 0 : index
    %c0_86 = arith.constant 0 : index
    %122 = vector.load %arg5[%c3_84, %c0_85, %c0_86] : memref<9x16x16xf32, #tpu.memory_space<vmem>>, vector<1x16x16xf32>
    %123 = vector.shape_cast %122 : vector<1x16x16xf32> to vector<16x16xf32>
    %cst_87 = arith.constant dense<0.000000e+00> : vector<16x384xf32>
    %124 = tpu.matmul %123, %121, %cst_87 {dimension_numbers = #tpu.dot_dimension_numbers<[1], [0], [0], [1], [0, 0, 1, 1], [], []>} : vector<16x16xf32>, vector<16x384xf32>, vector<16x384xf32> -> vector<16x384xf32>
    %125 = arith.addf %116, %124 : vector<16x384xf32>
    %126 = vector.extract_strided_slice %90 {offsets = [0, 128], sizes = [16, 384], strides = [1, 1]} : vector<16x640xf32> to vector<16x384xf32>
    %c4_88 = arith.constant 4 : index
    %c0_89 = arith.constant 0 : index
    %c0_90 = arith.constant 0 : index
    %127 = vector.load %arg2[%c4_88, %c0_89, %c0_90] : memref<9x1x384xf32, #tpu.memory_space<vmem>>, vector<1x1x384xf32>
    %128 = vector.shape_cast %127 : vector<1x1x384xf32> to vector<1x384xf32>
    %129 = vector.broadcast %128 : vector<1x384xf32> to vector<16x384xf32>
    %130 = arith.mulf %126, %129 : vector<16x384xf32>
    %c4_91 = arith.constant 4 : index
    %c0_92 = arith.constant 0 : index
    %c0_93 = arith.constant 0 : index
    %131 = vector.load %arg5[%c4_91, %c0_92, %c0_93] : memref<9x16x16xf32, #tpu.memory_space<vmem>>, vector<1x16x16xf32>
    %132 = vector.shape_cast %131 : vector<1x16x16xf32> to vector<16x16xf32>
    %cst_94 = arith.constant dense<0.000000e+00> : vector<16x384xf32>
    %133 = tpu.matmul %132, %130, %cst_94 {dimension_numbers = #tpu.dot_dimension_numbers<[1], [0], [0], [1], [0, 0, 1, 1], [], []>} : vector<16x16xf32>, vector<16x384xf32>, vector<16x384xf32> -> vector<16x384xf32>
    %134 = arith.addf %125, %133 : vector<16x384xf32>
    %135 = vector.extract_strided_slice %90 {offsets = [0, 129], sizes = [16, 384], strides = [1, 1]} : vector<16x640xf32> to vector<16x384xf32>
    %c5_95 = arith.constant 5 : index
    %c0_96 = arith.constant 0 : index
    %c0_97 = arith.constant 0 : index
    %136 = vector.load %arg2[%c5_95, %c0_96, %c0_97] : memref<9x1x384xf32, #tpu.memory_space<vmem>>, vector<1x1x384xf32>
    %137 = vector.shape_cast %136 : vector<1x1x384xf32> to vector<1x384xf32>
    %138 = vector.broadcast %137 : vector<1x384xf32> to vector<16x384xf32>
    %139 = arith.mulf %135, %138 : vector<16x384xf32>
    %c5_98 = arith.constant 5 : index
    %c0_99 = arith.constant 0 : index
    %c0_100 = arith.constant 0 : index
    %140 = vector.load %arg5[%c5_98, %c0_99, %c0_100] : memref<9x16x16xf32, #tpu.memory_space<vmem>>, vector<1x16x16xf32>
    %141 = vector.shape_cast %140 : vector<1x16x16xf32> to vector<16x16xf32>
    %cst_101 = arith.constant dense<0.000000e+00> : vector<16x384xf32>
    %142 = tpu.matmul %141, %139, %cst_101 {dimension_numbers = #tpu.dot_dimension_numbers<[1], [0], [0], [1], [0, 0, 1, 1], [], []>} : vector<16x16xf32>, vector<16x384xf32>, vector<16x384xf32> -> vector<16x384xf32>
    %143 = arith.addf %134, %142 : vector<16x384xf32>
    %144 = vector.extract_strided_slice %90 {offsets = [0, 136], sizes = [16, 384], strides = [1, 1]} : vector<16x640xf32> to vector<16x384xf32>
    %c6_102 = arith.constant 6 : index
    %c0_103 = arith.constant 0 : index
    %c0_104 = arith.constant 0 : index
    %145 = vector.load %arg2[%c6_102, %c0_103, %c0_104] : memref<9x1x384xf32, #tpu.memory_space<vmem>>, vector<1x1x384xf32>
    %146 = vector.shape_cast %145 : vector<1x1x384xf32> to vector<1x384xf32>
    %147 = vector.broadcast %146 : vector<1x384xf32> to vector<16x384xf32>
    %148 = arith.mulf %144, %147 : vector<16x384xf32>
    %c6_105 = arith.constant 6 : index
    %c0_106 = arith.constant 0 : index
    %c0_107 = arith.constant 0 : index
    %149 = vector.load %arg5[%c6_105, %c0_106, %c0_107] : memref<9x16x16xf32, #tpu.memory_space<vmem>>, vector<1x16x16xf32>
    %150 = vector.shape_cast %149 : vector<1x16x16xf32> to vector<16x16xf32>
    %cst_108 = arith.constant dense<0.000000e+00> : vector<16x384xf32>
    %151 = tpu.matmul %150, %148, %cst_108 {dimension_numbers = #tpu.dot_dimension_numbers<[1], [0], [0], [1], [0, 0, 1, 1], [], []>} : vector<16x16xf32>, vector<16x384xf32>, vector<16x384xf32> -> vector<16x384xf32>
    %152 = arith.addf %143, %151 : vector<16x384xf32>
    %153 = vector.extract_strided_slice %90 {offsets = [0, 137], sizes = [16, 384], strides = [1, 1]} : vector<16x640xf32> to vector<16x384xf32>
    %c7_109 = arith.constant 7 : index
    %c0_110 = arith.constant 0 : index
    %c0_111 = arith.constant 0 : index
    %154 = vector.load %arg2[%c7_109, %c0_110, %c0_111] : memref<9x1x384xf32, #tpu.memory_space<vmem>>, vector<1x1x384xf32>
    %155 = vector.shape_cast %154 : vector<1x1x384xf32> to vector<1x384xf32>
    %156 = vector.broadcast %155 : vector<1x384xf32> to vector<16x384xf32>
    %157 = arith.mulf %153, %156 : vector<16x384xf32>
    %c7_112 = arith.constant 7 : index
    %c0_113 = arith.constant 0 : index
    %c0_114 = arith.constant 0 : index
    %158 = vector.load %arg5[%c7_112, %c0_113, %c0_114] : memref<9x16x16xf32, #tpu.memory_space<vmem>>, vector<1x16x16xf32>
    %159 = vector.shape_cast %158 : vector<1x16x16xf32> to vector<16x16xf32>
    %cst_115 = arith.constant dense<0.000000e+00> : vector<16x384xf32>
    %160 = tpu.matmul %159, %157, %cst_115 {dimension_numbers = #tpu.dot_dimension_numbers<[1], [0], [0], [1], [0, 0, 1, 1], [], []>} : vector<16x16xf32>, vector<16x384xf32>, vector<16x384xf32> -> vector<16x384xf32>
    %161 = arith.addf %152, %160 : vector<16x384xf32>
    %162 = vector.extract_strided_slice %90 {offsets = [0, 138], sizes = [16, 384], strides = [1, 1]} : vector<16x640xf32> to vector<16x384xf32>
    %c8_116 = arith.constant 8 : index
    %c0_117 = arith.constant 0 : index
    %c0_118 = arith.constant 0 : index
    %163 = vector.load %arg2[%c8_116, %c0_117, %c0_118] : memref<9x1x384xf32, #tpu.memory_space<vmem>>, vector<1x1x384xf32>
    %164 = vector.shape_cast %163 : vector<1x1x384xf32> to vector<1x384xf32>
    %165 = vector.broadcast %164 : vector<1x384xf32> to vector<16x384xf32>
    %166 = arith.mulf %162, %165 : vector<16x384xf32>
    %c8_119 = arith.constant 8 : index
    %c0_120 = arith.constant 0 : index
    %c0_121 = arith.constant 0 : index
    %167 = vector.load %arg5[%c8_119, %c0_120, %c0_121] : memref<9x16x16xf32, #tpu.memory_space<vmem>>, vector<1x16x16xf32>
    %168 = vector.shape_cast %167 : vector<1x16x16xf32> to vector<16x16xf32>
    %cst_122 = arith.constant dense<0.000000e+00> : vector<16x384xf32>
    %169 = tpu.matmul %168, %166, %cst_122 {dimension_numbers = #tpu.dot_dimension_numbers<[1], [0], [0], [1], [0, 0, 1, 1], [], []>} : vector<16x16xf32>, vector<16x384xf32>, vector<16x384xf32> -> vector<16x384xf32>
    %170 = arith.addf %161, %169 : vector<16x384xf32>
    %c0_123 = arith.constant 0 : index
    %c0_124 = arith.constant 0 : index
    %171 = vector.load %arg6[%c0_123, %c0_124] : memref<16x1xf32, #tpu.memory_space<vmem>>, vector<16x1xf32>
    %172 = vector.broadcast %171 : vector<16x1xf32> to vector<16x384xf32>
    %173 = arith.addf %170, %172 : vector<16x384xf32>
    %174 = vector.extract_strided_slice %0 {offsets = [0, 128], sizes = [16, 384], strides = [1, 1]} : vector<16x640xf32> to vector<16x384xf32>
    %175 = arith.addf %173, %174 : vector<16x384xf32>
    %c0_125 = arith.constant 0 : index
    %c0_126 = arith.constant 0 : index
    %176 = vector.load %arg1[%c0_125, %c0_126] : memref<16x640xf32, #tpu.memory_space<vmem>>, vector<16x640xf32>
    %177 = vector.extract_strided_slice %176 {offsets = [0, 118], sizes = [16, 384], strides = [1, 1]} : vector<16x640xf32> to vector<16x384xf32>
    %c0_127 = arith.constant 0 : index
    %c0_128 = arith.constant 0 : index
    %c0_129 = arith.constant 0 : index
    %178 = vector.load %arg2[%c0_127, %c0_128, %c0_129] : memref<9x1x384xf32, #tpu.memory_space<vmem>>, vector<1x1x384xf32>
    %179 = vector.shape_cast %178 : vector<1x1x384xf32> to vector<1x384xf32>
    %180 = vector.broadcast %179 : vector<1x384xf32> to vector<16x384xf32>
    %181 = arith.mulf %177, %180 : vector<16x384xf32>
    %c0_130 = arith.constant 0 : index
    %c0_131 = arith.constant 0 : index
    %c0_132 = arith.constant 0 : index
    %182 = vector.load %arg7[%c0_130, %c0_131, %c0_132] : memref<9x16x16xf32, #tpu.memory_space<vmem>>, vector<1x16x16xf32>
    %183 = vector.shape_cast %182 : vector<1x16x16xf32> to vector<16x16xf32>
    %cst_133 = arith.constant dense<0.000000e+00> : vector<16x384xf32>
    %184 = tpu.matmul %183, %181, %cst_133 {dimension_numbers = #tpu.dot_dimension_numbers<[1], [0], [0], [1], [0, 0, 1, 1], [], []>} : vector<16x16xf32>, vector<16x384xf32>, vector<16x384xf32> -> vector<16x384xf32>
    %185 = vector.extract_strided_slice %176 {offsets = [0, 119], sizes = [16, 384], strides = [1, 1]} : vector<16x640xf32> to vector<16x384xf32>
    %c1_134 = arith.constant 1 : index
    %c0_135 = arith.constant 0 : index
    %c0_136 = arith.constant 0 : index
    %186 = vector.load %arg2[%c1_134, %c0_135, %c0_136] : memref<9x1x384xf32, #tpu.memory_space<vmem>>, vector<1x1x384xf32>
    %187 = vector.shape_cast %186 : vector<1x1x384xf32> to vector<1x384xf32>
    %188 = vector.broadcast %187 : vector<1x384xf32> to vector<16x384xf32>
    %189 = arith.mulf %185, %188 : vector<16x384xf32>
    %c1_137 = arith.constant 1 : index
    %c0_138 = arith.constant 0 : index
    %c0_139 = arith.constant 0 : index
    %190 = vector.load %arg7[%c1_137, %c0_138, %c0_139] : memref<9x16x16xf32, #tpu.memory_space<vmem>>, vector<1x16x16xf32>
    %191 = vector.shape_cast %190 : vector<1x16x16xf32> to vector<16x16xf32>
    %cst_140 = arith.constant dense<0.000000e+00> : vector<16x384xf32>
    %192 = tpu.matmul %191, %189, %cst_140 {dimension_numbers = #tpu.dot_dimension_numbers<[1], [0], [0], [1], [0, 0, 1, 1], [], []>} : vector<16x16xf32>, vector<16x384xf32>, vector<16x384xf32> -> vector<16x384xf32>
    %193 = arith.addf %184, %192 : vector<16x384xf32>
    %194 = vector.extract_strided_slice %176 {offsets = [0, 120], sizes = [16, 384], strides = [1, 1]} : vector<16x640xf32> to vector<16x384xf32>
    %c2_141 = arith.constant 2 : index
    %c0_142 = arith.constant 0 : index
    %c0_143 = arith.constant 0 : index
    %195 = vector.load %arg2[%c2_141, %c0_142, %c0_143] : memref<9x1x384xf32, #tpu.memory_space<vmem>>, vector<1x1x384xf32>
    %196 = vector.shape_cast %195 : vector<1x1x384xf32> to vector<1x384xf32>
    %197 = vector.broadcast %196 : vector<1x384xf32> to vector<16x384xf32>
    %198 = arith.mulf %194, %197 : vector<16x384xf32>
    %c2_144 = arith.constant 2 : index
    %c0_145 = arith.constant 0 : index
    %c0_146 = arith.constant 0 : index
    %199 = vector.load %arg7[%c2_144, %c0_145, %c0_146] : memref<9x16x16xf32, #tpu.memory_space<vmem>>, vector<1x16x16xf32>
    %200 = vector.shape_cast %199 : vector<1x16x16xf32> to vector<16x16xf32>
    %cst_147 = arith.constant dense<0.000000e+00> : vector<16x384xf32>
    %201 = tpu.matmul %200, %198, %cst_147 {dimension_numbers = #tpu.dot_dimension_numbers<[1], [0], [0], [1], [0, 0, 1, 1], [], []>} : vector<16x16xf32>, vector<16x384xf32>, vector<16x384xf32> -> vector<16x384xf32>
    %202 = arith.addf %193, %201 : vector<16x384xf32>
    %203 = vector.extract_strided_slice %176 {offsets = [0, 127], sizes = [16, 384], strides = [1, 1]} : vector<16x640xf32> to vector<16x384xf32>
    %c3_148 = arith.constant 3 : index
    %c0_149 = arith.constant 0 : index
    %c0_150 = arith.constant 0 : index
    %204 = vector.load %arg2[%c3_148, %c0_149, %c0_150] : memref<9x1x384xf32, #tpu.memory_space<vmem>>, vector<1x1x384xf32>
    %205 = vector.shape_cast %204 : vector<1x1x384xf32> to vector<1x384xf32>
    %206 = vector.broadcast %205 : vector<1x384xf32> to vector<16x384xf32>
    %207 = arith.mulf %203, %206 : vector<16x384xf32>
    %c3_151 = arith.constant 3 : index
    %c0_152 = arith.constant 0 : index
    %c0_153 = arith.constant 0 : index
    %208 = vector.load %arg7[%c3_151, %c0_152, %c0_153] : memref<9x16x16xf32, #tpu.memory_space<vmem>>, vector<1x16x16xf32>
    %209 = vector.shape_cast %208 : vector<1x16x16xf32> to vector<16x16xf32>
    %cst_154 = arith.constant dense<0.000000e+00> : vector<16x384xf32>
    %210 = tpu.matmul %209, %207, %cst_154 {dimension_numbers = #tpu.dot_dimension_numbers<[1], [0], [0], [1], [0, 0, 1, 1], [], []>} : vector<16x16xf32>, vector<16x384xf32>, vector<16x384xf32> -> vector<16x384xf32>
    %211 = arith.addf %202, %210 : vector<16x384xf32>
    %212 = vector.extract_strided_slice %176 {offsets = [0, 128], sizes = [16, 384], strides = [1, 1]} : vector<16x640xf32> to vector<16x384xf32>
    %c4_155 = arith.constant 4 : index
    %c0_156 = arith.constant 0 : index
    %c0_157 = arith.constant 0 : index
    %213 = vector.load %arg2[%c4_155, %c0_156, %c0_157] : memref<9x1x384xf32, #tpu.memory_space<vmem>>, vector<1x1x384xf32>
    %214 = vector.shape_cast %213 : vector<1x1x384xf32> to vector<1x384xf32>
    %215 = vector.broadcast %214 : vector<1x384xf32> to vector<16x384xf32>
    %216 = arith.mulf %212, %215 : vector<16x384xf32>
    %c4_158 = arith.constant 4 : index
    %c0_159 = arith.constant 0 : index
    %c0_160 = arith.constant 0 : index
    %217 = vector.load %arg7[%c4_158, %c0_159, %c0_160] : memref<9x16x16xf32, #tpu.memory_space<vmem>>, vector<1x16x16xf32>
    %218 = vector.shape_cast %217 : vector<1x16x16xf32> to vector<16x16xf32>
    %cst_161 = arith.constant dense<0.000000e+00> : vector<16x384xf32>
    %219 = tpu.matmul %218, %216, %cst_161 {dimension_numbers = #tpu.dot_dimension_numbers<[1], [0], [0], [1], [0, 0, 1, 1], [], []>} : vector<16x16xf32>, vector<16x384xf32>, vector<16x384xf32> -> vector<16x384xf32>
    %220 = arith.addf %211, %219 : vector<16x384xf32>
    %221 = vector.extract_strided_slice %176 {offsets = [0, 129], sizes = [16, 384], strides = [1, 1]} : vector<16x640xf32> to vector<16x384xf32>
    %c5_162 = arith.constant 5 : index
    %c0_163 = arith.constant 0 : index
    %c0_164 = arith.constant 0 : index
    %222 = vector.load %arg2[%c5_162, %c0_163, %c0_164] : memref<9x1x384xf32, #tpu.memory_space<vmem>>, vector<1x1x384xf32>
    %223 = vector.shape_cast %222 : vector<1x1x384xf32> to vector<1x384xf32>
    %224 = vector.broadcast %223 : vector<1x384xf32> to vector<16x384xf32>
    %225 = arith.mulf %221, %224 : vector<16x384xf32>
    %c5_165 = arith.constant 5 : index
    %c0_166 = arith.constant 0 : index
    %c0_167 = arith.constant 0 : index
    %226 = vector.load %arg7[%c5_165, %c0_166, %c0_167] : memref<9x16x16xf32, #tpu.memory_space<vmem>>, vector<1x16x16xf32>
    %227 = vector.shape_cast %226 : vector<1x16x16xf32> to vector<16x16xf32>
    %cst_168 = arith.constant dense<0.000000e+00> : vector<16x384xf32>
    %228 = tpu.matmul %227, %225, %cst_168 {dimension_numbers = #tpu.dot_dimension_numbers<[1], [0], [0], [1], [0, 0, 1, 1], [], []>} : vector<16x16xf32>, vector<16x384xf32>, vector<16x384xf32> -> vector<16x384xf32>
    %229 = arith.addf %220, %228 : vector<16x384xf32>
    %230 = vector.extract_strided_slice %176 {offsets = [0, 136], sizes = [16, 384], strides = [1, 1]} : vector<16x640xf32> to vector<16x384xf32>
    %c6_169 = arith.constant 6 : index
    %c0_170 = arith.constant 0 : index
    %c0_171 = arith.constant 0 : index
    %231 = vector.load %arg2[%c6_169, %c0_170, %c0_171] : memref<9x1x384xf32, #tpu.memory_space<vmem>>, vector<1x1x384xf32>
    %232 = vector.shape_cast %231 : vector<1x1x384xf32> to vector<1x384xf32>
    %233 = vector.broadcast %232 : vector<1x384xf32> to vector<16x384xf32>
    %234 = arith.mulf %230, %233 : vector<16x384xf32>
    %c6_172 = arith.constant 6 : index
    %c0_173 = arith.constant 0 : index
    %c0_174 = arith.constant 0 : index
    %235 = vector.load %arg7[%c6_172, %c0_173, %c0_174] : memref<9x16x16xf32, #tpu.memory_space<vmem>>, vector<1x16x16xf32>
    %236 = vector.shape_cast %235 : vector<1x16x16xf32> to vector<16x16xf32>
    %cst_175 = arith.constant dense<0.000000e+00> : vector<16x384xf32>
    %237 = tpu.matmul %236, %234, %cst_175 {dimension_numbers = #tpu.dot_dimension_numbers<[1], [0], [0], [1], [0, 0, 1, 1], [], []>} : vector<16x16xf32>, vector<16x384xf32>, vector<16x384xf32> -> vector<16x384xf32>
    %238 = arith.addf %229, %237 : vector<16x384xf32>
    %239 = vector.extract_strided_slice %176 {offsets = [0, 137], sizes = [16, 384], strides = [1, 1]} : vector<16x640xf32> to vector<16x384xf32>
    %c7_176 = arith.constant 7 : index
    %c0_177 = arith.constant 0 : index
    %c0_178 = arith.constant 0 : index
    %240 = vector.load %arg2[%c7_176, %c0_177, %c0_178] : memref<9x1x384xf32, #tpu.memory_space<vmem>>, vector<1x1x384xf32>
    %241 = vector.shape_cast %240 : vector<1x1x384xf32> to vector<1x384xf32>
    %242 = vector.broadcast %241 : vector<1x384xf32> to vector<16x384xf32>
    %243 = arith.mulf %239, %242 : vector<16x384xf32>
    %c7_179 = arith.constant 7 : index
    %c0_180 = arith.constant 0 : index
    %c0_181 = arith.constant 0 : index
    %244 = vector.load %arg7[%c7_179, %c0_180, %c0_181] : memref<9x16x16xf32, #tpu.memory_space<vmem>>, vector<1x16x16xf32>
    %245 = vector.shape_cast %244 : vector<1x16x16xf32> to vector<16x16xf32>
    %cst_182 = arith.constant dense<0.000000e+00> : vector<16x384xf32>
    %246 = tpu.matmul %245, %243, %cst_182 {dimension_numbers = #tpu.dot_dimension_numbers<[1], [0], [0], [1], [0, 0, 1, 1], [], []>} : vector<16x16xf32>, vector<16x384xf32>, vector<16x384xf32> -> vector<16x384xf32>
    %247 = arith.addf %238, %246 : vector<16x384xf32>
    %248 = vector.extract_strided_slice %176 {offsets = [0, 138], sizes = [16, 384], strides = [1, 1]} : vector<16x640xf32> to vector<16x384xf32>
    %c8_183 = arith.constant 8 : index
    %c0_184 = arith.constant 0 : index
    %c0_185 = arith.constant 0 : index
    %249 = vector.load %arg2[%c8_183, %c0_184, %c0_185] : memref<9x1x384xf32, #tpu.memory_space<vmem>>, vector<1x1x384xf32>
    %250 = vector.shape_cast %249 : vector<1x1x384xf32> to vector<1x384xf32>
    %251 = vector.broadcast %250 : vector<1x384xf32> to vector<16x384xf32>
    %252 = arith.mulf %248, %251 : vector<16x384xf32>
    %c8_186 = arith.constant 8 : index
    %c0_187 = arith.constant 0 : index
    %c0_188 = arith.constant 0 : index
    %253 = vector.load %arg7[%c8_186, %c0_187, %c0_188] : memref<9x16x16xf32, #tpu.memory_space<vmem>>, vector<1x16x16xf32>
    %254 = vector.shape_cast %253 : vector<1x16x16xf32> to vector<16x16xf32>
    %cst_189 = arith.constant dense<0.000000e+00> : vector<16x384xf32>
    %255 = tpu.matmul %254, %252, %cst_189 {dimension_numbers = #tpu.dot_dimension_numbers<[1], [0], [0], [1], [0, 0, 1, 1], [], []>} : vector<16x16xf32>, vector<16x384xf32>, vector<16x384xf32> -> vector<16x384xf32>
    %256 = arith.addf %247, %255 : vector<16x384xf32>
    %c0_190 = arith.constant 0 : index
    %c0_191 = arith.constant 0 : index
    %257 = vector.load %arg8[%c0_190, %c0_191] : memref<16x1xf32, #tpu.memory_space<vmem>>, vector<16x1xf32>
    %258 = vector.broadcast %257 : vector<16x1xf32> to vector<16x384xf32>
    %259 = arith.addf %256, %258 : vector<16x384xf32>
    %cst_192 = arith.constant 0.000000e+00 : f32
    %260 = vector.broadcast %cst_192 : f32 to vector<16x384xf32>
    %261 = arith.cmpf oge, %259, %260 : vector<16x384xf32>
    %cst_193 = arith.constant 1.000000e-01 : f32
    %262 = vector.broadcast %cst_193 : f32 to vector<16x384xf32>
    %263 = arith.mulf %262, %259 : vector<16x384xf32>
    %264 = arith.select %261, %259, %263 : vector<16x384xi1>, vector<16x384xf32>
    %cst_194 = arith.constant 0.000000e+00 : f32
    %265 = vector.broadcast %cst_194 : f32 to vector<16x128xf32>
    %266 = tpu.concatenate %265, %264, %265 in 1 : vector<16x128xf32>, vector<16x384xf32>, vector<16x128xf32> -> vector<16x640xf32>
    %267 = vector.extract_strided_slice %266 {offsets = [0, 118], sizes = [16, 384], strides = [1, 1]} : vector<16x640xf32> to vector<16x384xf32>
    %c0_195 = arith.constant 0 : index
    %c0_196 = arith.constant 0 : index
    %c0_197 = arith.constant 0 : index
    %268 = vector.load %arg2[%c0_195, %c0_196, %c0_197] : memref<9x1x384xf32, #tpu.memory_space<vmem>>, vector<1x1x384xf32>
    %269 = vector.shape_cast %268 : vector<1x1x384xf32> to vector<1x384xf32>
    %270 = vector.broadcast %269 : vector<1x384xf32> to vector<16x384xf32>
    %271 = arith.mulf %267, %270 : vector<16x384xf32>
    %c0_198 = arith.constant 0 : index
    %c0_199 = arith.constant 0 : index
    %c0_200 = arith.constant 0 : index
    %272 = vector.load %arg9[%c0_198, %c0_199, %c0_200] : memref<9x16x16xf32, #tpu.memory_space<vmem>>, vector<1x16x16xf32>
    %273 = vector.shape_cast %272 : vector<1x16x16xf32> to vector<16x16xf32>
    %cst_201 = arith.constant dense<0.000000e+00> : vector<16x384xf32>
    %274 = tpu.matmul %273, %271, %cst_201 {dimension_numbers = #tpu.dot_dimension_numbers<[1], [0], [0], [1], [0, 0, 1, 1], [], []>} : vector<16x16xf32>, vector<16x384xf32>, vector<16x384xf32> -> vector<16x384xf32>
    %275 = vector.extract_strided_slice %266 {offsets = [0, 119], sizes = [16, 384], strides = [1, 1]} : vector<16x640xf32> to vector<16x384xf32>
    %c1_202 = arith.constant 1 : index
    %c0_203 = arith.constant 0 : index
    %c0_204 = arith.constant 0 : index
    %276 = vector.load %arg2[%c1_202, %c0_203, %c0_204] : memref<9x1x384xf32, #tpu.memory_space<vmem>>, vector<1x1x384xf32>
    %277 = vector.shape_cast %276 : vector<1x1x384xf32> to vector<1x384xf32>
    %278 = vector.broadcast %277 : vector<1x384xf32> to vector<16x384xf32>
    %279 = arith.mulf %275, %278 : vector<16x384xf32>
    %c1_205 = arith.constant 1 : index
    %c0_206 = arith.constant 0 : index
    %c0_207 = arith.constant 0 : index
    %280 = vector.load %arg9[%c1_205, %c0_206, %c0_207] : memref<9x16x16xf32, #tpu.memory_space<vmem>>, vector<1x16x16xf32>
    %281 = vector.shape_cast %280 : vector<1x16x16xf32> to vector<16x16xf32>
    %cst_208 = arith.constant dense<0.000000e+00> : vector<16x384xf32>
    %282 = tpu.matmul %281, %279, %cst_208 {dimension_numbers = #tpu.dot_dimension_numbers<[1], [0], [0], [1], [0, 0, 1, 1], [], []>} : vector<16x16xf32>, vector<16x384xf32>, vector<16x384xf32> -> vector<16x384xf32>
    %283 = arith.addf %274, %282 : vector<16x384xf32>
    %284 = vector.extract_strided_slice %266 {offsets = [0, 120], sizes = [16, 384], strides = [1, 1]} : vector<16x640xf32> to vector<16x384xf32>
    %c2_209 = arith.constant 2 : index
    %c0_210 = arith.constant 0 : index
    %c0_211 = arith.constant 0 : index
    %285 = vector.load %arg2[%c2_209, %c0_210, %c0_211] : memref<9x1x384xf32, #tpu.memory_space<vmem>>, vector<1x1x384xf32>
    %286 = vector.shape_cast %285 : vector<1x1x384xf32> to vector<1x384xf32>
    %287 = vector.broadcast %286 : vector<1x384xf32> to vector<16x384xf32>
    %288 = arith.mulf %284, %287 : vector<16x384xf32>
    %c2_212 = arith.constant 2 : index
    %c0_213 = arith.constant 0 : index
    %c0_214 = arith.constant 0 : index
    %289 = vector.load %arg9[%c2_212, %c0_213, %c0_214] : memref<9x16x16xf32, #tpu.memory_space<vmem>>, vector<1x16x16xf32>
    %290 = vector.shape_cast %289 : vector<1x16x16xf32> to vector<16x16xf32>
    %cst_215 = arith.constant dense<0.000000e+00> : vector<16x384xf32>
    %291 = tpu.matmul %290, %288, %cst_215 {dimension_numbers = #tpu.dot_dimension_numbers<[1], [0], [0], [1], [0, 0, 1, 1], [], []>} : vector<16x16xf32>, vector<16x384xf32>, vector<16x384xf32> -> vector<16x384xf32>
    %292 = arith.addf %283, %291 : vector<16x384xf32>
    %293 = vector.extract_strided_slice %266 {offsets = [0, 127], sizes = [16, 384], strides = [1, 1]} : vector<16x640xf32> to vector<16x384xf32>
    %c3_216 = arith.constant 3 : index
    %c0_217 = arith.constant 0 : index
    %c0_218 = arith.constant 0 : index
    %294 = vector.load %arg2[%c3_216, %c0_217, %c0_218] : memref<9x1x384xf32, #tpu.memory_space<vmem>>, vector<1x1x384xf32>
    %295 = vector.shape_cast %294 : vector<1x1x384xf32> to vector<1x384xf32>
    %296 = vector.broadcast %295 : vector<1x384xf32> to vector<16x384xf32>
    %297 = arith.mulf %293, %296 : vector<16x384xf32>
    %c3_219 = arith.constant 3 : index
    %c0_220 = arith.constant 0 : index
    %c0_221 = arith.constant 0 : index
    %298 = vector.load %arg9[%c3_219, %c0_220, %c0_221] : memref<9x16x16xf32, #tpu.memory_space<vmem>>, vector<1x16x16xf32>
    %299 = vector.shape_cast %298 : vector<1x16x16xf32> to vector<16x16xf32>
    %cst_222 = arith.constant dense<0.000000e+00> : vector<16x384xf32>
    %300 = tpu.matmul %299, %297, %cst_222 {dimension_numbers = #tpu.dot_dimension_numbers<[1], [0], [0], [1], [0, 0, 1, 1], [], []>} : vector<16x16xf32>, vector<16x384xf32>, vector<16x384xf32> -> vector<16x384xf32>
    %301 = arith.addf %292, %300 : vector<16x384xf32>
    %302 = vector.extract_strided_slice %266 {offsets = [0, 128], sizes = [16, 384], strides = [1, 1]} : vector<16x640xf32> to vector<16x384xf32>
    %c4_223 = arith.constant 4 : index
    %c0_224 = arith.constant 0 : index
    %c0_225 = arith.constant 0 : index
    %303 = vector.load %arg2[%c4_223, %c0_224, %c0_225] : memref<9x1x384xf32, #tpu.memory_space<vmem>>, vector<1x1x384xf32>
    %304 = vector.shape_cast %303 : vector<1x1x384xf32> to vector<1x384xf32>
    %305 = vector.broadcast %304 : vector<1x384xf32> to vector<16x384xf32>
    %306 = arith.mulf %302, %305 : vector<16x384xf32>
    %c4_226 = arith.constant 4 : index
    %c0_227 = arith.constant 0 : index
    %c0_228 = arith.constant 0 : index
    %307 = vector.load %arg9[%c4_226, %c0_227, %c0_228] : memref<9x16x16xf32, #tpu.memory_space<vmem>>, vector<1x16x16xf32>
    %308 = vector.shape_cast %307 : vector<1x16x16xf32> to vector<16x16xf32>
    %cst_229 = arith.constant dense<0.000000e+00> : vector<16x384xf32>
    %309 = tpu.matmul %308, %306, %cst_229 {dimension_numbers = #tpu.dot_dimension_numbers<[1], [0], [0], [1], [0, 0, 1, 1], [], []>} : vector<16x16xf32>, vector<16x384xf32>, vector<16x384xf32> -> vector<16x384xf32>
    %310 = arith.addf %301, %309 : vector<16x384xf32>
    %311 = vector.extract_strided_slice %266 {offsets = [0, 129], sizes = [16, 384], strides = [1, 1]} : vector<16x640xf32> to vector<16x384xf32>
    %c5_230 = arith.constant 5 : index
    %c0_231 = arith.constant 0 : index
    %c0_232 = arith.constant 0 : index
    %312 = vector.load %arg2[%c5_230, %c0_231, %c0_232] : memref<9x1x384xf32, #tpu.memory_space<vmem>>, vector<1x1x384xf32>
    %313 = vector.shape_cast %312 : vector<1x1x384xf32> to vector<1x384xf32>
    %314 = vector.broadcast %313 : vector<1x384xf32> to vector<16x384xf32>
    %315 = arith.mulf %311, %314 : vector<16x384xf32>
    %c5_233 = arith.constant 5 : index
    %c0_234 = arith.constant 0 : index
    %c0_235 = arith.constant 0 : index
    %316 = vector.load %arg9[%c5_233, %c0_234, %c0_235] : memref<9x16x16xf32, #tpu.memory_space<vmem>>, vector<1x16x16xf32>
    %317 = vector.shape_cast %316 : vector<1x16x16xf32> to vector<16x16xf32>
    %cst_236 = arith.constant dense<0.000000e+00> : vector<16x384xf32>
    %318 = tpu.matmul %317, %315, %cst_236 {dimension_numbers = #tpu.dot_dimension_numbers<[1], [0], [0], [1], [0, 0, 1, 1], [], []>} : vector<16x16xf32>, vector<16x384xf32>, vector<16x384xf32> -> vector<16x384xf32>
    %319 = arith.addf %310, %318 : vector<16x384xf32>
    %320 = vector.extract_strided_slice %266 {offsets = [0, 136], sizes = [16, 384], strides = [1, 1]} : vector<16x640xf32> to vector<16x384xf32>
    %c6_237 = arith.constant 6 : index
    %c0_238 = arith.constant 0 : index
    %c0_239 = arith.constant 0 : index
    %321 = vector.load %arg2[%c6_237, %c0_238, %c0_239] : memref<9x1x384xf32, #tpu.memory_space<vmem>>, vector<1x1x384xf32>
    %322 = vector.shape_cast %321 : vector<1x1x384xf32> to vector<1x384xf32>
    %323 = vector.broadcast %322 : vector<1x384xf32> to vector<16x384xf32>
    %324 = arith.mulf %320, %323 : vector<16x384xf32>
    %c6_240 = arith.constant 6 : index
    %c0_241 = arith.constant 0 : index
    %c0_242 = arith.constant 0 : index
    %325 = vector.load %arg9[%c6_240, %c0_241, %c0_242] : memref<9x16x16xf32, #tpu.memory_space<vmem>>, vector<1x16x16xf32>
    %326 = vector.shape_cast %325 : vector<1x16x16xf32> to vector<16x16xf32>
    %cst_243 = arith.constant dense<0.000000e+00> : vector<16x384xf32>
    %327 = tpu.matmul %326, %324, %cst_243 {dimension_numbers = #tpu.dot_dimension_numbers<[1], [0], [0], [1], [0, 0, 1, 1], [], []>} : vector<16x16xf32>, vector<16x384xf32>, vector<16x384xf32> -> vector<16x384xf32>
    %328 = arith.addf %319, %327 : vector<16x384xf32>
    %329 = vector.extract_strided_slice %266 {offsets = [0, 137], sizes = [16, 384], strides = [1, 1]} : vector<16x640xf32> to vector<16x384xf32>
    %c7_244 = arith.constant 7 : index
    %c0_245 = arith.constant 0 : index
    %c0_246 = arith.constant 0 : index
    %330 = vector.load %arg2[%c7_244, %c0_245, %c0_246] : memref<9x1x384xf32, #tpu.memory_space<vmem>>, vector<1x1x384xf32>
    %331 = vector.shape_cast %330 : vector<1x1x384xf32> to vector<1x384xf32>
    %332 = vector.broadcast %331 : vector<1x384xf32> to vector<16x384xf32>
    %333 = arith.mulf %329, %332 : vector<16x384xf32>
    %c7_247 = arith.constant 7 : index
    %c0_248 = arith.constant 0 : index
    %c0_249 = arith.constant 0 : index
    %334 = vector.load %arg9[%c7_247, %c0_248, %c0_249] : memref<9x16x16xf32, #tpu.memory_space<vmem>>, vector<1x16x16xf32>
    %335 = vector.shape_cast %334 : vector<1x16x16xf32> to vector<16x16xf32>
    %cst_250 = arith.constant dense<0.000000e+00> : vector<16x384xf32>
    %336 = tpu.matmul %335, %333, %cst_250 {dimension_numbers = #tpu.dot_dimension_numbers<[1], [0], [0], [1], [0, 0, 1, 1], [], []>} : vector<16x16xf32>, vector<16x384xf32>, vector<16x384xf32> -> vector<16x384xf32>
    %337 = arith.addf %328, %336 : vector<16x384xf32>
    %338 = vector.extract_strided_slice %266 {offsets = [0, 138], sizes = [16, 384], strides = [1, 1]} : vector<16x640xf32> to vector<16x384xf32>
    %c8_251 = arith.constant 8 : index
    %c0_252 = arith.constant 0 : index
    %c0_253 = arith.constant 0 : index
    %339 = vector.load %arg2[%c8_251, %c0_252, %c0_253] : memref<9x1x384xf32, #tpu.memory_space<vmem>>, vector<1x1x384xf32>
    %340 = vector.shape_cast %339 : vector<1x1x384xf32> to vector<1x384xf32>
    %341 = vector.broadcast %340 : vector<1x384xf32> to vector<16x384xf32>
    %342 = arith.mulf %338, %341 : vector<16x384xf32>
    %c8_254 = arith.constant 8 : index
    %c0_255 = arith.constant 0 : index
    %c0_256 = arith.constant 0 : index
    %343 = vector.load %arg9[%c8_254, %c0_255, %c0_256] : memref<9x16x16xf32, #tpu.memory_space<vmem>>, vector<1x16x16xf32>
    %344 = vector.shape_cast %343 : vector<1x16x16xf32> to vector<16x16xf32>
    %cst_257 = arith.constant dense<0.000000e+00> : vector<16x384xf32>
    %345 = tpu.matmul %344, %342, %cst_257 {dimension_numbers = #tpu.dot_dimension_numbers<[1], [0], [0], [1], [0, 0, 1, 1], [], []>} : vector<16x16xf32>, vector<16x384xf32>, vector<16x384xf32> -> vector<16x384xf32>
    %346 = arith.addf %337, %345 : vector<16x384xf32>
    %c0_258 = arith.constant 0 : index
    %c0_259 = arith.constant 0 : index
    %347 = vector.load %arg10[%c0_258, %c0_259] : memref<16x1xf32, #tpu.memory_space<vmem>>, vector<16x1xf32>
    %348 = vector.broadcast %347 : vector<16x1xf32> to vector<16x384xf32>
    %349 = arith.addf %346, %348 : vector<16x384xf32>
    %350 = vector.extract_strided_slice %176 {offsets = [0, 128], sizes = [16, 384], strides = [1, 1]} : vector<16x640xf32> to vector<16x384xf32>
    %351 = arith.addf %349, %350 : vector<16x384xf32>
    %352 = math.cos %351 : vector<16x384xf32>
    %353 = arith.mulf %175, %352 : vector<16x384xf32>
    %c0_260 = arith.constant 0 : index
    %c0_261 = arith.constant 0 : index
    %354 = vector.load %arg11[%c0_260, %c0_261] : memref<16x384xf32, #tpu.memory_space<vmem>>, vector<16x384xf32>
    tpu.vector_store %arg11[%c0_260, %c0_261], %353 {strides = array<i32>} : memref<16x384xf32, #tpu.memory_space<vmem>>, vector<16x384xf32>,
    %355 = math.sin %351 : vector<16x384xf32>
    %356 = arith.mulf %175, %355 : vector<16x384xf32>
    %c0_262 = arith.constant 0 : index
    %c0_263 = arith.constant 0 : index
    %357 = vector.load %arg12[%c0_262, %c0_263] : memref<16x384xf32, #tpu.memory_space<vmem>>, vector<16x384xf32>
    tpu.vector_store %arg12[%c0_262, %c0_263], %356 {strides = array<i32>} : memref<16x384xf32, #tpu.memory_space<vmem>>, vector<16x384xf32>,
    return
  }
}

module attributes {stable_mosaic.version = 11 : i64} {
  func.func @_post_kernel(%arg0: memref<16x512xf32, #tpu.memory_space<vmem>>, %arg1: memref<16x768xf32, #tpu.memory_space<vmem>>, %arg2: memref<16x16xf32, #tpu.memory_space<vmem>>, %arg3: memref<16x1xf32, #tpu.memory_space<vmem>>, %arg4: memref<1x1xf32, #tpu.memory_space<vmem>>, %arg5: memref<16x512xf32, #tpu.memory_space<vmem>>) attributes {dimension_semantics = [], scalar_prefetch = 0 : i64, scratch_operands = 0 : i64, tpu.core_type = #tpu.core_type<tc>} {
    %c0 = arith.constant 0 : index
    %c0_0 = arith.constant 0 : index
    %0 = vector.load %arg0[%c0, %c0_0] : memref<16x512xf32, #tpu.memory_space<vmem>>, vector<16x512xf32>
    %1 = math.absf %0 : vector<16x512xf32>
    %c0_1 = arith.constant 0 : index
    %c0_2 = arith.constant 0 : index
    %2 = vector.load %arg2[%c0_1, %c0_2] : memref<16x16xf32, #tpu.memory_space<vmem>>, vector<16x16xf32>
    %cst = arith.constant dense<0.000000e+00> : vector<16x512xf32>
    %3 = tpu.matmul %2, %1, %cst {dimension_numbers = #tpu.dot_dimension_numbers<[1], [0], [0], [1], [0, 0, 1, 1], [], []>} : vector<16x16xf32>, vector<16x512xf32>, vector<16x512xf32> -> vector<16x512xf32>
    %c0_3 = arith.constant 0 : index
    %c0_4 = arith.constant 0 : index
    %4 = vector.load %arg3[%c0_3, %c0_4] : memref<16x1xf32, #tpu.memory_space<vmem>>, vector<16x1xf32>
    %5 = vector.broadcast %4 : vector<16x1xf32> to vector<16x512xf32>
    %6 = arith.addf %3, %5 : vector<16x512xf32>
    %c0_5 = arith.constant 0 : index
    %c0_6 = arith.constant 0 : index
    %7 = vector.load %arg1[%c0_5, %c0_6] : memref<16x768xf32, #tpu.memory_space<vmem>>, vector<16x768xf32>
    %8 = vector.extract_strided_slice %7 {offsets = [0, 128], sizes = [16, 512], strides = [1, 1]} : vector<16x768xf32> to vector<16x512xf32>
    %c0_7 = arith.constant 0 : index
    %c0_8 = arith.constant 0 : index
    %9 = vector.load %arg4[%c0_7, %c0_8] : memref<1x1xf32, #tpu.memory_space<vmem>>, vector<1x1xf32>
    %10 = vector.broadcast %9 : vector<1x1xf32> to vector<16x512xf32>
    %11 = arith.mulf %10, %8 : vector<16x512xf32>
    %12 = arith.addf %6, %11 : vector<16x512xf32>
    %13 = arith.cmpf oeq, %12, %12 : vector<16x512xf32>
    %14 = math.absf %12 : vector<16x512xf32>
    %cst_9 = arith.constant 3.40282347E+38 : f32
    %15 = vector.broadcast %cst_9 : f32 to vector<16x512xf32>
    %16 = arith.cmpf ole, %14, %15 : vector<16x512xf32>
    %17 = arith.andi %13, %16 : vector<16x512xi1>
    %cst_10 = arith.constant 9.99999974E-6 : f32
    %18 = vector.broadcast %cst_10 : f32 to vector<16x512xf32>
    %19 = arith.select %17, %12, %18 : vector<16x512xi1>, vector<16x512xf32>
    %c0_11 = arith.constant 0 : index
    %c0_12 = arith.constant 0 : index
    %20 = vector.load %arg5[%c0_11, %c0_12] : memref<16x512xf32, #tpu.memory_space<vmem>>, vector<16x512xf32>
    tpu.vector_store %arg5[%c0_11, %c0_12], %19 {strides = array<i32>} : memref<16x512xf32, #tpu.memory_space<vmem>>, vector<16x512xf32>,
    return
  }
}

</mosaic_0001>

<llo_original>
// kernel: freblock_chaattn_pallas.3
$region0: #{freblock_chaattn_pallas.3}
  #allocation0 [shape = 'u32[]', space=smem, size = 0x4, offset = 0x4, fixed_abs, tag = 'smem constant byte address 0x4 - core index']
  #allocation1 [shape = 'u32[144,128]{1,0:T(1,128)}', space=vmem, size = 0x12000, scoped, tag = 'internal scratch']
  %s0 = inlined_call_operand.vmem [shape: f32[16,768], index: 0, kind: input, shape index: {}]
  %s1 = inlined_call_operand.vmem [shape: f32[9,1,512], index: 1, kind: input, shape index: {}]
  %s2 = inlined_call_operand.vmem [shape: f32[9,16,16], index: 2, kind: input, shape index: {}]
  %s3 = inlined_call_operand.vmem [shape: f32[16,1], index: 3, kind: input, shape index: {}]
  %s4 = inlined_call_operand.vmem [shape: f32[4,16], index: 4, kind: input, shape index: {}]
  %s5 = inlined_call_operand.vmem [shape: f32[4,1], index: 5, kind: input, shape index: {}]
  %s6 = inlined_call_operand.vmem [shape: f32[16,4], index: 6, kind: input, shape index: {}]
  %s7 = inlined_call_operand.vmem [shape: f32[16,1], index: 7, kind: input, shape index: {}]
  %s8 = inlined_call_operand.vmem [shape: f32[16,512], index: 8, kind: output, shape index: {}]
  %s9 = sld [smem:[#allocation0]]
  $region42: #{freblock_chaattn_pallas.3} parent=0
    _
  %s11 = ssub.s32 1, %s9
  %s12 = scalar_select 0, %s11, %s9
  // Predicated region
  $region2: #{freblock_chaattn_pallas.3} parent=0 // pred_check
    _
  $region3: #{freblock_chaattn_pallas.3} parent=0 // pred_check_branch
    %14 = sbr.rel (0) target = $region5
  $region4: #{freblock_chaattn_pallas.3} parent=0 // pred_region
    _
  $region5: #{freblock_chaattn_pallas.3} parent=0 // pred_fallthru
    _
  // Predicated region
  $region6: #{freblock_chaattn_pallas.3} parent=0 // pred_check
    _
  $region7: #{freblock_chaattn_pallas.3} parent=0 // pred_check_branch
    %16 = sbr.rel (0) target = $region9
  $region8: #{freblock_chaattn_pallas.3} parent=0 // pred_region
    _
  $region9: #{freblock_chaattn_pallas.3} parent=0 // pred_fallthru
    _
  // Predicated region
  $region10: #{freblock_chaattn_pallas.3} parent=0 // pred_check
    _
  $region11: #{freblock_chaattn_pallas.3} parent=0 // pred_check_branch
    %18 = sbr.rel (0) target = $region13
  $region12: #{freblock_chaattn_pallas.3} parent=0 // pred_region
    _
  $region13: #{freblock_chaattn_pallas.3} parent=0 // pred_fallthru
    _
  // Predicated region
  $region14: #{freblock_chaattn_pallas.3} parent=0 // pred_check
    _
  $region15: #{freblock_chaattn_pallas.3} parent=0 // pred_check_branch
    %20 = sbr.rel (0) target = $region17
  $region16: #{freblock_chaattn_pallas.3} parent=0 // pred_region
    _
  $region17: #{freblock_chaattn_pallas.3} parent=0 // pred_fallthru
    _
  // Predicated region
  $region18: #{freblock_chaattn_pallas.3} parent=0 // pred_check
    _
  $region19: #{freblock_chaattn_pallas.3} parent=0 // pred_check_branch
    %22 = sbr.rel (0) target = $region21
  $region20: #{freblock_chaattn_pallas.3} parent=0 // pred_region
    _
  $region21: #{freblock_chaattn_pallas.3} parent=0 // pred_fallthru
    _
  // Predicated region
  $region22: #{freblock_chaattn_pallas.3} parent=0 // pred_check
    _
  $region23: #{freblock_chaattn_pallas.3} parent=0 // pred_check_branch
    %24 = sbr.rel (0) target = $region25
  $region24: #{freblock_chaattn_pallas.3} parent=0 // pred_region
    _
  $region25: #{freblock_chaattn_pallas.3} parent=0 // pred_fallthru
    _
  // Predicated region
  $region26: #{freblock_chaattn_pallas.3} parent=0 // pred_check
    _
  $region27: #{freblock_chaattn_pallas.3} parent=0 // pred_check_branch
    %26 = sbr.rel (0) target = $region29
  $region28: #{freblock_chaattn_pallas.3} parent=0 // pred_region
    _
  $region29: #{freblock_chaattn_pallas.3} parent=0 // pred_fallthru
    _
  // Predicated region
  $region30: #{freblock_chaattn_pallas.3} parent=0 // pred_check
    _
  $region31: #{freblock_chaattn_pallas.3} parent=0 // pred_check_branch
    %28 = sbr.rel (0) target = $region33
  $region32: #{freblock_chaattn_pallas.3} parent=0 // pred_region
    _
  $region33: #{freblock_chaattn_pallas.3} parent=0 // pred_fallthru
    _
  %v29 = vld [vmem:[%s0] sm:$0xff]
  %v30 = vld [vmem:[%s0 + $0x8] sm:$0xff]
  %v31 = vld [vmem:[%s0 + $0x10] sm:$0xff]
  %v32 = vld [vmem:[%s0 + $0x18] sm:$0xff]
  %v33 = vld [vmem:[%s0 + $0x20] sm:$0xff]
  %v34 = vld [vmem:[%s0 + $0x28] sm:$0xff]
  %v35 = vld [vmem:[%s0 + $0x30] sm:$0xff]
  %v36 = vld [vmem:[%s0 + $0x38] sm:$0xff]
  %v37 = vld [vmem:[%s0 + $0x40] sm:$0xff]
  %v38 = vld [vmem:[%s0 + $0x48] sm:$0xff]
  %v39 = vld [vmem:[%s0 + $0x50] sm:$0xff]
  %v40 = vld [vmem:[%s0 + $0x58] sm:$0xff]
  %v41 = vld [vmem:[%s1] sm:$0xf]
  %v43 = vlaneseq
  %v44 = vshrl.u32 %v43, 7
  %v45 = vsub.s32 0, %v44
  %v46 = vrot.slane %v41, %v45
  %v47 = vlaneseq
  %v48 = vshrl.u32 %v47, 7
  %v49 = vsub.s32 1, %v48
  %v50 = vrot.slane %v41, %v49
  %v51 = vlaneseq
  %v52 = vshrl.u32 %v51, 7
  %v53 = vsub.s32 2, %v52
  %v54 = vrot.slane %v41, %v53
  %v55 = vlaneseq
  %v56 = vshrl.u32 %v55, 7
  %v57 = vsub.s32 3, %v56
  %v58 = vrot.slane %v41, %v57
  %59 = vrot.lane.b32.xlu0 %v46, 111
  %v60 = vpop.permute.xlu0 %59
  %61 = vrot.lane.b32.xlu0 %v50, 111
  %v62 = vpop.permute.xlu0 %61
  %63 = vrot.lane.b32.xlu0 %v54, 111
  %v64 = vpop.permute.xlu0 %63
  %65 = vrot.lane.b32.xlu0 %v58, 111
  %v66 = vpop.permute.xlu0 %65
  %vm67 = vcmask 908288
  %v68 = vsel %vm67, %v60, %v62
  %v69 = vsel %vm67, %v62, %v64
  %v70 = vsel %vm67, %v64, %v66
  %v76 = vmul.f32 %v29, %v60
  %v77 = vmul.f32 %v30, %v68
  %v78 = vmul.f32 %v31, %v69
  %v79 = vmul.f32 %v32, %v70
  %v80 = vmul.f32 %v33, %v66
  %v81 = vmul.f32 %v35, %v60
  %v82 = vmul.f32 %v36, %v68
  %v83 = vmul.f32 %v37, %v69
  %v84 = vmul.f32 %v38, %v70
  %v85 = vmul.f32 %v39, %v66
  %v86 = vld [vmem:[%s2] sm:$0xff]
  %v87 = vld [vmem:[%s2 + $0x8] sm:$0xff]
  %s88 = scalar_lea.vmem %s1, 4
  %v89 = vld [vmem:[%s88] sm:$0xf]
  %v91 = vlaneseq
  %v92 = vshrl.u32 %v91, 7
  %v93 = vsub.s32 0, %v92
  %v94 = vrot.slane %v89, %v93
  %v95 = vlaneseq
  %v96 = vshrl.u32 %v95, 7
  %v97 = vsub.s32 1, %v96
  %v98 = vrot.slane %v89, %v97
  %v99 = vlaneseq
  %v100 = vshrl.u32 %v99, 7
  %v101 = vsub.s32 2, %v100
  %v102 = vrot.slane %v89, %v101
  %v103 = vlaneseq
  %v104 = vshrl.u32 %v103, 7
  %v105 = vsub.s32 3, %v104
  %v106 = vrot.slane %v89, %v105
  %107 = vrot.lane.b32.xlu0 %v94, 112
  %v108 = vpop.permute.xlu0 %107
  %109 = vrot.lane.b32.xlu0 %v98, 112
  %v110 = vpop.permute.xlu0 %109
  %111 = vrot.lane.b32.xlu0 %v102, 112
  %v112 = vpop.permute.xlu0 %111
  %113 = vrot.lane.b32.xlu0 %v106, 112
  %v114 = vpop.permute.xlu0 %113
  %vm115 = vcmask 916480
  %v116 = vsel %vm115, %v108, %v110
  %v117 = vsel %vm115, %v110, %v112
  %v118 = vsel %vm115, %v112, %v114
  %v124 = vmul.f32 %v29, %v108
  %v125 = vmul.f32 %v30, %v116
  %v126 = vmul.f32 %v31, %v117
  %v127 = vmul.f32 %v32, %v118
  %v128 = vmul.f32 %v33, %v114
  %v129 = vmul.f32 %v35, %v108
  %v130 = vmul.f32 %v36, %v116
  %v131 = vmul.f32 %v37, %v117
  %v132 = vmul.f32 %v38, %v118
  %v133 = vmul.f32 %v39, %v114
  %s134 = scalar_lea.vmem %s2, 16
  %v135 = vld [vmem:[%s134] sm:$0xff]
  %v136 = vld [vmem:[%s134 + $0x8] sm:$0xff]
  %147 = vrot.lane.b32.xlu0 %v124, 16
  %v148 = vpop.permute.xlu0 %147
  %149 = vrot.lane.b32.xlu0 %v125, 16
  %v150 = vpop.permute.xlu0 %149
  %151 = vrot.lane.b32.xlu0 %v126, 16
  %v152 = vpop.permute.xlu0 %151
  %153 = vrot.lane.b32.xlu0 %v127, 16
  %v154 = vpop.permute.xlu0 %153
  %155 = vrot.lane.b32.xlu0 %v128, 16
  %v156 = vpop.permute.xlu0 %155
  %157 = vrot.lane.b32.xlu0 %v129, 16
  %v158 = vpop.permute.xlu0 %157
  %159 = vrot.lane.b32.xlu0 %v130, 16
  %v160 = vpop.permute.xlu0 %159
  %161 = vrot.lane.b32.xlu0 %v131, 16
  %v162 = vpop.permute.xlu0 %161
  %163 = vrot.lane.b32.xlu0 %v132, 16
  %v164 = vpop.permute.xlu0 %163
  %165 = vrot.lane.b32.xlu0 %v133, 16
  %v166 = vpop.permute.xlu0 %165
  %vm167 = vcmask 130048
  %v168 = vsel %vm167, %v148, %v150
  %v169 = vsel %vm167, %v150, %v152
  %v170 = vsel %vm167, %v152, %v154
  %v171 = vsel %vm167, %v154, %v156
  %v172 = vsel %vm167, %v158, %v160
  %v173 = vsel %vm167, %v160, %v162
  %v174 = vsel %vm167, %v162, %v164
  %v175 = vsel %vm167, %v164, %v166
  %v185 = vsel %vm167, %v135, 0
  %v188 = vsel %vm167, %v136, 0
  %190 = vmatprep.subr.mxu0 %v169
  %191 = vmatpush1.msra.mxu0 %v168
  %192 = vmatprep.subr.mxu0 %v173
  %193 = vmatpush1.msra.mxu0 %v172
  %194 = vmatprep.subr.mxu0 0.0
  %195 = vmatpush1.msra.mxu0 0.0
  %196 = vmatprep.subr.mxu0 0.0
  %197 = vmatpush1.msra.mxu0 0.0
  %198 = vmatprep.subr.mxu0 0.0
  %199 = vmatpush1.msra.mxu0 0.0
  %200 = vmatprep.subr.mxu0 0.0
  %201 = vmatpush1.msra.mxu0 0.0
  %202 = vmatprep.subr.mxu0 0.0
  %203 = vmatpush1.msra.mxu0 0.0
  %204 = vmatprep.subr.mxu0 0.0
  %205 = vmatpush1.msra.mxu0 0.0
  %206 = vmatprep.subr.mxu0 0.0
  %207 = vmatpush1.msra.mxu0 0.0
  %208 = vmatprep.subr.mxu0 0.0
  %209 = vmatpush1.msra.mxu0 0.0
  %210 = vmatprep.subr.mxu0 0.0
  %211 = vmatpush1.msra.mxu0 0.0
  %212 = vmatprep.subr.mxu0 0.0
  %213 = vmatpush1.msra.mxu0 0.0
  %214 = vmatprep.subr.mxu0 0.0
  %215 = vmatpush1.msra.mxu0 0.0
  %216 = vmatprep.subr.mxu0 0.0
  %217 = vmatpush1.msra.mxu0 0.0
  %218 = vmatprep.subr.mxu0 0.0
  %219 = vmatpush1.msra.mxu0 0.0
  %220 = vmatprep.subr.mxu0 0.0
  %221 = vmatpush1.msra.mxu0 0.0
  %222 = vmatprep.subr.mxu0 0.0
  %223 = vmatpush1.msra.mxu0 0.0
  %224 = vmatprep.subr.mxu0 0.0
  %225 = vmatpush1.msra.mxu0 0.0
  %226 = vmatprep.subr.mxu0 0.0
  %227 = vmatpush1.msra.mxu0 0.0
  %228 = vmatprep.subr.mxu0 0.0
  %229 = vmatpush1.msra.mxu0 0.0
  %230 = vmatprep.subr.mxu0 0.0
  %231 = vmatpush1.msra.mxu0 0.0
  %232 = vmatprep.subr.mxu0 0.0
  %233 = vmatpush1.msra.mxu0 0.0
  %234 = vmatprep.subr.mxu0 0.0
  %235 = vmatpush1.msra.mxu0 0.0
  %236 = vmatprep.subr.mxu0 0.0
  %237 = vmatpush1.msra.mxu0 0.0
  %238 = vmatprep.subr.mxu0 0.0
  %239 = vmatpush1.msra.mxu0 0.0
  %240 = vmatprep.subr.mxu0 0.0
  %241 = vmatpush1.msra.mxu0 0.0
  %242 = vmatprep.subr.mxu0 0.0
  %243 = vmatpush1.msra.mxu0 0.0
  %244 = vmatprep.subr.mxu0 0.0
  %245 = vmatpush1.msra.mxu0 0.0
  %246 = vmatprep.subr.mxu0 0.0
  %247 = vmatpush1.msra.mxu0 0.0
  %248 = vmatprep.subr.mxu0 0.0
  %249 = vmatpush1.msra.mxu0 0.0
  %250 = vmatprep.subr.mxu0 0.0
  %251 = vmatpush1.msra.mxu0 0.0
  %252 = vmatprep.subr.mxu0 0.0
  %253 = vmatpush1.msra.mxu0 0.0
  %254 = vmatprep.mubr.f32.mxu0 0.0
  %255 = vmatmul.mubr.f32.gmra.mrb[0].mxu0 %v185
  %v256 = vpop.f32.mrb[0].mxu0
  %v257 = vadd.f32 0.0, %v256
  %v258 = vpop.f32.mrb[0].mxu0
  %v259 = vadd.f32 0.0, %v258
  %260 = vmatprep.mubr.f32.mxu0 0.0
  %261 = vmatmul.mubr.f32.gmra.mrb[0].mxu0 %v188
  %v262 = vpop.f32.mrb[0].mxu0
  %v263 = vadd.f32 0.0, %v262
  %v264 = vpop.f32.mrb[0].mxu0
  %v265 = vadd.f32 0.0, %v264
  %266 = vdwg.mxu0
  %267 = vmatprep.subr.mxu0 %v171
  %268 = vmatpush1.msra.mxu0 %v170
  %269 = vmatprep.subr.mxu0 %v175
  %270 = vmatpush1.msra.mxu0 %v174
  %271 = vmatprep.subr.mxu0 0.0
  %272 = vmatpush1.msra.mxu0 0.0
  %273 = vmatprep.subr.mxu0 0.0
  %274 = vmatpush1.msra.mxu0 0.0
  %275 = vmatprep.subr.mxu0 0.0
  %276 = vmatpush1.msra.mxu0 0.0
  %277 = vmatprep.subr.mxu0 0.0
  %278 = vmatpush1.msra.mxu0 0.0
  %279 = vmatprep.subr.mxu0 0.0
  %280 = vmatpush1.msra.mxu0 0.0
  %281 = vmatprep.subr.mxu0 0.0
  %282 = vmatpush1.msra.mxu0 0.0
  %283 = vmatprep.subr.mxu0 0.0
  %284 = vmatpush1.msra.mxu0 0.0
  %285 = vmatprep.subr.mxu0 0.0
  %286 = vmatpush1.msra.mxu0 0.0
  %287 = vmatprep.subr.mxu0 0.0
  %288 = vmatpush1.msra.mxu0 0.0
  %289 = vmatprep.subr.mxu0 0.0
  %290 = vmatpush1.msra.mxu0 0.0
  %291 = vmatprep.subr.mxu0 0.0
  %292 = vmatpush1.msra.mxu0 0.0
  %293 = vmatprep.subr.mxu0 0.0
  %294 = vmatpush1.msra.mxu0 0.0
  %295 = vmatprep.subr.mxu0 0.0
  %296 = vmatpush1.msra.mxu0 0.0
  %297 = vmatprep.subr.mxu0 0.0
  %298 = vmatpush1.msra.mxu0 0.0
  %299 = vmatprep.subr.mxu0 0.0
  %300 = vmatpush1.msra.mxu0 0.0
  %301 = vmatprep.subr.mxu0 0.0
  %302 = vmatpush1.msra.mxu0 0.0
  %303 = vmatprep.subr.mxu0 0.0
  %304 = vmatpush1.msra.mxu0 0.0
  %305 = vmatprep.subr.mxu0 0.0
  %306 = vmatpush1.msra.mxu0 0.0
  %307 = vmatprep.subr.mxu0 0.0
  %308 = vmatpush1.msra.mxu0 0.0
  %309 = vmatprep.subr.mxu0 0.0
  %310 = vmatpush1.msra.mxu0 0.0
  %311 = vmatprep.subr.mxu0 0.0
  %312 = vmatpush1.msra.mxu0 0.0
  %313 = vmatprep.subr.mxu0 0.0
  %314 = vmatpush1.msra.mxu0 0.0
  %315 = vmatprep.subr.mxu0 0.0
  %316 = vmatpush1.msra.mxu0 0.0
  %317 = vmatprep.subr.mxu0 0.0
  %318 = vmatpush1.msra.mxu0 0.0
  %319 = vmatprep.subr.mxu0 0.0
  %320 = vmatpush1.msra.mxu0 0.0
  %321 = vmatprep.subr.mxu0 0.0
  %322 = vmatpush1.msra.mxu0 0.0
  %323 = vmatprep.subr.mxu0 0.0
  %324 = vmatpush1.msra.mxu0 0.0
  %325 = vmatprep.subr.mxu0 0.0
  %326 = vmatpush1.msra.mxu0 0.0
  %327 = vmatprep.subr.mxu0 0.0
  %328 = vmatpush1.msra.mxu0 0.0
  %329 = vmatprep.subr.mxu0 0.0
  %330 = vmatpush1.msra.mxu0 0.0
  %331 = vmatprep.mubr.f32.mxu0 0.0
  %332 = vmatmul.mubr.f32.gmra.mrb[0].mxu0 %v185
  %v333 = vpop.f32.mrb[0].mxu0
  %v334 = vadd.f32 0.0, %v333
  %v335 = vpop.f32.mrb[0].mxu0
  %v336 = vadd.f32 0.0, %v335
  %337 = vmatprep.mubr.f32.mxu0 0.0
  %338 = vmatmul.mubr.f32.gmra.mrb[0].mxu0 %v188
  %v339 = vpop.f32.mrb[0].mxu0
  %v340 = vadd.f32 0.0, %v339
  %v341 = vpop.f32.mrb[0].mxu0
  %v342 = vadd.f32 0.0, %v341
  %343 = vdwg.mxu0
  %354 = vrot.lane.b32.xlu0 %v76, 17
  %v355 = vpop.permute.xlu0 %354
  %356 = vrot.lane.b32.xlu0 %v77, 17
  %v357 = vpop.permute.xlu0 %356
  %358 = vrot.lane.b32.xlu0 %v78, 17
  %v359 = vpop.permute.xlu0 %358
  %360 = vrot.lane.b32.xlu0 %v79, 17
  %v361 = vpop.permute.xlu0 %360
  %362 = vrot.lane.b32.xlu0 %v80, 17
  %v363 = vpop.permute.xlu0 %362
  %364 = vrot.lane.b32.xlu0 %v81, 17
  %v365 = vpop.permute.xlu0 %364
  %366 = vrot.lane.b32.xlu0 %v82, 17
  %v367 = vpop.permute.xlu0 %366
  %368 = vrot.lane.b32.xlu0 %v83, 17
  %v369 = vpop.permute.xlu0 %368
  %370 = vrot.lane.b32.xlu0 %v84, 17
  %v371 = vpop.permute.xlu0 %370
  %372 = vrot.lane.b32.xlu0 %v85, 17
  %v373 = vpop.permute.xlu0 %372
  %vm374 = vcmask 138240
  %v375 = vsel %vm374, %v355, %v357
  %v376 = vsel %vm374, %v357, %v359
  %v377 = vsel %vm374, %v359, %v361
  %v378 = vsel %vm374, %v361, %v363
  %v379 = vsel %vm374, %v365, %v367
  %v380 = vsel %vm374, %v367, %v369
  %v381 = vsel %vm374, %v369, %v371
  %v382 = vsel %vm374, %v371, %v373
  %v392 = vsel %vm167, %v86, 0
  %v395 = vsel %vm167, %v87, 0
  %397 = vmatprep.subr.mxu0 %v376
  %398 = vmatpush1.msra.mxu0 %v375
  %399 = vmatprep.subr.mxu0 %v380
  %400 = vmatpush1.msra.mxu0 %v379
  %401 = vmatprep.subr.mxu0 0.0
  %402 = vmatpush1.msra.mxu0 0.0
  %403 = vmatprep.subr.mxu0 0.0
  %404 = vmatpush1.msra.mxu0 0.0
  %405 = vmatprep.subr.mxu0 0.0
  %406 = vmatpush1.msra.mxu0 0.0
  %407 = vmatprep.subr.mxu0 0.0
  %408 = vmatpush1.msra.mxu0 0.0
  %409 = vmatprep.subr.mxu0 0.0
  %410 = vmatpush1.msra.mxu0 0.0
  %411 = vmatprep.subr.mxu0 0.0
  %412 = vmatpush1.msra.mxu0 0.0
  %413 = vmatprep.subr.mxu0 0.0
  %414 = vmatpush1.msra.mxu0 0.0
  %415 = vmatprep.subr.mxu0 0.0
  %416 = vmatpush1.msra.mxu0 0.0
  %417 = vmatprep.subr.mxu0 0.0
  %418 = vmatpush1.msra.mxu0 0.0
  %419 = vmatprep.subr.mxu0 0.0
  %420 = vmatpush1.msra.mxu0 0.0
  %421 = vmatprep.subr.mxu0 0.0
  %422 = vmatpush1.msra.mxu0 0.0
  %423 = vmatprep.subr.mxu0 0.0
  %424 = vmatpush1.msra.mxu0 0.0
  %425 = vmatprep.subr.mxu0 0.0
  %426 = vmatpush1.msra.mxu0 0.0
  %427 = vmatprep.subr.mxu0 0.0
  %428 = vmatpush1.msra.mxu0 0.0
  %429 = vmatprep.subr.mxu0 0.0
  %430 = vmatpush1.msra.mxu0 0.0
  %431 = vmatprep.subr.mxu0 0.0
  %432 = vmatpush1.msra.mxu0 0.0
  %433 = vmatprep.subr.mxu0 0.0
  %434 = vmatpush1.msra.mxu0 0.0
  %435 = vmatprep.subr.mxu0 0.0
  %436 = vmatpush1.msra.mxu0 0.0
  %437 = vmatprep.subr.mxu0 0.0
  %438 = vmatpush1.msra.mxu0 0.0
  %439 = vmatprep.subr.mxu0 0.0
  %440 = vmatpush1.msra.mxu0 0.0
  %441 = vmatprep.subr.mxu0 0.0
  %442 = vmatpush1.msra.mxu0 0.0
  %443 = vmatprep.subr.mxu0 0.0
  %444 = vmatpush1.msra.mxu0 0.0
  %445 = vmatprep.subr.mxu0 0.0
  %446 = vmatpush1.msra.mxu0 0.0
  %447 = vmatprep.subr.mxu0 0.0
  %448 = vmatpush1.msra.mxu0 0.0
  %449 = vmatprep.subr.mxu0 0.0
  %450 = vmatpush1.msra.mxu0 0.0
  %451 = vmatprep.subr.mxu0 0.0
  %452 = vmatpush1.msra.mxu0 0.0
  %453 = vmatprep.subr.mxu0 0.0
  %454 = vmatpush1.msra.mxu0 0.0
  %455 = vmatprep.subr.mxu0 0.0
  %456 = vmatpush1.msra.mxu0 0.0
  %457 = vmatprep.subr.mxu0 0.0
  %458 = vmatpush1.msra.mxu0 0.0
  %459 = vmatprep.subr.mxu0 0.0
  %460 = vmatpush1.msra.mxu0 0.0
  %461 = vmatprep.mubr.f32.mxu0 0.0
  %462 = vmatmul.mubr.f32.gmra.mrb[0].mxu0 %v392
  %v463 = vpop.f32.mrb[0].mxu0
  %v464 = vadd.f32 %v257, %v463
  %v465 = vpop.f32.mrb[0].mxu0
  %v466 = vadd.f32 %v259, %v465
  %467 = vmatprep.mubr.f32.mxu0 0.0
  %468 = vmatmul.mubr.f32.gmra.mrb[0].mxu0 %v395
  %v469 = vpop.f32.mrb[0].mxu0
  %v470 = vadd.f32 %v263, %v469
  %v471 = vpop.f32.mrb[0].mxu0
  %v472 = vadd.f32 %v265, %v471
  %473 = vdwg.mxu0
  %474 = vmatprep.subr.mxu0 %v378
  %475 = vmatpush1.msra.mxu0 %v377
  %476 = vmatprep.subr.mxu0 %v382
  %477 = vmatpush1.msra.mxu0 %v381
  %478 = vmatprep.subr.mxu0 0.0
  %479 = vmatpush1.msra.mxu0 0.0
  %480 = vmatprep.subr.mxu0 0.0
  %481 = vmatpush1.msra.mxu0 0.0
  %482 = vmatprep.subr.mxu0 0.0
  %483 = vmatpush1.msra.mxu0 0.0
  %484 = vmatprep.subr.mxu0 0.0
  %485 = vmatpush1.msra.mxu0 0.0
  %486 = vmatprep.subr.mxu0 0.0
  %487 = vmatpush1.msra.mxu0 0.0
  %488 = vmatprep.subr.mxu0 0.0
  %489 = vmatpush1.msra.mxu0 0.0
  %490 = vmatprep.subr.mxu0 0.0
  %491 = vmatpush1.msra.mxu0 0.0
  %492 = vmatprep.subr.mxu0 0.0
  %493 = vmatpush1.msra.mxu0 0.0
  %494 = vmatprep.subr.mxu0 0.0
  %495 = vmatpush1.msra.mxu0 0.0
  %496 = vmatprep.subr.mxu0 0.0
  %497 = vmatpush1.msra.mxu0 0.0
  %498 = vmatprep.subr.mxu0 0.0
  %499 = vmatpush1.msra.mxu0 0.0
  %500 = vmatprep.subr.mxu0 0.0
  %501 = vmatpush1.msra.mxu0 0.0
  %502 = vmatprep.subr.mxu0 0.0
  %503 = vmatpush1.msra.mxu0 0.0
  %504 = vmatprep.subr.mxu0 0.0
  %505 = vmatpush1.msra.mxu0 0.0
  %506 = vmatprep.subr.mxu0 0.0
  %507 = vmatpush1.msra.mxu0 0.0
  %508 = vmatprep.subr.mxu0 0.0
  %509 = vmatpush1.msra.mxu0 0.0
  %510 = vmatprep.subr.mxu0 0.0
  %511 = vmatpush1.msra.mxu0 0.0
  %512 = vmatprep.subr.mxu0 0.0
  %513 = vmatpush1.msra.mxu0 0.0
  %514 = vmatprep.subr.mxu0 0.0
  %515 = vmatpush1.msra.mxu0 0.0
  %516 = vmatprep.subr.mxu0 0.0
  %517 = vmatpush1.msra.mxu0 0.0
  %518 = vmatprep.subr.mxu0 0.0
  %519 = vmatpush1.msra.mxu0 0.0
  %520 = vmatprep.subr.mxu0 0.0
  %521 = vmatpush1.msra.mxu0 0.0
  %522 = vmatprep.subr.mxu0 0.0
  %523 = vmatpush1.msra.mxu0 0.0
  %524 = vmatprep.subr.mxu0 0.0
  %525 = vmatpush1.msra.mxu0 0.0
  %526 = vmatprep.subr.mxu0 0.0
  %527 = vmatpush1.msra.mxu0 0.0
  %528 = vmatprep.subr.mxu0 0.0
  %529 = vmatpush1.msra.mxu0 0.0
  %530 = vmatprep.subr.mxu0 0.0
  %531 = vmatpush1.msra.mxu0 0.0
  %532 = vmatprep.subr.mxu0 0.0
  %533 = vmatpush1.msra.mxu0 0.0
  %534 = vmatprep.subr.mxu0 0.0
  %535 = vmatpush1.msra.mxu0 0.0
  %536 = vmatprep.subr.mxu0 0.0
  %537 = vmatpush1.msra.mxu0 0.0
  %538 = vmatprep.mubr.f32.mxu0 0.0
  %539 = vmatmul.mubr.f32.gmra.mrb[0].mxu0 %v392
  %v540 = vpop.f32.mrb[0].mxu0
  %v541 = vadd.f32 %v334, %v540
  %v542 = vpop.f32.mrb[0].mxu0
  %v543 = vadd.f32 %v336, %v542
  %544 = vmatprep.mubr.f32.mxu0 0.0
  %545 = vmatmul.mubr.f32.gmra.mrb[0].mxu0 %v395
  %v546 = vpop.f32.mrb[0].mxu0
  %v547 = vadd.f32 %v340, %v546
  %v548 = vpop.f32.mrb[0].mxu0
  %v549 = vadd.f32 %v342, %v548
  %550 = vdwg.mxu0
  %s551 = scalar_lea.vmem %s1, 8
  %v552 = vld [vmem:[%s551] sm:$0xf]
  %v554 = vlaneseq
  %v555 = vshrl.u32 %v554, 7
  %v556 = vsub.s32 0, %v555
  %v557 = vrot.slane %v552, %v556
  %v558 = vlaneseq
  %v559 = vshrl.u32 %v558, 7
  %v560 = vsub.s32 1, %v559
  %v561 = vrot.slane %v552, %v560
  %v562 = vlaneseq
  %v563 = vshrl.u32 %v562, 7
  %v564 = vsub.s32 2, %v563
  %v565 = vrot.slane %v552, %v564
  %v566 = vlaneseq
  %v567 = vshrl.u32 %v566, 7
  %v568 = vsub.s32 3, %v567
  %v569 = vrot.slane %v552, %v568
  %570 = vrot.lane.b32.xlu0 %v557, 113
  %v571 = vpop.permute.xlu0 %570
  %572 = vrot.lane.b32.xlu0 %v561, 113
  %v573 = vpop.permute.xlu0 %572
  %574 = vrot.lane.b32.xlu0 %v565, 113
  %v575 = vpop.permute.xlu0 %574
  %576 = vrot.lane.b32.xlu0 %v569, 113
  %v577 = vpop.permute.xlu0 %576
  %vm578 = vcmask 924672
  %v579 = vsel %vm578, %v571, %v573
  %v580 = vsel %vm578, %v573, %v575
  %v581 = vsel %vm578, %v575, %v577
  %v587 = vmul.f32 %v29, %v571
  %v588 = vmul.f32 %v30, %v579
  %v589 = vmul.f32 %v31, %v580
  %v590 = vmul.f32 %v32, %v581
  %v591 = vmul.f32 %v33, %v577
  %v592 = vmul.f32 %v35, %v571
  %v593 = vmul.f32 %v36, %v579
  %v594 = vmul.f32 %v37, %v580
  %v595 = vmul.f32 %v38, %v581
  %v596 = vmul.f32 %v39, %v577
  %s597 = scalar_lea.vmem %s2, 32
  %v598 = vld [vmem:[%s597] sm:$0xff]
  %v599 = vld [vmem:[%s597 + $0x8] sm:$0xff]
  %610 = vrot.lane.b32.xlu0 %v587, 15
  %v611 = vpop.permute.xlu0 %610
  %612 = vrot.lane.b32.xlu0 %v588, 15
  %v613 = vpop.permute.xlu0 %612
  %614 = vrot.lane.b32.xlu0 %v589, 15
  %v615 = vpop.permute.xlu0 %614
  %616 = vrot.lane.b32.xlu0 %v590, 15
  %v617 = vpop.permute.xlu0 %616
  %618 = vrot.lane.b32.xlu0 %v591, 15
  %v619 = vpop.permute.xlu0 %618
  %620 = vrot.lane.b32.xlu0 %v592, 15
  %v621 = vpop.permute.xlu0 %620
  %622 = vrot.lane.b32.xlu0 %v593, 15
  %v623 = vpop.permute.xlu0 %622
  %624 = vrot.lane.b32.xlu0 %v594, 15
  %v625 = vpop.permute.xlu0 %624
  %626 = vrot.lane.b32.xlu0 %v595, 15
  %v627 = vpop.permute.xlu0 %626
  %628 = vrot.lane.b32.xlu0 %v596, 15
  %v629 = vpop.permute.xlu0 %628
  %vm630 = vcmask 121856
  %v631 = vsel %vm630, %v611, %v613
  %v632 = vsel %vm630, %v613, %v615
  %v633 = vsel %vm630, %v615, %v617
  %v634 = vsel %vm630, %v617, %v619
  %v635 = vsel %vm630, %v621, %v623
  %v636 = vsel %vm630, %v623, %v625
  %v637 = vsel %vm630, %v625, %v627
  %v638 = vsel %vm630, %v627, %v629
  %v648 = vsel %vm167, %v598, 0
  %v651 = vsel %vm167, %v599, 0
  %653 = vmatprep.subr.mxu0 %v632
  %654 = vmatpush1.msra.mxu0 %v631
  %655 = vmatprep.subr.mxu0 %v636
  %656 = vmatpush1.msra.mxu0 %v635
  %657 = vmatprep.subr.mxu0 0.0
  %658 = vmatpush1.msra.mxu0 0.0
  %659 = vmatprep.subr.mxu0 0.0
  %660 = vmatpush1.msra.mxu0 0.0
  %661 = vmatprep.subr.mxu0 0.0
  %662 = vmatpush1.msra.mxu0 0.0
  %663 = vmatprep.subr.mxu0 0.0
  %664 = vmatpush1.msra.mxu0 0.0
  %665 = vmatprep.subr.mxu0 0.0
  %666 = vmatpush1.msra.mxu0 0.0
  %667 = vmatprep.subr.mxu0 0.0
  %668 = vmatpush1.msra.mxu0 0.0
  %669 = vmatprep.subr.mxu0 0.0
  %670 = vmatpush1.msra.mxu0 0.0
  %671 = vmatprep.subr.mxu0 0.0
  %672 = vmatpush1.msra.mxu0 0.0
  %673 = vmatprep.subr.mxu0 0.0
  %674 = vmatpush1.msra.mxu0 0.0
  %675 = vmatprep.subr.mxu0 0.0
  %676 = vmatpush1.msra.mxu0 0.0
  %677 = vmatprep.subr.mxu0 0.0
  %678 = vmatpush1.msra.mxu0 0.0
  %679 = vmatprep.subr.mxu0 0.0
  %680 = vmatpush1.msra.mxu0 0.0
  %681 = vmatprep.subr.mxu0 0.0
  %682 = vmatpush1.msra.mxu0 0.0
  %683 = vmatprep.subr.mxu0 0.0
  %684 = vmatpush1.msra.mxu0 0.0
  %685 = vmatprep.subr.mxu0 0.0
  %686 = vmatpush1.msra.mxu0 0.0
  %687 = vmatprep.subr.mxu0 0.0
  %688 = vmatpush1.msra.mxu0 0.0
  %689 = vmatprep.subr.mxu0 0.0
  %690 = vmatpush1.msra.mxu0 0.0
  %691 = vmatprep.subr.mxu0 0.0
  %692 = vmatpush1.msra.mxu0 0.0
  %693 = vmatprep.subr.mxu0 0.0
  %694 = vmatpush1.msra.mxu0 0.0
  %695 = vmatprep.subr.mxu0 0.0
  %696 = vmatpush1.msra.mxu0 0.0
  %697 = vmatprep.subr.mxu0 0.0
  %698 = vmatpush1.msra.mxu0 0.0
  %699 = vmatprep.subr.mxu0 0.0
  %700 = vmatpush1.msra.mxu0 0.0
  %701 = vmatprep.subr.mxu0 0.0
  %702 = vmatpush1.msra.mxu0 0.0
  %703 = vmatprep.subr.mxu0 0.0
  %704 = vmatpush1.msra.mxu0 0.0
  %705 = vmatprep.subr.mxu0 0.0
  %706 = vmatpush1.msra.mxu0 0.0
  %707 = vmatprep.subr.mxu0 0.0
  %708 = vmatpush1.msra.mxu0 0.0
  %709 = vmatprep.subr.mxu0 0.0
  %710 = vmatpush1.msra.mxu0 0.0
  %711 = vmatprep.subr.mxu0 0.0
  %712 = vmatpush1.msra.mxu0 0.0
  %713 = vmatprep.subr.mxu0 0.0
  %714 = vmatpush1.msra.mxu0 0.0
  %715 = vmatprep.subr.mxu0 0.0
  %716 = vmatpush1.msra.mxu0 0.0
  %717 = vmatprep.mubr.f32.mxu0 0.0
  %718 = vmatmul.mubr.f32.gmra.mrb[0].mxu0 %v648
  %v719 = vpop.f32.mrb[0].mxu0
  %v720 = vadd.f32 0.0, %v719
  %v721 = vpop.f32.mrb[0].mxu0
  %v722 = vadd.f32 0.0, %v721
  %723 = vmatprep.mubr.f32.mxu0 0.0
  %724 = vmatmul.mubr.f32.gmra.mrb[0].mxu0 %v651
  %v725 = vpop.f32.mrb[0].mxu0
  %v726 = vadd.f32 0.0, %v725
  %v727 = vpop.f32.mrb[0].mxu0
  %v728 = vadd.f32 0.0, %v727
  %729 = vdwg.mxu0
  %730 = vmatprep.subr.mxu0 %v634
  %731 = vmatpush1.msra.mxu0 %v633
  %732 = vmatprep.subr.mxu0 %v638
  %733 = vmatpush1.msra.mxu0 %v637
  %734 = vmatprep.subr.mxu0 0.0
  %735 = vmatpush1.msra.mxu0 0.0
  %736 = vmatprep.subr.mxu0 0.0
  %737 = vmatpush1.msra.mxu0 0.0
  %738 = vmatprep.subr.mxu0 0.0
  %739 = vmatpush1.msra.mxu0 0.0
  %740 = vmatprep.subr.mxu0 0.0
  %741 = vmatpush1.msra.mxu0 0.0
  %742 = vmatprep.subr.mxu0 0.0
  %743 = vmatpush1.msra.mxu0 0.0
  %744 = vmatprep.subr.mxu0 0.0
  %745 = vmatpush1.msra.mxu0 0.0
  %746 = vmatprep.subr.mxu0 0.0
  %747 = vmatpush1.msra.mxu0 0.0
  %748 = vmatprep.subr.mxu0 0.0
  %749 = vmatpush1.msra.mxu0 0.0
  %750 = vmatprep.subr.mxu0 0.0
  %751 = vmatpush1.msra.mxu0 0.0
  %752 = vmatprep.subr.mxu0 0.0
  %753 = vmatpush1.msra.mxu0 0.0
  %754 = vmatprep.subr.mxu0 0.0
  %755 = vmatpush1.msra.mxu0 0.0
  %756 = vmatprep.subr.mxu0 0.0
  %757 = vmatpush1.msra.mxu0 0.0
  %758 = vmatprep.subr.mxu0 0.0
  %759 = vmatpush1.msra.mxu0 0.0
  %760 = vmatprep.subr.mxu0 0.0
  %761 = vmatpush1.msra.mxu0 0.0
  %762 = vmatprep.subr.mxu0 0.0
  %763 = vmatpush1.msra.mxu0 0.0
  %764 = vmatprep.subr.mxu0 0.0
  %765 = vmatpush1.msra.mxu0 0.0
  %766 = vmatprep.subr.mxu0 0.0
  %767 = vmatpush1.msra.mxu0 0.0
  %768 = vmatprep.subr.mxu0 0.0
  %769 = vmatpush1.msra.mxu0 0.0
  %770 = vmatprep.subr.mxu0 0.0
  %771 = vmatpush1.msra.mxu0 0.0
  %772 = vmatprep.subr.mxu0 0.0
  %773 = vmatpush1.msra.mxu0 0.0
  %774 = vmatprep.subr.mxu0 0.0
  %775 = vmatpush1.msra.mxu0 0.0
  %776 = vmatprep.subr.mxu0 0.0
  %777 = vmatpush1.msra.mxu0 0.0
  %778 = vmatprep.subr.mxu0 0.0
  %779 = vmatpush1.msra.mxu0 0.0
  %780 = vmatprep.subr.mxu0 0.0
  %781 = vmatpush1.msra.mxu0 0.0
  %782 = vmatprep.subr.mxu0 0.0
  %783 = vmatpush1.msra.mxu0 0.0
  %784 = vmatprep.subr.mxu0 0.0
  %785 = vmatpush1.msra.mxu0 0.0
  %786 = vmatprep.subr.mxu0 0.0
  %787 = vmatpush1.msra.mxu0 0.0
  %788 = vmatprep.subr.mxu0 0.0
  %789 = vmatpush1.msra.mxu0 0.0
  %790 = vmatprep.subr.mxu0 0.0
  %791 = vmatpush1.msra.mxu0 0.0
  %792 = vmatprep.subr.mxu0 0.0
  %793 = vmatpush1.msra.mxu0 0.0
  %794 = vmatprep.mubr.f32.mxu0 0.0
  %795 = vmatmul.mubr.f32.gmra.mrb[0].mxu0 %v648
  %v796 = vpop.f32.mrb[0].mxu0
  %v797 = vadd.f32 0.0, %v796
  %v798 = vpop.f32.mrb[0].mxu0
  %v799 = vadd.f32 0.0, %v798
  %800 = vmatprep.mubr.f32.mxu0 0.0
  %801 = vmatmul.mubr.f32.gmra.mrb[0].mxu0 %v651
  %v802 = vpop.f32.mrb[0].mxu0
  %v803 = vadd.f32 0.0, %v802
  %v804 = vpop.f32.mrb[0].mxu0
  %v805 = vadd.f32 0.0, %v804
  %806 = vdwg.mxu0
  %v807 = vadd.f32 %v464, %v720
  %v808 = vadd.f32 %v466, %v722
  %v809 = vadd.f32 %v541, %v797
  %v810 = vadd.f32 %v543, %v799
  %v811 = vadd.f32 %v470, %v726
  %v812 = vadd.f32 %v472, %v728
  %v813 = vadd.f32 %v547, %v803
  %v814 = vadd.f32 %v549, %v805
  %s815 = scalar_lea.vmem %s1, 12
  %v816 = vld [vmem:[%s815] sm:$0xf]
  %v818 = vlaneseq
  %v819 = vshrl.u32 %v818, 7
  %v820 = vsub.s32 0, %v819
  %v821 = vrot.slane %v816, %v820
  %v822 = vlaneseq
  %v823 = vshrl.u32 %v822, 7
  %v824 = vsub.s32 1, %v823
  %v825 = vrot.slane %v816, %v824
  %v826 = vlaneseq
  %v827 = vshrl.u32 %v826, 7
  %v828 = vsub.s32 2, %v827
  %v829 = vrot.slane %v816, %v828
  %v830 = vlaneseq
  %v831 = vshrl.u32 %v830, 7
  %v832 = vsub.s32 3, %v831
  %v833 = vrot.slane %v816, %v832
  %834 = vrot.lane.b32.xlu0 %v821, 127
  %v835 = vpop.permute.xlu0 %834
  %836 = vrot.lane.b32.xlu0 %v825, 127
  %v837 = vpop.permute.xlu0 %836
  %838 = vrot.lane.b32.xlu0 %v829, 127
  %v839 = vpop.permute.xlu0 %838
  %840 = vrot.lane.b32.xlu0 %v833, 127
  %v841 = vpop.permute.xlu0 %840
  %vm842 = vcmask 1039360
  %v843 = vsel %vm842, %v835, %v837
  %v844 = vsel %vm842, %v837, %v839
  %v845 = vsel %vm842, %v839, %v841
  %v851 = vmul.f32 %v29, %v835
  %v852 = vmul.f32 %v30, %v843
  %v853 = vmul.f32 %v31, %v844
  %v854 = vmul.f32 %v32, %v845
  %v855 = vmul.f32 %v33, %v841
  %v856 = vmul.f32 %v35, %v835
  %v857 = vmul.f32 %v36, %v843
  %v858 = vmul.f32 %v37, %v844
  %v859 = vmul.f32 %v38, %v845
  %v860 = vmul.f32 %v39, %v841
  %s861 = scalar_lea.vmem %s2, 48
  %v862 = vld [vmem:[%s861] sm:$0xff]
  %v863 = vld [vmem:[%s861 + $0x8] sm:$0xff]
  %874 = vrot.lane.b32.xlu0 %v851, 1
  %v875 = vpop.permute.xlu0 %874
  %876 = vrot.lane.b32.xlu0 %v852, 1
  %v877 = vpop.permute.xlu0 %876
  %878 = vrot.lane.b32.xlu0 %v853, 1
  %v879 = vpop.permute.xlu0 %878
  %880 = vrot.lane.b32.xlu0 %v854, 1
  %v881 = vpop.permute.xlu0 %880
  %882 = vrot.lane.b32.xlu0 %v855, 1
  %v883 = vpop.permute.xlu0 %882
  %884 = vrot.lane.b32.xlu0 %v856, 1
  %v885 = vpop.permute.xlu0 %884
  %886 = vrot.lane.b32.xlu0 %v857, 1
  %v887 = vpop.permute.xlu0 %886
  %888 = vrot.lane.b32.xlu0 %v858, 1
  %v889 = vpop.permute.xlu0 %888
  %890 = vrot.lane.b32.xlu0 %v859, 1
  %v891 = vpop.permute.xlu0 %890
  %892 = vrot.lane.b32.xlu0 %v860, 1
  %v893 = vpop.permute.xlu0 %892
  %vm894 = vcmask 7168
  %v895 = vsel %vm894, %v875, %v877
  %v896 = vsel %vm894, %v877, %v879
  %v897 = vsel %vm894, %v879, %v881
  %v898 = vsel %vm894, %v881, %v883
  %v899 = vsel %vm894, %v885, %v887
  %v900 = vsel %vm894, %v887, %v889
  %v901 = vsel %vm894, %v889, %v891
  %v902 = vsel %vm894, %v891, %v893
  %v912 = vsel %vm167, %v862, 0
  %v915 = vsel %vm167, %v863, 0
  %917 = vmatprep.subr.mxu0 %v896
  %918 = vmatpush1.msra.mxu0 %v895
  %919 = vmatprep.subr.mxu0 %v900
  %920 = vmatpush1.msra.mxu0 %v899
  %921 = vmatprep.subr.mxu0 0.0
  %922 = vmatpush1.msra.mxu0 0.0
  %923 = vmatprep.subr.mxu0 0.0
  %924 = vmatpush1.msra.mxu0 0.0
  %925 = vmatprep.subr.mxu0 0.0
  %926 = vmatpush1.msra.mxu0 0.0
  %927 = vmatprep.subr.mxu0 0.0
  %928 = vmatpush1.msra.mxu0 0.0
  %929 = vmatprep.subr.mxu0 0.0
  %930 = vmatpush1.msra.mxu0 0.0
  %931 = vmatprep.subr.mxu0 0.0
  %932 = vmatpush1.msra.mxu0 0.0
  %933 = vmatprep.subr.mxu0 0.0
  %934 = vmatpush1.msra.mxu0 0.0
  %935 = vmatprep.subr.mxu0 0.0
  %936 = vmatpush1.msra.mxu0 0.0
  %937 = vmatprep.subr.mxu0 0.0
  %938 = vmatpush1.msra.mxu0 0.0
  %939 = vmatprep.subr.mxu0 0.0
  %940 = vmatpush1.msra.mxu0 0.0
  %941 = vmatprep.subr.mxu0 0.0
  %942 = vmatpush1.msra.mxu0 0.0
  %943 = vmatprep.subr.mxu0 0.0
  %944 = vmatpush1.msra.mxu0 0.0
  %945 = vmatprep.subr.mxu0 0.0
  %946 = vmatpush1.msra.mxu0 0.0
  %947 = vmatprep.subr.mxu0 0.0
  %948 = vmatpush1.msra.mxu0 0.0
  %949 = vmatprep.subr.mxu0 0.0
  %950 = vmatpush1.msra.mxu0 0.0
  %951 = vmatprep.subr.mxu0 0.0
  %952 = vmatpush1.msra.mxu0 0.0
  %953 = vmatprep.subr.mxu0 0.0
  %954 = vmatpush1.msra.mxu0 0.0
  %955 = vmatprep.subr.mxu0 0.0
  %956 = vmatpush1.msra.mxu0 0.0
  %957 = vmatprep.subr.mxu0 0.0
  %958 = vmatpush1.msra.mxu0 0.0
  %959 = vmatprep.subr.mxu0 0.0
  %960 = vmatpush1.msra.mxu0 0.0
  %961 = vmatprep.subr.mxu0 0.0
  %962 = vmatpush1.msra.mxu0 0.0
  %963 = vmatprep.subr.mxu0 0.0
  %964 = vmatpush1.msra.mxu0 0.0
  %965 = vmatprep.subr.mxu0 0.0
  %966 = vmatpush1.msra.mxu0 0.0
  %967 = vmatprep.subr.mxu0 0.0
  %968 = vmatpush1.msra.mxu0 0.0
  %969 = vmatprep.subr.mxu0 0.0
  %970 = vmatpush1.msra.mxu0 0.0
  %971 = vmatprep.subr.mxu0 0.0
  %972 = vmatpush1.msra.mxu0 0.0
  %973 = vmatprep.subr.mxu0 0.0
  %974 = vmatpush1.msra.mxu0 0.0
  %975 = vmatprep.subr.mxu0 0.0
  %976 = vmatpush1.msra.mxu0 0.0
  %977 = vmatprep.subr.mxu0 0.0
  %978 = vmatpush1.msra.mxu0 0.0
  %979 = vmatprep.subr.mxu0 0.0
  %980 = vmatpush1.msra.mxu0 0.0
  %981 = vmatprep.mubr.f32.mxu0 0.0
  %982 = vmatmul.mubr.f32.gmra.mrb[0].mxu0 %v912
  %v983 = vpop.f32.mrb[0].mxu0
  %v984 = vadd.f32 0.0, %v983
  %v985 = vpop.f32.mrb[0].mxu0
  %v986 = vadd.f32 0.0, %v985
  %987 = vmatprep.mubr.f32.mxu0 0.0
  %988 = vmatmul.mubr.f32.gmra.mrb[0].mxu0 %v915
  %v989 = vpop.f32.mrb[0].mxu0
  %v990 = vadd.f32 0.0, %v989
  %v991 = vpop.f32.mrb[0].mxu0
  %v992 = vadd.f32 0.0, %v991
  %993 = vdwg.mxu0
  %994 = vmatprep.subr.mxu0 %v898
  %995 = vmatpush1.msra.mxu0 %v897
  %996 = vmatprep.subr.mxu0 %v902
  %997 = vmatpush1.msra.mxu0 %v901
  %998 = vmatprep.subr.mxu0 0.0
  %999 = vmatpush1.msra.mxu0 0.0
  %1000 = vmatprep.subr.mxu0 0.0
  %1001 = vmatpush1.msra.mxu0 0.0
  %1002 = vmatprep.subr.mxu0 0.0
  %1003 = vmatpush1.msra.mxu0 0.0
  %1004 = vmatprep.subr.mxu0 0.0
  %1005 = vmatpush1.msra.mxu0 0.0
  %1006 = vmatprep.subr.mxu0 0.0
  %1007 = vmatpush1.msra.mxu0 0.0
  %1008 = vmatprep.subr.mxu0 0.0
  %1009 = vmatpush1.msra.mxu0 0.0
  %1010 = vmatprep.subr.mxu0 0.0
  %1011 = vmatpush1.msra.mxu0 0.0
  %1012 = vmatprep.subr.mxu0 0.0
  %1013 = vmatpush1.msra.mxu0 0.0
  %1014 = vmatprep.subr.mxu0 0.0
  %1015 = vmatpush1.msra.mxu0 0.0
  %1016 = vmatprep.subr.mxu0 0.0
  %1017 = vmatpush1.msra.mxu0 0.0
  %1018 = vmatprep.subr.mxu0 0.0
  %1019 = vmatpush1.msra.mxu0 0.0
  %1020 = vmatprep.subr.mxu0 0.0
  %1021 = vmatpush1.msra.mxu0 0.0
  %1022 = vmatprep.subr.mxu0 0.0
  %1023 = vmatpush1.msra.mxu0 0.0
  %1024 = vmatprep.subr.mxu0 0.0
  %1025 = vmatpush1.msra.mxu0 0.0
  %1026 = vmatprep.subr.mxu0 0.0
  %1027 = vmatpush1.msra.mxu0 0.0
  %1028 = vmatprep.subr.mxu0 0.0
  %1029 = vmatpush1.msra.mxu0 0.0
  %1030 = vmatprep.subr.mxu0 0.0
  %1031 = vmatpush1.msra.mxu0 0.0
  %1032 = vmatprep.subr.mxu0 0.0
  %1033 = vmatpush1.msra.mxu0 0.0
  %1034 = vmatprep.subr.mxu0 0.0
  %1035 = vmatpush1.msra.mxu0 0.0
  %1036 = vmatprep.subr.mxu0 0.0
  %1037 = vmatpush1.msra.mxu0 0.0
  %1038 = vmatprep.subr.mxu0 0.0
  %1039 = vmatpush1.msra.mxu0 0.0
  %1040 = vmatprep.subr.mxu0 0.0
  %1041 = vmatpush1.msra.mxu0 0.0
  %1042 = vmatprep.subr.mxu0 0.0
  %1043 = vmatpush1.msra.mxu0 0.0
  %1044 = vmatprep.subr.mxu0 0.0
  %1045 = vmatpush1.msra.mxu0 0.0
  %1046 = vmatprep.subr.mxu0 0.0
  %1047 = vmatpush1.msra.mxu0 0.0
  %1048 = vmatprep.subr.mxu0 0.0
  %1049 = vmatpush1.msra.mxu0 0.0
  %1050 = vmatprep.subr.mxu0 0.0
  %1051 = vmatpush1.msra.mxu0 0.0
  %1052 = vmatprep.subr.mxu0 0.0
  %1053 = vmatpush1.msra.mxu0 0.0
  %1054 = vmatprep.subr.mxu0 0.0
  %1055 = vmatpush1.msra.mxu0 0.0
  %1056 = vmatprep.subr.mxu0 0.0
  %1057 = vmatpush1.msra.mxu0 0.0
  %1058 = vmatprep.mubr.f32.mxu0 0.0
  %1059 = vmatmul.mubr.f32.gmra.mrb[0].mxu0 %v912
  %v1060 = vpop.f32.mrb[0].mxu0
  %v1061 = vadd.f32 0.0, %v1060
  %v1062 = vpop.f32.mrb[0].mxu0
  %v1063 = vadd.f32 0.0, %v1062
  %1064 = vmatprep.mubr.f32.mxu0 0.0
  %1065 = vmatmul.mubr.f32.gmra.mrb[0].mxu0 %v915
  %v1066 = vpop.f32.mrb[0].mxu0
  %v1067 = vadd.f32 0.0, %v1066
  %v1068 = vpop.f32.mrb[0].mxu0
  %v1069 = vadd.f32 0.0, %v1068
  %1070 = vdwg.mxu0
  %v1071 = vadd.f32 %v807, %v984
  %v1072 = vadd.f32 %v808, %v986
  %v1073 = vadd.f32 %v809, %v1061
  %v1074 = vadd.f32 %v810, %v1063
  %v1075 = vadd.f32 %v811, %v990
  %v1076 = vadd.f32 %v812, %v992
  %v1077 = vadd.f32 %v813, %v1067
  %v1078 = vadd.f32 %v814, %v1069
  %s1079 = scalar_lea.vmem %s1, 16
  %v1080 = vld [vmem:[%s1079] sm:$0xf]
  %v1082 = vlaneseq
  %v1083 = vshrl.u32 %v1082, 7
  %v1084 = vsub.s32 0, %v1083
  %v1085 = vrot.slane %v1080, %v1084
  %v1086 = vlaneseq
  %v1087 = vshrl.u32 %v1086, 7
  %v1088 = vsub.s32 1, %v1087
  %v1089 = vrot.slane %v1080, %v1088
  %v1090 = vlaneseq
  %v1091 = vshrl.u32 %v1090, 7
  %v1092 = vsub.s32 2, %v1091
  %v1093 = vrot.slane %v1080, %v1092
  %v1094 = vlaneseq
  %v1095 = vshrl.u32 %v1094, 7
  %v1096 = vsub.s32 3, %v1095
  %v1097 = vrot.slane %v1080, %v1096
  %v1102 = vmul.f32 %v30, %v1085
  %v1103 = vmul.f32 %v31, %v1089
  %v1104 = vmul.f32 %v32, %v1093
  %v1105 = vmul.f32 %v33, %v1097
  %v1106 = vmul.f32 %v36, %v1085
  %v1107 = vmul.f32 %v37, %v1089
  %v1108 = vmul.f32 %v38, %v1093
  %v1109 = vmul.f32 %v39, %v1097
  %s1110 = scalar_lea.vmem %s2, 64
  %v1111 = vld [vmem:[%s1110] sm:$0xff]
  %v1112 = vld [vmem:[%s1110 + $0x8] sm:$0xff]
  %v1114 = vsel %vm167, %v1111, 0
  %v1117 = vsel %vm167, %v1112, 0
  %1119 = vmatprep.subr.mxu0 %v1103
  %1120 = vmatpush1.msra.mxu0 %v1102
  %1121 = vmatprep.subr.mxu0 %v1107
  %1122 = vmatpush1.msra.mxu0 %v1106
  %1123 = vmatprep.subr.mxu0 0.0
  %1124 = vmatpush1.msra.mxu0 0.0
  %1125 = vmatprep.subr.mxu0 0.0
  %1126 = vmatpush1.msra.mxu0 0.0
  %1127 = vmatprep.subr.mxu0 0.0
  %1128 = vmatpush1.msra.mxu0 0.0
  %1129 = vmatprep.subr.mxu0 0.0
  %1130 = vmatpush1.msra.mxu0 0.0
  %1131 = vmatprep.subr.mxu0 0.0
  %1132 = vmatpush1.msra.mxu0 0.0
  %1133 = vmatprep.subr.mxu0 0.0
  %1134 = vmatpush1.msra.mxu0 0.0
  %1135 = vmatprep.subr.mxu0 0.0
  %1136 = vmatpush1.msra.mxu0 0.0
  %1137 = vmatprep.subr.mxu0 0.0
  %1138 = vmatpush1.msra.mxu0 0.0
  %1139 = vmatprep.subr.mxu0 0.0
  %1140 = vmatpush1.msra.mxu0 0.0
  %1141 = vmatprep.subr.mxu0 0.0
  %1142 = vmatpush1.msra.mxu0 0.0
  %1143 = vmatprep.subr.mxu0 0.0
  %1144 = vmatpush1.msra.mxu0 0.0
  %1145 = vmatprep.subr.mxu0 0.0
  %1146 = vmatpush1.msra.mxu0 0.0
  %1147 = vmatprep.subr.mxu0 0.0
  %1148 = vmatpush1.msra.mxu0 0.0
  %1149 = vmatprep.subr.mxu0 0.0
  %1150 = vmatpush1.msra.mxu0 0.0
  %1151 = vmatprep.subr.mxu0 0.0
  %1152 = vmatpush1.msra.mxu0 0.0
  %1153 = vmatprep.subr.mxu0 0.0
  %1154 = vmatpush1.msra.mxu0 0.0
  %1155 = vmatprep.subr.mxu0 0.0
  %1156 = vmatpush1.msra.mxu0 0.0
  %1157 = vmatprep.subr.mxu0 0.0
  %1158 = vmatpush1.msra.mxu0 0.0
  %1159 = vmatprep.subr.mxu0 0.0
  %1160 = vmatpush1.msra.mxu0 0.0
  %1161 = vmatprep.subr.mxu0 0.0
  %1162 = vmatpush1.msra.mxu0 0.0
  %1163 = vmatprep.subr.mxu0 0.0
  %1164 = vmatpush1.msra.mxu0 0.0
  %1165 = vmatprep.subr.mxu0 0.0
  %1166 = vmatpush1.msra.mxu0 0.0
  %1167 = vmatprep.subr.mxu0 0.0
  %1168 = vmatpush1.msra.mxu0 0.0
  %1169 = vmatprep.subr.mxu0 0.0
  %1170 = vmatpush1.msra.mxu0 0.0
  %1171 = vmatprep.subr.mxu0 0.0
  %1172 = vmatpush1.msra.mxu0 0.0
  %1173 = vmatprep.subr.mxu0 0.0
  %1174 = vmatpush1.msra.mxu0 0.0
  %1175 = vmatprep.subr.mxu0 0.0
  %1176 = vmatpush1.msra.mxu0 0.0
  %1177 = vmatprep.subr.mxu0 0.0
  %1178 = vmatpush1.msra.mxu0 0.0
  %1179 = vmatprep.subr.mxu0 0.0
  %1180 = vmatpush1.msra.mxu0 0.0
  %1181 = vmatprep.subr.mxu0 0.0
  %1182 = vmatpush1.msra.mxu0 0.0
  %1183 = vmatprep.mubr.f32.mxu0 0.0
  %1184 = vmatmul.mubr.f32.gmra.mrb[0].mxu0 %v1114
  %v1185 = vpop.f32.mrb[0].mxu0
  %v1186 = vadd.f32 0.0, %v1185
  %v1187 = vpop.f32.mrb[0].mxu0
  %v1188 = vadd.f32 0.0, %v1187
  %1189 = vmatprep.mubr.f32.mxu0 0.0
  %1190 = vmatmul.mubr.f32.gmra.mrb[0].mxu0 %v1117
  %v1191 = vpop.f32.mrb[0].mxu0
  %v1192 = vadd.f32 0.0, %v1191
  %v1193 = vpop.f32.mrb[0].mxu0
  %v1194 = vadd.f32 0.0, %v1193
  %1195 = vdwg.mxu0
  %1196 = vmatprep.subr.mxu0 %v1105
  %1197 = vmatpush1.msra.mxu0 %v1104
  %1198 = vmatprep.subr.mxu0 %v1109
  %1199 = vmatpush1.msra.mxu0 %v1108
  %1200 = vmatprep.subr.mxu0 0.0
  %1201 = vmatpush1.msra.mxu0 0.0
  %1202 = vmatprep.subr.mxu0 0.0
  %1203 = vmatpush1.msra.mxu0 0.0
  %1204 = vmatprep.subr.mxu0 0.0
  %1205 = vmatpush1.msra.mxu0 0.0
  %1206 = vmatprep.subr.mxu0 0.0
  %1207 = vmatpush1.msra.mxu0 0.0
  %1208 = vmatprep.subr.mxu0 0.0
  %1209 = vmatpush1.msra.mxu0 0.0
  %1210 = vmatprep.subr.mxu0 0.0
  %1211 = vmatpush1.msra.mxu0 0.0
  %1212 = vmatprep.subr.mxu0 0.0
  %1213 = vmatpush1.msra.mxu0 0.0
  %1214 = vmatprep.subr.mxu0 0.0
  %1215 = vmatpush1.msra.mxu0 0.0
  %1216 = vmatprep.subr.mxu0 0.0
  %1217 = vmatpush1.msra.mxu0 0.0
  %1218 = vmatprep.subr.mxu0 0.0
  %1219 = vmatpush1.msra.mxu0 0.0
  %1220 = vmatprep.subr.mxu0 0.0
  %1221 = vmatpush1.msra.mxu0 0.0
  %1222 = vmatprep.subr.mxu0 0.0
  %1223 = vmatpush1.msra.mxu0 0.0
  %1224 = vmatprep.subr.mxu0 0.0
  %1225 = vmatpush1.msra.mxu0 0.0
  %1226 = vmatprep.subr.mxu0 0.0
  %1227 = vmatpush1.msra.mxu0 0.0
  %1228 = vmatprep.subr.mxu0 0.0
  %1229 = vmatpush1.msra.mxu0 0.0
  %1230 = vmatprep.subr.mxu0 0.0
  %1231 = vmatpush1.msra.mxu0 0.0
  %1232 = vmatprep.subr.mxu0 0.0
  %1233 = vmatpush1.msra.mxu0 0.0
  %1234 = vmatprep.subr.mxu0 0.0
  %1235 = vmatpush1.msra.mxu0 0.0
  %1236 = vmatprep.subr.mxu0 0.0
  %1237 = vmatpush1.msra.mxu0 0.0
  %1238 = vmatprep.subr.mxu0 0.0
  %1239 = vmatpush1.msra.mxu0 0.0
  %1240 = vmatprep.subr.mxu0 0.0
  %1241 = vmatpush1.msra.mxu0 0.0
  %1242 = vmatprep.subr.mxu0 0.0
  %1243 = vmatpush1.msra.mxu0 0.0
  %1244 = vmatprep.subr.mxu0 0.0
  %1245 = vmatpush1.msra.mxu0 0.0
  %1246 = vmatprep.subr.mxu0 0.0
  %1247 = vmatpush1.msra.mxu0 0.0
  %1248 = vmatprep.subr.mxu0 0.0
  %1249 = vmatpush1.msra.mxu0 0.0
  %1250 = vmatprep.subr.mxu0 0.0
  %1251 = vmatpush1.msra.mxu0 0.0
  %1252 = vmatprep.subr.mxu0 0.0
  %1253 = vmatpush1.msra.mxu0 0.0
  %1254 = vmatprep.subr.mxu0 0.0
  %1255 = vmatpush1.msra.mxu0 0.0
  %1256 = vmatprep.subr.mxu0 0.0
  %1257 = vmatpush1.msra.mxu0 0.0
  %1258 = vmatprep.subr.mxu0 0.0
  %1259 = vmatpush1.msra.mxu0 0.0
  %1260 = vmatprep.mubr.f32.mxu0 0.0
  %1261 = vmatmul.mubr.f32.gmra.mrb[0].mxu0 %v1114
  %v1262 = vpop.f32.mrb[0].mxu0
  %v1263 = vadd.f32 0.0, %v1262
  %v1264 = vpop.f32.mrb[0].mxu0
  %v1265 = vadd.f32 0.0, %v1264
  %1266 = vmatprep.mubr.f32.mxu0 0.0
  %1267 = vmatmul.mubr.f32.gmra.mrb[0].mxu0 %v1117
  %v1268 = vpop.f32.mrb[0].mxu0
  %v1269 = vadd.f32 0.0, %v1268
  %v1270 = vpop.f32.mrb[0].mxu0
  %v1271 = vadd.f32 0.0, %v1270
  %1272 = vdwg.mxu0
  %v1273 = vadd.f32 %v1071, %v1186
  %v1274 = vadd.f32 %v1072, %v1188
  %v1275 = vadd.f32 %v1073, %v1263
  %v1276 = vadd.f32 %v1074, %v1265
  %v1277 = vadd.f32 %v1075, %v1192
  %v1278 = vadd.f32 %v1076, %v1194
  %v1279 = vadd.f32 %v1077, %v1269
  %v1280 = vadd.f32 %v1078, %v1271
  %s1281 = scalar_lea.vmem %s1, 20
  %v1282 = vld [vmem:[%s1281] sm:$0xf]
  %v1284 = vlaneseq
  %v1285 = vshrl.u32 %v1284, 7
  %v1286 = vsub.s32 0, %v1285
  %v1287 = vrot.slane %v1282, %v1286
  %v1288 = vlaneseq
  %v1289 = vshrl.u32 %v1288, 7
  %v1290 = vsub.s32 1, %v1289
  %v1291 = vrot.slane %v1282, %v1290
  %v1292 = vlaneseq
  %v1293 = vshrl.u32 %v1292, 7
  %v1294 = vsub.s32 2, %v1293
  %v1295 = vrot.slane %v1282, %v1294
  %v1296 = vlaneseq
  %v1297 = vshrl.u32 %v1296, 7
  %v1298 = vsub.s32 3, %v1297
  %v1299 = vrot.slane %v1282, %v1298
  %1300 = vrot.lane.b32.xlu0 %v1287, 1
  %v1301 = vpop.permute.xlu0 %1300
  %1302 = vrot.lane.b32.xlu0 %v1291, 1
  %v1303 = vpop.permute.xlu0 %1302
  %1304 = vrot.lane.b32.xlu0 %v1295, 1
  %v1305 = vpop.permute.xlu0 %1304
  %1306 = vrot.lane.b32.xlu0 %v1299, 1
  %v1307 = vpop.permute.xlu0 %1306
  %v1308 = vsel %vm894, %v1301, %v1303
  %v1309 = vsel %vm894, %v1303, %v1305
  %v1310 = vsel %vm894, %v1305, %v1307
  %v1316 = vmul.f32 %v30, %v1301
  %v1317 = vmul.f32 %v31, %v1308
  %v1318 = vmul.f32 %v32, %v1309
  %v1319 = vmul.f32 %v33, %v1310
  %v1320 = vmul.f32 %v34, %v1307
  %v1321 = vmul.f32 %v36, %v1301
  %v1322 = vmul.f32 %v37, %v1308
  %v1323 = vmul.f32 %v38, %v1309
  %v1324 = vmul.f32 %v39, %v1310
  %v1325 = vmul.f32 %v40, %v1307
  %s1326 = scalar_lea.vmem %s2, 80
  %v1327 = vld [vmem:[%s1326] sm:$0xff]
  %v1328 = vld [vmem:[%s1326 + $0x8] sm:$0xff]
  %1339 = vrot.lane.b32.xlu0 %v1316, 127
  %v1340 = vpop.permute.xlu0 %1339
  %1341 = vrot.lane.b32.xlu0 %v1317, 127
  %v1342 = vpop.permute.xlu0 %1341
  %1343 = vrot.lane.b32.xlu0 %v1318, 127
  %v1344 = vpop.permute.xlu0 %1343
  %1345 = vrot.lane.b32.xlu0 %v1319, 127
  %v1346 = vpop.permute.xlu0 %1345
  %1347 = vrot.lane.b32.xlu0 %v1320, 127
  %v1348 = vpop.permute.xlu0 %1347
  %1349 = vrot.lane.b32.xlu0 %v1321, 127
  %v1350 = vpop.permute.xlu0 %1349
  %1351 = vrot.lane.b32.xlu0 %v1322, 127
  %v1352 = vpop.permute.xlu0 %1351
  %1353 = vrot.lane.b32.xlu0 %v1323, 127
  %v1354 = vpop.permute.xlu0 %1353
  %1355 = vrot.lane.b32.xlu0 %v1324, 127
  %v1356 = vpop.permute.xlu0 %1355
  %1357 = vrot.lane.b32.xlu0 %v1325, 127
  %v1358 = vpop.permute.xlu0 %1357
  %v1359 = vsel %vm842, %v1340, %v1342
  %v1360 = vsel %vm842, %v1342, %v1344
  %v1361 = vsel %vm842, %v1344, %v1346
  %v1362 = vsel %vm842, %v1346, %v1348
  %v1363 = vsel %vm842, %v1350, %v1352
  %v1364 = vsel %vm842, %v1352, %v1354
  %v1365 = vsel %vm842, %v1354, %v1356
  %v1366 = vsel %vm842, %v1356, %v1358
  %v1376 = vsel %vm167, %v1327, 0
  %v1379 = vsel %vm167, %v1328, 0
  %1381 = vmatprep.subr.mxu0 %v1360
  %1382 = vmatpush1.msra.mxu0 %v1359
  %1383 = vmatprep.subr.mxu0 %v1364
  %1384 = vmatpush1.msra.mxu0 %v1363
  %1385 = vmatprep.subr.mxu0 0.0
  %1386 = vmatpush1.msra.mxu0 0.0
  %1387 = vmatprep.subr.mxu0 0.0
  %1388 = vmatpush1.msra.mxu0 0.0
  %1389 = vmatprep.subr.mxu0 0.0
  %1390 = vmatpush1.msra.mxu0 0.0
  %1391 = vmatprep.subr.mxu0 0.0
  %1392 = vmatpush1.msra.mxu0 0.0
  %1393 = vmatprep.subr.mxu0 0.0
  %1394 = vmatpush1.msra.mxu0 0.0
  %1395 = vmatprep.subr.mxu0 0.0
  %1396 = vmatpush1.msra.mxu0 0.0
  %1397 = vmatprep.subr.mxu0 0.0
  %1398 = vmatpush1.msra.mxu0 0.0
  %1399 = vmatprep.subr.mxu0 0.0
  %1400 = vmatpush1.msra.mxu0 0.0
  %1401 = vmatprep.subr.mxu0 0.0
  %1402 = vmatpush1.msra.mxu0 0.0
  %1403 = vmatprep.subr.mxu0 0.0
  %1404 = vmatpush1.msra.mxu0 0.0
  %1405 = vmatprep.subr.mxu0 0.0
  %1406 = vmatpush1.msra.mxu0 0.0
  %1407 = vmatprep.subr.mxu0 0.0
  %1408 = vmatpush1.msra.mxu0 0.0
  %1409 = vmatprep.subr.mxu0 0.0
  %1410 = vmatpush1.msra.mxu0 0.0
  %1411 = vmatprep.subr.mxu0 0.0
  %1412 = vmatpush1.msra.mxu0 0.0
  %1413 = vmatprep.subr.mxu0 0.0
  %1414 = vmatpush1.msra.mxu0 0.0
  %1415 = vmatprep.subr.mxu0 0.0
  %1416 = vmatpush1.msra.mxu0 0.0
  %1417 = vmatprep.subr.mxu0 0.0
  %1418 = vmatpush1.msra.mxu0 0.0
  %1419 = vmatprep.subr.mxu0 0.0
  %1420 = vmatpush1.msra.mxu0 0.0
  %1421 = vmatprep.subr.mxu0 0.0
  %1422 = vmatpush1.msra.mxu0 0.0
  %1423 = vmatprep.subr.mxu0 0.0
  %1424 = vmatpush1.msra.mxu0 0.0
  %1425 = vmatprep.subr.mxu0 0.0
  %1426 = vmatpush1.msra.mxu0 0.0
  %1427 = vmatprep.subr.mxu0 0.0
  %1428 = vmatpush1.msra.mxu0 0.0
  %1429 = vmatprep.subr.mxu0 0.0
  %1430 = vmatpush1.msra.mxu0 0.0
  %1431 = vmatprep.subr.mxu0 0.0
  %1432 = vmatpush1.msra.mxu0 0.0
  %1433 = vmatprep.subr.mxu0 0.0
  %1434 = vmatpush1.msra.mxu0 0.0
  %1435 = vmatprep.subr.mxu0 0.0
  %1436 = vmatpush1.msra.mxu0 0.0
  %1437 = vmatprep.subr.mxu0 0.0
  %1438 = vmatpush1.msra.mxu0 0.0
  %1439 = vmatprep.subr.mxu0 0.0
  %1440 = vmatpush1.msra.mxu0 0.0
  %1441 = vmatprep.subr.mxu0 0.0
  %1442 = vmatpush1.msra.mxu0 0.0
  %1443 = vmatprep.subr.mxu0 0.0
  %1444 = vmatpush1.msra.mxu0 0.0
  %1445 = vmatprep.mubr.f32.mxu0 0.0
  %1446 = vmatmul.mubr.f32.gmra.mrb[0].mxu0 %v1376
  %v1447 = vpop.f32.mrb[0].mxu0
  %v1448 = vadd.f32 0.0, %v1447
  %v1449 = vpop.f32.mrb[0].mxu0
  %v1450 = vadd.f32 0.0, %v1449
  %1451 = vmatprep.mubr.f32.mxu0 0.0
  %1452 = vmatmul.mubr.f32.gmra.mrb[0].mxu0 %v1379
  %v1453 = vpop.f32.mrb[0].mxu0
  %v1454 = vadd.f32 0.0, %v1453
  %v1455 = vpop.f32.mrb[0].mxu0
  %v1456 = vadd.f32 0.0, %v1455
  %1457 = vdwg.mxu0
  %1458 = vmatprep.subr.mxu0 %v1362
  %1459 = vmatpush1.msra.mxu0 %v1361
  %1460 = vmatprep.subr.mxu0 %v1366
  %1461 = vmatpush1.msra.mxu0 %v1365
  %1462 = vmatprep.subr.mxu0 0.0
  %1463 = vmatpush1.msra.mxu0 0.0
  %1464 = vmatprep.subr.mxu0 0.0
  %1465 = vmatpush1.msra.mxu0 0.0
  %1466 = vmatprep.subr.mxu0 0.0
  %1467 = vmatpush1.msra.mxu0 0.0
  %1468 = vmatprep.subr.mxu0 0.0
  %1469 = vmatpush1.msra.mxu0 0.0
  %1470 = vmatprep.subr.mxu0 0.0
  %1471 = vmatpush1.msra.mxu0 0.0
  %1472 = vmatprep.subr.mxu0 0.0
  %1473 = vmatpush1.msra.mxu0 0.0
  %1474 = vmatprep.subr.mxu0 0.0
  %1475 = vmatpush1.msra.mxu0 0.0
  %1476 = vmatprep.subr.mxu0 0.0
  %1477 = vmatpush1.msra.mxu0 0.0
  %1478 = vmatprep.subr.mxu0 0.0
  %1479 = vmatpush1.msra.mxu0 0.0
  %1480 = vmatprep.subr.mxu0 0.0
  %1481 = vmatpush1.msra.mxu0 0.0
  %1482 = vmatprep.subr.mxu0 0.0
  %1483 = vmatpush1.msra.mxu0 0.0
  %1484 = vmatprep.subr.mxu0 0.0
  %1485 = vmatpush1.msra.mxu0 0.0
  %1486 = vmatprep.subr.mxu0 0.0
  %1487 = vmatpush1.msra.mxu0 0.0
  %1488 = vmatprep.subr.mxu0 0.0
  %1489 = vmatpush1.msra.mxu0 0.0
  %1490 = vmatprep.subr.mxu0 0.0
  %1491 = vmatpush1.msra.mxu0 0.0
  %1492 = vmatprep.subr.mxu0 0.0
  %1493 = vmatpush1.msra.mxu0 0.0
  %1494 = vmatprep.subr.mxu0 0.0
  %1495 = vmatpush1.msra.mxu0 0.0
  %1496 = vmatprep.subr.mxu0 0.0
  %1497 = vmatpush1.msra.mxu0 0.0
  %1498 = vmatprep.subr.mxu0 0.0
  %1499 = vmatpush1.msra.mxu0 0.0
  %1500 = vmatprep.subr.mxu0 0.0
  %1501 = vmatpush1.msra.mxu0 0.0
  %1502 = vmatprep.subr.mxu0 0.0
  %1503 = vmatpush1.msra.mxu0 0.0
  %1504 = vmatprep.subr.mxu0 0.0
  %1505 = vmatpush1.msra.mxu0 0.0
  %1506 = vmatprep.subr.mxu0 0.0
  %1507 = vmatpush1.msra.mxu0 0.0
  %1508 = vmatprep.subr.mxu0 0.0
  %1509 = vmatpush1.msra.mxu0 0.0
  %1510 = vmatprep.subr.mxu0 0.0
  %1511 = vmatpush1.msra.mxu0 0.0
  %1512 = vmatprep.subr.mxu0 0.0
  %1513 = vmatpush1.msra.mxu0 0.0
  %1514 = vmatprep.subr.mxu0 0.0
  %1515 = vmatpush1.msra.mxu0 0.0
  %1516 = vmatprep.subr.mxu0 0.0
  %1517 = vmatpush1.msra.mxu0 0.0
  %1518 = vmatprep.subr.mxu0 0.0
  %1519 = vmatpush1.msra.mxu0 0.0
  %1520 = vmatprep.subr.mxu0 0.0
  %1521 = vmatpush1.msra.mxu0 0.0
  %1522 = vmatprep.mubr.f32.mxu0 0.0
  %1523 = vmatmul.mubr.f32.gmra.mrb[0].mxu0 %v1376
  %v1524 = vpop.f32.mrb[0].mxu0
  %v1525 = vadd.f32 0.0, %v1524
  %v1526 = vpop.f32.mrb[0].mxu0
  %v1527 = vadd.f32 0.0, %v1526
  %1528 = vmatprep.mubr.f32.mxu0 0.0
  %1529 = vmatmul.mubr.f32.gmra.mrb[0].mxu0 %v1379
  %v1530 = vpop.f32.mrb[0].mxu0
  %v1531 = vadd.f32 0.0, %v1530
  %v1532 = vpop.f32.mrb[0].mxu0
  %v1533 = vadd.f32 0.0, %v1532
  %1534 = vdwg.mxu0
  %v1535 = vadd.f32 %v1273, %v1448
  %v1536 = vadd.f32 %v1274, %v1450
  %v1537 = vadd.f32 %v1275, %v1525
  %v1538 = vadd.f32 %v1276, %v1527
  %v1539 = vadd.f32 %v1277, %v1454
  %v1540 = vadd.f32 %v1278, %v1456
  %v1541 = vadd.f32 %v1279, %v1531
  %v1542 = vadd.f32 %v1280, %v1533
  %s1543 = scalar_lea.vmem %s1, 24
  %v1544 = vld [vmem:[%s1543] sm:$0xf]
  %v1546 = vlaneseq
  %v1547 = vshrl.u32 %v1546, 7
  %v1548 = vsub.s32 0, %v1547
  %v1549 = vrot.slane %v1544, %v1548
  %v1550 = vlaneseq
  %v1551 = vshrl.u32 %v1550, 7
  %v1552 = vsub.s32 1, %v1551
  %v1553 = vrot.slane %v1544, %v1552
  %v1554 = vlaneseq
  %v1555 = vshrl.u32 %v1554, 7
  %v1556 = vsub.s32 2, %v1555
  %v1557 = vrot.slane %v1544, %v1556
  %v1558 = vlaneseq
  %v1559 = vshrl.u32 %v1558, 7
  %v1560 = vsub.s32 3, %v1559
  %v1561 = vrot.slane %v1544, %v1560
  %1562 = vrot.lane.b32.xlu0 %v1549, 15
  %v1563 = vpop.permute.xlu0 %1562
  %1564 = vrot.lane.b32.xlu0 %v1553, 15
  %v1565 = vpop.permute.xlu0 %1564
  %1566 = vrot.lane.b32.xlu0 %v1557, 15
  %v1567 = vpop.permute.xlu0 %1566
  %1568 = vrot.lane.b32.xlu0 %v1561, 15
  %v1569 = vpop.permute.xlu0 %1568
  %v1570 = vsel %vm630, %v1563, %v1565
  %v1571 = vsel %vm630, %v1565, %v1567
  %v1572 = vsel %vm630, %v1567, %v1569
  %v1578 = vmul.f32 %v30, %v1563
  %v1579 = vmul.f32 %v31, %v1570
  %v1580 = vmul.f32 %v32, %v1571
  %v1581 = vmul.f32 %v33, %v1572
  %v1582 = vmul.f32 %v34, %v1569
  %v1583 = vmul.f32 %v36, %v1563
  %v1584 = vmul.f32 %v37, %v1570
  %v1585 = vmul.f32 %v38, %v1571
  %v1586 = vmul.f32 %v39, %v1572
  %v1587 = vmul.f32 %v40, %v1569
  %s1588 = scalar_lea.vmem %s2, 96
  %v1589 = vld [vmem:[%s1588] sm:$0xff]
  %v1590 = vld [vmem:[%s1588 + $0x8] sm:$0xff]
  %1601 = vrot.lane.b32.xlu0 %v1578, 113
  %v1602 = vpop.permute.xlu0 %1601
  %1603 = vrot.lane.b32.xlu0 %v1579, 113
  %v1604 = vpop.permute.xlu0 %1603
  %1605 = vrot.lane.b32.xlu0 %v1580, 113
  %v1606 = vpop.permute.xlu0 %1605
  %1607 = vrot.lane.b32.xlu0 %v1581, 113
  %v1608 = vpop.permute.xlu0 %1607
  %1609 = vrot.lane.b32.xlu0 %v1582, 113
  %v1610 = vpop.permute.xlu0 %1609
  %1611 = vrot.lane.b32.xlu0 %v1583, 113
  %v1612 = vpop.permute.xlu0 %1611
  %1613 = vrot.lane.b32.xlu0 %v1584, 113
  %v1614 = vpop.permute.xlu0 %1613
  %1615 = vrot.lane.b32.xlu0 %v1585, 113
  %v1616 = vpop.permute.xlu0 %1615
  %1617 = vrot.lane.b32.xlu0 %v1586, 113
  %v1618 = vpop.permute.xlu0 %1617
  %1619 = vrot.lane.b32.xlu0 %v1587, 113
  %v1620 = vpop.permute.xlu0 %1619
  %v1621 = vsel %vm578, %v1602, %v1604
  %v1622 = vsel %vm578, %v1604, %v1606
  %v1623 = vsel %vm578, %v1606, %v1608
  %v1624 = vsel %vm578, %v1608, %v1610
  %v1625 = vsel %vm578, %v1612, %v1614
  %v1626 = vsel %vm578, %v1614, %v1616
  %v1627 = vsel %vm578, %v1616, %v1618
  %v1628 = vsel %vm578, %v1618, %v1620
  %v1638 = vsel %vm167, %v1589, 0
  %v1641 = vsel %vm167, %v1590, 0
  %1643 = vmatprep.subr.mxu0 %v1622
  %1644 = vmatpush1.msra.mxu0 %v1621
  %1645 = vmatprep.subr.mxu0 %v1626
  %1646 = vmatpush1.msra.mxu0 %v1625
  %1647 = vmatprep.subr.mxu0 0.0
  %1648 = vmatpush1.msra.mxu0 0.0
  %1649 = vmatprep.subr.mxu0 0.0
  %1650 = vmatpush1.msra.mxu0 0.0
  %1651 = vmatprep.subr.mxu0 0.0
  %1652 = vmatpush1.msra.mxu0 0.0
  %1653 = vmatprep.subr.mxu0 0.0
  %1654 = vmatpush1.msra.mxu0 0.0
  %1655 = vmatprep.subr.mxu0 0.0
  %1656 = vmatpush1.msra.mxu0 0.0
  %1657 = vmatprep.subr.mxu0 0.0
  %1658 = vmatpush1.msra.mxu0 0.0
  %1659 = vmatprep.subr.mxu0 0.0
  %1660 = vmatpush1.msra.mxu0 0.0
  %1661 = vmatprep.subr.mxu0 0.0
  %1662 = vmatpush1.msra.mxu0 0.0
  %1663 = vmatprep.subr.mxu0 0.0
  %1664 = vmatpush1.msra.mxu0 0.0
  %1665 = vmatprep.subr.mxu0 0.0
  %1666 = vmatpush1.msra.mxu0 0.0
  %1667 = vmatprep.subr.mxu0 0.0
  %1668 = vmatpush1.msra.mxu0 0.0
  %1669 = vmatprep.subr.mxu0 0.0
  %1670 = vmatpush1.msra.mxu0 0.0
  %1671 = vmatprep.subr.mxu0 0.0
  %1672 = vmatpush1.msra.mxu0 0.0
  %1673 = vmatprep.subr.mxu0 0.0
  %1674 = vmatpush1.msra.mxu0 0.0
  %1675 = vmatprep.subr.mxu0 0.0
  %1676 = vmatpush1.msra.mxu0 0.0
  %1677 = vmatprep.subr.mxu0 0.0
  %1678 = vmatpush1.msra.mxu0 0.0
  %1679 = vmatprep.subr.mxu0 0.0
  %1680 = vmatpush1.msra.mxu0 0.0
  %1681 = vmatprep.subr.mxu0 0.0
  %1682 = vmatpush1.msra.mxu0 0.0
  %1683 = vmatprep.subr.mxu0 0.0
  %1684 = vmatpush1.msra.mxu0 0.0
  %1685 = vmatprep.subr.mxu0 0.0
  %1686 = vmatpush1.msra.mxu0 0.0
  %1687 = vmatprep.subr.mxu0 0.0
  %1688 = vmatpush1.msra.mxu0 0.0
  %1689 = vmatprep.subr.mxu0 0.0
  %1690 = vmatpush1.msra.mxu0 0.0
  %1691 = vmatprep.subr.mxu0 0.0
  %1692 = vmatpush1.msra.mxu0 0.0
  %1693 = vmatprep.subr.mxu0 0.0
  %1694 = vmatpush1.msra.mxu0 0.0
  %1695 = vmatprep.subr.mxu0 0.0
  %1696 = vmatpush1.msra.mxu0 0.0
  %1697 = vmatprep.subr.mxu0 0.0
  %1698 = vmatpush1.msra.mxu0 0.0
  %1699 = vmatprep.subr.mxu0 0.0
  %1700 = vmatpush1.msra.mxu0 0.0
  %1701 = vmatprep.subr.mxu0 0.0
  %1702 = vmatpush1.msra.mxu0 0.0
  %1703 = vmatprep.subr.mxu0 0.0
  %1704 = vmatpush1.msra.mxu0 0.0
  %1705 = vmatprep.subr.mxu0 0.0
  %1706 = vmatpush1.msra.mxu0 0.0
  %1707 = vmatprep.mubr.f32.mxu0 0.0
  %1708 = vmatmul.mubr.f32.gmra.mrb[0].mxu0 %v1638
  %v1709 = vpop.f32.mrb[0].mxu0
  %v1710 = vadd.f32 0.0, %v1709
  %v1711 = vpop.f32.mrb[0].mxu0
  %v1712 = vadd.f32 0.0, %v1711
  %1713 = vmatprep.mubr.f32.mxu0 0.0
  %1714 = vmatmul.mubr.f32.gmra.mrb[0].mxu0 %v1641
  %v1715 = vpop.f32.mrb[0].mxu0
  %v1716 = vadd.f32 0.0, %v1715
  %v1717 = vpop.f32.mrb[0].mxu0
  %v1718 = vadd.f32 0.0, %v1717
  %1719 = vdwg.mxu0
  %1720 = vmatprep.subr.mxu0 %v1624
  %1721 = vmatpush1.msra.mxu0 %v1623
  %1722 = vmatprep.subr.mxu0 %v1628
  %1723 = vmatpush1.msra.mxu0 %v1627
  %1724 = vmatprep.subr.mxu0 0.0
  %1725 = vmatpush1.msra.mxu0 0.0
  %1726 = vmatprep.subr.mxu0 0.0
  %1727 = vmatpush1.msra.mxu0 0.0
  %1728 = vmatprep.subr.mxu0 0.0
  %1729 = vmatpush1.msra.mxu0 0.0
  %1730 = vmatprep.subr.mxu0 0.0
  %1731 = vmatpush1.msra.mxu0 0.0
  %1732 = vmatprep.subr.mxu0 0.0
  %1733 = vmatpush1.msra.mxu0 0.0
  %1734 = vmatprep.subr.mxu0 0.0
  %1735 = vmatpush1.msra.mxu0 0.0
  %1736 = vmatprep.subr.mxu0 0.0
  %1737 = vmatpush1.msra.mxu0 0.0
  %1738 = vmatprep.subr.mxu0 0.0
  %1739 = vmatpush1.msra.mxu0 0.0
  %1740 = vmatprep.subr.mxu0 0.0
  %1741 = vmatpush1.msra.mxu0 0.0
  %1742 = vmatprep.subr.mxu0 0.0
  %1743 = vmatpush1.msra.mxu0 0.0
  %1744 = vmatprep.subr.mxu0 0.0
  %1745 = vmatpush1.msra.mxu0 0.0
  %1746 = vmatprep.subr.mxu0 0.0
  %1747 = vmatpush1.msra.mxu0 0.0
  %1748 = vmatprep.subr.mxu0 0.0
  %1749 = vmatpush1.msra.mxu0 0.0
  %1750 = vmatprep.subr.mxu0 0.0
  %1751 = vmatpush1.msra.mxu0 0.0
  %1752 = vmatprep.subr.mxu0 0.0
  %1753 = vmatpush1.msra.mxu0 0.0
  %1754 = vmatprep.subr.mxu0 0.0
  %1755 = vmatpush1.msra.mxu0 0.0
  %1756 = vmatprep.subr.mxu0 0.0
  %1757 = vmatpush1.msra.mxu0 0.0
  %1758 = vmatprep.subr.mxu0 0.0
  %1759 = vmatpush1.msra.mxu0 0.0
  %1760 = vmatprep.subr.mxu0 0.0
  %1761 = vmatpush1.msra.mxu0 0.0
  %1762 = vmatprep.subr.mxu0 0.0
  %1763 = vmatpush1.msra.mxu0 0.0
  %1764 = vmatprep.subr.mxu0 0.0
  %1765 = vmatpush1.msra.mxu0 0.0
  %1766 = vmatprep.subr.mxu0 0.0
  %1767 = vmatpush1.msra.mxu0 0.0
  %1768 = vmatprep.subr.mxu0 0.0
  %1769 = vmatpush1.msra.mxu0 0.0
  %1770 = vmatprep.subr.mxu0 0.0
  %1771 = vmatpush1.msra.mxu0 0.0
  %1772 = vmatprep.subr.mxu0 0.0
  %1773 = vmatpush1.msra.mxu0 0.0
  %1774 = vmatprep.subr.mxu0 0.0
  %1775 = vmatpush1.msra.mxu0 0.0
  %1776 = vmatprep.subr.mxu0 0.0
  %1777 = vmatpush1.msra.mxu0 0.0
  %1778 = vmatprep.subr.mxu0 0.0
  %1779 = vmatpush1.msra.mxu0 0.0
  %1780 = vmatprep.subr.mxu0 0.0
  %1781 = vmatpush1.msra.mxu0 0.0
  %1782 = vmatprep.subr.mxu0 0.0
  %1783 = vmatpush1.msra.mxu0 0.0
  %1784 = vmatprep.mubr.f32.mxu0 0.0
  %1785 = vmatmul.mubr.f32.gmra.mrb[0].mxu0 %v1638
  %v1786 = vpop.f32.mrb[0].mxu0
  %v1787 = vadd.f32 0.0, %v1786
  %v1788 = vpop.f32.mrb[0].mxu0
  %v1789 = vadd.f32 0.0, %v1788
  %1790 = vmatprep.mubr.f32.mxu0 0.0
  %1791 = vmatmul.mubr.f32.gmra.mrb[0].mxu0 %v1641
  %v1792 = vpop.f32.mrb[0].mxu0
  %v1793 = vadd.f32 0.0, %v1792
  %v1794 = vpop.f32.mrb[0].mxu0
  %v1795 = vadd.f32 0.0, %v1794
  %1796 = vdwg.mxu0
  %v1797 = vadd.f32 %v1535, %v1710
  %v1798 = vadd.f32 %v1536, %v1712
  %v1799 = vadd.f32 %v1537, %v1787
  %v1800 = vadd.f32 %v1538, %v1789
  %v1801 = vadd.f32 %v1539, %v1716
  %v1802 = vadd.f32 %v1540, %v1718
  %v1803 = vadd.f32 %v1541, %v1793
  %v1804 = vadd.f32 %v1542, %v1795
  %s1805 = scalar_lea.vmem %s1, 28
  %v1806 = vld [vmem:[%s1805] sm:$0xf]
  %v1808 = vlaneseq
  %v1809 = vshrl.u32 %v1808, 7
  %v1810 = vsub.s32 0, %v1809
  %v1811 = vrot.slane %v1806, %v1810
  %v1812 = vlaneseq
  %v1813 = vshrl.u32 %v1812, 7
  %v1814 = vsub.s32 1, %v1813
  %v1815 = vrot.slane %v1806, %v1814
  %v1816 = vlaneseq
  %v1817 = vshrl.u32 %v1816, 7
  %v1818 = vsub.s32 2, %v1817
  %v1819 = vrot.slane %v1806, %v1818
  %v1820 = vlaneseq
  %v1821 = vshrl.u32 %v1820, 7
  %v1822 = vsub.s32 3, %v1821
  %v1823 = vrot.slane %v1806, %v1822
  %1824 = vrot.lane.b32.xlu0 %v1811, 16
  %v1825 = vpop.permute.xlu0 %1824
  %1826 = vrot.lane.b32.xlu0 %v1815, 16
  %v1827 = vpop.permute.xlu0 %1826
  %1828 = vrot.lane.b32.xlu0 %v1819, 16
  %v1829 = vpop.permute.xlu0 %1828
  %1830 = vrot.lane.b32.xlu0 %v1823, 16
  %v1831 = vpop.permute.xlu0 %1830
  %v1832 = vsel %vm167, %v1825, %v1827
  %v1833 = vsel %vm167, %v1827, %v1829
  %v1834 = vsel %vm167, %v1829, %v1831
  %v1840 = vmul.f32 %v30, %v1825
  %v1841 = vmul.f32 %v31, %v1832
  %v1842 = vmul.f32 %v32, %v1833
  %v1843 = vmul.f32 %v33, %v1834
  %v1844 = vmul.f32 %v34, %v1831
  %v1845 = vmul.f32 %v36, %v1825
  %v1846 = vmul.f32 %v37, %v1832
  %v1847 = vmul.f32 %v38, %v1833
  %v1848 = vmul.f32 %v39, %v1834
  %v1849 = vmul.f32 %v40, %v1831
  %s1850 = scalar_lea.vmem %s2, 112
  %v1851 = vld [vmem:[%s1850] sm:$0xff]
  %v1852 = vld [vmem:[%s1850 + $0x8] sm:$0xff]
  %1863 = vrot.lane.b32.xlu0 %v1840, 112
  %v1864 = vpop.permute.xlu0 %1863
  %1865 = vrot.lane.b32.xlu0 %v1841, 112
  %v1866 = vpop.permute.xlu0 %1865
  %1867 = vrot.lane.b32.xlu0 %v1842, 112
  %v1868 = vpop.permute.xlu0 %1867
  %1869 = vrot.lane.b32.xlu0 %v1843, 112
  %v1870 = vpop.permute.xlu0 %1869
  %1871 = vrot.lane.b32.xlu0 %v1844, 112
  %v1872 = vpop.permute.xlu0 %1871
  %1873 = vrot.lane.b32.xlu0 %v1845, 112
  %v1874 = vpop.permute.xlu0 %1873
  %1875 = vrot.lane.b32.xlu0 %v1846, 112
  %v1876 = vpop.permute.xlu0 %1875
  %1877 = vrot.lane.b32.xlu0 %v1847, 112
  %v1878 = vpop.permute.xlu0 %1877
  %1879 = vrot.lane.b32.xlu0 %v1848, 112
  %v1880 = vpop.permute.xlu0 %1879
  %1881 = vrot.lane.b32.xlu0 %v1849, 112
  %v1882 = vpop.permute.xlu0 %1881
  %v1883 = vsel %vm115, %v1864, %v1866
  %v1884 = vsel %vm115, %v1866, %v1868
  %v1885 = vsel %vm115, %v1868, %v1870
  %v1886 = vsel %vm115, %v1870, %v1872
  %v1887 = vsel %vm115, %v1874, %v1876
  %v1888 = vsel %vm115, %v1876, %v1878
  %v1889 = vsel %vm115, %v1878, %v1880
  %v1890 = vsel %vm115, %v1880, %v1882
  %v1900 = vsel %vm167, %v1851, 0
  %v1903 = vsel %vm167, %v1852, 0
  %1905 = vmatprep.subr.mxu0 %v1884
  %1906 = vmatpush1.msra.mxu0 %v1883
  %1907 = vmatprep.subr.mxu0 %v1888
  %1908 = vmatpush1.msra.mxu0 %v1887
  %1909 = vmatprep.subr.mxu0 0.0
  %1910 = vmatpush1.msra.mxu0 0.0
  %1911 = vmatprep.subr.mxu0 0.0
  %1912 = vmatpush1.msra.mxu0 0.0
  %1913 = vmatprep.subr.mxu0 0.0
  %1914 = vmatpush1.msra.mxu0 0.0
  %1915 = vmatprep.subr.mxu0 0.0
  %1916 = vmatpush1.msra.mxu0 0.0
  %1917 = vmatprep.subr.mxu0 0.0
  %1918 = vmatpush1.msra.mxu0 0.0
  %1919 = vmatprep.subr.mxu0 0.0
  %1920 = vmatpush1.msra.mxu0 0.0
  %1921 = vmatprep.subr.mxu0 0.0
  %1922 = vmatpush1.msra.mxu0 0.0
  %1923 = vmatprep.subr.mxu0 0.0
  %1924 = vmatpush1.msra.mxu0 0.0
  %1925 = vmatprep.subr.mxu0 0.0
  %1926 = vmatpush1.msra.mxu0 0.0
  %1927 = vmatprep.subr.mxu0 0.0
  %1928 = vmatpush1.msra.mxu0 0.0
  %1929 = vmatprep.subr.mxu0 0.0
  %1930 = vmatpush1.msra.mxu0 0.0
  %1931 = vmatprep.subr.mxu0 0.0
  %1932 = vmatpush1.msra.mxu0 0.0
  %1933 = vmatprep.subr.mxu0 0.0
  %1934 = vmatpush1.msra.mxu0 0.0
  %1935 = vmatprep.subr.mxu0 0.0
  %1936 = vmatpush1.msra.mxu0 0.0
  %1937 = vmatprep.subr.mxu0 0.0
  %1938 = vmatpush1.msra.mxu0 0.0
  %1939 = vmatprep.subr.mxu0 0.0
  %1940 = vmatpush1.msra.mxu0 0.0
  %1941 = vmatprep.subr.mxu0 0.0
  %1942 = vmatpush1.msra.mxu0 0.0
  %1943 = vmatprep.subr.mxu0 0.0
  %1944 = vmatpush1.msra.mxu0 0.0
  %1945 = vmatprep.subr.mxu0 0.0
  %1946 = vmatpush1.msra.mxu0 0.0
  %1947 = vmatprep.subr.mxu0 0.0
  %1948 = vmatpush1.msra.mxu0 0.0
  %1949 = vmatprep.subr.mxu0 0.0
  %1950 = vmatpush1.msra.mxu0 0.0
  %1951 = vmatprep.subr.mxu0 0.0
  %1952 = vmatpush1.msra.mxu0 0.0
  %1953 = vmatprep.subr.mxu0 0.0
  %1954 = vmatpush1.msra.mxu0 0.0
  %1955 = vmatprep.subr.mxu0 0.0
  %1956 = vmatpush1.msra.mxu0 0.0
  %1957 = vmatprep.subr.mxu0 0.0
  %1958 = vmatpush1.msra.mxu0 0.0
  %1959 = vmatprep.subr.mxu0 0.0
  %1960 = vmatpush1.msra.mxu0 0.0
  %1961 = vmatprep.subr.mxu0 0.0
  %1962 = vmatpush1.msra.mxu0 0.0
  %1963 = vmatprep.subr.mxu0 0.0
  %1964 = vmatpush1.msra.mxu0 0.0
  %1965 = vmatprep.subr.mxu0 0.0
  %1966 = vmatpush1.msra.mxu0 0.0
  %1967 = vmatprep.subr.mxu0 0.0
  %1968 = vmatpush1.msra.mxu0 0.0
  %1969 = vmatprep.mubr.f32.mxu0 0.0
  %1970 = vmatmul.mubr.f32.gmra.mrb[0].mxu0 %v1900
  %v1971 = vpop.f32.mrb[0].mxu0
  %v1972 = vadd.f32 0.0, %v1971
  %v1973 = vpop.f32.mrb[0].mxu0
  %v1974 = vadd.f32 0.0, %v1973
  %1975 = vmatprep.mubr.f32.mxu0 0.0
  %1976 = vmatmul.mubr.f32.gmra.mrb[0].mxu0 %v1903
  %v1977 = vpop.f32.mrb[0].mxu0
  %v1978 = vadd.f32 0.0, %v1977
  %v1979 = vpop.f32.mrb[0].mxu0
  %v1980 = vadd.f32 0.0, %v1979
  %1981 = vdwg.mxu0
  %1982 = vmatprep.subr.mxu0 %v1886
  %1983 = vmatpush1.msra.mxu0 %v1885
  %1984 = vmatprep.subr.mxu0 %v1890
  %1985 = vmatpush1.msra.mxu0 %v1889
  %1986 = vmatprep.subr.mxu0 0.0
  %1987 = vmatpush1.msra.mxu0 0.0
  %1988 = vmatprep.subr.mxu0 0.0
  %1989 = vmatpush1.msra.mxu0 0.0
  %1990 = vmatprep.subr.mxu0 0.0
  %1991 = vmatpush1.msra.mxu0 0.0
  %1992 = vmatprep.subr.mxu0 0.0
  %1993 = vmatpush1.msra.mxu0 0.0
  %1994 = vmatprep.subr.mxu0 0.0
  %1995 = vmatpush1.msra.mxu0 0.0
  %1996 = vmatprep.subr.mxu0 0.0
  %1997 = vmatpush1.msra.mxu0 0.0
  %1998 = vmatprep.subr.mxu0 0.0
  %1999 = vmatpush1.msra.mxu0 0.0
  %2000 = vmatprep.subr.mxu0 0.0
  %2001 = vmatpush1.msra.mxu0 0.0
  %2002 = vmatprep.subr.mxu0 0.0
  %2003 = vmatpush1.msra.mxu0 0.0
  %2004 = vmatprep.subr.mxu0 0.0
  %2005 = vmatpush1.msra.mxu0 0.0
  %2006 = vmatprep.subr.mxu0 0.0
  %2007 = vmatpush1.msra.mxu0 0.0
  %2008 = vmatprep.subr.mxu0 0.0
  %2009 = vmatpush1.msra.mxu0 0.0
  %2010 = vmatprep.subr.mxu0 0.0
  %2011 = vmatpush1.msra.mxu0 0.0
  %2012 = vmatprep.subr.mxu0 0.0
  %2013 = vmatpush1.msra.mxu0 0.0
  %2014 = vmatprep.subr.mxu0 0.0
  %2015 = vmatpush1.msra.mxu0 0.0
  %2016 = vmatprep.subr.mxu0 0.0
  %2017 = vmatpush1.msra.mxu0 0.0
  %2018 = vmatprep.subr.mxu0 0.0
  %2019 = vmatpush1.msra.mxu0 0.0
  %2020 = vmatprep.subr.mxu0 0.0
  %2021 = vmatpush1.msra.mxu0 0.0
  %2022 = vmatprep.subr.mxu0 0.0
  %2023 = vmatpush1.msra.mxu0 0.0
  %2024 = vmatprep.subr.mxu0 0.0
  %2025 = vmatpush1.msra.mxu0 0.0
  %2026 = vmatprep.subr.mxu0 0.0
  %2027 = vmatpush1.msra.mxu0 0.0
  %2028 = vmatprep.subr.mxu0 0.0
  %2029 = vmatpush1.msra.mxu0 0.0
  %2030 = vmatprep.subr.mxu0 0.0
  %2031 = vmatpush1.msra.mxu0 0.0
  %2032 = vmatprep.subr.mxu0 0.0
  %2033 = vmatpush1.msra.mxu0 0.0
  %2034 = vmatprep.subr.mxu0 0.0
  %2035 = vmatpush1.msra.mxu0 0.0
  %2036 = vmatprep.subr.mxu0 0.0
  %2037 = vmatpush1.msra.mxu0 0.0
  %2038 = vmatprep.subr.mxu0 0.0
  %2039 = vmatpush1.msra.mxu0 0.0
  %2040 = vmatprep.subr.mxu0 0.0
  %2041 = vmatpush1.msra.mxu0 0.0
  %2042 = vmatprep.subr.mxu0 0.0
  %2043 = vmatpush1.msra.mxu0 0.0
  %2044 = vmatprep.subr.mxu0 0.0
  %2045 = vmatpush1.msra.mxu0 0.0
  %2046 = vmatprep.mubr.f32.mxu0 0.0
  %2047 = vmatmul.mubr.f32.gmra.mrb[0].mxu0 %v1900
  %v2048 = vpop.f32.mrb[0].mxu0
  %v2049 = vadd.f32 0.0, %v2048
  %v2050 = vpop.f32.mrb[0].mxu0
  %v2051 = vadd.f32 0.0, %v2050
  %2052 = vmatprep.mubr.f32.mxu0 0.0
  %2053 = vmatmul.mubr.f32.gmra.mrb[0].mxu0 %v1903
  %v2054 = vpop.f32.mrb[0].mxu0
  %v2055 = vadd.f32 0.0, %v2054
  %v2056 = vpop.f32.mrb[0].mxu0
  %v2057 = vadd.f32 0.0, %v2056
  %2058 = vdwg.mxu0
  %v2059 = vadd.f32 %v1797, %v1972
  %v2060 = vadd.f32 %v1798, %v1974
  %v2061 = vadd.f32 %v1799, %v2049
  %v2062 = vadd.f32 %v1800, %v2051
  %v2063 = vadd.f32 %v1801, %v1978
  %v2064 = vadd.f32 %v1802, %v1980
  %v2065 = vadd.f32 %v1803, %v2055
  %v2066 = vadd.f32 %v1804, %v2057
  %s2067 = scalar_lea.vmem %s1, 32
  %v2068 = vld [vmem:[%s2067] sm:$0xf]
  %v2070 = vlaneseq
  %v2071 = vshrl.u32 %v2070, 7
  %v2072 = vsub.s32 0, %v2071
  %v2073 = vrot.slane %v2068, %v2072
  %v2074 = vlaneseq
  %v2075 = vshrl.u32 %v2074, 7
  %v2076 = vsub.s32 1, %v2075
  %v2077 = vrot.slane %v2068, %v2076
  %v2078 = vlaneseq
  %v2079 = vshrl.u32 %v2078, 7
  %v2080 = vsub.s32 2, %v2079
  %v2081 = vrot.slane %v2068, %v2080
  %v2082 = vlaneseq
  %v2083 = vshrl.u32 %v2082, 7
  %v2084 = vsub.s32 3, %v2083
  %v2085 = vrot.slane %v2068, %v2084
  %2086 = vrot.lane.b32.xlu0 %v2073, 17
  %v2087 = vpop.permute.xlu0 %2086
  %2088 = vrot.lane.b32.xlu0 %v2077, 17
  %v2089 = vpop.permute.xlu0 %2088
  %2090 = vrot.lane.b32.xlu0 %v2081, 17
  %v2091 = vpop.permute.xlu0 %2090
  %2092 = vrot.lane.b32.xlu0 %v2085, 17
  %v2093 = vpop.permute.xlu0 %2092
  %v2094 = vsel %vm374, %v2087, %v2089
  %v2095 = vsel %vm374, %v2089, %v2091
  %v2096 = vsel %vm374, %v2091, %v2093
  %v2102 = vmul.f32 %v30, %v2087
  %v2103 = vmul.f32 %v31, %v2094
  %v2104 = vmul.f32 %v32, %v2095
  %v2105 = vmul.f32 %v33, %v2096
  %v2106 = vmul.f32 %v34, %v2093
  %v2107 = vmul.f32 %v36, %v2087
  %v2108 = vmul.f32 %v37, %v2094
  %v2109 = vmul.f32 %v38, %v2095
  %v2110 = vmul.f32 %v39, %v2096
  %v2111 = vmul.f32 %v40, %v2093
  %s2112 = scalar_lea.vmem %s2, 128
  %v2113 = vld [vmem:[%s2112] sm:$0xff]
  %v2114 = vld [vmem:[%s2112 + $0x8] sm:$0xff]
  %2125 = vrot.lane.b32.xlu0 %v2102, 111
  %v2126 = vpop.permute.xlu0 %2125
  %2127 = vrot.lane.b32.xlu0 %v2103, 111
  %v2128 = vpop.permute.xlu0 %2127
  %2129 = vrot.lane.b32.xlu0 %v2104, 111
  %v2130 = vpop.permute.xlu0 %2129
  %2131 = vrot.lane.b32.xlu0 %v2105, 111
  %v2132 = vpop.permute.xlu0 %2131
  %2133 = vrot.lane.b32.xlu0 %v2106, 111
  %v2134 = vpop.permute.xlu0 %2133
  %2135 = vrot.lane.b32.xlu0 %v2107, 111
  %v2136 = vpop.permute.xlu0 %2135
  %2137 = vrot.lane.b32.xlu0 %v2108, 111
  %v2138 = vpop.permute.xlu0 %2137
  %2139 = vrot.lane.b32.xlu0 %v2109, 111
  %v2140 = vpop.permute.xlu0 %2139
  %2141 = vrot.lane.b32.xlu0 %v2110, 111
  %v2142 = vpop.permute.xlu0 %2141
  %2143 = vrot.lane.b32.xlu0 %v2111, 111
  %v2144 = vpop.permute.xlu0 %2143
  %v2145 = vsel %vm67, %v2126, %v2128
  %v2146 = vsel %vm67, %v2128, %v2130
  %v2147 = vsel %vm67, %v2130, %v2132
  %v2148 = vsel %vm67, %v2132, %v2134
  %v2149 = vsel %vm67, %v2136, %v2138
  %v2150 = vsel %vm67, %v2138, %v2140
  %v2151 = vsel %vm67, %v2140, %v2142
  %v2152 = vsel %vm67, %v2142, %v2144
  %v2162 = vsel %vm167, %v2113, 0
  %v2165 = vsel %vm167, %v2114, 0
  %2167 = vmatprep.subr.mxu0 %v2146
  %2168 = vmatpush1.msra.mxu0 %v2145
  %2169 = vmatprep.subr.mxu0 %v2150
  %2170 = vmatpush1.msra.mxu0 %v2149
  %2171 = vmatprep.subr.mxu0 0.0
  %2172 = vmatpush1.msra.mxu0 0.0
  %2173 = vmatprep.subr.mxu0 0.0
  %2174 = vmatpush1.msra.mxu0 0.0
  %2175 = vmatprep.subr.mxu0 0.0
  %2176 = vmatpush1.msra.mxu0 0.0
  %2177 = vmatprep.subr.mxu0 0.0
  %2178 = vmatpush1.msra.mxu0 0.0
  %2179 = vmatprep.subr.mxu0 0.0
  %2180 = vmatpush1.msra.mxu0 0.0
  %2181 = vmatprep.subr.mxu0 0.0
  %2182 = vmatpush1.msra.mxu0 0.0
  %2183 = vmatprep.subr.mxu0 0.0
  %2184 = vmatpush1.msra.mxu0 0.0
  %2185 = vmatprep.subr.mxu0 0.0
  %2186 = vmatpush1.msra.mxu0 0.0
  %2187 = vmatprep.subr.mxu0 0.0
  %2188 = vmatpush1.msra.mxu0 0.0
  %2189 = vmatprep.subr.mxu0 0.0
  %2190 = vmatpush1.msra.mxu0 0.0
  %2191 = vmatprep.subr.mxu0 0.0
  %2192 = vmatpush1.msra.mxu0 0.0
  %2193 = vmatprep.subr.mxu0 0.0
  %2194 = vmatpush1.msra.mxu0 0.0
  %2195 = vmatprep.subr.mxu0 0.0
  %2196 = vmatpush1.msra.mxu0 0.0
  %2197 = vmatprep.subr.mxu0 0.0
  %2198 = vmatpush1.msra.mxu0 0.0
  %2199 = vmatprep.subr.mxu0 0.0
  %2200 = vmatpush1.msra.mxu0 0.0
  %2201 = vmatprep.subr.mxu0 0.0
  %2202 = vmatpush1.msra.mxu0 0.0
  %2203 = vmatprep.subr.mxu0 0.0
  %2204 = vmatpush1.msra.mxu0 0.0
  %2205 = vmatprep.subr.mxu0 0.0
  %2206 = vmatpush1.msra.mxu0 0.0
  %2207 = vmatprep.subr.mxu0 0.0
  %2208 = vmatpush1.msra.mxu0 0.0
  %2209 = vmatprep.subr.mxu0 0.0
  %2210 = vmatpush1.msra.mxu0 0.0
  %2211 = vmatprep.subr.mxu0 0.0
  %2212 = vmatpush1.msra.mxu0 0.0
  %2213 = vmatprep.subr.mxu0 0.0
  %2214 = vmatpush1.msra.mxu0 0.0
  %2215 = vmatprep.subr.mxu0 0.0
  %2216 = vmatpush1.msra.mxu0 0.0
  %2217 = vmatprep.subr.mxu0 0.0
  %2218 = vmatpush1.msra.mxu0 0.0
  %2219 = vmatprep.subr.mxu0 0.0
  %2220 = vmatpush1.msra.mxu0 0.0
  %2221 = vmatprep.subr.mxu0 0.0
  %2222 = vmatpush1.msra.mxu0 0.0
  %2223 = vmatprep.subr.mxu0 0.0
  %2224 = vmatpush1.msra.mxu0 0.0
  %2225 = vmatprep.subr.mxu0 0.0
  %2226 = vmatpush1.msra.mxu0 0.0
  %2227 = vmatprep.subr.mxu0 0.0
  %2228 = vmatpush1.msra.mxu0 0.0
  %2229 = vmatprep.subr.mxu0 0.0
  %2230 = vmatpush1.msra.mxu0 0.0
  %2231 = vmatprep.mubr.f32.mxu0 0.0
  %2232 = vmatmul.mubr.f32.gmra.mrb[0].mxu0 %v2162
  %v2233 = vpop.f32.mrb[0].mxu0
  %v2234 = vadd.f32 0.0, %v2233
  %v2235 = vpop.f32.mrb[0].mxu0
  %v2236 = vadd.f32 0.0, %v2235
  %2237 = vmatprep.mubr.f32.mxu0 0.0
  %2238 = vmatmul.mubr.f32.gmra.mrb[0].mxu0 %v2165
  %v2239 = vpop.f32.mrb[0].mxu0
  %v2240 = vadd.f32 0.0, %v2239
  %v2241 = vpop.f32.mrb[0].mxu0
  %v2242 = vadd.f32 0.0, %v2241
  %2243 = vdwg.mxu0
  %2244 = vmatprep.subr.mxu0 %v2148
  %2245 = vmatpush1.msra.mxu0 %v2147
  %2246 = vmatprep.subr.mxu0 %v2152
  %2247 = vmatpush1.msra.mxu0 %v2151
  %2248 = vmatprep.subr.mxu0 0.0
  %2249 = vmatpush1.msra.mxu0 0.0
  %2250 = vmatprep.subr.mxu0 0.0
  %2251 = vmatpush1.msra.mxu0 0.0
  %2252 = vmatprep.subr.mxu0 0.0
  %2253 = vmatpush1.msra.mxu0 0.0
  %2254 = vmatprep.subr.mxu0 0.0
  %2255 = vmatpush1.msra.mxu0 0.0
  %2256 = vmatprep.subr.mxu0 0.0
  %2257 = vmatpush1.msra.mxu0 0.0
  %2258 = vmatprep.subr.mxu0 0.0
  %2259 = vmatpush1.msra.mxu0 0.0
  %2260 = vmatprep.subr.mxu0 0.0
  %2261 = vmatpush1.msra.mxu0 0.0
  %2262 = vmatprep.subr.mxu0 0.0
  %2263 = vmatpush1.msra.mxu0 0.0
  %2264 = vmatprep.subr.mxu0 0.0
  %2265 = vmatpush1.msra.mxu0 0.0
  %2266 = vmatprep.subr.mxu0 0.0
  %2267 = vmatpush1.msra.mxu0 0.0
  %2268 = vmatprep.subr.mxu0 0.0
  %2269 = vmatpush1.msra.mxu0 0.0
  %2270 = vmatprep.subr.mxu0 0.0
  %2271 = vmatpush1.msra.mxu0 0.0
  %2272 = vmatprep.subr.mxu0 0.0
  %2273 = vmatpush1.msra.mxu0 0.0
  %2274 = vmatprep.subr.mxu0 0.0
  %2275 = vmatpush1.msra.mxu0 0.0
  %2276 = vmatprep.subr.mxu0 0.0
  %2277 = vmatpush1.msra.mxu0 0.0
  %2278 = vmatprep.subr.mxu0 0.0
  %2279 = vmatpush1.msra.mxu0 0.0
  %2280 = vmatprep.subr.mxu0 0.0
  %2281 = vmatpush1.msra.mxu0 0.0
  %2282 = vmatprep.subr.mxu0 0.0
  %2283 = vmatpush1.msra.mxu0 0.0
  %2284 = vmatprep.subr.mxu0 0.0
  %2285 = vmatpush1.msra.mxu0 0.0
  %2286 = vmatprep.subr.mxu0 0.0
  %2287 = vmatpush1.msra.mxu0 0.0
  %2288 = vmatprep.subr.mxu0 0.0
  %2289 = vmatpush1.msra.mxu0 0.0
  %2290 = vmatprep.subr.mxu0 0.0
  %2291 = vmatpush1.msra.mxu0 0.0
  %2292 = vmatprep.subr.mxu0 0.0
  %2293 = vmatpush1.msra.mxu0 0.0
  %2294 = vmatprep.subr.mxu0 0.0
  %2295 = vmatpush1.msra.mxu0 0.0
  %2296 = vmatprep.subr.mxu0 0.0
  %2297 = vmatpush1.msra.mxu0 0.0
  %2298 = vmatprep.subr.mxu0 0.0
  %2299 = vmatpush1.msra.mxu0 0.0
  %2300 = vmatprep.subr.mxu0 0.0
  %2301 = vmatpush1.msra.mxu0 0.0
  %2302 = vmatprep.subr.mxu0 0.0
  %2303 = vmatpush1.msra.mxu0 0.0
  %2304 = vmatprep.subr.mxu0 0.0
  %2305 = vmatpush1.msra.mxu0 0.0
  %2306 = vmatprep.subr.mxu0 0.0
  %2307 = vmatpush1.msra.mxu0 0.0
  %2308 = vmatprep.mubr.f32.mxu0 0.0
  %2309 = vmatmul.mubr.f32.gmra.mrb[0].mxu0 %v2162
  %v2310 = vpop.f32.mrb[0].mxu0
  %v2311 = vadd.f32 0.0, %v2310
  %v2312 = vpop.f32.mrb[0].mxu0
  %v2313 = vadd.f32 0.0, %v2312
  %2314 = vmatprep.mubr.f32.mxu0 0.0
  %2315 = vmatmul.mubr.f32.gmra.mrb[0].mxu0 %v2165
  %v2316 = vpop.f32.mrb[0].mxu0
  %v2317 = vadd.f32 0.0, %v2316
  %v2318 = vpop.f32.mrb[0].mxu0
  %v2319 = vadd.f32 0.0, %v2318
  %2320 = vdwg.mxu0
  %v2321 = vadd.f32 %v2059, %v2234
  %v2322 = vadd.f32 %v2060, %v2236
  %v2323 = vadd.f32 %v2061, %v2311
  %v2324 = vadd.f32 %v2062, %v2313
  %v2325 = vadd.f32 %v2063, %v2240
  %v2326 = vadd.f32 %v2064, %v2242
  %v2327 = vadd.f32 %v2065, %v2317
  %v2328 = vadd.f32 %v2066, %v2319
  %v2329 = vld [vmem:[%s3] sm:$0xff]
  %v2330 = vld [vmem:[%s3 + $0x8] sm:$0xff]
  %2332 = vset.pattern.permute.xlu0 0
  %2333 = vperm.xlu0 %2332, %v2329
  %v2334 = vpop.permute.xlu0 %2333
  %2337 = vset.pattern.permute.xlu0 0
  %2338 = vperm.xlu0 %2337, %v2330
  %v2339 = vpop.permute.xlu0 %2338
  %v2341 = vadd.f32 %v2321, %v2334
  %v2342 = vadd.f32 %v2322, %v2334
  %v2343 = vadd.f32 %v2323, %v2334
  %v2344 = vadd.f32 %v2324, %v2334
  %v2345 = vadd.f32 %v2325, %v2339
  %v2346 = vadd.f32 %v2326, %v2339
  %v2347 = vadd.f32 %v2327, %v2339
  %v2348 = vadd.f32 %v2328, %v2339
  %v2349 = vadd.f32 %v2341, %v2342
  %2350 = vadd.xlane.f32.xlu0 %v2349
  %v2351 = vpop.xlane.xlu0 %2350
  %v2352 = vadd.f32 %v2345, %v2346
  %2353 = vadd.xlane.f32.xlu0 %v2352
  %v2354 = vpop.xlane.xlu0 %2353
  %v2355 = vrcp.pop 256.0
  %v2356 = vmul.f32 %v2351, %v2355
  %v2357 = vmul.f32 %v2354, %v2355
  %v2358 = vld [vmem:[%s4] sm:$0xf]
  %v2359 = vld [vmem:[%s5] sm:$0xf]
  %v2361 = vsel %vm167, %v2358, 0
  %2363 = vmatprep.subr.mxu0 0.0
  %2364 = vmatpush1.msra.mxu0 %v2356
  %2365 = vmatprep.subr.mxu0 0.0
  %2366 = vmatpush1.msra.mxu0 %v2357
  %2367 = vmatprep.subr.mxu0 0.0
  %2368 = vmatpush1.msra.mxu0 0.0
  %2369 = vmatprep.subr.mxu0 0.0
  %2370 = vmatpush1.msra.mxu0 0.0
  %2371 = vmatprep.subr.mxu0 0.0
  %2372 = vmatpush1.msra.mxu0 0.0
  %2373 = vmatprep.subr.mxu0 0.0
  %2374 = vmatpush1.msra.mxu0 0.0
  %2375 = vmatprep.subr.mxu0 0.0
  %2376 = vmatpush1.msra.mxu0 0.0
  %2377 = vmatprep.subr.mxu0 0.0
  %2378 = vmatpush1.msra.mxu0 0.0
  %2379 = vmatprep.subr.mxu0 0.0
  %2380 = vmatpush1.msra.mxu0 0.0
  %2381 = vmatprep.subr.mxu0 0.0
  %2382 = vmatpush1.msra.mxu0 0.0
  %2383 = vmatprep.subr.mxu0 0.0
  %2384 = vmatpush1.msra.mxu0 0.0
  %2385 = vmatprep.subr.mxu0 0.0
  %2386 = vmatpush1.msra.mxu0 0.0
  %2387 = vmatprep.subr.mxu0 0.0
  %2388 = vmatpush1.msra.mxu0 0.0
  %2389 = vmatprep.subr.mxu0 0.0
  %2390 = vmatpush1.msra.mxu0 0.0
  %2391 = vmatprep.subr.mxu0 0.0
  %2392 = vmatpush1.msra.mxu0 0.0
  %2393 = vmatprep.subr.mxu0 0.0
  %2394 = vmatpush1.msra.mxu0 0.0
  %2395 = vmatprep.subr.mxu0 0.0
  %2396 = vmatpush1.msra.mxu0 0.0
  %2397 = vmatprep.subr.mxu0 0.0
  %2398 = vmatpush1.msra.mxu0 0.0
  %2399 = vmatprep.subr.mxu0 0.0
  %2400 = vmatpush1.msra.mxu0 0.0
  %2401 = vmatprep.subr.mxu0 0.0
  %2402 = vmatpush1.msra.mxu0 0.0
  %2403 = vmatprep.subr.mxu0 0.0
  %2404 = vmatpush1.msra.mxu0 0.0
  %2405 = vmatprep.subr.mxu0 0.0
  %2406 = vmatpush1.msra.mxu0 0.0
  %2407 = vmatprep.subr.mxu0 0.0
  %2408 = vmatpush1.msra.mxu0 0.0
  %2409 = vmatprep.subr.mxu0 0.0
  %2410 = vmatpush1.msra.mxu0 0.0
  %2411 = vmatprep.subr.mxu0 0.0
  %2412 = vmatpush1.msra.mxu0 0.0
  %2413 = vmatprep.subr.mxu0 0.0
  %2414 = vmatpush1.msra.mxu0 0.0
  %2415 = vmatprep.subr.mxu0 0.0
  %2416 = vmatpush1.msra.mxu0 0.0
  %2417 = vmatprep.subr.mxu0 0.0
  %2418 = vmatpush1.msra.mxu0 0.0
  %2419 = vmatprep.subr.mxu0 0.0
  %2420 = vmatpush1.msra.mxu0 0.0
  %2421 = vmatprep.subr.mxu0 0.0
  %2422 = vmatpush1.msra.mxu0 0.0
  %2423 = vmatprep.subr.mxu0 0.0
  %2424 = vmatpush1.msra.mxu0 0.0
  %2425 = vmatprep.subr.mxu0 0.0
  %2426 = vmatpush1.msra.mxu0 0.0
  %2427 = vmatprep.mubr.f32.mxu0 0.0
  %2428 = vmatmul.mubr.f32.gmra.mrb[0].mxu0 %v2361
  %v2429 = vpop.f32.mrb[0].mxu0
  %v2430 = vadd.f32 %v2359, %v2429
  %v2431 = vpop.f32.mrb[0].mxu0
  %2432 = vdwg.mxu0
  %v2433 = vmax.f32 %v2430, 0.0
  %v2434 = vld [vmem:[%s6] sm:$0xff]
  %v2435 = vld [vmem:[%s6 + $0x8] sm:$0xff]
  %v2436 = vld [vmem:[%s7] sm:$0xff]
  %v2437 = vld [vmem:[%s7 + $0x8] sm:$0xff]
  %vm2438 = vcmask 31744
  %v2440 = vsel %vm2438, %v2434, 0
  %v2443 = vsel %vm2438, %v2435, 0
  %vm2445 = vcmask 1043456
  %v2447 = vsel %vm2445, %v2433, 0
  %2449 = vmatprep.subr.mxu0 0.0
  %2450 = vmatpush1.msra.mxu0 %v2447
  %2451 = vmatprep.subr.mxu0 0.0
  %2452 = vmatpush1.msra.mxu0 0.0
  %2453 = vmatprep.subr.mxu0 0.0
  %2454 = vmatpush1.msra.mxu0 0.0
  %2455 = vmatprep.subr.mxu0 0.0
  %2456 = vmatpush1.msra.mxu0 0.0
  %2457 = vmatprep.subr.mxu0 0.0
  %2458 = vmatpush1.msra.mxu0 0.0
  %2459 = vmatprep.subr.mxu0 0.0
  %2460 = vmatpush1.msra.mxu0 0.0
  %2461 = vmatprep.subr.mxu0 0.0
  %2462 = vmatpush1.msra.mxu0 0.0
  %2463 = vmatprep.subr.mxu0 0.0
  %2464 = vmatpush1.msra.mxu0 0.0
  %2465 = vmatprep.subr.mxu0 0.0
  %2466 = vmatpush1.msra.mxu0 0.0
  %2467 = vmatprep.subr.mxu0 0.0
  %2468 = vmatpush1.msra.mxu0 0.0
  %2469 = vmatprep.subr.mxu0 0.0
  %2470 = vmatpush1.msra.mxu0 0.0
  %2471 = vmatprep.subr.mxu0 0.0
  %2472 = vmatpush1.msra.mxu0 0.0
  %2473 = vmatprep.subr.mxu0 0.0
  %2474 = vmatpush1.msra.mxu0 0.0
  %2475 = vmatprep.subr.mxu0 0.0
  %2476 = vmatpush1.msra.mxu0 0.0
  %2477 = vmatprep.subr.mxu0 0.0
  %2478 = vmatpush1.msra.mxu0 0.0
  %2479 = vmatprep.subr.mxu0 0.0
  %2480 = vmatpush1.msra.mxu0 0.0
  %2481 = vmatprep.subr.mxu0 0.0
  %2482 = vmatpush1.msra.mxu0 0.0
  %2483 = vmatprep.subr.mxu0 0.0
  %2484 = vmatpush1.msra.mxu0 0.0
  %2485 = vmatprep.subr.mxu0 0.0
  %2486 = vmatpush1.msra.mxu0 0.0
  %2487 = vmatprep.subr.mxu0 0.0
  %2488 = vmatpush1.msra.mxu0 0.0
  %2489 = vmatprep.subr.mxu0 0.0
  %2490 = vmatpush1.msra.mxu0 0.0
  %2491 = vmatprep.subr.mxu0 0.0
  %2492 = vmatpush1.msra.mxu0 0.0
  %2493 = vmatprep.subr.mxu0 0.0
  %2494 = vmatpush1.msra.mxu0 0.0
  %2495 = vmatprep.subr.mxu0 0.0
  %2496 = vmatpush1.msra.mxu0 0.0
  %2497 = vmatprep.subr.mxu0 0.0
  %2498 = vmatpush1.msra.mxu0 0.0
  %2499 = vmatprep.subr.mxu0 0.0
  %2500 = vmatpush1.msra.mxu0 0.0
  %2501 = vmatprep.subr.mxu0 0.0
  %2502 = vmatpush1.msra.mxu0 0.0
  %2503 = vmatprep.subr.mxu0 0.0
  %2504 = vmatpush1.msra.mxu0 0.0
  %2505 = vmatprep.subr.mxu0 0.0
  %2506 = vmatpush1.msra.mxu0 0.0
  %2507 = vmatprep.subr.mxu0 0.0
  %2508 = vmatpush1.msra.mxu0 0.0
  %2509 = vmatprep.subr.mxu0 0.0
  %2510 = vmatpush1.msra.mxu0 0.0
  %2511 = vmatprep.subr.mxu0 0.0
  %2512 = vmatpush1.msra.mxu0 0.0
  %2513 = vmatprep.mubr.f32.mxu0 0.0
  %2514 = vmatmul.mubr.f32.gmra.mrb[0].mxu0 %v2440
  %v2515 = vpop.f32.mrb[0].mxu0
  %v2516 = vadd.f32 %v2436, %v2515
  %v2517 = vpop.f32.mrb[0].mxu0
  %2518 = vmatprep.mubr.f32.mxu0 0.0
  %2519 = vmatmul.mubr.f32.gmra.mrb[0].mxu0 %v2443
  %v2520 = vpop.f32.mrb[0].mxu0
  %v2521 = vadd.f32 %v2437, %v2520
  %v2522 = vpop.f32.mrb[0].mxu0
  %2523 = vdwg.mxu0
  %v2524 = vxor.u32 %v2516, 2147483648
  %v2525 = vxor.u32 %v2521, 2147483648
  %v2526 = vmul.f32 %v2524, 1.442695
  %v2527 = vpow.pop %v2526
  %v2528 = vmul.f32 %v2525, 1.442695
  %v2529 = vpow.pop %v2528
  %v2530 = vadd.f32 %v2527, 1.0
  %v2531 = vadd.f32 %v2529, 1.0
  %v2532 = vrcp.pop %v2530
  %v2533 = vmul.f32 1.0, %v2532
  %v2534 = vrcp.pop %v2531
  %v2535 = vmul.f32 1.0, %v2534
  %2537 = vset.pattern.permute.xlu0 0
  %2538 = vperm.xlu0 %2537, %v2533
  %v2539 = vpop.permute.xlu0 %2538
  %2542 = vset.pattern.permute.xlu0 0
  %2543 = vperm.xlu0 %2542, %v2535
  %v2544 = vpop.permute.xlu0 %2543
  %v2546 = vmul.f32 %v2341, %v2539
  %v2547 = vmul.f32 %v2342, %v2539
  %v2548 = vmul.f32 %v2345, %v2544
  %v2549 = vmul.f32 %v2346, %v2544
  %v2550 = vadd.f32 %v30, %v2546
  %v2551 = vadd.f32 %v31, %v2547
  %v2552 = vadd.f32 %v36, %v2548
  %v2553 = vadd.f32 %v37, %v2549
  %2554 = vst [vmem:[%s8] sm:$0xff] %v2550
  %2555 = vst [vmem:[%s8 + $0x8] sm:$0xff] %v2551
  %2556 = vst [vmem:[%s8 + $0x20] sm:$0xff] %v2552
  %2557 = vst [vmem:[%s8 + $0x28] sm:$0xff] %v2553
  %v2558 = vadd.f32 %v2343, %v2344
  %2559 = vadd.xlane.f32.xlu0 %v2558
  %v2560 = vpop.xlane.xlu0 %2559
  %v2561 = vadd.f32 %v2347, %v2348
  %2562 = vadd.xlane.f32.xlu0 %v2561
  %v2563 = vpop.xlane.xlu0 %2562
  %v2564 = vmul.f32 %v2560, %v2355
  %v2565 = vmul.f32 %v2563, %v2355
  %v2566 = vld [vmem:[%s4] sm:$0xf]
  %v2567 = vld [vmem:[%s5] sm:$0xf]
  %v2569 = vsel %vm167, %v2566, 0
  %2571 = vmatprep.subr.mxu0 0.0
  %2572 = vmatpush1.msra.mxu0 %v2564
  %2573 = vmatprep.subr.mxu0 0.0
  %2574 = vmatpush1.msra.mxu0 %v2565
  %2575 = vmatprep.subr.mxu0 0.0
  %2576 = vmatpush1.msra.mxu0 0.0
  %2577 = vmatprep.subr.mxu0 0.0
  %2578 = vmatpush1.msra.mxu0 0.0
  %2579 = vmatprep.subr.mxu0 0.0
  %2580 = vmatpush1.msra.mxu0 0.0
  %2581 = vmatprep.subr.mxu0 0.0
  %2582 = vmatpush1.msra.mxu0 0.0
  %2583 = vmatprep.subr.mxu0 0.0
  %2584 = vmatpush1.msra.mxu0 0.0
  %2585 = vmatprep.subr.mxu0 0.0
  %2586 = vmatpush1.msra.mxu0 0.0
  %2587 = vmatprep.subr.mxu0 0.0
  %2588 = vmatpush1.msra.mxu0 0.0
  %2589 = vmatprep.subr.mxu0 0.0
  %2590 = vmatpush1.msra.mxu0 0.0
  %2591 = vmatprep.subr.mxu0 0.0
  %2592 = vmatpush1.msra.mxu0 0.0
  %2593 = vmatprep.subr.mxu0 0.0
  %2594 = vmatpush1.msra.mxu0 0.0
  %2595 = vmatprep.subr.mxu0 0.0
  %2596 = vmatpush1.msra.mxu0 0.0
  %2597 = vmatprep.subr.mxu0 0.0
  %2598 = vmatpush1.msra.mxu0 0.0
  %2599 = vmatprep.subr.mxu0 0.0
  %2600 = vmatpush1.msra.mxu0 0.0
  %2601 = vmatprep.subr.mxu0 0.0
  %2602 = vmatpush1.msra.mxu0 0.0
  %2603 = vmatprep.subr.mxu0 0.0
  %2604 = vmatpush1.msra.mxu0 0.0
  %2605 = vmatprep.subr.mxu0 0.0
  %2606 = vmatpush1.msra.mxu0 0.0
  %2607 = vmatprep.subr.mxu0 0.0
  %2608 = vmatpush1.msra.mxu0 0.0
  %2609 = vmatprep.subr.mxu0 0.0
  %2610 = vmatpush1.msra.mxu0 0.0
  %2611 = vmatprep.subr.mxu0 0.0
  %2612 = vmatpush1.msra.mxu0 0.0
  %2613 = vmatprep.subr.mxu0 0.0
  %2614 = vmatpush1.msra.mxu0 0.0
  %2615 = vmatprep.subr.mxu0 0.0
  %2616 = vmatpush1.msra.mxu0 0.0
  %2617 = vmatprep.subr.mxu0 0.0
  %2618 = vmatpush1.msra.mxu0 0.0
  %2619 = vmatprep.subr.mxu0 0.0
  %2620 = vmatpush1.msra.mxu0 0.0
  %2621 = vmatprep.subr.mxu0 0.0
  %2622 = vmatpush1.msra.mxu0 0.0
  %2623 = vmatprep.subr.mxu0 0.0
  %2624 = vmatpush1.msra.mxu0 0.0
  %2625 = vmatprep.subr.mxu0 0.0
  %2626 = vmatpush1.msra.mxu0 0.0
  %2627 = vmatprep.subr.mxu0 0.0
  %2628 = vmatpush1.msra.mxu0 0.0
  %2629 = vmatprep.subr.mxu0 0.0
  %2630 = vmatpush1.msra.mxu0 0.0
  %2631 = vmatprep.subr.mxu0 0.0
  %2632 = vmatpush1.msra.mxu0 0.0
  %2633 = vmatprep.subr.mxu0 0.0
  %2634 = vmatpush1.msra.mxu0 0.0
  %2635 = vmatprep.mubr.f32.mxu0 0.0
  %2636 = vmatmul.mubr.f32.gmra.mrb[0].mxu0 %v2569
  %v2637 = vpop.f32.mrb[0].mxu0
  %v2638 = vadd.f32 %v2567, %v2637
  %v2639 = vpop.f32.mrb[0].mxu0
  %2640 = vdwg.mxu0
  %v2641 = vmax.f32 %v2638, 0.0
  %v2642 = vld [vmem:[%s6] sm:$0xff]
  %v2643 = vld [vmem:[%s6 + $0x8] sm:$0xff]
  %v2644 = vld [vmem:[%s7] sm:$0xff]
  %v2645 = vld [vmem:[%s7 + $0x8] sm:$0xff]
  %v2647 = vsel %vm2438, %v2642, 0
  %v2650 = vsel %vm2438, %v2643, 0
  %v2653 = vsel %vm2445, %v2641, 0
  %2655 = vmatprep.subr.mxu0 0.0
  %2656 = vmatpush1.msra.mxu0 %v2653
  %2657 = vmatprep.subr.mxu0 0.0
  %2658 = vmatpush1.msra.mxu0 0.0
  %2659 = vmatprep.subr.mxu0 0.0
  %2660 = vmatpush1.msra.mxu0 0.0
  %2661 = vmatprep.subr.mxu0 0.0
  %2662 = vmatpush1.msra.mxu0 0.0
  %2663 = vmatprep.subr.mxu0 0.0
  %2664 = vmatpush1.msra.mxu0 0.0
  %2665 = vmatprep.subr.mxu0 0.0
  %2666 = vmatpush1.msra.mxu0 0.0
  %2667 = vmatprep.subr.mxu0 0.0
  %2668 = vmatpush1.msra.mxu0 0.0
  %2669 = vmatprep.subr.mxu0 0.0
  %2670 = vmatpush1.msra.mxu0 0.0
  %2671 = vmatprep.subr.mxu0 0.0
  %2672 = vmatpush1.msra.mxu0 0.0
  %2673 = vmatprep.subr.mxu0 0.0
  %2674 = vmatpush1.msra.mxu0 0.0
  %2675 = vmatprep.subr.mxu0 0.0
  %2676 = vmatpush1.msra.mxu0 0.0
  %2677 = vmatprep.subr.mxu0 0.0
  %2678 = vmatpush1.msra.mxu0 0.0
  %2679 = vmatprep.subr.mxu0 0.0
  %2680 = vmatpush1.msra.mxu0 0.0
  %2681 = vmatprep.subr.mxu0 0.0
  %2682 = vmatpush1.msra.mxu0 0.0
  %2683 = vmatprep.subr.mxu0 0.0
  %2684 = vmatpush1.msra.mxu0 0.0
  %2685 = vmatprep.subr.mxu0 0.0
  %2686 = vmatpush1.msra.mxu0 0.0
  %2687 = vmatprep.subr.mxu0 0.0
  %2688 = vmatpush1.msra.mxu0 0.0
  %2689 = vmatprep.subr.mxu0 0.0
  %2690 = vmatpush1.msra.mxu0 0.0
  %2691 = vmatprep.subr.mxu0 0.0
  %2692 = vmatpush1.msra.mxu0 0.0
  %2693 = vmatprep.subr.mxu0 0.0
  %2694 = vmatpush1.msra.mxu0 0.0
  %2695 = vmatprep.subr.mxu0 0.0
  %2696 = vmatpush1.msra.mxu0 0.0
  %2697 = vmatprep.subr.mxu0 0.0
  %2698 = vmatpush1.msra.mxu0 0.0
  %2699 = vmatprep.subr.mxu0 0.0
  %2700 = vmatpush1.msra.mxu0 0.0
  %2701 = vmatprep.subr.mxu0 0.0
  %2702 = vmatpush1.msra.mxu0 0.0
  %2703 = vmatprep.subr.mxu0 0.0
  %2704 = vmatpush1.msra.mxu0 0.0
  %2705 = vmatprep.subr.mxu0 0.0
  %2706 = vmatpush1.msra.mxu0 0.0
  %2707 = vmatprep.subr.mxu0 0.0
  %2708 = vmatpush1.msra.mxu0 0.0
  %2709 = vmatprep.subr.mxu0 0.0
  %2710 = vmatpush1.msra.mxu0 0.0
  %2711 = vmatprep.subr.mxu0 0.0
  %2712 = vmatpush1.msra.mxu0 0.0
  %2713 = vmatprep.subr.mxu0 0.0
  %2714 = vmatpush1.msra.mxu0 0.0
  %2715 = vmatprep.subr.mxu0 0.0
  %2716 = vmatpush1.msra.mxu0 0.0
  %2717 = vmatprep.subr.mxu0 0.0
  %2718 = vmatpush1.msra.mxu0 0.0
  %2719 = vmatprep.mubr.f32.mxu0 0.0
  %2720 = vmatmul.mubr.f32.gmra.mrb[0].mxu0 %v2647
  %v2721 = vpop.f32.mrb[0].mxu0
  %v2722 = vadd.f32 %v2644, %v2721
  %v2723 = vpop.f32.mrb[0].mxu0
  %2724 = vmatprep.mubr.f32.mxu0 0.0
  %2725 = vmatmul.mubr.f32.gmra.mrb[0].mxu0 %v2650
  %v2726 = vpop.f32.mrb[0].mxu0
  %v2727 = vadd.f32 %v2645, %v2726
  %v2728 = vpop.f32.mrb[0].mxu0
  %2729 = vdwg.mxu0
  %v2730 = vxor.u32 %v2722, 2147483648
  %v2731 = vxor.u32 %v2727, 2147483648
  %v2732 = vmul.f32 %v2730, 1.442695
  %v2733 = vpow.pop %v2732
  %v2734 = vmul.f32 %v2731, 1.442695
  %v2735 = vpow.pop %v2734
  %v2736 = vadd.f32 %v2733, 1.0
  %v2737 = vadd.f32 %v2735, 1.0
  %v2738 = vrcp.pop %v2736
  %v2739 = vmul.f32 1.0, %v2738
  %v2740 = vrcp.pop %v2737
  %v2741 = vmul.f32 1.0, %v2740
  %2743 = vset.pattern.permute.xlu0 0
  %2744 = vperm.xlu0 %2743, %v2739
  %v2745 = vpop.permute.xlu0 %2744
  %2748 = vset.pattern.permute.xlu0 0
  %2749 = vperm.xlu0 %2748, %v2741
  %v2750 = vpop.permute.xlu0 %2749
  %v2752 = vmul.f32 %v2343, %v2745
  %v2753 = vmul.f32 %v2344, %v2745
  %v2754 = vmul.f32 %v2347, %v2750
  %v2755 = vmul.f32 %v2348, %v2750
  %v2756 = vadd.f32 %v32, %v2752
  %v2757 = vadd.f32 %v33, %v2753
  %v2758 = vadd.f32 %v38, %v2754
  %v2759 = vadd.f32 %v39, %v2755
  %2760 = vst [vmem:[%s8 + $0x10] sm:$0xff] %v2756
  %2761 = vst [vmem:[%s8 + $0x18] sm:$0xff] %v2757
  %2762 = vst [vmem:[%s8 + $0x30] sm:$0xff] %v2758
  %2763 = vst [vmem:[%s8 + $0x38] sm:$0xff] %v2759
  // Predicated region
  $region34: #{freblock_chaattn_pallas.3} parent=0 // pred_check
    _
  $region35: #{freblock_chaattn_pallas.3} parent=0 // pred_check_branch
    %2765 = sbr.rel (0) target = $region37
  $region36: #{freblock_chaattn_pallas.3} parent=0 // pred_region
    _
  $region37: #{freblock_chaattn_pallas.3} parent=0 // pred_fallthru
    _
  // Predicated region
  $region38: #{freblock_chaattn_pallas.3} parent=0 // pred_check
    _
  $region39: #{freblock_chaattn_pallas.3} parent=0 // pred_check_branch
    %2767 = sbr.rel (0) target = $region41
  $region40: #{freblock_chaattn_pallas.3} parent=0 // pred_region
    _
  $region41: #{freblock_chaattn_pallas.3} parent=0 // pred_fallthru
    _

// kernel: reverse.1
$region0: #{reverse.1}
  #allocation0 [shape = 's32[1]{0}', space=sflag, size = 0x4, scoped, tag = 'scoped memory for reverse.1']
  %s0 = inlined_call_operand.vmem [shape: f32[2,16,16,7], index: 0, kind: input, shape index: {}]
  %s1 = inlined_call_operand.vmem [shape: f32[2,16,16,7], index: 1, kind: output, shape index: {}]
  %s2 = scalar_lea.vmem %s0, 96
  %v3 = vld [vmem:[%s2] sm:$0xff]
  %4 = vst [vmem:[%s1] sm:$0xff] %v3
  %s5 = scalar_lea.vmem %s0, 208
  %v6 = vld [vmem:[%s5] sm:$0xff]
  %s7 = scalar_lea.vmem %s1, 112
  %8 = vst [vmem:[%s7] sm:$0xff] %v6
  %s9 = scalar_lea.vmem %s0, 80
  %v10 = vld [vmem:[%s9] sm:$0xff]
  %s11 = scalar_lea.vmem %s1, 16
  %12 = vst [vmem:[%s11] sm:$0xff] %v10
  %s13 = scalar_lea.vmem %s0, 192
  %v14 = vld [vmem:[%s13] sm:$0xff]
  %s15 = scalar_lea.vmem %s1, 128
  %16 = vst [vmem:[%s15] sm:$0xff] %v14
  %s17 = scalar_lea.vmem %s0, 64
  %v18 = vld [vmem:[%s17] sm:$0xff]
  %s19 = scalar_lea.vmem %s1, 32
  %20 = vst [vmem:[%s19] sm:$0xff] %v18
  %s21 = scalar_lea.vmem %s0, 176
  %v22 = vld [vmem:[%s21] sm:$0xff]
  %s23 = scalar_lea.vmem %s1, 144
  %24 = vst [vmem:[%s23] sm:$0xff] %v22
  %s25 = scalar_lea.vmem %s0, 48
  %v26 = vld [vmem:[%s25] sm:$0xff]
  %s27 = scalar_lea.vmem %s1, 48
  %28 = vst [vmem:[%s27] sm:$0xff] %v26
  %s29 = scalar_lea.vmem %s0, 160
  %v30 = vld [vmem:[%s29] sm:$0xff]
  %s31 = scalar_lea.vmem %s1, 160
  %32 = vst [vmem:[%s31] sm:$0xff] %v30
  %s33 = scalar_lea.vmem %s0, 32
  %v34 = vld [vmem:[%s33] sm:$0xff]
  %s35 = scalar_lea.vmem %s1, 64
  %36 = vst [vmem:[%s35] sm:$0xff] %v34
  %s37 = scalar_lea.vmem %s0, 144
  %v38 = vld [vmem:[%s37] sm:$0xff]
  %s39 = scalar_lea.vmem %s1, 176
  %40 = vst [vmem:[%s39] sm:$0xff] %v38
  %s41 = scalar_lea.vmem %s0, 16
  %v42 = vld [vmem:[%s41] sm:$0xff]
  %s43 = scalar_lea.vmem %s1, 80
  %44 = vst [vmem:[%s43] sm:$0xff] %v42
  %s45 = scalar_lea.vmem %s0, 128
  %v46 = vld [vmem:[%s45] sm:$0xff]
  %s47 = scalar_lea.vmem %s1, 192
  %48 = vst [vmem:[%s47] sm:$0xff] %v46
  %v49 = vld [vmem:[%s0] sm:$0xff]
  %s50 = scalar_lea.vmem %s1, 96
  %51 = vst [vmem:[%s50] sm:$0xff] %v49
  %s52 = scalar_lea.vmem %s0, 112
  %v53 = vld [vmem:[%s52] sm:$0xff]
  %s54 = scalar_lea.vmem %s1, 208
  %55 = vst [vmem:[%s54] sm:$0xff] %v53
  %s56 = scalar_lea.vmem %s0, 104
  %v57 = vld [vmem:[%s56] sm:$0xff]
  %s58 = scalar_lea.vmem %s1, 8
  %59 = vst [vmem:[%s58] sm:$0xff] %v57
  %s60 = scalar_lea.vmem %s0, 216
  %v61 = vld [vmem:[%s60] sm:$0xff]
  %s62 = scalar_lea.vmem %s1, 120
  %63 = vst [vmem:[%s62] sm:$0xff] %v61
  %s64 = scalar_lea.vmem %s0, 88
  %v65 = vld [vmem:[%s64] sm:$0xff]
  %s66 = scalar_lea.vmem %s1, 24
  %67 = vst [vmem:[%s66] sm:$0xff] %v65
  %s68 = scalar_lea.vmem %s0, 200
  %v69 = vld [vmem:[%s68] sm:$0xff]
  %s70 = scalar_lea.vmem %s1, 136
  %71 = vst [vmem:[%s70] sm:$0xff] %v69
  %s72 = scalar_lea.vmem %s0, 72
  %v73 = vld [vmem:[%s72] sm:$0xff]
  %s74 = scalar_lea.vmem %s1, 40
  %75 = vst [vmem:[%s74] sm:$0xff] %v73
  %s76 = scalar_lea.vmem %s0, 184
  %v77 = vld [vmem:[%s76] sm:$0xff]
  %s78 = scalar_lea.vmem %s1, 152
  %79 = vst [vmem:[%s78] sm:$0xff] %v77
  %s80 = scalar_lea.vmem %s0, 56
  %v81 = vld [vmem:[%s80] sm:$0xff]
  %s82 = scalar_lea.vmem %s1, 56
  %83 = vst [vmem:[%s82] sm:$0xff] %v81
  %s84 = scalar_lea.vmem %s0, 168
  %v85 = vld [vmem:[%s84] sm:$0xff]
  %s86 = scalar_lea.vmem %s1, 168
  %87 = vst [vmem:[%s86] sm:$0xff] %v85
  %s88 = scalar_lea.vmem %s0, 40
  %v89 = vld [vmem:[%s88] sm:$0xff]
  %s90 = scalar_lea.vmem %s1, 72
  %91 = vst [vmem:[%s90] sm:$0xff] %v89
  %s92 = scalar_lea.vmem %s0, 152
  %v93 = vld [vmem:[%s92] sm:$0xff]
  %s94 = scalar_lea.vmem %s1, 184
  %95 = vst [vmem:[%s94] sm:$0xff] %v93
  %s96 = scalar_lea.vmem %s0, 24
  %v97 = vld [vmem:[%s96] sm:$0xff]
  %s98 = scalar_lea.vmem %s1, 88
  %99 = vst [vmem:[%s98] sm:$0xff] %v97
  %s100 = scalar_lea.vmem %s0, 136
  %v101 = vld [vmem:[%s100] sm:$0xff]
  %s102 = scalar_lea.vmem %s1, 200
  %103 = vst [vmem:[%s102] sm:$0xff] %v101
  %s104 = scalar_lea.vmem %s0, 8
  %v105 = vld [vmem:[%s104] sm:$0xff]
  %s106 = scalar_lea.vmem %s1, 104
  %107 = vst [vmem:[%s106] sm:$0xff] %v105
  %s108 = scalar_lea.vmem %s0, 120
  %v109 = vld [vmem:[%s108] sm:$0xff]
  %s110 = scalar_lea.vmem %s1, 216
  %111 = vst [vmem:[%s110] sm:$0xff] %v109

// kernel: freblock_chaattn_pallas.4
$region0: #{freblock_chaattn_pallas.4}
  #allocation0 [shape = 'u32[]', space=smem, size = 0x4, offset = 0x4, fixed_abs, tag = 'smem constant byte address 0x4 - core index']
  #allocation1 [shape = 'u32[144,128]{1,0:T(1,128)}', space=vmem, size = 0x12000, scoped, tag = 'internal scratch']
  %s0 = inlined_call_operand.vmem [shape: f32[16,640], index: 0, kind: input, shape index: {}]
  %s1 = inlined_call_operand.vmem [shape: f32[16,640], index: 1, kind: input, shape index: {}]
  %s2 = inlined_call_operand.vmem [shape: f32[9,1,384], index: 2, kind: input, shape index: {}]
  %s3 = inlined_call_operand.vmem [shape: f32[9,16,16], index: 3, kind: input, shape index: {}]
  %s4 = inlined_call_operand.vmem [shape: f32[16,1], index: 4, kind: input, shape index: {}]
  %s5 = inlined_call_operand.vmem [shape: f32[9,16,16], index: 5, kind: input, shape index: {}]
  %s6 = inlined_call_operand.vmem [shape: f32[16,1], index: 6, kind: input, shape index: {}]
  %s7 = inlined_call_operand.vmem [shape: f32[9,16,16], index: 7, kind: input, shape index: {}]
  %s8 = inlined_call_operand.vmem [shape: f32[16,1], index: 8, kind: input, shape index: {}]
  %s9 = inlined_call_operand.vmem [shape: f32[9,16,16], index: 9, kind: input, shape index: {}]
  %s10 = inlined_call_operand.vmem [shape: f32[16,1], index: 10, kind: input, shape index: {}]
  %s11 = inlined_call_operand.vmem [shape: f32[16,384], index: 11, kind: output, shape index: {0}]
  %s12 = inlined_call_operand.vmem [shape: f32[16,384], index: 12, kind: output, shape index: {1}]
  %13 = xla_tuple %s11, %s12
  %s14 = sld [smem:[#allocation0]]
  $region62: #{freblock_chaattn_pallas.4} parent=0
    _
  %s16 = ssub.s32 1, %s14
  %s17 = scalar_select 0, %s16, %s14
  // Predicated region
  $region2: #{freblock_chaattn_pallas.4} parent=0 // pred_check
    _
  $region3: #{freblock_chaattn_pallas.4} parent=0 // pred_check_branch
    %19 = sbr.rel (0) target = $region5
  $region4: #{freblock_chaattn_pallas.4} parent=0 // pred_region
    _
  $region5: #{freblock_chaattn_pallas.4} parent=0 // pred_fallthru
    _
  // Predicated region
  $region6: #{freblock_chaattn_pallas.4} parent=0 // pred_check
    _
  $region7: #{freblock_chaattn_pallas.4} parent=0 // pred_check_branch
    %21 = sbr.rel (0) target = $region9
  $region8: #{freblock_chaattn_pallas.4} parent=0 // pred_region
    _
  $region9: #{freblock_chaattn_pallas.4} parent=0 // pred_fallthru
    _
  // Predicated region
  $region10: #{freblock_chaattn_pallas.4} parent=0 // pred_check
    _
  $region11: #{freblock_chaattn_pallas.4} parent=0 // pred_check_branch
    %23 = sbr.rel (0) target = $region13
  $region12: #{freblock_chaattn_pallas.4} parent=0 // pred_region
    _
  $region13: #{freblock_chaattn_pallas.4} parent=0 // pred_fallthru
    _
  // Predicated region
  $region14: #{freblock_chaattn_pallas.4} parent=0 // pred_check
    _
  $region15: #{freblock_chaattn_pallas.4} parent=0 // pred_check_branch
    %25 = sbr.rel (0) target = $region17
  $region16: #{freblock_chaattn_pallas.4} parent=0 // pred_region
    _
  $region17: #{freblock_chaattn_pallas.4} parent=0 // pred_fallthru
    _
  // Predicated region
  $region18: #{freblock_chaattn_pallas.4} parent=0 // pred_check
    _
  $region19: #{freblock_chaattn_pallas.4} parent=0 // pred_check_branch
    %27 = sbr.rel (0) target = $region21
  $region20: #{freblock_chaattn_pallas.4} parent=0 // pred_region
    _
  $region21: #{freblock_chaattn_pallas.4} parent=0 // pred_fallthru
    _
  // Predicated region
  $region22: #{freblock_chaattn_pallas.4} parent=0 // pred_check
    _
  $region23: #{freblock_chaattn_pallas.4} parent=0 // pred_check_branch
    %29 = sbr.rel (0) target = $region25
  $region24: #{freblock_chaattn_pallas.4} parent=0 // pred_region
    _
  $region25: #{freblock_chaattn_pallas.4} parent=0 // pred_fallthru
    _
  // Predicated region
  $region26: #{freblock_chaattn_pallas.4} parent=0 // pred_check
    _
  $region27: #{freblock_chaattn_pallas.4} parent=0 // pred_check_branch
    %31 = sbr.rel (0) target = $region29
  $region28: #{freblock_chaattn_pallas.4} parent=0 // pred_region
    _
  $region29: #{freblock_chaattn_pallas.4} parent=0 // pred_fallthru
    _
  // Predicated region
  $region30: #{freblock_chaattn_pallas.4} parent=0 // pred_check
    _
  $region31: #{freblock_chaattn_pallas.4} parent=0 // pred_check_branch
    %33 = sbr.rel (0) target = $region33
  $region32: #{freblock_chaattn_pallas.4} parent=0 // pred_region
    _
  $region33: #{freblock_chaattn_pallas.4} parent=0 // pred_fallthru
    _
  // Predicated region
  $region34: #{freblock_chaattn_pallas.4} parent=0 // pred_check
    _
  $region35: #{freblock_chaattn_pallas.4} parent=0 // pred_check_branch
    %35 = sbr.rel (0) target = $region37
  $region36: #{freblock_chaattn_pallas.4} parent=0 // pred_region
    _
  $region37: #{freblock_chaattn_pallas.4} parent=0 // pred_fallthru
    _
  // Predicated region
  $region38: #{freblock_chaattn_pallas.4} parent=0 // pred_check
    _
  $region39: #{freblock_chaattn_pallas.4} parent=0 // pred_check_branch
    %37 = sbr.rel (0) target = $region41
  $region40: #{freblock_chaattn_pallas.4} parent=0 // pred_region
    _
  $region41: #{freblock_chaattn_pallas.4} parent=0 // pred_fallthru
    _
  // Predicated region
  $region42: #{freblock_chaattn_pallas.4} parent=0 // pred_check
    _
  $region43: #{freblock_chaattn_pallas.4} parent=0 // pred_check_branch
    %39 = sbr.rel (0) target = $region45
  $region44: #{freblock_chaattn_pallas.4} parent=0 // pred_region
    _
  $region45: #{freblock_chaattn_pallas.4} parent=0 // pred_fallthru
    _
  %v40 = vld [vmem:[%s0] sm:$0xff]
  %v41 = vld [vmem:[%s0 + $0x8] sm:$0xff]
  %v42 = vld [vmem:[%s0 + $0x10] sm:$0xff]
  %v43 = vld [vmem:[%s0 + $0x18] sm:$0xff]
  %v44 = vld [vmem:[%s0 + $0x20] sm:$0xff]
  %v45 = vld [vmem:[%s0 + $0x28] sm:$0xff]
  %v46 = vld [vmem:[%s0 + $0x30] sm:$0xff]
  %v47 = vld [vmem:[%s0 + $0x38] sm:$0xff]
  %v48 = vld [vmem:[%s0 + $0x40] sm:$0xff]
  %v49 = vld [vmem:[%s0 + $0x48] sm:$0xff]
  %v50 = vld [vmem:[%s2] sm:$0x7]
  %v52 = vlaneseq
  %v53 = vshrl.u32 %v52, 7
  %v54 = vsub.s32 0, %v53
  %v55 = vrot.slane %v50, %v54
  %v56 = vlaneseq
  %v57 = vshrl.u32 %v56, 7
  %v58 = vsub.s32 1, %v57
  %v59 = vrot.slane %v50, %v58
  %v60 = vlaneseq
  %v61 = vshrl.u32 %v60, 7
  %v62 = vsub.s32 2, %v61
  %v63 = vrot.slane %v50, %v62
  %64 = vrot.lane.b32.xlu0 %v55, 118
  %v65 = vpop.permute.xlu0 %64
  %66 = vrot.lane.b32.xlu0 %v59, 118
  %v67 = vpop.permute.xlu0 %66
  %68 = vrot.lane.b32.xlu0 %v63, 118
  %v69 = vpop.permute.xlu0 %68
  %vm70 = vcmask 965632
  %v71 = vsel %vm70, %v65, %v67
  %v72 = vsel %vm70, %v67, %v69
  %v77 = vmul.f32 %v40, %v65
  %v78 = vmul.f32 %v41, %v71
  %v79 = vmul.f32 %v42, %v72
  %v80 = vmul.f32 %v43, %v69
  %v81 = vmul.f32 %v45, %v65
  %v82 = vmul.f32 %v46, %v71
  %v83 = vmul.f32 %v47, %v72
  %v84 = vmul.f32 %v48, %v69
  %v85 = vld [vmem:[%s3] sm:$0xff]
  %v86 = vld [vmem:[%s3 + $0x8] sm:$0xff]
  %s87 = scalar_lea.vmem %s2, 3
  %v88 = vld [vmem:[%s87] sm:$0x7]
  %v90 = vlaneseq
  %v91 = vshrl.u32 %v90, 7
  %v92 = vsub.s32 0, %v91
  %v93 = vrot.slane %v88, %v92
  %v94 = vlaneseq
  %v95 = vshrl.u32 %v94, 7
  %v96 = vsub.s32 1, %v95
  %v97 = vrot.slane %v88, %v96
  %v98 = vlaneseq
  %v99 = vshrl.u32 %v98, 7
  %v100 = vsub.s32 2, %v99
  %v101 = vrot.slane %v88, %v100
  %102 = vrot.lane.b32.xlu0 %v93, 119
  %v103 = vpop.permute.xlu0 %102
  %104 = vrot.lane.b32.xlu0 %v97, 119
  %v105 = vpop.permute.xlu0 %104
  %106 = vrot.lane.b32.xlu0 %v101, 119
  %v107 = vpop.permute.xlu0 %106
  %vm108 = vcmask 973824
  %v109 = vsel %vm108, %v103, %v105
  %v110 = vsel %vm108, %v105, %v107
  %v115 = vmul.f32 %v40, %v103
  %v116 = vmul.f32 %v41, %v109
  %v117 = vmul.f32 %v42, %v110
  %v118 = vmul.f32 %v43, %v107
  %v119 = vmul.f32 %v45, %v103
  %v120 = vmul.f32 %v46, %v109
  %v121 = vmul.f32 %v47, %v110
  %v122 = vmul.f32 %v48, %v107
  %s123 = scalar_lea.vmem %s3, 16
  %v124 = vld [vmem:[%s123] sm:$0xff]
  %v125 = vld [vmem:[%s123 + $0x8] sm:$0xff]
  %134 = vrot.lane.b32.xlu0 %v115, 9
  %v135 = vpop.permute.xlu0 %134
  %136 = vrot.lane.b32.xlu0 %v116, 9
  %v137 = vpop.permute.xlu0 %136
  %138 = vrot.lane.b32.xlu0 %v117, 9
  %v139 = vpop.permute.xlu0 %138
  %140 = vrot.lane.b32.xlu0 %v118, 9
  %v141 = vpop.permute.xlu0 %140
  %142 = vrot.lane.b32.xlu0 %v119, 9
  %v143 = vpop.permute.xlu0 %142
  %144 = vrot.lane.b32.xlu0 %v120, 9
  %v145 = vpop.permute.xlu0 %144
  %146 = vrot.lane.b32.xlu0 %v121, 9
  %v147 = vpop.permute.xlu0 %146
  %148 = vrot.lane.b32.xlu0 %v122, 9
  %v149 = vpop.permute.xlu0 %148
  %vm150 = vcmask 72704
  %v151 = vsel %vm150, %v135, %v137
  %v152 = vsel %vm150, %v137, %v139
  %v153 = vsel %vm150, %v139, %v141
  %v154 = vsel %vm150, %v143, %v145
  %v155 = vsel %vm150, %v145, %v147
  %v156 = vsel %vm150, %v147, %v149
  %vm163 = vcmask 130048
  %v165 = vsel %vm163, %v124, 0
  %v168 = vsel %vm163, %v125, 0
  %170 = vmatprep.subr.mxu0 %v152
  %171 = vmatpush1.msra.mxu0 %v151
  %172 = vmatprep.subr.mxu0 %v155
  %173 = vmatpush1.msra.mxu0 %v154
  %174 = vmatprep.subr.mxu0 0.0
  %175 = vmatpush1.msra.mxu0 0.0
  %176 = vmatprep.subr.mxu0 0.0
  %177 = vmatpush1.msra.mxu0 0.0
  %178 = vmatprep.subr.mxu0 0.0
  %179 = vmatpush1.msra.mxu0 0.0
  %180 = vmatprep.subr.mxu0 0.0
  %181 = vmatpush1.msra.mxu0 0.0
  %182 = vmatprep.subr.mxu0 0.0
  %183 = vmatpush1.msra.mxu0 0.0
  %184 = vmatprep.subr.mxu0 0.0
  %185 = vmatpush1.msra.mxu0 0.0
  %186 = vmatprep.subr.mxu0 0.0
  %187 = vmatpush1.msra.mxu0 0.0
  %188 = vmatprep.subr.mxu0 0.0
  %189 = vmatpush1.msra.mxu0 0.0
  %190 = vmatprep.subr.mxu0 0.0
  %191 = vmatpush1.msra.mxu0 0.0
  %192 = vmatprep.subr.mxu0 0.0
  %193 = vmatpush1.msra.mxu0 0.0
  %194 = vmatprep.subr.mxu0 0.0
  %195 = vmatpush1.msra.mxu0 0.0
  %196 = vmatprep.subr.mxu0 0.0
  %197 = vmatpush1.msra.mxu0 0.0
  %198 = vmatprep.subr.mxu0 0.0
  %199 = vmatpush1.msra.mxu0 0.0
  %200 = vmatprep.subr.mxu0 0.0
  %201 = vmatpush1.msra.mxu0 0.0
  %202 = vmatprep.subr.mxu0 0.0
  %203 = vmatpush1.msra.mxu0 0.0
  %204 = vmatprep.subr.mxu0 0.0
  %205 = vmatpush1.msra.mxu0 0.0
  %206 = vmatprep.subr.mxu0 0.0
  %207 = vmatpush1.msra.mxu0 0.0
  %208 = vmatprep.subr.mxu0 0.0
  %209 = vmatpush1.msra.mxu0 0.0
  %210 = vmatprep.subr.mxu0 0.0
  %211 = vmatpush1.msra.mxu0 0.0
  %212 = vmatprep.subr.mxu0 0.0
  %213 = vmatpush1.msra.mxu0 0.0
  %214 = vmatprep.subr.mxu0 0.0
  %215 = vmatpush1.msra.mxu0 0.0
  %216 = vmatprep.subr.mxu0 0.0
  %217 = vmatpush1.msra.mxu0 0.0
  %218 = vmatprep.subr.mxu0 0.0
  %219 = vmatpush1.msra.mxu0 0.0
  %220 = vmatprep.subr.mxu0 0.0
  %221 = vmatpush1.msra.mxu0 0.0
  %222 = vmatprep.subr.mxu0 0.0
  %223 = vmatpush1.msra.mxu0 0.0
  %224 = vmatprep.subr.mxu0 0.0
  %225 = vmatpush1.msra.mxu0 0.0
  %226 = vmatprep.subr.mxu0 0.0
  %227 = vmatpush1.msra.mxu0 0.0
  %228 = vmatprep.subr.mxu0 0.0
  %229 = vmatpush1.msra.mxu0 0.0
  %230 = vmatprep.subr.mxu0 0.0
  %231 = vmatpush1.msra.mxu0 0.0
  %232 = vmatprep.subr.mxu0 0.0
  %233 = vmatpush1.msra.mxu0 0.0
  %234 = vmatprep.mubr.f32.mxu0 0.0
  %235 = vmatmul.mubr.f32.gmra.mrb[0].mxu0 %v165
  %v236 = vpop.f32.mrb[0].mxu0
  %v237 = vadd.f32 0.0, %v236
  %v238 = vpop.f32.mrb[0].mxu0
  %v239 = vadd.f32 0.0, %v238
  %240 = vmatprep.mubr.f32.mxu0 0.0
  %241 = vmatmul.mubr.f32.gmra.mrb[0].mxu0 %v168
  %v242 = vpop.f32.mrb[0].mxu0
  %v243 = vadd.f32 0.0, %v242
  %v244 = vpop.f32.mrb[0].mxu0
  %v245 = vadd.f32 0.0, %v244
  %246 = vdwg.mxu0
  %247 = vmatprep.subr.mxu0 0.0
  %248 = vmatpush1.msra.mxu0 %v153
  %249 = vmatprep.subr.mxu0 0.0
  %250 = vmatpush1.msra.mxu0 %v156
  %251 = vmatprep.subr.mxu0 0.0
  %252 = vmatpush1.msra.mxu0 0.0
  %253 = vmatprep.subr.mxu0 0.0
  %254 = vmatpush1.msra.mxu0 0.0
  %255 = vmatprep.subr.mxu0 0.0
  %256 = vmatpush1.msra.mxu0 0.0
  %257 = vmatprep.subr.mxu0 0.0
  %258 = vmatpush1.msra.mxu0 0.0
  %259 = vmatprep.subr.mxu0 0.0
  %260 = vmatpush1.msra.mxu0 0.0
  %261 = vmatprep.subr.mxu0 0.0
  %262 = vmatpush1.msra.mxu0 0.0
  %263 = vmatprep.subr.mxu0 0.0
  %264 = vmatpush1.msra.mxu0 0.0
  %265 = vmatprep.subr.mxu0 0.0
  %266 = vmatpush1.msra.mxu0 0.0
  %267 = vmatprep.subr.mxu0 0.0
  %268 = vmatpush1.msra.mxu0 0.0
  %269 = vmatprep.subr.mxu0 0.0
  %270 = vmatpush1.msra.mxu0 0.0
  %271 = vmatprep.subr.mxu0 0.0
  %272 = vmatpush1.msra.mxu0 0.0
  %273 = vmatprep.subr.mxu0 0.0
  %274 = vmatpush1.msra.mxu0 0.0
  %275 = vmatprep.subr.mxu0 0.0
  %276 = vmatpush1.msra.mxu0 0.0
  %277 = vmatprep.subr.mxu0 0.0
  %278 = vmatpush1.msra.mxu0 0.0
  %279 = vmatprep.subr.mxu0 0.0
  %280 = vmatpush1.msra.mxu0 0.0
  %281 = vmatprep.subr.mxu0 0.0
  %282 = vmatpush1.msra.mxu0 0.0
  %283 = vmatprep.subr.mxu0 0.0
  %284 = vmatpush1.msra.mxu0 0.0
  %285 = vmatprep.subr.mxu0 0.0
  %286 = vmatpush1.msra.mxu0 0.0
  %287 = vmatprep.subr.mxu0 0.0
  %288 = vmatpush1.msra.mxu0 0.0
  %289 = vmatprep.subr.mxu0 0.0
  %290 = vmatpush1.msra.mxu0 0.0
  %291 = vmatprep.subr.mxu0 0.0
  %292 = vmatpush1.msra.mxu0 0.0
  %293 = vmatprep.subr.mxu0 0.0
  %294 = vmatpush1.msra.mxu0 0.0
  %295 = vmatprep.subr.mxu0 0.0
  %296 = vmatpush1.msra.mxu0 0.0
  %297 = vmatprep.subr.mxu0 0.0
  %298 = vmatpush1.msra.mxu0 0.0
  %299 = vmatprep.subr.mxu0 0.0
  %300 = vmatpush1.msra.mxu0 0.0
  %301 = vmatprep.subr.mxu0 0.0
  %302 = vmatpush1.msra.mxu0 0.0
  %303 = vmatprep.subr.mxu0 0.0
  %304 = vmatpush1.msra.mxu0 0.0
  %305 = vmatprep.subr.mxu0 0.0
  %306 = vmatpush1.msra.mxu0 0.0
  %307 = vmatprep.subr.mxu0 0.0
  %308 = vmatpush1.msra.mxu0 0.0
  %309 = vmatprep.subr.mxu0 0.0
  %310 = vmatpush1.msra.mxu0 0.0
  %311 = vmatprep.mubr.f32.mxu0 0.0
  %312 = vmatmul.mubr.f32.gmra.mrb[0].mxu0 %v165
  %v313 = vpop.f32.mrb[0].mxu0
  %v314 = vadd.f32 0.0, %v313
  %v315 = vpop.f32.mrb[0].mxu0
  %316 = vmatprep.mubr.f32.mxu0 0.0
  %317 = vmatmul.mubr.f32.gmra.mrb[0].mxu0 %v168
  %v318 = vpop.f32.mrb[0].mxu0
  %v319 = vadd.f32 0.0, %v318
  %v320 = vpop.f32.mrb[0].mxu0
  %321 = vdwg.mxu0
  %330 = vrot.lane.b32.xlu0 %v77, 10
  %v331 = vpop.permute.xlu0 %330
  %332 = vrot.lane.b32.xlu0 %v78, 10
  %v333 = vpop.permute.xlu0 %332
  %334 = vrot.lane.b32.xlu0 %v79, 10
  %v335 = vpop.permute.xlu0 %334
  %336 = vrot.lane.b32.xlu0 %v80, 10
  %v337 = vpop.permute.xlu0 %336
  %338 = vrot.lane.b32.xlu0 %v81, 10
  %v339 = vpop.permute.xlu0 %338
  %340 = vrot.lane.b32.xlu0 %v82, 10
  %v341 = vpop.permute.xlu0 %340
  %342 = vrot.lane.b32.xlu0 %v83, 10
  %v343 = vpop.permute.xlu0 %342
  %344 = vrot.lane.b32.xlu0 %v84, 10
  %v345 = vpop.permute.xlu0 %344
  %vm346 = vcmask 80896
  %v347 = vsel %vm346, %v331, %v333
  %v348 = vsel %vm346, %v333, %v335
  %v349 = vsel %vm346, %v335, %v337
  %v350 = vsel %vm346, %v339, %v341
  %v351 = vsel %vm346, %v341, %v343
  %v352 = vsel %vm346, %v343, %v345
  %v360 = vsel %vm163, %v85, 0
  %v363 = vsel %vm163, %v86, 0
  %365 = vmatprep.subr.mxu0 %v348
  %366 = vmatpush1.msra.mxu0 %v347
  %367 = vmatprep.subr.mxu0 %v351
  %368 = vmatpush1.msra.mxu0 %v350
  %369 = vmatprep.subr.mxu0 0.0
  %370 = vmatpush1.msra.mxu0 0.0
  %371 = vmatprep.subr.mxu0 0.0
  %372 = vmatpush1.msra.mxu0 0.0
  %373 = vmatprep.subr.mxu0 0.0
  %374 = vmatpush1.msra.mxu0 0.0
  %375 = vmatprep.subr.mxu0 0.0
  %376 = vmatpush1.msra.mxu0 0.0
  %377 = vmatprep.subr.mxu0 0.0
  %378 = vmatpush1.msra.mxu0 0.0
  %379 = vmatprep.subr.mxu0 0.0
  %380 = vmatpush1.msra.mxu0 0.0
  %381 = vmatprep.subr.mxu0 0.0
  %382 = vmatpush1.msra.mxu0 0.0
  %383 = vmatprep.subr.mxu0 0.0
  %384 = vmatpush1.msra.mxu0 0.0
  %385 = vmatprep.subr.mxu0 0.0
  %386 = vmatpush1.msra.mxu0 0.0
  %387 = vmatprep.subr.mxu0 0.0
  %388 = vmatpush1.msra.mxu0 0.0
  %389 = vmatprep.subr.mxu0 0.0
  %390 = vmatpush1.msra.mxu0 0.0
  %391 = vmatprep.subr.mxu0 0.0
  %392 = vmatpush1.msra.mxu0 0.0
  %393 = vmatprep.subr.mxu0 0.0
  %394 = vmatpush1.msra.mxu0 0.0
  %395 = vmatprep.subr.mxu0 0.0
  %396 = vmatpush1.msra.mxu0 0.0
  %397 = vmatprep.subr.mxu0 0.0
  %398 = vmatpush1.msra.mxu0 0.0
  %399 = vmatprep.subr.mxu0 0.0
  %400 = vmatpush1.msra.mxu0 0.0
  %401 = vmatprep.subr.mxu0 0.0
  %402 = vmatpush1.msra.mxu0 0.0
  %403 = vmatprep.subr.mxu0 0.0
  %404 = vmatpush1.msra.mxu0 0.0
  %405 = vmatprep.subr.mxu0 0.0
  %406 = vmatpush1.msra.mxu0 0.0
  %407 = vmatprep.subr.mxu0 0.0
  %408 = vmatpush1.msra.mxu0 0.0
  %409 = vmatprep.subr.mxu0 0.0
  %410 = vmatpush1.msra.mxu0 0.0
  %411 = vmatprep.subr.mxu0 0.0
  %412 = vmatpush1.msra.mxu0 0.0
  %413 = vmatprep.subr.mxu0 0.0
  %414 = vmatpush1.msra.mxu0 0.0
  %415 = vmatprep.subr.mxu0 0.0
  %416 = vmatpush1.msra.mxu0 0.0
  %417 = vmatprep.subr.mxu0 0.0
  %418 = vmatpush1.msra.mxu0 0.0
  %419 = vmatprep.subr.mxu0 0.0
  %420 = vmatpush1.msra.mxu0 0.0
  %421 = vmatprep.subr.mxu0 0.0
  %422 = vmatpush1.msra.mxu0 0.0
  %423 = vmatprep.subr.mxu0 0.0
  %424 = vmatpush1.msra.mxu0 0.0
  %425 = vmatprep.subr.mxu0 0.0
  %426 = vmatpush1.msra.mxu0 0.0
  %427 = vmatprep.subr.mxu0 0.0
  %428 = vmatpush1.msra.mxu0 0.0
  %429 = vmatprep.mubr.f32.mxu0 0.0
  %430 = vmatmul.mubr.f32.gmra.mrb[0].mxu0 %v360
  %v431 = vpop.f32.mrb[0].mxu0
  %v432 = vadd.f32 %v237, %v431
  %v433 = vpop.f32.mrb[0].mxu0
  %v434 = vadd.f32 %v239, %v433
  %435 = vmatprep.mubr.f32.mxu0 0.0
  %436 = vmatmul.mubr.f32.gmra.mrb[0].mxu0 %v363
  %v437 = vpop.f32.mrb[0].mxu0
  %v438 = vadd.f32 %v243, %v437
  %v439 = vpop.f32.mrb[0].mxu0
  %v440 = vadd.f32 %v245, %v439
  %441 = vdwg.mxu0
  %442 = vmatprep.subr.mxu0 0.0
  %443 = vmatpush1.msra.mxu0 %v349
  %444 = vmatprep.subr.mxu0 0.0
  %445 = vmatpush1.msra.mxu0 %v352
  %446 = vmatprep.subr.mxu0 0.0
  %447 = vmatpush1.msra.mxu0 0.0
  %448 = vmatprep.subr.mxu0 0.0
  %449 = vmatpush1.msra.mxu0 0.0
  %450 = vmatprep.subr.mxu0 0.0
  %451 = vmatpush1.msra.mxu0 0.0
  %452 = vmatprep.subr.mxu0 0.0
  %453 = vmatpush1.msra.mxu0 0.0
  %454 = vmatprep.subr.mxu0 0.0
  %455 = vmatpush1.msra.mxu0 0.0
  %456 = vmatprep.subr.mxu0 0.0
  %457 = vmatpush1.msra.mxu0 0.0
  %458 = vmatprep.subr.mxu0 0.0
  %459 = vmatpush1.msra.mxu0 0.0
  %460 = vmatprep.subr.mxu0 0.0
  %461 = vmatpush1.msra.mxu0 0.0
  %462 = vmatprep.subr.mxu0 0.0
  %463 = vmatpush1.msra.mxu0 0.0
  %464 = vmatprep.subr.mxu0 0.0
  %465 = vmatpush1.msra.mxu0 0.0
  %466 = vmatprep.subr.mxu0 0.0
  %467 = vmatpush1.msra.mxu0 0.0
  %468 = vmatprep.subr.mxu0 0.0
  %469 = vmatpush1.msra.mxu0 0.0
  %470 = vmatprep.subr.mxu0 0.0
  %471 = vmatpush1.msra.mxu0 0.0
  %472 = vmatprep.subr.mxu0 0.0
  %473 = vmatpush1.msra.mxu0 0.0
  %474 = vmatprep.subr.mxu0 0.0
  %475 = vmatpush1.msra.mxu0 0.0
  %476 = vmatprep.subr.mxu0 0.0
  %477 = vmatpush1.msra.mxu0 0.0
  %478 = vmatprep.subr.mxu0 0.0
  %479 = vmatpush1.msra.mxu0 0.0
  %480 = vmatprep.subr.mxu0 0.0
  %481 = vmatpush1.msra.mxu0 0.0
  %482 = vmatprep.subr.mxu0 0.0
  %483 = vmatpush1.msra.mxu0 0.0
  %484 = vmatprep.subr.mxu0 0.0
  %485 = vmatpush1.msra.mxu0 0.0
  %486 = vmatprep.subr.mxu0 0.0
  %487 = vmatpush1.msra.mxu0 0.0
  %488 = vmatprep.subr.mxu0 0.0
  %489 = vmatpush1.msra.mxu0 0.0
  %490 = vmatprep.subr.mxu0 0.0
  %491 = vmatpush1.msra.mxu0 0.0
  %492 = vmatprep.subr.mxu0 0.0
  %493 = vmatpush1.msra.mxu0 0.0
  %494 = vmatprep.subr.mxu0 0.0
  %495 = vmatpush1.msra.mxu0 0.0
  %496 = vmatprep.subr.mxu0 0.0
  %497 = vmatpush1.msra.mxu0 0.0
  %498 = vmatprep.subr.mxu0 0.0
  %499 = vmatpush1.msra.mxu0 0.0
  %500 = vmatprep.subr.mxu0 0.0
  %501 = vmatpush1.msra.mxu0 0.0
  %502 = vmatprep.subr.mxu0 0.0
  %503 = vmatpush1.msra.mxu0 0.0
  %504 = vmatprep.subr.mxu0 0.0
  %505 = vmatpush1.msra.mxu0 0.0
  %506 = vmatprep.mubr.f32.mxu0 0.0
  %507 = vmatmul.mubr.f32.gmra.mrb[0].mxu0 %v360
  %v508 = vpop.f32.mrb[0].mxu0
  %v509 = vadd.f32 %v314, %v508
  %v510 = vpop.f32.mrb[0].mxu0
  %511 = vmatprep.mubr.f32.mxu0 0.0
  %512 = vmatmul.mubr.f32.gmra.mrb[0].mxu0 %v363
  %v513 = vpop.f32.mrb[0].mxu0
  %v514 = vadd.f32 %v319, %v513
  %v515 = vpop.f32.mrb[0].mxu0
  %516 = vdwg.mxu0
  %s517 = scalar_lea.vmem %s2, 6
  %v518 = vld [vmem:[%s517] sm:$0x7]
  %v520 = vlaneseq
  %v521 = vshrl.u32 %v520, 7
  %v522 = vsub.s32 0, %v521
  %v523 = vrot.slane %v518, %v522
  %v524 = vlaneseq
  %v525 = vshrl.u32 %v524, 7
  %v526 = vsub.s32 1, %v525
  %v527 = vrot.slane %v518, %v526
  %v528 = vlaneseq
  %v529 = vshrl.u32 %v528, 7
  %v530 = vsub.s32 2, %v529
  %v531 = vrot.slane %v518, %v530
  %532 = vrot.lane.b32.xlu0 %v523, 120
  %v533 = vpop.permute.xlu0 %532
  %534 = vrot.lane.b32.xlu0 %v527, 120
  %v535 = vpop.permute.xlu0 %534
  %536 = vrot.lane.b32.xlu0 %v531, 120
  %v537 = vpop.permute.xlu0 %536
  %vm538 = vcmask 982016
  %v539 = vsel %vm538, %v533, %v535
  %v540 = vsel %vm538, %v535, %v537
  %v545 = vmul.f32 %v40, %v533
  %v546 = vmul.f32 %v41, %v539
  %v547 = vmul.f32 %v42, %v540
  %v548 = vmul.f32 %v43, %v537
  %v549 = vmul.f32 %v45, %v533
  %v550 = vmul.f32 %v46, %v539
  %v551 = vmul.f32 %v47, %v540
  %v552 = vmul.f32 %v48, %v537
  %s553 = scalar_lea.vmem %s3, 32
  %v554 = vld [vmem:[%s553] sm:$0xff]
  %v555 = vld [vmem:[%s553 + $0x8] sm:$0xff]
  %564 = vrot.lane.b32.xlu0 %v545, 8
  %v565 = vpop.permute.xlu0 %564
  %566 = vrot.lane.b32.xlu0 %v546, 8
  %v567 = vpop.permute.xlu0 %566
  %568 = vrot.lane.b32.xlu0 %v547, 8
  %v569 = vpop.permute.xlu0 %568
  %570 = vrot.lane.b32.xlu0 %v548, 8
  %v571 = vpop.permute.xlu0 %570
  %572 = vrot.lane.b32.xlu0 %v549, 8
  %v573 = vpop.permute.xlu0 %572
  %574 = vrot.lane.b32.xlu0 %v550, 8
  %v575 = vpop.permute.xlu0 %574
  %576 = vrot.lane.b32.xlu0 %v551, 8
  %v577 = vpop.permute.xlu0 %576
  %578 = vrot.lane.b32.xlu0 %v552, 8
  %v579 = vpop.permute.xlu0 %578
  %vm580 = vcmask 64512
  %v581 = vsel %vm580, %v565, %v567
  %v582 = vsel %vm580, %v567, %v569
  %v583 = vsel %vm580, %v569, %v571
  %v584 = vsel %vm580, %v573, %v575
  %v585 = vsel %vm580, %v575, %v577
  %v586 = vsel %vm580, %v577, %v579
  %v594 = vsel %vm163, %v554, 0
  %v597 = vsel %vm163, %v555, 0
  %599 = vmatprep.subr.mxu0 %v582
  %600 = vmatpush1.msra.mxu0 %v581
  %601 = vmatprep.subr.mxu0 %v585
  %602 = vmatpush1.msra.mxu0 %v584
  %603 = vmatprep.subr.mxu0 0.0
  %604 = vmatpush1.msra.mxu0 0.0
  %605 = vmatprep.subr.mxu0 0.0
  %606 = vmatpush1.msra.mxu0 0.0
  %607 = vmatprep.subr.mxu0 0.0
  %608 = vmatpush1.msra.mxu0 0.0
  %609 = vmatprep.subr.mxu0 0.0
  %610 = vmatpush1.msra.mxu0 0.0
  %611 = vmatprep.subr.mxu0 0.0
  %612 = vmatpush1.msra.mxu0 0.0
  %613 = vmatprep.subr.mxu0 0.0
  %614 = vmatpush1.msra.mxu0 0.0
  %615 = vmatprep.subr.mxu0 0.0
  %616 = vmatpush1.msra.mxu0 0.0
  %617 = vmatprep.subr.mxu0 0.0
  %618 = vmatpush1.msra.mxu0 0.0
  %619 = vmatprep.subr.mxu0 0.0
  %620 = vmatpush1.msra.mxu0 0.0
  %621 = vmatprep.subr.mxu0 0.0
  %622 = vmatpush1.msra.mxu0 0.0
  %623 = vmatprep.subr.mxu0 0.0
  %624 = vmatpush1.msra.mxu0 0.0
  %625 = vmatprep.subr.mxu0 0.0
  %626 = vmatpush1.msra.mxu0 0.0
  %627 = vmatprep.subr.mxu0 0.0
  %628 = vmatpush1.msra.mxu0 0.0
  %629 = vmatprep.subr.mxu0 0.0
  %630 = vmatpush1.msra.mxu0 0.0
  %631 = vmatprep.subr.mxu0 0.0
  %632 = vmatpush1.msra.mxu0 0.0
  %633 = vmatprep.subr.mxu0 0.0
  %634 = vmatpush1.msra.mxu0 0.0
  %635 = vmatprep.subr.mxu0 0.0
  %636 = vmatpush1.msra.mxu0 0.0
  %637 = vmatprep.subr.mxu0 0.0
  %638 = vmatpush1.msra.mxu0 0.0
  %639 = vmatprep.subr.mxu0 0.0
  %640 = vmatpush1.msra.mxu0 0.0
  %641 = vmatprep.subr.mxu0 0.0
  %642 = vmatpush1.msra.mxu0 0.0
  %643 = vmatprep.subr.mxu0 0.0
  %644 = vmatpush1.msra.mxu0 0.0
  %645 = vmatprep.subr.mxu0 0.0
  %646 = vmatpush1.msra.mxu0 0.0
  %647 = vmatprep.subr.mxu0 0.0
  %648 = vmatpush1.msra.mxu0 0.0
  %649 = vmatprep.subr.mxu0 0.0
  %650 = vmatpush1.msra.mxu0 0.0
  %651 = vmatprep.subr.mxu0 0.0
  %652 = vmatpush1.msra.mxu0 0.0
  %653 = vmatprep.subr.mxu0 0.0
  %654 = vmatpush1.msra.mxu0 0.0
  %655 = vmatprep.subr.mxu0 0.0
  %656 = vmatpush1.msra.mxu0 0.0
  %657 = vmatprep.subr.mxu0 0.0
  %658 = vmatpush1.msra.mxu0 0.0
  %659 = vmatprep.subr.mxu0 0.0
  %660 = vmatpush1.msra.mxu0 0.0
  %661 = vmatprep.subr.mxu0 0.0
  %662 = vmatpush1.msra.mxu0 0.0
  %663 = vmatprep.mubr.f32.mxu0 0.0
  %664 = vmatmul.mubr.f32.gmra.mrb[0].mxu0 %v594
  %v665 = vpop.f32.mrb[0].mxu0
  %v666 = vadd.f32 0.0, %v665
  %v667 = vpop.f32.mrb[0].mxu0
  %v668 = vadd.f32 0.0, %v667
  %669 = vmatprep.mubr.f32.mxu0 0.0
  %670 = vmatmul.mubr.f32.gmra.mrb[0].mxu0 %v597
  %v671 = vpop.f32.mrb[0].mxu0
  %v672 = vadd.f32 0.0, %v671
  %v673 = vpop.f32.mrb[0].mxu0
  %v674 = vadd.f32 0.0, %v673
  %675 = vdwg.mxu0
  %676 = vmatprep.subr.mxu0 0.0
  %677 = vmatpush1.msra.mxu0 %v583
  %678 = vmatprep.subr.mxu0 0.0
  %679 = vmatpush1.msra.mxu0 %v586
  %680 = vmatprep.subr.mxu0 0.0
  %681 = vmatpush1.msra.mxu0 0.0
  %682 = vmatprep.subr.mxu0 0.0
  %683 = vmatpush1.msra.mxu0 0.0
  %684 = vmatprep.subr.mxu0 0.0
  %685 = vmatpush1.msra.mxu0 0.0
  %686 = vmatprep.subr.mxu0 0.0
  %687 = vmatpush1.msra.mxu0 0.0
  %688 = vmatprep.subr.mxu0 0.0
  %689 = vmatpush1.msra.mxu0 0.0
  %690 = vmatprep.subr.mxu0 0.0
  %691 = vmatpush1.msra.mxu0 0.0
  %692 = vmatprep.subr.mxu0 0.0
  %693 = vmatpush1.msra.mxu0 0.0
  %694 = vmatprep.subr.mxu0 0.0
  %695 = vmatpush1.msra.mxu0 0.0
  %696 = vmatprep.subr.mxu0 0.0
  %697 = vmatpush1.msra.mxu0 0.0
  %698 = vmatprep.subr.mxu0 0.0
  %699 = vmatpush1.msra.mxu0 0.0
  %700 = vmatprep.subr.mxu0 0.0
  %701 = vmatpush1.msra.mxu0 0.0
  %702 = vmatprep.subr.mxu0 0.0
  %703 = vmatpush1.msra.mxu0 0.0
  %704 = vmatprep.subr.mxu0 0.0
  %705 = vmatpush1.msra.mxu0 0.0
  %706 = vmatprep.subr.mxu0 0.0
  %707 = vmatpush1.msra.mxu0 0.0
  %708 = vmatprep.subr.mxu0 0.0
  %709 = vmatpush1.msra.mxu0 0.0
  %710 = vmatprep.subr.mxu0 0.0
  %711 = vmatpush1.msra.mxu0 0.0
  %712 = vmatprep.subr.mxu0 0.0
  %713 = vmatpush1.msra.mxu0 0.0
  %714 = vmatprep.subr.mxu0 0.0
  %715 = vmatpush1.msra.mxu0 0.0
  %716 = vmatprep.subr.mxu0 0.0
  %717 = vmatpush1.msra.mxu0 0.0
  %718 = vmatprep.subr.mxu0 0.0
  %719 = vmatpush1.msra.mxu0 0.0
  %720 = vmatprep.subr.mxu0 0.0
  %721 = vmatpush1.msra.mxu0 0.0
  %722 = vmatprep.subr.mxu0 0.0
  %723 = vmatpush1.msra.mxu0 0.0
  %724 = vmatprep.subr.mxu0 0.0
  %725 = vmatpush1.msra.mxu0 0.0
  %726 = vmatprep.subr.mxu0 0.0
  %727 = vmatpush1.msra.mxu0 0.0
  %728 = vmatprep.subr.mxu0 0.0
  %729 = vmatpush1.msra.mxu0 0.0
  %730 = vmatprep.subr.mxu0 0.0
  %731 = vmatpush1.msra.mxu0 0.0
  %732 = vmatprep.subr.mxu0 0.0
  %733 = vmatpush1.msra.mxu0 0.0
  %734 = vmatprep.subr.mxu0 0.0
  %735 = vmatpush1.msra.mxu0 0.0
  %736 = vmatprep.subr.mxu0 0.0
  %737 = vmatpush1.msra.mxu0 0.0
  %738 = vmatprep.subr.mxu0 0.0
  %739 = vmatpush1.msra.mxu0 0.0
  %740 = vmatprep.mubr.f32.mxu0 0.0
  %741 = vmatmul.mubr.f32.gmra.mrb[0].mxu0 %v594
  %v742 = vpop.f32.mrb[0].mxu0
  %v743 = vadd.f32 0.0, %v742
  %v744 = vpop.f32.mrb[0].mxu0
  %745 = vmatprep.mubr.f32.mxu0 0.0
  %746 = vmatmul.mubr.f32.gmra.mrb[0].mxu0 %v597
  %v747 = vpop.f32.mrb[0].mxu0
  %v748 = vadd.f32 0.0, %v747
  %v749 = vpop.f32.mrb[0].mxu0
  %750 = vdwg.mxu0
  %v751 = vadd.f32 %v432, %v666
  %v752 = vadd.f32 %v434, %v668
  %v753 = vadd.f32 %v509, %v743
  %v754 = vadd.f32 %v438, %v672
  %v755 = vadd.f32 %v440, %v674
  %v756 = vadd.f32 %v514, %v748
  %s757 = scalar_lea.vmem %s2, 9
  %v758 = vld [vmem:[%s757] sm:$0x7]
  %v760 = vlaneseq
  %v761 = vshrl.u32 %v760, 7
  %v762 = vsub.s32 0, %v761
  %v763 = vrot.slane %v758, %v762
  %v764 = vlaneseq
  %v765 = vshrl.u32 %v764, 7
  %v766 = vsub.s32 1, %v765
  %v767 = vrot.slane %v758, %v766
  %v768 = vlaneseq
  %v769 = vshrl.u32 %v768, 7
  %v770 = vsub.s32 2, %v769
  %v771 = vrot.slane %v758, %v770
  %772 = vrot.lane.b32.xlu0 %v763, 127
  %v773 = vpop.permute.xlu0 %772
  %774 = vrot.lane.b32.xlu0 %v767, 127
  %v775 = vpop.permute.xlu0 %774
  %776 = vrot.lane.b32.xlu0 %v771, 127
  %v777 = vpop.permute.xlu0 %776
  %vm778 = vcmask 1039360
  %v779 = vsel %vm778, %v773, %v775
  %v780 = vsel %vm778, %v775, %v777
  %v785 = vmul.f32 %v40, %v773
  %v786 = vmul.f32 %v41, %v779
  %v787 = vmul.f32 %v42, %v780
  %v788 = vmul.f32 %v43, %v777
  %v789 = vmul.f32 %v45, %v773
  %v790 = vmul.f32 %v46, %v779
  %v791 = vmul.f32 %v47, %v780
  %v792 = vmul.f32 %v48, %v777
  %s793 = scalar_lea.vmem %s3, 48
  %v794 = vld [vmem:[%s793] sm:$0xff]
  %v795 = vld [vmem:[%s793 + $0x8] sm:$0xff]
  %804 = vrot.lane.b32.xlu0 %v785, 1
  %v805 = vpop.permute.xlu0 %804
  %806 = vrot.lane.b32.xlu0 %v786, 1
  %v807 = vpop.permute.xlu0 %806
  %808 = vrot.lane.b32.xlu0 %v787, 1
  %v809 = vpop.permute.xlu0 %808
  %810 = vrot.lane.b32.xlu0 %v788, 1
  %v811 = vpop.permute.xlu0 %810
  %812 = vrot.lane.b32.xlu0 %v789, 1
  %v813 = vpop.permute.xlu0 %812
  %814 = vrot.lane.b32.xlu0 %v790, 1
  %v815 = vpop.permute.xlu0 %814
  %816 = vrot.lane.b32.xlu0 %v791, 1
  %v817 = vpop.permute.xlu0 %816
  %818 = vrot.lane.b32.xlu0 %v792, 1
  %v819 = vpop.permute.xlu0 %818
  %vm820 = vcmask 7168
  %v821 = vsel %vm820, %v805, %v807
  %v822 = vsel %vm820, %v807, %v809
  %v823 = vsel %vm820, %v809, %v811
  %v824 = vsel %vm820, %v813, %v815
  %v825 = vsel %vm820, %v815, %v817
  %v826 = vsel %vm820, %v817, %v819
  %v834 = vsel %vm163, %v794, 0
  %v837 = vsel %vm163, %v795, 0
  %839 = vmatprep.subr.mxu0 %v822
  %840 = vmatpush1.msra.mxu0 %v821
  %841 = vmatprep.subr.mxu0 %v825
  %842 = vmatpush1.msra.mxu0 %v824
  %843 = vmatprep.subr.mxu0 0.0
  %844 = vmatpush1.msra.mxu0 0.0
  %845 = vmatprep.subr.mxu0 0.0
  %846 = vmatpush1.msra.mxu0 0.0
  %847 = vmatprep.subr.mxu0 0.0
  %848 = vmatpush1.msra.mxu0 0.0
  %849 = vmatprep.subr.mxu0 0.0
  %850 = vmatpush1.msra.mxu0 0.0
  %851 = vmatprep.subr.mxu0 0.0
  %852 = vmatpush1.msra.mxu0 0.0
  %853 = vmatprep.subr.mxu0 0.0
  %854 = vmatpush1.msra.mxu0 0.0
  %855 = vmatprep.subr.mxu0 0.0
  %856 = vmatpush1.msra.mxu0 0.0
  %857 = vmatprep.subr.mxu0 0.0
  %858 = vmatpush1.msra.mxu0 0.0
  %859 = vmatprep.subr.mxu0 0.0
  %860 = vmatpush1.msra.mxu0 0.0
  %861 = vmatprep.subr.mxu0 0.0
  %862 = vmatpush1.msra.mxu0 0.0
  %863 = vmatprep.subr.mxu0 0.0
  %864 = vmatpush1.msra.mxu0 0.0
  %865 = vmatprep.subr.mxu0 0.0
  %866 = vmatpush1.msra.mxu0 0.0
  %867 = vmatprep.subr.mxu0 0.0
  %868 = vmatpush1.msra.mxu0 0.0
  %869 = vmatprep.subr.mxu0 0.0
  %870 = vmatpush1.msra.mxu0 0.0
  %871 = vmatprep.subr.mxu0 0.0
  %872 = vmatpush1.msra.mxu0 0.0
  %873 = vmatprep.subr.mxu0 0.0
  %874 = vmatpush1.msra.mxu0 0.0
  %875 = vmatprep.subr.mxu0 0.0
  %876 = vmatpush1.msra.mxu0 0.0
  %877 = vmatprep.subr.mxu0 0.0
  %878 = vmatpush1.msra.mxu0 0.0
  %879 = vmatprep.subr.mxu0 0.0
  %880 = vmatpush1.msra.mxu0 0.0
  %881 = vmatprep.subr.mxu0 0.0
  %882 = vmatpush1.msra.mxu0 0.0
  %883 = vmatprep.subr.mxu0 0.0
  %884 = vmatpush1.msra.mxu0 0.0
  %885 = vmatprep.subr.mxu0 0.0
  %886 = vmatpush1.msra.mxu0 0.0
  %887 = vmatprep.subr.mxu0 0.0
  %888 = vmatpush1.msra.mxu0 0.0
  %889 = vmatprep.subr.mxu0 0.0
  %890 = vmatpush1.msra.mxu0 0.0
  %891 = vmatprep.subr.mxu0 0.0
  %892 = vmatpush1.msra.mxu0 0.0
  %893 = vmatprep.subr.mxu0 0.0
  %894 = vmatpush1.msra.mxu0 0.0
  %895 = vmatprep.subr.mxu0 0.0
  %896 = vmatpush1.msra.mxu0 0.0
  %897 = vmatprep.subr.mxu0 0.0
  %898 = vmatpush1.msra.mxu0 0.0
  %899 = vmatprep.subr.mxu0 0.0
  %900 = vmatpush1.msra.mxu0 0.0
  %901 = vmatprep.subr.mxu0 0.0
  %902 = vmatpush1.msra.mxu0 0.0
  %903 = vmatprep.mubr.f32.mxu0 0.0
  %904 = vmatmul.mubr.f32.gmra.mrb[0].mxu0 %v834
  %v905 = vpop.f32.mrb[0].mxu0
  %v906 = vadd.f32 0.0, %v905
  %v907 = vpop.f32.mrb[0].mxu0
  %v908 = vadd.f32 0.0, %v907
  %909 = vmatprep.mubr.f32.mxu0 0.0
  %910 = vmatmul.mubr.f32.gmra.mrb[0].mxu0 %v837
  %v911 = vpop.f32.mrb[0].mxu0
  %v912 = vadd.f32 0.0, %v911
  %v913 = vpop.f32.mrb[0].mxu0
  %v914 = vadd.f32 0.0, %v913
  %915 = vdwg.mxu0
  %916 = vmatprep.subr.mxu0 0.0
  %917 = vmatpush1.msra.mxu0 %v823
  %918 = vmatprep.subr.mxu0 0.0
  %919 = vmatpush1.msra.mxu0 %v826
  %920 = vmatprep.subr.mxu0 0.0
  %921 = vmatpush1.msra.mxu0 0.0
  %922 = vmatprep.subr.mxu0 0.0
  %923 = vmatpush1.msra.mxu0 0.0
  %924 = vmatprep.subr.mxu0 0.0
  %925 = vmatpush1.msra.mxu0 0.0
  %926 = vmatprep.subr.mxu0 0.0
  %927 = vmatpush1.msra.mxu0 0.0
  %928 = vmatprep.subr.mxu0 0.0
  %929 = vmatpush1.msra.mxu0 0.0
  %930 = vmatprep.subr.mxu0 0.0
  %931 = vmatpush1.msra.mxu0 0.0
  %932 = vmatprep.subr.mxu0 0.0
  %933 = vmatpush1.msra.mxu0 0.0
  %934 = vmatprep.subr.mxu0 0.0
  %935 = vmatpush1.msra.mxu0 0.0
  %936 = vmatprep.subr.mxu0 0.0
  %937 = vmatpush1.msra.mxu0 0.0
  %938 = vmatprep.subr.mxu0 0.0
  %939 = vmatpush1.msra.mxu0 0.0
  %940 = vmatprep.subr.mxu0 0.0
  %941 = vmatpush1.msra.mxu0 0.0
  %942 = vmatprep.subr.mxu0 0.0
  %943 = vmatpush1.msra.mxu0 0.0
  %944 = vmatprep.subr.mxu0 0.0
  %945 = vmatpush1.msra.mxu0 0.0
  %946 = vmatprep.subr.mxu0 0.0
  %947 = vmatpush1.msra.mxu0 0.0
  %948 = vmatprep.subr.mxu0 0.0
  %949 = vmatpush1.msra.mxu0 0.0
  %950 = vmatprep.subr.mxu0 0.0
  %951 = vmatpush1.msra.mxu0 0.0
  %952 = vmatprep.subr.mxu0 0.0
  %953 = vmatpush1.msra.mxu0 0.0
  %954 = vmatprep.subr.mxu0 0.0
  %955 = vmatpush1.msra.mxu0 0.0
  %956 = vmatprep.subr.mxu0 0.0
  %957 = vmatpush1.msra.mxu0 0.0
  %958 = vmatprep.subr.mxu0 0.0
  %959 = vmatpush1.msra.mxu0 0.0
  %960 = vmatprep.subr.mxu0 0.0
  %961 = vmatpush1.msra.mxu0 0.0
  %962 = vmatprep.subr.mxu0 0.0
  %963 = vmatpush1.msra.mxu0 0.0
  %964 = vmatprep.subr.mxu0 0.0
  %965 = vmatpush1.msra.mxu0 0.0
  %966 = vmatprep.subr.mxu0 0.0
  %967 = vmatpush1.msra.mxu0 0.0
  %968 = vmatprep.subr.mxu0 0.0
  %969 = vmatpush1.msra.mxu0 0.0
  %970 = vmatprep.subr.mxu0 0.0
  %971 = vmatpush1.msra.mxu0 0.0
  %972 = vmatprep.subr.mxu0 0.0
  %973 = vmatpush1.msra.mxu0 0.0
  %974 = vmatprep.subr.mxu0 0.0
  %975 = vmatpush1.msra.mxu0 0.0
  %976 = vmatprep.subr.mxu0 0.0
  %977 = vmatpush1.msra.mxu0 0.0
  %978 = vmatprep.subr.mxu0 0.0
  %979 = vmatpush1.msra.mxu0 0.0
  %980 = vmatprep.mubr.f32.mxu0 0.0
  %981 = vmatmul.mubr.f32.gmra.mrb[0].mxu0 %v834
  %v982 = vpop.f32.mrb[0].mxu0
  %v983 = vadd.f32 0.0, %v982
  %v984 = vpop.f32.mrb[0].mxu0
  %985 = vmatprep.mubr.f32.mxu0 0.0
  %986 = vmatmul.mubr.f32.gmra.mrb[0].mxu0 %v837
  %v987 = vpop.f32.mrb[0].mxu0
  %v988 = vadd.f32 0.0, %v987
  %v989 = vpop.f32.mrb[0].mxu0
  %990 = vdwg.mxu0
  %v991 = vadd.f32 %v751, %v906
  %v992 = vadd.f32 %v752, %v908
  %v993 = vadd.f32 %v753, %v983
  %v994 = vadd.f32 %v754, %v912
  %v995 = vadd.f32 %v755, %v914
  %v996 = vadd.f32 %v756, %v988
  %s997 = scalar_lea.vmem %s2, 12
  %v998 = vld [vmem:[%s997] sm:$0x7]
  %v1000 = vlaneseq
  %v1001 = vshrl.u32 %v1000, 7
  %v1002 = vsub.s32 0, %v1001
  %v1003 = vrot.slane %v998, %v1002
  %v1004 = vlaneseq
  %v1005 = vshrl.u32 %v1004, 7
  %v1006 = vsub.s32 1, %v1005
  %v1007 = vrot.slane %v998, %v1006
  %v1008 = vlaneseq
  %v1009 = vshrl.u32 %v1008, 7
  %v1010 = vsub.s32 2, %v1009
  %v1011 = vrot.slane %v998, %v1010
  %v1015 = vmul.f32 %v41, %v1003
  %v1016 = vmul.f32 %v42, %v1007
  %v1017 = vmul.f32 %v43, %v1011
  %v1018 = vmul.f32 %v46, %v1003
  %v1019 = vmul.f32 %v47, %v1007
  %v1020 = vmul.f32 %v48, %v1011
  %s1021 = scalar_lea.vmem %s3, 64
  %v1022 = vld [vmem:[%s1021] sm:$0xff]
  %v1023 = vld [vmem:[%s1021 + $0x8] sm:$0xff]
  %v1025 = vsel %vm163, %v1022, 0
  %v1028 = vsel %vm163, %v1023, 0
  %1030 = vmatprep.subr.mxu0 %v1016
  %1031 = vmatpush1.msra.mxu0 %v1015
  %1032 = vmatprep.subr.mxu0 %v1019
  %1033 = vmatpush1.msra.mxu0 %v1018
  %1034 = vmatprep.subr.mxu0 0.0
  %1035 = vmatpush1.msra.mxu0 0.0
  %1036 = vmatprep.subr.mxu0 0.0
  %1037 = vmatpush1.msra.mxu0 0.0
  %1038 = vmatprep.subr.mxu0 0.0
  %1039 = vmatpush1.msra.mxu0 0.0
  %1040 = vmatprep.subr.mxu0 0.0
  %1041 = vmatpush1.msra.mxu0 0.0
  %1042 = vmatprep.subr.mxu0 0.0
  %1043 = vmatpush1.msra.mxu0 0.0
  %1044 = vmatprep.subr.mxu0 0.0
  %1045 = vmatpush1.msra.mxu0 0.0
  %1046 = vmatprep.subr.mxu0 0.0
  %1047 = vmatpush1.msra.mxu0 0.0
  %1048 = vmatprep.subr.mxu0 0.0
  %1049 = vmatpush1.msra.mxu0 0.0
  %1050 = vmatprep.subr.mxu0 0.0
  %1051 = vmatpush1.msra.mxu0 0.0
  %1052 = vmatprep.subr.mxu0 0.0
  %1053 = vmatpush1.msra.mxu0 0.0
  %1054 = vmatprep.subr.mxu0 0.0
  %1055 = vmatpush1.msra.mxu0 0.0
  %1056 = vmatprep.subr.mxu0 0.0
  %1057 = vmatpush1.msra.mxu0 0.0
  %1058 = vmatprep.subr.mxu0 0.0
  %1059 = vmatpush1.msra.mxu0 0.0
  %1060 = vmatprep.subr.mxu0 0.0
  %1061 = vmatpush1.msra.mxu0 0.0
  %1062 = vmatprep.subr.mxu0 0.0
  %1063 = vmatpush1.msra.mxu0 0.0
  %1064 = vmatprep.subr.mxu0 0.0
  %1065 = vmatpush1.msra.mxu0 0.0
  %1066 = vmatprep.subr.mxu0 0.0
  %1067 = vmatpush1.msra.mxu0 0.0
  %1068 = vmatprep.subr.mxu0 0.0
  %1069 = vmatpush1.msra.mxu0 0.0
  %1070 = vmatprep.subr.mxu0 0.0
  %1071 = vmatpush1.msra.mxu0 0.0
  %1072 = vmatprep.subr.mxu0 0.0
  %1073 = vmatpush1.msra.mxu0 0.0
  %1074 = vmatprep.subr.mxu0 0.0
  %1075 = vmatpush1.msra.mxu0 0.0
  %1076 = vmatprep.subr.mxu0 0.0
  %1077 = vmatpush1.msra.mxu0 0.0
  %1078 = vmatprep.subr.mxu0 0.0
  %1079 = vmatpush1.msra.mxu0 0.0
  %1080 = vmatprep.subr.mxu0 0.0
  %1081 = vmatpush1.msra.mxu0 0.0
  %1082 = vmatprep.subr.mxu0 0.0
  %1083 = vmatpush1.msra.mxu0 0.0
  %1084 = vmatprep.subr.mxu0 0.0
  %1085 = vmatpush1.msra.mxu0 0.0
  %1086 = vmatprep.subr.mxu0 0.0
  %1087 = vmatpush1.msra.mxu0 0.0
  %1088 = vmatprep.subr.mxu0 0.0
  %1089 = vmatpush1.msra.mxu0 0.0
  %1090 = vmatprep.subr.mxu0 0.0
  %1091 = vmatpush1.msra.mxu0 0.0
  %1092 = vmatprep.subr.mxu0 0.0
  %1093 = vmatpush1.msra.mxu0 0.0
  %1094 = vmatprep.mubr.f32.mxu0 0.0
  %1095 = vmatmul.mubr.f32.gmra.mrb[0].mxu0 %v1025
  %v1096 = vpop.f32.mrb[0].mxu0
  %v1097 = vadd.f32 0.0, %v1096
  %v1098 = vpop.f32.mrb[0].mxu0
  %v1099 = vadd.f32 0.0, %v1098
  %1100 = vmatprep.mubr.f32.mxu0 0.0
  %1101 = vmatmul.mubr.f32.gmra.mrb[0].mxu0 %v1028
  %v1102 = vpop.f32.mrb[0].mxu0
  %v1103 = vadd.f32 0.0, %v1102
  %v1104 = vpop.f32.mrb[0].mxu0
  %v1105 = vadd.f32 0.0, %v1104
  %1106 = vdwg.mxu0
  %1107 = vmatprep.subr.mxu0 0.0
  %1108 = vmatpush1.msra.mxu0 %v1017
  %1109 = vmatprep.subr.mxu0 0.0
  %1110 = vmatpush1.msra.mxu0 %v1020
  %1111 = vmatprep.subr.mxu0 0.0
  %1112 = vmatpush1.msra.mxu0 0.0
  %1113 = vmatprep.subr.mxu0 0.0
  %1114 = vmatpush1.msra.mxu0 0.0
  %1115 = vmatprep.subr.mxu0 0.0
  %1116 = vmatpush1.msra.mxu0 0.0
  %1117 = vmatprep.subr.mxu0 0.0
  %1118 = vmatpush1.msra.mxu0 0.0
  %1119 = vmatprep.subr.mxu0 0.0
  %1120 = vmatpush1.msra.mxu0 0.0
  %1121 = vmatprep.subr.mxu0 0.0
  %1122 = vmatpush1.msra.mxu0 0.0
  %1123 = vmatprep.subr.mxu0 0.0
  %1124 = vmatpush1.msra.mxu0 0.0
  %1125 = vmatprep.subr.mxu0 0.0
  %1126 = vmatpush1.msra.mxu0 0.0
  %1127 = vmatprep.subr.mxu0 0.0
  %1128 = vmatpush1.msra.mxu0 0.0
  %1129 = vmatprep.subr.mxu0 0.0
  %1130 = vmatpush1.msra.mxu0 0.0
  %1131 = vmatprep.subr.mxu0 0.0
  %1132 = vmatpush1.msra.mxu0 0.0
  %1133 = vmatprep.subr.mxu0 0.0
  %1134 = vmatpush1.msra.mxu0 0.0
  %1135 = vmatprep.subr.mxu0 0.0
  %1136 = vmatpush1.msra.mxu0 0.0
  %1137 = vmatprep.subr.mxu0 0.0
  %1138 = vmatpush1.msra.mxu0 0.0
  %1139 = vmatprep.subr.mxu0 0.0
  %1140 = vmatpush1.msra.mxu0 0.0
  %1141 = vmatprep.subr.mxu0 0.0
  %1142 = vmatpush1.msra.mxu0 0.0
  %1143 = vmatprep.subr.mxu0 0.0
  %1144 = vmatpush1.msra.mxu0 0.0
  %1145 = vmatprep.subr.mxu0 0.0
  %1146 = vmatpush1.msra.mxu0 0.0
  %1147 = vmatprep.subr.mxu0 0.0
  %1148 = vmatpush1.msra.mxu0 0.0
  %1149 = vmatprep.subr.mxu0 0.0
  %1150 = vmatpush1.msra.mxu0 0.0
  %1151 = vmatprep.subr.mxu0 0.0
  %1152 = vmatpush1.msra.mxu0 0.0
  %1153 = vmatprep.subr.mxu0 0.0
  %1154 = vmatpush1.msra.mxu0 0.0
  %1155 = vmatprep.subr.mxu0 0.0
  %1156 = vmatpush1.msra.mxu0 0.0
  %1157 = vmatprep.subr.mxu0 0.0
  %1158 = vmatpush1.msra.mxu0 0.0
  %1159 = vmatprep.subr.mxu0 0.0
  %1160 = vmatpush1.msra.mxu0 0.0
  %1161 = vmatprep.subr.mxu0 0.0
  %1162 = vmatpush1.msra.mxu0 0.0
  %1163 = vmatprep.subr.mxu0 0.0
  %1164 = vmatpush1.msra.mxu0 0.0
  %1165 = vmatprep.subr.mxu0 0.0
  %1166 = vmatpush1.msra.mxu0 0.0
  %1167 = vmatprep.subr.mxu0 0.0
  %1168 = vmatpush1.msra.mxu0 0.0
  %1169 = vmatprep.subr.mxu0 0.0
  %1170 = vmatpush1.msra.mxu0 0.0
  %1171 = vmatprep.mubr.f32.mxu0 0.0
  %1172 = vmatmul.mubr.f32.gmra.mrb[0].mxu0 %v1025
  %v1173 = vpop.f32.mrb[0].mxu0
  %v1174 = vadd.f32 0.0, %v1173
  %v1175 = vpop.f32.mrb[0].mxu0
  %1176 = vmatprep.mubr.f32.mxu0 0.0
  %1177 = vmatmul.mubr.f32.gmra.mrb[0].mxu0 %v1028
  %v1178 = vpop.f32.mrb[0].mxu0
  %v1179 = vadd.f32 0.0, %v1178
  %v1180 = vpop.f32.mrb[0].mxu0
  %1181 = vdwg.mxu0
  %v1182 = vadd.f32 %v991, %v1097
  %v1183 = vadd.f32 %v992, %v1099
  %v1184 = vadd.f32 %v993, %v1174
  %v1185 = vadd.f32 %v994, %v1103
  %v1186 = vadd.f32 %v995, %v1105
  %v1187 = vadd.f32 %v996, %v1179
  %s1188 = scalar_lea.vmem %s2, 15
  %v1189 = vld [vmem:[%s1188] sm:$0x7]
  %v1191 = vlaneseq
  %v1192 = vshrl.u32 %v1191, 7
  %v1193 = vsub.s32 0, %v1192
  %v1194 = vrot.slane %v1189, %v1193
  %v1195 = vlaneseq
  %v1196 = vshrl.u32 %v1195, 7
  %v1197 = vsub.s32 1, %v1196
  %v1198 = vrot.slane %v1189, %v1197
  %v1199 = vlaneseq
  %v1200 = vshrl.u32 %v1199, 7
  %v1201 = vsub.s32 2, %v1200
  %v1202 = vrot.slane %v1189, %v1201
  %1203 = vrot.lane.b32.xlu0 %v1194, 1
  %v1204 = vpop.permute.xlu0 %1203
  %1205 = vrot.lane.b32.xlu0 %v1198, 1
  %v1206 = vpop.permute.xlu0 %1205
  %1207 = vrot.lane.b32.xlu0 %v1202, 1
  %v1208 = vpop.permute.xlu0 %1207
  %v1209 = vsel %vm820, %v1204, %v1206
  %v1210 = vsel %vm820, %v1206, %v1208
  %v1215 = vmul.f32 %v41, %v1204
  %v1216 = vmul.f32 %v42, %v1209
  %v1217 = vmul.f32 %v43, %v1210
  %v1218 = vmul.f32 %v44, %v1208
  %v1219 = vmul.f32 %v46, %v1204
  %v1220 = vmul.f32 %v47, %v1209
  %v1221 = vmul.f32 %v48, %v1210
  %v1222 = vmul.f32 %v49, %v1208
  %s1223 = scalar_lea.vmem %s3, 80
  %v1224 = vld [vmem:[%s1223] sm:$0xff]
  %v1225 = vld [vmem:[%s1223 + $0x8] sm:$0xff]
  %1234 = vrot.lane.b32.xlu0 %v1215, 127
  %v1235 = vpop.permute.xlu0 %1234
  %1236 = vrot.lane.b32.xlu0 %v1216, 127
  %v1237 = vpop.permute.xlu0 %1236
  %1238 = vrot.lane.b32.xlu0 %v1217, 127
  %v1239 = vpop.permute.xlu0 %1238
  %1240 = vrot.lane.b32.xlu0 %v1218, 127
  %v1241 = vpop.permute.xlu0 %1240
  %1242 = vrot.lane.b32.xlu0 %v1219, 127
  %v1243 = vpop.permute.xlu0 %1242
  %1244 = vrot.lane.b32.xlu0 %v1220, 127
  %v1245 = vpop.permute.xlu0 %1244
  %1246 = vrot.lane.b32.xlu0 %v1221, 127
  %v1247 = vpop.permute.xlu0 %1246
  %1248 = vrot.lane.b32.xlu0 %v1222, 127
  %v1249 = vpop.permute.xlu0 %1248
  %v1250 = vsel %vm778, %v1235, %v1237
  %v1251 = vsel %vm778, %v1237, %v1239
  %v1252 = vsel %vm778, %v1239, %v1241
  %v1253 = vsel %vm778, %v1243, %v1245
  %v1254 = vsel %vm778, %v1245, %v1247
  %v1255 = vsel %vm778, %v1247, %v1249
  %v1263 = vsel %vm163, %v1224, 0
  %v1266 = vsel %vm163, %v1225, 0
  %1268 = vmatprep.subr.mxu0 %v1251
  %1269 = vmatpush1.msra.mxu0 %v1250
  %1270 = vmatprep.subr.mxu0 %v1254
  %1271 = vmatpush1.msra.mxu0 %v1253
  %1272 = vmatprep.subr.mxu0 0.0
  %1273 = vmatpush1.msra.mxu0 0.0
  %1274 = vmatprep.subr.mxu0 0.0
  %1275 = vmatpush1.msra.mxu0 0.0
  %1276 = vmatprep.subr.mxu0 0.0
  %1277 = vmatpush1.msra.mxu0 0.0
  %1278 = vmatprep.subr.mxu0 0.0
  %1279 = vmatpush1.msra.mxu0 0.0
  %1280 = vmatprep.subr.mxu0 0.0
  %1281 = vmatpush1.msra.mxu0 0.0
  %1282 = vmatprep.subr.mxu0 0.0
  %1283 = vmatpush1.msra.mxu0 0.0
  %1284 = vmatprep.subr.mxu0 0.0
  %1285 = vmatpush1.msra.mxu0 0.0
  %1286 = vmatprep.subr.mxu0 0.0
  %1287 = vmatpush1.msra.mxu0 0.0
  %1288 = vmatprep.subr.mxu0 0.0
  %1289 = vmatpush1.msra.mxu0 0.0
  %1290 = vmatprep.subr.mxu0 0.0
  %1291 = vmatpush1.msra.mxu0 0.0
  %1292 = vmatprep.subr.mxu0 0.0
  %1293 = vmatpush1.msra.mxu0 0.0
  %1294 = vmatprep.subr.mxu0 0.0
  %1295 = vmatpush1.msra.mxu0 0.0
  %1296 = vmatprep.subr.mxu0 0.0
  %1297 = vmatpush1.msra.mxu0 0.0
  %1298 = vmatprep.subr.mxu0 0.0
  %1299 = vmatpush1.msra.mxu0 0.0
  %1300 = vmatprep.subr.mxu0 0.0
  %1301 = vmatpush1.msra.mxu0 0.0
  %1302 = vmatprep.subr.mxu0 0.0
  %1303 = vmatpush1.msra.mxu0 0.0
  %1304 = vmatprep.subr.mxu0 0.0
  %1305 = vmatpush1.msra.mxu0 0.0
  %1306 = vmatprep.subr.mxu0 0.0
  %1307 = vmatpush1.msra.mxu0 0.0
  %1308 = vmatprep.subr.mxu0 0.0
  %1309 = vmatpush1.msra.mxu0 0.0
  %1310 = vmatprep.subr.mxu0 0.0
  %1311 = vmatpush1.msra.mxu0 0.0
  %1312 = vmatprep.subr.mxu0 0.0
  %1313 = vmatpush1.msra.mxu0 0.0
  %1314 = vmatprep.subr.mxu0 0.0
  %1315 = vmatpush1.msra.mxu0 0.0
  %1316 = vmatprep.subr.mxu0 0.0
  %1317 = vmatpush1.msra.mxu0 0.0
  %1318 = vmatprep.subr.mxu0 0.0
  %1319 = vmatpush1.msra.mxu0 0.0
  %1320 = vmatprep.subr.mxu0 0.0
  %1321 = vmatpush1.msra.mxu0 0.0
  %1322 = vmatprep.subr.mxu0 0.0
  %1323 = vmatpush1.msra.mxu0 0.0
  %1324 = vmatprep.subr.mxu0 0.0
  %1325 = vmatpush1.msra.mxu0 0.0
  %1326 = vmatprep.subr.mxu0 0.0
  %1327 = vmatpush1.msra.mxu0 0.0
  %1328 = vmatprep.subr.mxu0 0.0
  %1329 = vmatpush1.msra.mxu0 0.0
  %1330 = vmatprep.subr.mxu0 0.0
  %1331 = vmatpush1.msra.mxu0 0.0
  %1332 = vmatprep.mubr.f32.mxu0 0.0
  %1333 = vmatmul.mubr.f32.gmra.mrb[0].mxu0 %v1263
  %v1334 = vpop.f32.mrb[0].mxu0
  %v1335 = vadd.f32 0.0, %v1334
  %v1336 = vpop.f32.mrb[0].mxu0
  %v1337 = vadd.f32 0.0, %v1336
  %1338 = vmatprep.mubr.f32.mxu0 0.0
  %1339 = vmatmul.mubr.f32.gmra.mrb[0].mxu0 %v1266
  %v1340 = vpop.f32.mrb[0].mxu0
  %v1341 = vadd.f32 0.0, %v1340
  %v1342 = vpop.f32.mrb[0].mxu0
  %v1343 = vadd.f32 0.0, %v1342
  %1344 = vdwg.mxu0
  %1345 = vmatprep.subr.mxu0 0.0
  %1346 = vmatpush1.msra.mxu0 %v1252
  %1347 = vmatprep.subr.mxu0 0.0
  %1348 = vmatpush1.msra.mxu0 %v1255
  %1349 = vmatprep.subr.mxu0 0.0
  %1350 = vmatpush1.msra.mxu0 0.0
  %1351 = vmatprep.subr.mxu0 0.0
  %1352 = vmatpush1.msra.mxu0 0.0
  %1353 = vmatprep.subr.mxu0 0.0
  %1354 = vmatpush1.msra.mxu0 0.0
  %1355 = vmatprep.subr.mxu0 0.0
  %1356 = vmatpush1.msra.mxu0 0.0
  %1357 = vmatprep.subr.mxu0 0.0
  %1358 = vmatpush1.msra.mxu0 0.0
  %1359 = vmatprep.subr.mxu0 0.0
  %1360 = vmatpush1.msra.mxu0 0.0
  %1361 = vmatprep.subr.mxu0 0.0
  %1362 = vmatpush1.msra.mxu0 0.0
  %1363 = vmatprep.subr.mxu0 0.0
  %1364 = vmatpush1.msra.mxu0 0.0
  %1365 = vmatprep.subr.mxu0 0.0
  %1366 = vmatpush1.msra.mxu0 0.0
  %1367 = vmatprep.subr.mxu0 0.0
  %1368 = vmatpush1.msra.mxu0 0.0
  %1369 = vmatprep.subr.mxu0 0.0
  %1370 = vmatpush1.msra.mxu0 0.0
  %1371 = vmatprep.subr.mxu0 0.0
  %1372 = vmatpush1.msra.mxu0 0.0
  %1373 = vmatprep.subr.mxu0 0.0
  %1374 = vmatpush1.msra.mxu0 0.0
  %1375 = vmatprep.subr.mxu0 0.0
  %1376 = vmatpush1.msra.mxu0 0.0
  %1377 = vmatprep.subr.mxu0 0.0
  %1378 = vmatpush1.msra.mxu0 0.0
  %1379 = vmatprep.subr.mxu0 0.0
  %1380 = vmatpush1.msra.mxu0 0.0
  %1381 = vmatprep.subr.mxu0 0.0
  %1382 = vmatpush1.msra.mxu0 0.0
  %1383 = vmatprep.subr.mxu0 0.0
  %1384 = vmatpush1.msra.mxu0 0.0
  %1385 = vmatprep.subr.mxu0 0.0
  %1386 = vmatpush1.msra.mxu0 0.0
  %1387 = vmatprep.subr.mxu0 0.0
  %1388 = vmatpush1.msra.mxu0 0.0
  %1389 = vmatprep.subr.mxu0 0.0
  %1390 = vmatpush1.msra.mxu0 0.0
  %1391 = vmatprep.subr.mxu0 0.0
  %1392 = vmatpush1.msra.mxu0 0.0
  %1393 = vmatprep.subr.mxu0 0.0
  %1394 = vmatpush1.msra.mxu0 0.0
  %1395 = vmatprep.subr.mxu0 0.0
  %1396 = vmatpush1.msra.mxu0 0.0
  %1397 = vmatprep.subr.mxu0 0.0
  %1398 = vmatpush1.msra.mxu0 0.0
  %1399 = vmatprep.subr.mxu0 0.0
  %1400 = vmatpush1.msra.mxu0 0.0
  %1401 = vmatprep.subr.mxu0 0.0
  %1402 = vmatpush1.msra.mxu0 0.0
  %1403 = vmatprep.subr.mxu0 0.0
  %1404 = vmatpush1.msra.mxu0 0.0
  %1405 = vmatprep.subr.mxu0 0.0
  %1406 = vmatpush1.msra.mxu0 0.0
  %1407 = vmatprep.subr.mxu0 0.0
  %1408 = vmatpush1.msra.mxu0 0.0
  %1409 = vmatprep.mubr.f32.mxu0 0.0
  %1410 = vmatmul.mubr.f32.gmra.mrb[0].mxu0 %v1263
  %v1411 = vpop.f32.mrb[0].mxu0
  %v1412 = vadd.f32 0.0, %v1411
  %v1413 = vpop.f32.mrb[0].mxu0
  %1414 = vmatprep.mubr.f32.mxu0 0.0
  %1415 = vmatmul.mubr.f32.gmra.mrb[0].mxu0 %v1266
  %v1416 = vpop.f32.mrb[0].mxu0
  %v1417 = vadd.f32 0.0, %v1416
  %v1418 = vpop.f32.mrb[0].mxu0
  %1419 = vdwg.mxu0
  %v1420 = vadd.f32 %v1182, %v1335
  %v1421 = vadd.f32 %v1183, %v1337
  %v1422 = vadd.f32 %v1184, %v1412
  %v1423 = vadd.f32 %v1185, %v1341
  %v1424 = vadd.f32 %v1186, %v1343
  %v1425 = vadd.f32 %v1187, %v1417
  %s1426 = scalar_lea.vmem %s2, 18
  %v1427 = vld [vmem:[%s1426] sm:$0x7]
  %v1429 = vlaneseq
  %v1430 = vshrl.u32 %v1429, 7
  %v1431 = vsub.s32 0, %v1430
  %v1432 = vrot.slane %v1427, %v1431
  %v1433 = vlaneseq
  %v1434 = vshrl.u32 %v1433, 7
  %v1435 = vsub.s32 1, %v1434
  %v1436 = vrot.slane %v1427, %v1435
  %v1437 = vlaneseq
  %v1438 = vshrl.u32 %v1437, 7
  %v1439 = vsub.s32 2, %v1438
  %v1440 = vrot.slane %v1427, %v1439
  %1441 = vrot.lane.b32.xlu0 %v1432, 8
  %v1442 = vpop.permute.xlu0 %1441
  %1443 = vrot.lane.b32.xlu0 %v1436, 8
  %v1444 = vpop.permute.xlu0 %1443
  %1445 = vrot.lane.b32.xlu0 %v1440, 8
  %v1446 = vpop.permute.xlu0 %1445
  %v1447 = vsel %vm580, %v1442, %v1444
  %v1448 = vsel %vm580, %v1444, %v1446
  %v1453 = vmul.f32 %v41, %v1442
  %v1454 = vmul.f32 %v42, %v1447
  %v1455 = vmul.f32 %v43, %v1448
  %v1456 = vmul.f32 %v44, %v1446
  %v1457 = vmul.f32 %v46, %v1442
  %v1458 = vmul.f32 %v47, %v1447
  %v1459 = vmul.f32 %v48, %v1448
  %v1460 = vmul.f32 %v49, %v1446
  %s1461 = scalar_lea.vmem %s3, 96
  %v1462 = vld [vmem:[%s1461] sm:$0xff]
  %v1463 = vld [vmem:[%s1461 + $0x8] sm:$0xff]
  %1472 = vrot.lane.b32.xlu0 %v1453, 120
  %v1473 = vpop.permute.xlu0 %1472
  %1474 = vrot.lane.b32.xlu0 %v1454, 120
  %v1475 = vpop.permute.xlu0 %1474
  %1476 = vrot.lane.b32.xlu0 %v1455, 120
  %v1477 = vpop.permute.xlu0 %1476
  %1478 = vrot.lane.b32.xlu0 %v1456, 120
  %v1479 = vpop.permute.xlu0 %1478
  %1480 = vrot.lane.b32.xlu0 %v1457, 120
  %v1481 = vpop.permute.xlu0 %1480
  %1482 = vrot.lane.b32.xlu0 %v1458, 120
  %v1483 = vpop.permute.xlu0 %1482
  %1484 = vrot.lane.b32.xlu0 %v1459, 120
  %v1485 = vpop.permute.xlu0 %1484
  %1486 = vrot.lane.b32.xlu0 %v1460, 120
  %v1487 = vpop.permute.xlu0 %1486
  %v1488 = vsel %vm538, %v1473, %v1475
  %v1489 = vsel %vm538, %v1475, %v1477
  %v1490 = vsel %vm538, %v1477, %v1479
  %v1491 = vsel %vm538, %v1481, %v1483
  %v1492 = vsel %vm538, %v1483, %v1485
  %v1493 = vsel %vm538, %v1485, %v1487
  %v1501 = vsel %vm163, %v1462, 0
  %v1504 = vsel %vm163, %v1463, 0
  %1506 = vmatprep.subr.mxu0 %v1489
  %1507 = vmatpush1.msra.mxu0 %v1488
  %1508 = vmatprep.subr.mxu0 %v1492
  %1509 = vmatpush1.msra.mxu0 %v1491
  %1510 = vmatprep.subr.mxu0 0.0
  %1511 = vmatpush1.msra.mxu0 0.0
  %1512 = vmatprep.subr.mxu0 0.0
  %1513 = vmatpush1.msra.mxu0 0.0
  %1514 = vmatprep.subr.mxu0 0.0
  %1515 = vmatpush1.msra.mxu0 0.0
  %1516 = vmatprep.subr.mxu0 0.0
  %1517 = vmatpush1.msra.mxu0 0.0
  %1518 = vmatprep.subr.mxu0 0.0
  %1519 = vmatpush1.msra.mxu0 0.0
  %1520 = vmatprep.subr.mxu0 0.0
  %1521 = vmatpush1.msra.mxu0 0.0
  %1522 = vmatprep.subr.mxu0 0.0
  %1523 = vmatpush1.msra.mxu0 0.0
  %1524 = vmatprep.subr.mxu0 0.0
  %1525 = vmatpush1.msra.mxu0 0.0
  %1526 = vmatprep.subr.mxu0 0.0
  %1527 = vmatpush1.msra.mxu0 0.0
  %1528 = vmatprep.subr.mxu0 0.0
  %1529 = vmatpush1.msra.mxu0 0.0
  %1530 = vmatprep.subr.mxu0 0.0
  %1531 = vmatpush1.msra.mxu0 0.0
  %1532 = vmatprep.subr.mxu0 0.0
  %1533 = vmatpush1.msra.mxu0 0.0
  %1534 = vmatprep.subr.mxu0 0.0
  %1535 = vmatpush1.msra.mxu0 0.0
  %1536 = vmatprep.subr.mxu0 0.0
  %1537 = vmatpush1.msra.mxu0 0.0
  %1538 = vmatprep.subr.mxu0 0.0
  %1539 = vmatpush1.msra.mxu0 0.0
  %1540 = vmatprep.subr.mxu0 0.0
  %1541 = vmatpush1.msra.mxu0 0.0
  %1542 = vmatprep.subr.mxu0 0.0
  %1543 = vmatpush1.msra.mxu0 0.0
  %1544 = vmatprep.subr.mxu0 0.0
  %1545 = vmatpush1.msra.mxu0 0.0
  %1546 = vmatprep.subr.mxu0 0.0
  %1547 = vmatpush1.msra.mxu0 0.0
  %1548 = vmatprep.subr.mxu0 0.0
  %1549 = vmatpush1.msra.mxu0 0.0
  %1550 = vmatprep.subr.mxu0 0.0
  %1551 = vmatpush1.msra.mxu0 0.0
  %1552 = vmatprep.subr.mxu0 0.0
  %1553 = vmatpush1.msra.mxu0 0.0
  %1554 = vmatprep.subr.mxu0 0.0
  %1555 = vmatpush1.msra.mxu0 0.0
  %1556 = vmatprep.subr.mxu0 0.0
  %1557 = vmatpush1.msra.mxu0 0.0
  %1558 = vmatprep.subr.mxu0 0.0
  %1559 = vmatpush1.msra.mxu0 0.0
  %1560 = vmatprep.subr.mxu0 0.0
  %1561 = vmatpush1.msra.mxu0 0.0
  %1562 = vmatprep.subr.mxu0 0.0
  %1563 = vmatpush1.msra.mxu0 0.0
  %1564 = vmatprep.subr.mxu0 0.0
  %1565 = vmatpush1.msra.mxu0 0.0
  %1566 = vmatprep.subr.mxu0 0.0
  %1567 = vmatpush1.msra.mxu0 0.0
  %1568 = vmatprep.subr.mxu0 0.0
  %1569 = vmatpush1.msra.mxu0 0.0
  %1570 = vmatprep.mubr.f32.mxu0 0.0
  %1571 = vmatmul.mubr.f32.gmra.mrb[0].mxu0 %v1501
  %v1572 = vpop.f32.mrb[0].mxu0
  %v1573 = vadd.f32 0.0, %v1572
  %v1574 = vpop.f32.mrb[0].mxu0
  %v1575 = vadd.f32 0.0, %v1574
  %1576 = vmatprep.mubr.f32.mxu0 0.0
  %1577 = vmatmul.mubr.f32.gmra.mrb[0].mxu0 %v1504
  %v1578 = vpop.f32.mrb[0].mxu0
  %v1579 = vadd.f32 0.0, %v1578
  %v1580 = vpop.f32.mrb[0].mxu0
  %v1581 = vadd.f32 0.0, %v1580
  %1582 = vdwg.mxu0
  %1583 = vmatprep.subr.mxu0 0.0
  %1584 = vmatpush1.msra.mxu0 %v1490
  %1585 = vmatprep.subr.mxu0 0.0
  %1586 = vmatpush1.msra.mxu0 %v1493
  %1587 = vmatprep.subr.mxu0 0.0
  %1588 = vmatpush1.msra.mxu0 0.0
  %1589 = vmatprep.subr.mxu0 0.0
  %1590 = vmatpush1.msra.mxu0 0.0
  %1591 = vmatprep.subr.mxu0 0.0
  %1592 = vmatpush1.msra.mxu0 0.0
  %1593 = vmatprep.subr.mxu0 0.0
  %1594 = vmatpush1.msra.mxu0 0.0
  %1595 = vmatprep.subr.mxu0 0.0
  %1596 = vmatpush1.msra.mxu0 0.0
  %1597 = vmatprep.subr.mxu0 0.0
  %1598 = vmatpush1.msra.mxu0 0.0
  %1599 = vmatprep.subr.mxu0 0.0
  %1600 = vmatpush1.msra.mxu0 0.0
  %1601 = vmatprep.subr.mxu0 0.0
  %1602 = vmatpush1.msra.mxu0 0.0
  %1603 = vmatprep.subr.mxu0 0.0
  %1604 = vmatpush1.msra.mxu0 0.0
  %1605 = vmatprep.subr.mxu0 0.0
  %1606 = vmatpush1.msra.mxu0 0.0
  %1607 = vmatprep.subr.mxu0 0.0
  %1608 = vmatpush1.msra.mxu0 0.0
  %1609 = vmatprep.subr.mxu0 0.0
  %1610 = vmatpush1.msra.mxu0 0.0
  %1611 = vmatprep.subr.mxu0 0.0
  %1612 = vmatpush1.msra.mxu0 0.0
  %1613 = vmatprep.subr.mxu0 0.0
  %1614 = vmatpush1.msra.mxu0 0.0
  %1615 = vmatprep.subr.mxu0 0.0
  %1616 = vmatpush1.msra.mxu0 0.0
  %1617 = vmatprep.subr.mxu0 0.0
  %1618 = vmatpush1.msra.mxu0 0.0
  %1619 = vmatprep.subr.mxu0 0.0
  %1620 = vmatpush1.msra.mxu0 0.0
  %1621 = vmatprep.subr.mxu0 0.0
  %1622 = vmatpush1.msra.mxu0 0.0
  %1623 = vmatprep.subr.mxu0 0.0
  %1624 = vmatpush1.msra.mxu0 0.0
  %1625 = vmatprep.subr.mxu0 0.0
  %1626 = vmatpush1.msra.mxu0 0.0
  %1627 = vmatprep.subr.mxu0 0.0
  %1628 = vmatpush1.msra.mxu0 0.0
  %1629 = vmatprep.subr.mxu0 0.0
  %1630 = vmatpush1.msra.mxu0 0.0
  %1631 = vmatprep.subr.mxu0 0.0
  %1632 = vmatpush1.msra.mxu0 0.0
  %1633 = vmatprep.subr.mxu0 0.0
  %1634 = vmatpush1.msra.mxu0 0.0
  %1635 = vmatprep.subr.mxu0 0.0
  %1636 = vmatpush1.msra.mxu0 0.0
  %1637 = vmatprep.subr.mxu0 0.0
  %1638 = vmatpush1.msra.mxu0 0.0
  %1639 = vmatprep.subr.mxu0 0.0
  %1640 = vmatpush1.msra.mxu0 0.0
  %1641 = vmatprep.subr.mxu0 0.0
  %1642 = vmatpush1.msra.mxu0 0.0
  %1643 = vmatprep.subr.mxu0 0.0
  %1644 = vmatpush1.msra.mxu0 0.0
  %1645 = vmatprep.subr.mxu0 0.0
  %1646 = vmatpush1.msra.mxu0 0.0
  %1647 = vmatprep.mubr.f32.mxu0 0.0
  %1648 = vmatmul.mubr.f32.gmra.mrb[0].mxu0 %v1501
  %v1649 = vpop.f32.mrb[0].mxu0
  %v1650 = vadd.f32 0.0, %v1649
  %v1651 = vpop.f32.mrb[0].mxu0
  %1652 = vmatprep.mubr.f32.mxu0 0.0
  %1653 = vmatmul.mubr.f32.gmra.mrb[0].mxu0 %v1504
  %v1654 = vpop.f32.mrb[0].mxu0
  %v1655 = vadd.f32 0.0, %v1654
  %v1656 = vpop.f32.mrb[0].mxu0
  %1657 = vdwg.mxu0
  %v1658 = vadd.f32 %v1420, %v1573
  %v1659 = vadd.f32 %v1421, %v1575
  %v1660 = vadd.f32 %v1422, %v1650
  %v1661 = vadd.f32 %v1423, %v1579
  %v1662 = vadd.f32 %v1424, %v1581
  %v1663 = vadd.f32 %v1425, %v1655
  %s1664 = scalar_lea.vmem %s2, 21
  %v1665 = vld [vmem:[%s1664] sm:$0x7]
  %v1667 = vlaneseq
  %v1668 = vshrl.u32 %v1667, 7
  %v1669 = vsub.s32 0, %v1668
  %v1670 = vrot.slane %v1665, %v1669
  %v1671 = vlaneseq
  %v1672 = vshrl.u32 %v1671, 7
  %v1673 = vsub.s32 1, %v1672
  %v1674 = vrot.slane %v1665, %v1673
  %v1675 = vlaneseq
  %v1676 = vshrl.u32 %v1675, 7
  %v1677 = vsub.s32 2, %v1676
  %v1678 = vrot.slane %v1665, %v1677
  %1679 = vrot.lane.b32.xlu0 %v1670, 9
  %v1680 = vpop.permute.xlu0 %1679
  %1681 = vrot.lane.b32.xlu0 %v1674, 9
  %v1682 = vpop.permute.xlu0 %1681
  %1683 = vrot.lane.b32.xlu0 %v1678, 9
  %v1684 = vpop.permute.xlu0 %1683
  %v1685 = vsel %vm150, %v1680, %v1682
  %v1686 = vsel %vm150, %v1682, %v1684
  %v1691 = vmul.f32 %v41, %v1680
  %v1692 = vmul.f32 %v42, %v1685
  %v1693 = vmul.f32 %v43, %v1686
  %v1694 = vmul.f32 %v44, %v1684
  %v1695 = vmul.f32 %v46, %v1680
  %v1696 = vmul.f32 %v47, %v1685
  %v1697 = vmul.f32 %v48, %v1686
  %v1698 = vmul.f32 %v49, %v1684
  %s1699 = scalar_lea.vmem %s3, 112
  %v1700 = vld [vmem:[%s1699] sm:$0xff]
  %v1701 = vld [vmem:[%s1699 + $0x8] sm:$0xff]
  %1710 = vrot.lane.b32.xlu0 %v1691, 119
  %v1711 = vpop.permute.xlu0 %1710
  %1712 = vrot.lane.b32.xlu0 %v1692, 119
  %v1713 = vpop.permute.xlu0 %1712
  %1714 = vrot.lane.b32.xlu0 %v1693, 119
  %v1715 = vpop.permute.xlu0 %1714
  %1716 = vrot.lane.b32.xlu0 %v1694, 119
  %v1717 = vpop.permute.xlu0 %1716
  %1718 = vrot.lane.b32.xlu0 %v1695, 119
  %v1719 = vpop.permute.xlu0 %1718
  %1720 = vrot.lane.b32.xlu0 %v1696, 119
  %v1721 = vpop.permute.xlu0 %1720
  %1722 = vrot.lane.b32.xlu0 %v1697, 119
  %v1723 = vpop.permute.xlu0 %1722
  %1724 = vrot.lane.b32.xlu0 %v1698, 119
  %v1725 = vpop.permute.xlu0 %1724
  %v1726 = vsel %vm108, %v1711, %v1713
  %v1727 = vsel %vm108, %v1713, %v1715
  %v1728 = vsel %vm108, %v1715, %v1717
  %v1729 = vsel %vm108, %v1719, %v1721
  %v1730 = vsel %vm108, %v1721, %v1723
  %v1731 = vsel %vm108, %v1723, %v1725
  %v1739 = vsel %vm163, %v1700, 0
  %v1742 = vsel %vm163, %v1701, 0
  %1744 = vmatprep.subr.mxu0 %v1727
  %1745 = vmatpush1.msra.mxu0 %v1726
  %1746 = vmatprep.subr.mxu0 %v1730
  %1747 = vmatpush1.msra.mxu0 %v1729
  %1748 = vmatprep.subr.mxu0 0.0
  %1749 = vmatpush1.msra.mxu0 0.0
  %1750 = vmatprep.subr.mxu0 0.0
  %1751 = vmatpush1.msra.mxu0 0.0
  %1752 = vmatprep.subr.mxu0 0.0
  %1753 = vmatpush1.msra.mxu0 0.0
  %1754 = vmatprep.subr.mxu0 0.0
  %1755 = vmatpush1.msra.mxu0 0.0
  %1756 = vmatprep.subr.mxu0 0.0
  %1757 = vmatpush1.msra.mxu0 0.0
  %1758 = vmatprep.subr.mxu0 0.0
  %1759 = vmatpush1.msra.mxu0 0.0
  %1760 = vmatprep.subr.mxu0 0.0
  %1761 = vmatpush1.msra.mxu0 0.0
  %1762 = vmatprep.subr.mxu0 0.0
  %1763 = vmatpush1.msra.mxu0 0.0
  %1764 = vmatprep.subr.mxu0 0.0
  %1765 = vmatpush1.msra.mxu0 0.0
  %1766 = vmatprep.subr.mxu0 0.0
  %1767 = vmatpush1.msra.mxu0 0.0
  %1768 = vmatprep.subr.mxu0 0.0
  %1769 = vmatpush1.msra.mxu0 0.0
  %1770 = vmatprep.subr.mxu0 0.0
  %1771 = vmatpush1.msra.mxu0 0.0
  %1772 = vmatprep.subr.mxu0 0.0
  %1773 = vmatpush1.msra.mxu0 0.0
  %1774 = vmatprep.subr.mxu0 0.0
  %1775 = vmatpush1.msra.mxu0 0.0
  %1776 = vmatprep.subr.mxu0 0.0
  %1777 = vmatpush1.msra.mxu0 0.0
  %1778 = vmatprep.subr.mxu0 0.0
  %1779 = vmatpush1.msra.mxu0 0.0
  %1780 = vmatprep.subr.mxu0 0.0
  %1781 = vmatpush1.msra.mxu0 0.0
  %1782 = vmatprep.subr.mxu0 0.0
  %1783 = vmatpush1.msra.mxu0 0.0
  %1784 = vmatprep.subr.mxu0 0.0
  %1785 = vmatpush1.msra.mxu0 0.0
  %1786 = vmatprep.subr.mxu0 0.0
  %1787 = vmatpush1.msra.mxu0 0.0
  %1788 = vmatprep.subr.mxu0 0.0
  %1789 = vmatpush1.msra.mxu0 0.0
  %1790 = vmatprep.subr.mxu0 0.0
  %1791 = vmatpush1.msra.mxu0 0.0
  %1792 = vmatprep.subr.mxu0 0.0
  %1793 = vmatpush1.msra.mxu0 0.0
  %1794 = vmatprep.subr.mxu0 0.0
  %1795 = vmatpush1.msra.mxu0 0.0
  %1796 = vmatprep.subr.mxu0 0.0
  %1797 = vmatpush1.msra.mxu0 0.0
  %1798 = vmatprep.subr.mxu0 0.0
  %1799 = vmatpush1.msra.mxu0 0.0
  %1800 = vmatprep.subr.mxu0 0.0
  %1801 = vmatpush1.msra.mxu0 0.0
  %1802 = vmatprep.subr.mxu0 0.0
  %1803 = vmatpush1.msra.mxu0 0.0
  %1804 = vmatprep.subr.mxu0 0.0
  %1805 = vmatpush1.msra.mxu0 0.0
  %1806 = vmatprep.subr.mxu0 0.0
  %1807 = vmatpush1.msra.mxu0 0.0
  %1808 = vmatprep.mubr.f32.mxu0 0.0
  %1809 = vmatmul.mubr.f32.gmra.mrb[0].mxu0 %v1739
  %v1810 = vpop.f32.mrb[0].mxu0
  %v1811 = vadd.f32 0.0, %v1810
  %v1812 = vpop.f32.mrb[0].mxu0
  %v1813 = vadd.f32 0.0, %v1812
  %1814 = vmatprep.mubr.f32.mxu0 0.0
  %1815 = vmatmul.mubr.f32.gmra.mrb[0].mxu0 %v1742
  %v1816 = vpop.f32.mrb[0].mxu0
  %v1817 = vadd.f32 0.0, %v1816
  %v1818 = vpop.f32.mrb[0].mxu0
  %v1819 = vadd.f32 0.0, %v1818
  %1820 = vdwg.mxu0
  %1821 = vmatprep.subr.mxu0 0.0
  %1822 = vmatpush1.msra.mxu0 %v1728
  %1823 = vmatprep.subr.mxu0 0.0
  %1824 = vmatpush1.msra.mxu0 %v1731
  %1825 = vmatprep.subr.mxu0 0.0
  %1826 = vmatpush1.msra.mxu0 0.0
  %1827 = vmatprep.subr.mxu0 0.0
  %1828 = vmatpush1.msra.mxu0 0.0
  %1829 = vmatprep.subr.mxu0 0.0
  %1830 = vmatpush1.msra.mxu0 0.0
  %1831 = vmatprep.subr.mxu0 0.0
  %1832 = vmatpush1.msra.mxu0 0.0
  %1833 = vmatprep.subr.mxu0 0.0
  %1834 = vmatpush1.msra.mxu0 0.0
  %1835 = vmatprep.subr.mxu0 0.0
  %1836 = vmatpush1.msra.mxu0 0.0
  %1837 = vmatprep.subr.mxu0 0.0
  %1838 = vmatpush1.msra.mxu0 0.0
  %1839 = vmatprep.subr.mxu0 0.0
  %1840 = vmatpush1.msra.mxu0 0.0
  %1841 = vmatprep.subr.mxu0 0.0
  %1842 = vmatpush1.msra.mxu0 0.0
  %1843 = vmatprep.subr.mxu0 0.0
  %1844 = vmatpush1.msra.mxu0 0.0
  %1845 = vmatprep.subr.mxu0 0.0
  %1846 = vmatpush1.msra.mxu0 0.0
  %1847 = vmatprep.subr.mxu0 0.0
  %1848 = vmatpush1.msra.mxu0 0.0
  %1849 = vmatprep.subr.mxu0 0.0
  %1850 = vmatpush1.msra.mxu0 0.0
  %1851 = vmatprep.subr.mxu0 0.0
  %1852 = vmatpush1.msra.mxu0 0.0
  %1853 = vmatprep.subr.mxu0 0.0
  %1854 = vmatpush1.msra.mxu0 0.0
  %1855 = vmatprep.subr.mxu0 0.0
  %1856 = vmatpush1.msra.mxu0 0.0
  %1857 = vmatprep.subr.mxu0 0.0
  %1858 = vmatpush1.msra.mxu0 0.0
  %1859 = vmatprep.subr.mxu0 0.0
  %1860 = vmatpush1.msra.mxu0 0.0
  %1861 = vmatprep.subr.mxu0 0.0
  %1862 = vmatpush1.msra.mxu0 0.0
  %1863 = vmatprep.subr.mxu0 0.0
  %1864 = vmatpush1.msra.mxu0 0.0
  %1865 = vmatprep.subr.mxu0 0.0
  %1866 = vmatpush1.msra.mxu0 0.0
  %1867 = vmatprep.subr.mxu0 0.0
  %1868 = vmatpush1.msra.mxu0 0.0
  %1869 = vmatprep.subr.mxu0 0.0
  %1870 = vmatpush1.msra.mxu0 0.0
  %1871 = vmatprep.subr.mxu0 0.0
  %1872 = vmatpush1.msra.mxu0 0.0
  %1873 = vmatprep.subr.mxu0 0.0
  %1874 = vmatpush1.msra.mxu0 0.0
  %1875 = vmatprep.subr.mxu0 0.0
  %1876 = vmatpush1.msra.mxu0 0.0
  %1877 = vmatprep.subr.mxu0 0.0
  %1878 = vmatpush1.msra.mxu0 0.0
  %1879 = vmatprep.subr.mxu0 0.0
  %1880 = vmatpush1.msra.mxu0 0.0
  %1881 = vmatprep.subr.mxu0 0.0
  %1882 = vmatpush1.msra.mxu0 0.0
  %1883 = vmatprep.subr.mxu0 0.0
  %1884 = vmatpush1.msra.mxu0 0.0
  %1885 = vmatprep.mubr.f32.mxu0 0.0
  %1886 = vmatmul.mubr.f32.gmra.mrb[0].mxu0 %v1739
  %v1887 = vpop.f32.mrb[0].mxu0
  %v1888 = vadd.f32 0.0, %v1887
  %v1889 = vpop.f32.mrb[0].mxu0
  %1890 = vmatprep.mubr.f32.mxu0 0.0
  %1891 = vmatmul.mubr.f32.gmra.mrb[0].mxu0 %v1742
  %v1892 = vpop.f32.mrb[0].mxu0
  %v1893 = vadd.f32 0.0, %v1892
  %v1894 = vpop.f32.mrb[0].mxu0
  %1895 = vdwg.mxu0
  %v1896 = vadd.f32 %v1658, %v1811
  %v1897 = vadd.f32 %v1659, %v1813
  %v1898 = vadd.f32 %v1660, %v1888
  %v1899 = vadd.f32 %v1661, %v1817
  %v1900 = vadd.f32 %v1662, %v1819
  %v1901 = vadd.f32 %v1663, %v1893
  %s1902 = scalar_lea.vmem %s2, 24
  %v1903 = vld [vmem:[%s1902] sm:$0x7]
  %v1905 = vlaneseq
  %v1906 = vshrl.u32 %v1905, 7
  %v1907 = vsub.s32 0, %v1906
  %v1908 = vrot.slane %v1903, %v1907
  %v1909 = vlaneseq
  %v1910 = vshrl.u32 %v1909, 7
  %v1911 = vsub.s32 1, %v1910
  %v1912 = vrot.slane %v1903, %v1911
  %v1913 = vlaneseq
  %v1914 = vshrl.u32 %v1913, 7
  %v1915 = vsub.s32 2, %v1914
  %v1916 = vrot.slane %v1903, %v1915
  %1917 = vrot.lane.b32.xlu0 %v1908, 10
  %v1918 = vpop.permute.xlu0 %1917
  %1919 = vrot.lane.b32.xlu0 %v1912, 10
  %v1920 = vpop.permute.xlu0 %1919
  %1921 = vrot.lane.b32.xlu0 %v1916, 10
  %v1922 = vpop.permute.xlu0 %1921
  %v1923 = vsel %vm346, %v1918, %v1920
  %v1924 = vsel %vm346, %v1920, %v1922
  %v1929 = vmul.f32 %v41, %v1918
  %v1930 = vmul.f32 %v42, %v1923
  %v1931 = vmul.f32 %v43, %v1924
  %v1932 = vmul.f32 %v44, %v1922
  %v1933 = vmul.f32 %v46, %v1918
  %v1934 = vmul.f32 %v47, %v1923
  %v1935 = vmul.f32 %v48, %v1924
  %v1936 = vmul.f32 %v49, %v1922
  %s1937 = scalar_lea.vmem %s3, 128
  %v1938 = vld [vmem:[%s1937] sm:$0xff]
  %v1939 = vld [vmem:[%s1937 + $0x8] sm:$0xff]
  %1948 = vrot.lane.b32.xlu0 %v1929, 118
  %v1949 = vpop.permute.xlu0 %1948
  %1950 = vrot.lane.b32.xlu0 %v1930, 118
  %v1951 = vpop.permute.xlu0 %1950
  %1952 = vrot.lane.b32.xlu0 %v1931, 118
  %v1953 = vpop.permute.xlu0 %1952
  %1954 = vrot.lane.b32.xlu0 %v1932, 118
  %v1955 = vpop.permute.xlu0 %1954
  %1956 = vrot.lane.b32.xlu0 %v1933, 118
  %v1957 = vpop.permute.xlu0 %1956
  %1958 = vrot.lane.b32.xlu0 %v1934, 118
  %v1959 = vpop.permute.xlu0 %1958
  %1960 = vrot.lane.b32.xlu0 %v1935, 118
  %v1961 = vpop.permute.xlu0 %1960
  %1962 = vrot.lane.b32.xlu0 %v1936, 118
  %v1963 = vpop.permute.xlu0 %1962
  %v1964 = vsel %vm70, %v1949, %v1951
  %v1965 = vsel %vm70, %v1951, %v1953
  %v1966 = vsel %vm70, %v1953, %v1955
  %v1967 = vsel %vm70, %v1957, %v1959
  %v1968 = vsel %vm70, %v1959, %v1961
  %v1969 = vsel %vm70, %v1961, %v1963
  %v1977 = vsel %vm163, %v1938, 0
  %v1980 = vsel %vm163, %v1939, 0
  %1982 = vmatprep.subr.mxu0 %v1965
  %1983 = vmatpush1.msra.mxu0 %v1964
  %1984 = vmatprep.subr.mxu0 %v1968
  %1985 = vmatpush1.msra.mxu0 %v1967
  %1986 = vmatprep.subr.mxu0 0.0
  %1987 = vmatpush1.msra.mxu0 0.0
  %1988 = vmatprep.subr.mxu0 0.0
  %1989 = vmatpush1.msra.mxu0 0.0
  %1990 = vmatprep.subr.mxu0 0.0
  %1991 = vmatpush1.msra.mxu0 0.0
  %1992 = vmatprep.subr.mxu0 0.0
  %1993 = vmatpush1.msra.mxu0 0.0
  %1994 = vmatprep.subr.mxu0 0.0
  %1995 = vmatpush1.msra.mxu0 0.0
  %1996 = vmatprep.subr.mxu0 0.0
  %1997 = vmatpush1.msra.mxu0 0.0
  %1998 = vmatprep.subr.mxu0 0.0
  %1999 = vmatpush1.msra.mxu0 0.0
  %2000 = vmatprep.subr.mxu0 0.0
  %2001 = vmatpush1.msra.mxu0 0.0
  %2002 = vmatprep.subr.mxu0 0.0
  %2003 = vmatpush1.msra.mxu0 0.0
  %2004 = vmatprep.subr.mxu0 0.0
  %2005 = vmatpush1.msra.mxu0 0.0
  %2006 = vmatprep.subr.mxu0 0.0
  %2007 = vmatpush1.msra.mxu0 0.0
  %2008 = vmatprep.subr.mxu0 0.0
  %2009 = vmatpush1.msra.mxu0 0.0
  %2010 = vmatprep.subr.mxu0 0.0
  %2011 = vmatpush1.msra.mxu0 0.0
  %2012 = vmatprep.subr.mxu0 0.0
  %2013 = vmatpush1.msra.mxu0 0.0
  %2014 = vmatprep.subr.mxu0 0.0
  %2015 = vmatpush1.msra.mxu0 0.0
  %2016 = vmatprep.subr.mxu0 0.0
  %2017 = vmatpush1.msra.mxu0 0.0
  %2018 = vmatprep.subr.mxu0 0.0
  %2019 = vmatpush1.msra.mxu0 0.0
  %2020 = vmatprep.subr.mxu0 0.0
  %2021 = vmatpush1.msra.mxu0 0.0
  %2022 = vmatprep.subr.mxu0 0.0
  %2023 = vmatpush1.msra.mxu0 0.0
  %2024 = vmatprep.subr.mxu0 0.0
  %2025 = vmatpush1.msra.mxu0 0.0
  %2026 = vmatprep.subr.mxu0 0.0
  %2027 = vmatpush1.msra.mxu0 0.0
  %2028 = vmatprep.subr.mxu0 0.0
  %2029 = vmatpush1.msra.mxu0 0.0
  %2030 = vmatprep.subr.mxu0 0.0
  %2031 = vmatpush1.msra.mxu0 0.0
  %2032 = vmatprep.subr.mxu0 0.0
  %2033 = vmatpush1.msra.mxu0 0.0
  %2034 = vmatprep.subr.mxu0 0.0
  %2035 = vmatpush1.msra.mxu0 0.0
  %2036 = vmatprep.subr.mxu0 0.0
  %2037 = vmatpush1.msra.mxu0 0.0
  %2038 = vmatprep.subr.mxu0 0.0
  %2039 = vmatpush1.msra.mxu0 0.0
  %2040 = vmatprep.subr.mxu0 0.0
  %2041 = vmatpush1.msra.mxu0 0.0
  %2042 = vmatprep.subr.mxu0 0.0
  %2043 = vmatpush1.msra.mxu0 0.0
  %2044 = vmatprep.subr.mxu0 0.0
  %2045 = vmatpush1.msra.mxu0 0.0
  %2046 = vmatprep.mubr.f32.mxu0 0.0
  %2047 = vmatmul.mubr.f32.gmra.mrb[0].mxu0 %v1977
  %v2048 = vpop.f32.mrb[0].mxu0
  %v2049 = vadd.f32 0.0, %v2048
  %v2050 = vpop.f32.mrb[0].mxu0
  %v2051 = vadd.f32 0.0, %v2050
  %2052 = vmatprep.mubr.f32.mxu0 0.0
  %2053 = vmatmul.mubr.f32.gmra.mrb[0].mxu0 %v1980
  %v2054 = vpop.f32.mrb[0].mxu0
  %v2055 = vadd.f32 0.0, %v2054
  %v2056 = vpop.f32.mrb[0].mxu0
  %v2057 = vadd.f32 0.0, %v2056
  %2058 = vdwg.mxu0
  %2059 = vmatprep.subr.mxu0 0.0
  %2060 = vmatpush1.msra.mxu0 %v1966
  %2061 = vmatprep.subr.mxu0 0.0
  %2062 = vmatpush1.msra.mxu0 %v1969
  %2063 = vmatprep.subr.mxu0 0.0
  %2064 = vmatpush1.msra.mxu0 0.0
  %2065 = vmatprep.subr.mxu0 0.0
  %2066 = vmatpush1.msra.mxu0 0.0
  %2067 = vmatprep.subr.mxu0 0.0
  %2068 = vmatpush1.msra.mxu0 0.0
  %2069 = vmatprep.subr.mxu0 0.0
  %2070 = vmatpush1.msra.mxu0 0.0
  %2071 = vmatprep.subr.mxu0 0.0
  %2072 = vmatpush1.msra.mxu0 0.0
  %2073 = vmatprep.subr.mxu0 0.0
  %2074 = vmatpush1.msra.mxu0 0.0
  %2075 = vmatprep.subr.mxu0 0.0
  %2076 = vmatpush1.msra.mxu0 0.0
  %2077 = vmatprep.subr.mxu0 0.0
  %2078 = vmatpush1.msra.mxu0 0.0
  %2079 = vmatprep.subr.mxu0 0.0
  %2080 = vmatpush1.msra.mxu0 0.0
  %2081 = vmatprep.subr.mxu0 0.0
  %2082 = vmatpush1.msra.mxu0 0.0
  %2083 = vmatprep.subr.mxu0 0.0
  %2084 = vmatpush1.msra.mxu0 0.0
  %2085 = vmatprep.subr.mxu0 0.0
  %2086 = vmatpush1.msra.mxu0 0.0
  %2087 = vmatprep.subr.mxu0 0.0
  %2088 = vmatpush1.msra.mxu0 0.0
  %2089 = vmatprep.subr.mxu0 0.0
  %2090 = vmatpush1.msra.mxu0 0.0
  %2091 = vmatprep.subr.mxu0 0.0
  %2092 = vmatpush1.msra.mxu0 0.0
  %2093 = vmatprep.subr.mxu0 0.0
  %2094 = vmatpush1.msra.mxu0 0.0
  %2095 = vmatprep.subr.mxu0 0.0
  %2096 = vmatpush1.msra.mxu0 0.0
  %2097 = vmatprep.subr.mxu0 0.0
  %2098 = vmatpush1.msra.mxu0 0.0
  %2099 = vmatprep.subr.mxu0 0.0
  %2100 = vmatpush1.msra.mxu0 0.0
  %2101 = vmatprep.subr.mxu0 0.0
  %2102 = vmatpush1.msra.mxu0 0.0
  %2103 = vmatprep.subr.mxu0 0.0
  %2104 = vmatpush1.msra.mxu0 0.0
  %2105 = vmatprep.subr.mxu0 0.0
  %2106 = vmatpush1.msra.mxu0 0.0
  %2107 = vmatprep.subr.mxu0 0.0
  %2108 = vmatpush1.msra.mxu0 0.0
  %2109 = vmatprep.subr.mxu0 0.0
  %2110 = vmatpush1.msra.mxu0 0.0
  %2111 = vmatprep.subr.mxu0 0.0
  %2112 = vmatpush1.msra.mxu0 0.0
  %2113 = vmatprep.subr.mxu0 0.0
  %2114 = vmatpush1.msra.mxu0 0.0
  %2115 = vmatprep.subr.mxu0 0.0
  %2116 = vmatpush1.msra.mxu0 0.0
  %2117 = vmatprep.subr.mxu0 0.0
  %2118 = vmatpush1.msra.mxu0 0.0
  %2119 = vmatprep.subr.mxu0 0.0
  %2120 = vmatpush1.msra.mxu0 0.0
  %2121 = vmatprep.subr.mxu0 0.0
  %2122 = vmatpush1.msra.mxu0 0.0
  %2123 = vmatprep.mubr.f32.mxu0 0.0
  %2124 = vmatmul.mubr.f32.gmra.mrb[0].mxu0 %v1977
  %v2125 = vpop.f32.mrb[0].mxu0
  %v2126 = vadd.f32 0.0, %v2125
  %v2127 = vpop.f32.mrb[0].mxu0
  %2128 = vmatprep.mubr.f32.mxu0 0.0
  %2129 = vmatmul.mubr.f32.gmra.mrb[0].mxu0 %v1980
  %v2130 = vpop.f32.mrb[0].mxu0
  %v2131 = vadd.f32 0.0, %v2130
  %v2132 = vpop.f32.mrb[0].mxu0
  %2133 = vdwg.mxu0
  %v2134 = vadd.f32 %v1896, %v2049
  %v2135 = vadd.f32 %v1897, %v2051
  %v2136 = vadd.f32 %v1898, %v2126
  %v2137 = vadd.f32 %v1899, %v2055
  %v2138 = vadd.f32 %v1900, %v2057
  %v2139 = vadd.f32 %v1901, %v2131
  %v2140 = vld [vmem:[%s4] sm:$0xff]
  %v2141 = vld [vmem:[%s4 + $0x8] sm:$0xff]
  %2143 = vset.pattern.permute.xlu0 0
  %2144 = vperm.xlu0 %2143, %v2140
  %v2145 = vpop.permute.xlu0 %2144
  %2148 = vset.pattern.permute.xlu0 0
  %2149 = vperm.xlu0 %2148, %v2141
  %v2150 = vpop.permute.xlu0 %2149
  %v2152 = vadd.f32 %v2134, %v2145
  %v2153 = vadd.f32 %v2135, %v2145
  %v2154 = vadd.f32 %v2136, %v2145
  %v2155 = vadd.f32 %v2137, %v2150
  %v2156 = vadd.f32 %v2138, %v2150
  %v2157 = vadd.f32 %v2139, %v2150
  %vm2158 = vcmp.ge.f32.partialorder %v2152, 0.0
  %vm2159 = vcmp.ge.f32.partialorder %v2153, 0.0
  %vm2160 = vcmp.ge.f32.partialorder %v2154, 0.0
  %vm2161 = vcmp.ge.f32.partialorder %v2155, 0.0
  %vm2162 = vcmp.ge.f32.partialorder %v2156, 0.0
  %vm2163 = vcmp.ge.f32.partialorder %v2157, 0.0
  %v2164 = vmul.f32 %v2152, 0.1
  %v2165 = vmul.f32 %v2153, 0.1
  %v2166 = vmul.f32 %v2154, 0.1
  %v2167 = vmul.f32 %v2155, 0.1
  %v2168 = vmul.f32 %v2156, 0.1
  %v2169 = vmul.f32 %v2157, 0.1
  %v2170 = vsel %vm2158, %v2152, %v2164
  %v2171 = vsel %vm2159, %v2153, %v2165
  %v2172 = vsel %vm2160, %v2154, %v2166
  %v2173 = vsel %vm2161, %v2155, %v2167
  %v2174 = vsel %vm2162, %v2156, %v2168
  %v2175 = vsel %vm2163, %v2157, %v2169
  %v2176 = vmul.f32 %v65, 0.0
  %v2177 = vmul.f32 %v2170, %v71
  %v2178 = vmul.f32 %v2171, %v72
  %v2179 = vmul.f32 %v2172, %v69
  %v2180 = vmul.f32 %v2173, %v71
  %v2181 = vmul.f32 %v2174, %v72
  %v2182 = vmul.f32 %v2175, %v69
  %v2183 = vld [vmem:[%s5] sm:$0xff]
  %v2184 = vld [vmem:[%s5 + $0x8] sm:$0xff]
  %v2185 = vmul.f32 %v103, 0.0
  %v2186 = vmul.f32 %v2170, %v109
  %v2187 = vmul.f32 %v2171, %v110
  %v2188 = vmul.f32 %v2172, %v107
  %v2189 = vmul.f32 %v2173, %v109
  %v2190 = vmul.f32 %v2174, %v110
  %v2191 = vmul.f32 %v2175, %v107
  %s2192 = scalar_lea.vmem %s5, 16
  %v2193 = vld [vmem:[%s2192] sm:$0xff]
  %v2194 = vld [vmem:[%s2192 + $0x8] sm:$0xff]
  %2202 = vrot.lane.b32.xlu0 %v2185, 9
  %v2203 = vpop.permute.xlu0 %2202
  %2204 = vrot.lane.b32.xlu0 %v2186, 9
  %v2205 = vpop.permute.xlu0 %2204
  %2206 = vrot.lane.b32.xlu0 %v2187, 9
  %v2207 = vpop.permute.xlu0 %2206
  %2208 = vrot.lane.b32.xlu0 %v2188, 9
  %v2209 = vpop.permute.xlu0 %2208
  %2210 = vrot.lane.b32.xlu0 %v2189, 9
  %v2211 = vpop.permute.xlu0 %2210
  %2212 = vrot.lane.b32.xlu0 %v2190, 9
  %v2213 = vpop.permute.xlu0 %2212
  %2214 = vrot.lane.b32.xlu0 %v2191, 9
  %v2215 = vpop.permute.xlu0 %2214
  %v2216 = vsel %vm150, %v2203, %v2205
  %v2217 = vsel %vm150, %v2205, %v2207
  %v2218 = vsel %vm150, %v2207, %v2209
  %v2219 = vsel %vm150, %v2203, %v2211
  %v2220 = vsel %vm150, %v2211, %v2213
  %v2221 = vsel %vm150, %v2213, %v2215
  %v2229 = vsel %vm163, %v2193, 0
  %v2232 = vsel %vm163, %v2194, 0
  %2234 = vmatprep.subr.mxu0 %v2217
  %2235 = vmatpush1.msra.mxu0 %v2216
  %2236 = vmatprep.subr.mxu0 %v2220
  %2237 = vmatpush1.msra.mxu0 %v2219
  %2238 = vmatprep.subr.mxu0 0.0
  %2239 = vmatpush1.msra.mxu0 0.0
  %2240 = vmatprep.subr.mxu0 0.0
  %2241 = vmatpush1.msra.mxu0 0.0
  %2242 = vmatprep.subr.mxu0 0.0
  %2243 = vmatpush1.msra.mxu0 0.0
  %2244 = vmatprep.subr.mxu0 0.0
  %2245 = vmatpush1.msra.mxu0 0.0
  %2246 = vmatprep.subr.mxu0 0.0
  %2247 = vmatpush1.msra.mxu0 0.0
  %2248 = vmatprep.subr.mxu0 0.0
  %2249 = vmatpush1.msra.mxu0 0.0
  %2250 = vmatprep.subr.mxu0 0.0
  %2251 = vmatpush1.msra.mxu0 0.0
  %2252 = vmatprep.subr.mxu0 0.0
  %2253 = vmatpush1.msra.mxu0 0.0
  %2254 = vmatprep.subr.mxu0 0.0
  %2255 = vmatpush1.msra.mxu0 0.0
  %2256 = vmatprep.subr.mxu0 0.0
  %2257 = vmatpush1.msra.mxu0 0.0
  %2258 = vmatprep.subr.mxu0 0.0
  %2259 = vmatpush1.msra.mxu0 0.0
  %2260 = vmatprep.subr.mxu0 0.0
  %2261 = vmatpush1.msra.mxu0 0.0
  %2262 = vmatprep.subr.mxu0 0.0
  %2263 = vmatpush1.msra.mxu0 0.0
  %2264 = vmatprep.subr.mxu0 0.0
  %2265 = vmatpush1.msra.mxu0 0.0
  %2266 = vmatprep.subr.mxu0 0.0
  %2267 = vmatpush1.msra.mxu0 0.0
  %2268 = vmatprep.subr.mxu0 0.0
  %2269 = vmatpush1.msra.mxu0 0.0
  %2270 = vmatprep.subr.mxu0 0.0
  %2271 = vmatpush1.msra.mxu0 0.0
  %2272 = vmatprep.subr.mxu0 0.0
  %2273 = vmatpush1.msra.mxu0 0.0
  %2274 = vmatprep.subr.mxu0 0.0
  %2275 = vmatpush1.msra.mxu0 0.0
  %2276 = vmatprep.subr.mxu0 0.0
  %2277 = vmatpush1.msra.mxu0 0.0
  %2278 = vmatprep.subr.mxu0 0.0
  %2279 = vmatpush1.msra.mxu0 0.0
  %2280 = vmatprep.subr.mxu0 0.0
  %2281 = vmatpush1.msra.mxu0 0.0
  %2282 = vmatprep.subr.mxu0 0.0
  %2283 = vmatpush1.msra.mxu0 0.0
  %2284 = vmatprep.subr.mxu0 0.0
  %2285 = vmatpush1.msra.mxu0 0.0
  %2286 = vmatprep.subr.mxu0 0.0
  %2287 = vmatpush1.msra.mxu0 0.0
  %2288 = vmatprep.subr.mxu0 0.0
  %2289 = vmatpush1.msra.mxu0 0.0
  %2290 = vmatprep.subr.mxu0 0.0
  %2291 = vmatpush1.msra.mxu0 0.0
  %2292 = vmatprep.subr.mxu0 0.0
  %2293 = vmatpush1.msra.mxu0 0.0
  %2294 = vmatprep.subr.mxu0 0.0
  %2295 = vmatpush1.msra.mxu0 0.0
  %2296 = vmatprep.subr.mxu0 0.0
  %2297 = vmatpush1.msra.mxu0 0.0
  %2298 = vmatprep.mubr.f32.mxu0 0.0
  %2299 = vmatmul.mubr.f32.gmra.mrb[0].mxu0 %v2229
  %v2300 = vpop.f32.mrb[0].mxu0
  %v2301 = vadd.f32 0.0, %v2300
  %v2302 = vpop.f32.mrb[0].mxu0
  %v2303 = vadd.f32 0.0, %v2302
  %2304 = vmatprep.mubr.f32.mxu0 0.0
  %2305 = vmatmul.mubr.f32.gmra.mrb[0].mxu0 %v2232
  %v2306 = vpop.f32.mrb[0].mxu0
  %v2307 = vadd.f32 0.0, %v2306
  %v2308 = vpop.f32.mrb[0].mxu0
  %v2309 = vadd.f32 0.0, %v2308
  %2310 = vdwg.mxu0
  %2311 = vmatprep.subr.mxu0 0.0
  %2312 = vmatpush1.msra.mxu0 %v2218
  %2313 = vmatprep.subr.mxu0 0.0
  %2314 = vmatpush1.msra.mxu0 %v2221
  %2315 = vmatprep.subr.mxu0 0.0
  %2316 = vmatpush1.msra.mxu0 0.0
  %2317 = vmatprep.subr.mxu0 0.0
  %2318 = vmatpush1.msra.mxu0 0.0
  %2319 = vmatprep.subr.mxu0 0.0
  %2320 = vmatpush1.msra.mxu0 0.0
  %2321 = vmatprep.subr.mxu0 0.0
  %2322 = vmatpush1.msra.mxu0 0.0
  %2323 = vmatprep.subr.mxu0 0.0
  %2324 = vmatpush1.msra.mxu0 0.0
  %2325 = vmatprep.subr.mxu0 0.0
  %2326 = vmatpush1.msra.mxu0 0.0
  %2327 = vmatprep.subr.mxu0 0.0
  %2328 = vmatpush1.msra.mxu0 0.0
  %2329 = vmatprep.subr.mxu0 0.0
  %2330 = vmatpush1.msra.mxu0 0.0
  %2331 = vmatprep.subr.mxu0 0.0
  %2332 = vmatpush1.msra.mxu0 0.0
  %2333 = vmatprep.subr.mxu0 0.0
  %2334 = vmatpush1.msra.mxu0 0.0
  %2335 = vmatprep.subr.mxu0 0.0
  %2336 = vmatpush1.msra.mxu0 0.0
  %2337 = vmatprep.subr.mxu0 0.0
  %2338 = vmatpush1.msra.mxu0 0.0
  %2339 = vmatprep.subr.mxu0 0.0
  %2340 = vmatpush1.msra.mxu0 0.0
  %2341 = vmatprep.subr.mxu0 0.0
  %2342 = vmatpush1.msra.mxu0 0.0
  %2343 = vmatprep.subr.mxu0 0.0
  %2344 = vmatpush1.msra.mxu0 0.0
  %2345 = vmatprep.subr.mxu0 0.0
  %2346 = vmatpush1.msra.mxu0 0.0
  %2347 = vmatprep.subr.mxu0 0.0
  %2348 = vmatpush1.msra.mxu0 0.0
  %2349 = vmatprep.subr.mxu0 0.0
  %2350 = vmatpush1.msra.mxu0 0.0
  %2351 = vmatprep.subr.mxu0 0.0
  %2352 = vmatpush1.msra.mxu0 0.0
  %2353 = vmatprep.subr.mxu0 0.0
  %2354 = vmatpush1.msra.mxu0 0.0
  %2355 = vmatprep.subr.mxu0 0.0
  %2356 = vmatpush1.msra.mxu0 0.0
  %2357 = vmatprep.subr.mxu0 0.0
  %2358 = vmatpush1.msra.mxu0 0.0
  %2359 = vmatprep.subr.mxu0 0.0
  %2360 = vmatpush1.msra.mxu0 0.0
  %2361 = vmatprep.subr.mxu0 0.0
  %2362 = vmatpush1.msra.mxu0 0.0
  %2363 = vmatprep.subr.mxu0 0.0
  %2364 = vmatpush1.msra.mxu0 0.0
  %2365 = vmatprep.subr.mxu0 0.0
  %2366 = vmatpush1.msra.mxu0 0.0
  %2367 = vmatprep.subr.mxu0 0.0
  %2368 = vmatpush1.msra.mxu0 0.0
  %2369 = vmatprep.subr.mxu0 0.0
  %2370 = vmatpush1.msra.mxu0 0.0
  %2371 = vmatprep.subr.mxu0 0.0
  %2372 = vmatpush1.msra.mxu0 0.0
  %2373 = vmatprep.subr.mxu0 0.0
  %2374 = vmatpush1.msra.mxu0 0.0
  %2375 = vmatprep.mubr.f32.mxu0 0.0
  %2376 = vmatmul.mubr.f32.gmra.mrb[0].mxu0 %v2229
  %v2377 = vpop.f32.mrb[0].mxu0
  %v2378 = vadd.f32 0.0, %v2377
  %v2379 = vpop.f32.mrb[0].mxu0
  %2380 = vmatprep.mubr.f32.mxu0 0.0
  %2381 = vmatmul.mubr.f32.gmra.mrb[0].mxu0 %v2232
  %v2382 = vpop.f32.mrb[0].mxu0
  %v2383 = vadd.f32 0.0, %v2382
  %v2384 = vpop.f32.mrb[0].mxu0
  %2385 = vdwg.mxu0
  %2393 = vrot.lane.b32.xlu0 %v2176, 10
  %v2394 = vpop.permute.xlu0 %2393
  %2395 = vrot.lane.b32.xlu0 %v2177, 10
  %v2396 = vpop.permute.xlu0 %2395
  %2397 = vrot.lane.b32.xlu0 %v2178, 10
  %v2398 = vpop.permute.xlu0 %2397
  %2399 = vrot.lane.b32.xlu0 %v2179, 10
  %v2400 = vpop.permute.xlu0 %2399
  %2401 = vrot.lane.b32.xlu0 %v2180, 10
  %v2402 = vpop.permute.xlu0 %2401
  %2403 = vrot.lane.b32.xlu0 %v2181, 10
  %v2404 = vpop.permute.xlu0 %2403
  %2405 = vrot.lane.b32.xlu0 %v2182, 10
  %v2406 = vpop.permute.xlu0 %2405
  %v2407 = vsel %vm346, %v2394, %v2396
  %v2408 = vsel %vm346, %v2396, %v2398
  %v2409 = vsel %vm346, %v2398, %v2400
  %v2410 = vsel %vm346, %v2394, %v2402
  %v2411 = vsel %vm346, %v2402, %v2404
  %v2412 = vsel %vm346, %v2404, %v2406
  %v2420 = vsel %vm163, %v2183, 0
  %v2423 = vsel %vm163, %v2184, 0
  %2425 = vmatprep.subr.mxu0 %v2408
  %2426 = vmatpush1.msra.mxu0 %v2407
  %2427 = vmatprep.subr.mxu0 %v2411
  %2428 = vmatpush1.msra.mxu0 %v2410
  %2429 = vmatprep.subr.mxu0 0.0
  %2430 = vmatpush1.msra.mxu0 0.0
  %2431 = vmatprep.subr.mxu0 0.0
  %2432 = vmatpush1.msra.mxu0 0.0
  %2433 = vmatprep.subr.mxu0 0.0
  %2434 = vmatpush1.msra.mxu0 0.0
  %2435 = vmatprep.subr.mxu0 0.0
  %2436 = vmatpush1.msra.mxu0 0.0
  %2437 = vmatprep.subr.mxu0 0.0
  %2438 = vmatpush1.msra.mxu0 0.0
  %2439 = vmatprep.subr.mxu0 0.0
  %2440 = vmatpush1.msra.mxu0 0.0
  %2441 = vmatprep.subr.mxu0 0.0
  %2442 = vmatpush1.msra.mxu0 0.0
  %2443 = vmatprep.subr.mxu0 0.0
  %2444 = vmatpush1.msra.mxu0 0.0
  %2445 = vmatprep.subr.mxu0 0.0
  %2446 = vmatpush1.msra.mxu0 0.0
  %2447 = vmatprep.subr.mxu0 0.0
  %2448 = vmatpush1.msra.mxu0 0.0
  %2449 = vmatprep.subr.mxu0 0.0
  %2450 = vmatpush1.msra.mxu0 0.0
  %2451 = vmatprep.subr.mxu0 0.0
  %2452 = vmatpush1.msra.mxu0 0.0
  %2453 = vmatprep.subr.mxu0 0.0
  %2454 = vmatpush1.msra.mxu0 0.0
  %2455 = vmatprep.subr.mxu0 0.0
  %2456 = vmatpush1.msra.mxu0 0.0
  %2457 = vmatprep.subr.mxu0 0.0
  %2458 = vmatpush1.msra.mxu0 0.0
  %2459 = vmatprep.subr.mxu0 0.0
  %2460 = vmatpush1.msra.mxu0 0.0
  %2461 = vmatprep.subr.mxu0 0.0
  %2462 = vmatpush1.msra.mxu0 0.0
  %2463 = vmatprep.subr.mxu0 0.0
  %2464 = vmatpush1.msra.mxu0 0.0
  %2465 = vmatprep.subr.mxu0 0.0
  %2466 = vmatpush1.msra.mxu0 0.0
  %2467 = vmatprep.subr.mxu0 0.0
  %2468 = vmatpush1.msra.mxu0 0.0
  %2469 = vmatprep.subr.mxu0 0.0
  %2470 = vmatpush1.msra.mxu0 0.0
  %2471 = vmatprep.subr.mxu0 0.0
  %2472 = vmatpush1.msra.mxu0 0.0
  %2473 = vmatprep.subr.mxu0 0.0
  %2474 = vmatpush1.msra.mxu0 0.0
  %2475 = vmatprep.subr.mxu0 0.0
  %2476 = vmatpush1.msra.mxu0 0.0
  %2477 = vmatprep.subr.mxu0 0.0
  %2478 = vmatpush1.msra.mxu0 0.0
  %2479 = vmatprep.subr.mxu0 0.0
  %2480 = vmatpush1.msra.mxu0 0.0
  %2481 = vmatprep.subr.mxu0 0.0
  %2482 = vmatpush1.msra.mxu0 0.0
  %2483 = vmatprep.subr.mxu0 0.0
  %2484 = vmatpush1.msra.mxu0 0.0
  %2485 = vmatprep.subr.mxu0 0.0
  %2486 = vmatpush1.msra.mxu0 0.0
  %2487 = vmatprep.subr.mxu0 0.0
  %2488 = vmatpush1.msra.mxu0 0.0
  %2489 = vmatprep.mubr.f32.mxu0 0.0
  %2490 = vmatmul.mubr.f32.gmra.mrb[0].mxu0 %v2420
  %v2491 = vpop.f32.mrb[0].mxu0
  %v2492 = vadd.f32 %v2301, %v2491
  %v2493 = vpop.f32.mrb[0].mxu0
  %v2494 = vadd.f32 %v2303, %v2493
  %2495 = vmatprep.mubr.f32.mxu0 0.0
  %2496 = vmatmul.mubr.f32.gmra.mrb[0].mxu0 %v2423
  %v2497 = vpop.f32.mrb[0].mxu0
  %v2498 = vadd.f32 %v2307, %v2497
  %v2499 = vpop.f32.mrb[0].mxu0
  %v2500 = vadd.f32 %v2309, %v2499
  %2501 = vdwg.mxu0
  %2502 = vmatprep.subr.mxu0 0.0
  %2503 = vmatpush1.msra.mxu0 %v2409
  %2504 = vmatprep.subr.mxu0 0.0
  %2505 = vmatpush1.msra.mxu0 %v2412
  %2506 = vmatprep.subr.mxu0 0.0
  %2507 = vmatpush1.msra.mxu0 0.0
  %2508 = vmatprep.subr.mxu0 0.0
  %2509 = vmatpush1.msra.mxu0 0.0
  %2510 = vmatprep.subr.mxu0 0.0
  %2511 = vmatpush1.msra.mxu0 0.0
  %2512 = vmatprep.subr.mxu0 0.0
  %2513 = vmatpush1.msra.mxu0 0.0
  %2514 = vmatprep.subr.mxu0 0.0
  %2515 = vmatpush1.msra.mxu0 0.0
  %2516 = vmatprep.subr.mxu0 0.0
  %2517 = vmatpush1.msra.mxu0 0.0
  %2518 = vmatprep.subr.mxu0 0.0
  %2519 = vmatpush1.msra.mxu0 0.0
  %2520 = vmatprep.subr.mxu0 0.0
  %2521 = vmatpush1.msra.mxu0 0.0
  %2522 = vmatprep.subr.mxu0 0.0
  %2523 = vmatpush1.msra.mxu0 0.0
  %2524 = vmatprep.subr.mxu0 0.0
  %2525 = vmatpush1.msra.mxu0 0.0
  %2526 = vmatprep.subr.mxu0 0.0
  %2527 = vmatpush1.msra.mxu0 0.0
  %2528 = vmatprep.subr.mxu0 0.0
  %2529 = vmatpush1.msra.mxu0 0.0
  %2530 = vmatprep.subr.mxu0 0.0
  %2531 = vmatpush1.msra.mxu0 0.0
  %2532 = vmatprep.subr.mxu0 0.0
  %2533 = vmatpush1.msra.mxu0 0.0
  %2534 = vmatprep.subr.mxu0 0.0
  %2535 = vmatpush1.msra.mxu0 0.0
  %2536 = vmatprep.subr.mxu0 0.0
  %2537 = vmatpush1.msra.mxu0 0.0
  %2538 = vmatprep.subr.mxu0 0.0
  %2539 = vmatpush1.msra.mxu0 0.0
  %2540 = vmatprep.subr.mxu0 0.0
  %2541 = vmatpush1.msra.mxu0 0.0
  %2542 = vmatprep.subr.mxu0 0.0
  %2543 = vmatpush1.msra.mxu0 0.0
  %2544 = vmatprep.subr.mxu0 0.0
  %2545 = vmatpush1.msra.mxu0 0.0
  %2546 = vmatprep.subr.mxu0 0.0
  %2547 = vmatpush1.msra.mxu0 0.0
  %2548 = vmatprep.subr.mxu0 0.0
  %2549 = vmatpush1.msra.mxu0 0.0
  %2550 = vmatprep.subr.mxu0 0.0
  %2551 = vmatpush1.msra.mxu0 0.0
  %2552 = vmatprep.subr.mxu0 0.0
  %2553 = vmatpush1.msra.mxu0 0.0
  %2554 = vmatprep.subr.mxu0 0.0
  %2555 = vmatpush1.msra.mxu0 0.0
  %2556 = vmatprep.subr.mxu0 0.0
  %2557 = vmatpush1.msra.mxu0 0.0
  %2558 = vmatprep.subr.mxu0 0.0
  %2559 = vmatpush1.msra.mxu0 0.0
  %2560 = vmatprep.subr.mxu0 0.0
  %2561 = vmatpush1.msra.mxu0 0.0
  %2562 = vmatprep.subr.mxu0 0.0
  %2563 = vmatpush1.msra.mxu0 0.0
  %2564 = vmatprep.subr.mxu0 0.0
  %2565 = vmatpush1.msra.mxu0 0.0
  %2566 = vmatprep.mubr.f32.mxu0 0.0
  %2567 = vmatmul.mubr.f32.gmra.mrb[0].mxu0 %v2420
  %v2568 = vpop.f32.mrb[0].mxu0
  %v2569 = vadd.f32 %v2378, %v2568
  %v2570 = vpop.f32.mrb[0].mxu0
  %2571 = vmatprep.mubr.f32.mxu0 0.0
  %2572 = vmatmul.mubr.f32.gmra.mrb[0].mxu0 %v2423
  %v2573 = vpop.f32.mrb[0].mxu0
  %v2574 = vadd.f32 %v2383, %v2573
  %v2575 = vpop.f32.mrb[0].mxu0
  %2576 = vdwg.mxu0
  %v2577 = vmul.f32 %v533, 0.0
  %v2578 = vmul.f32 %v2170, %v539
  %v2579 = vmul.f32 %v2171, %v540
  %v2580 = vmul.f32 %v2172, %v537
  %v2581 = vmul.f32 %v2173, %v539
  %v2582 = vmul.f32 %v2174, %v540
  %v2583 = vmul.f32 %v2175, %v537
  %s2584 = scalar_lea.vmem %s5, 32
  %v2585 = vld [vmem:[%s2584] sm:$0xff]
  %v2586 = vld [vmem:[%s2584 + $0x8] sm:$0xff]
  %2594 = vrot.lane.b32.xlu0 %v2577, 8
  %v2595 = vpop.permute.xlu0 %2594
  %2596 = vrot.lane.b32.xlu0 %v2578, 8
  %v2597 = vpop.permute.xlu0 %2596
  %2598 = vrot.lane.b32.xlu0 %v2579, 8
  %v2599 = vpop.permute.xlu0 %2598
  %2600 = vrot.lane.b32.xlu0 %v2580, 8
  %v2601 = vpop.permute.xlu0 %2600
  %2602 = vrot.lane.b32.xlu0 %v2581, 8
  %v2603 = vpop.permute.xlu0 %2602
  %2604 = vrot.lane.b32.xlu0 %v2582, 8
  %v2605 = vpop.permute.xlu0 %2604
  %2606 = vrot.lane.b32.xlu0 %v2583, 8
  %v2607 = vpop.permute.xlu0 %2606
  %v2608 = vsel %vm580, %v2595, %v2597
  %v2609 = vsel %vm580, %v2597, %v2599
  %v2610 = vsel %vm580, %v2599, %v2601
  %v2611 = vsel %vm580, %v2595, %v2603
  %v2612 = vsel %vm580, %v2603, %v2605
  %v2613 = vsel %vm580, %v2605, %v2607
  %v2621 = vsel %vm163, %v2585, 0
  %v2624 = vsel %vm163, %v2586, 0
  %2626 = vmatprep.subr.mxu0 %v2609
  %2627 = vmatpush1.msra.mxu0 %v2608
  %2628 = vmatprep.subr.mxu0 %v2612
  %2629 = vmatpush1.msra.mxu0 %v2611
  %2630 = vmatprep.subr.mxu0 0.0
  %2631 = vmatpush1.msra.mxu0 0.0
  %2632 = vmatprep.subr.mxu0 0.0
  %2633 = vmatpush1.msra.mxu0 0.0
  %2634 = vmatprep.subr.mxu0 0.0
  %2635 = vmatpush1.msra.mxu0 0.0
  %2636 = vmatprep.subr.mxu0 0.0
  %2637 = vmatpush1.msra.mxu0 0.0
  %2638 = vmatprep.subr.mxu0 0.0
  %2639 = vmatpush1.msra.mxu0 0.0
  %2640 = vmatprep.subr.mxu0 0.0
  %2641 = vmatpush1.msra.mxu0 0.0
  %2642 = vmatprep.subr.mxu0 0.0
  %2643 = vmatpush1.msra.mxu0 0.0
  %2644 = vmatprep.subr.mxu0 0.0
  %2645 = vmatpush1.msra.mxu0 0.0
  %2646 = vmatprep.subr.mxu0 0.0
  %2647 = vmatpush1.msra.mxu0 0.0
  %2648 = vmatprep.subr.mxu0 0.0
  %2649 = vmatpush1.msra.mxu0 0.0
  %2650 = vmatprep.subr.mxu0 0.0
  %2651 = vmatpush1.msra.mxu0 0.0
  %2652 = vmatprep.subr.mxu0 0.0
  %2653 = vmatpush1.msra.mxu0 0.0
  %2654 = vmatprep.subr.mxu0 0.0
  %2655 = vmatpush1.msra.mxu0 0.0
  %2656 = vmatprep.subr.mxu0 0.0
  %2657 = vmatpush1.msra.mxu0 0.0
  %2658 = vmatprep.subr.mxu0 0.0
  %2659 = vmatpush1.msra.mxu0 0.0
  %2660 = vmatprep.subr.mxu0 0.0
  %2661 = vmatpush1.msra.mxu0 0.0
  %2662 = vmatprep.subr.mxu0 0.0
  %2663 = vmatpush1.msra.mxu0 0.0
  %2664 = vmatprep.subr.mxu0 0.0
  %2665 = vmatpush1.msra.mxu0 0.0
  %2666 = vmatprep.subr.mxu0 0.0
  %2667 = vmatpush1.msra.mxu0 0.0
  %2668 = vmatprep.subr.mxu0 0.0
  %2669 = vmatpush1.msra.mxu0 0.0
  %2670 = vmatprep.subr.mxu0 0.0
  %2671 = vmatpush1.msra.mxu0 0.0
  %2672 = vmatprep.subr.mxu0 0.0
  %2673 = vmatpush1.msra.mxu0 0.0
  %2674 = vmatprep.subr.mxu0 0.0
  %2675 = vmatpush1.msra.mxu0 0.0
  %2676 = vmatprep.subr.mxu0 0.0
  %2677 = vmatpush1.msra.mxu0 0.0
  %2678 = vmatprep.subr.mxu0 0.0
  %2679 = vmatpush1.msra.mxu0 0.0
  %2680 = vmatprep.subr.mxu0 0.0
  %2681 = vmatpush1.msra.mxu0 0.0
  %2682 = vmatprep.subr.mxu0 0.0
  %2683 = vmatpush1.msra.mxu0 0.0
  %2684 = vmatprep.subr.mxu0 0.0
  %2685 = vmatpush1.msra.mxu0 0.0
  %2686 = vmatprep.subr.mxu0 0.0
  %2687 = vmatpush1.msra.mxu0 0.0
  %2688 = vmatprep.subr.mxu0 0.0
  %2689 = vmatpush1.msra.mxu0 0.0
  %2690 = vmatprep.mubr.f32.mxu0 0.0
  %2691 = vmatmul.mubr.f32.gmra.mrb[0].mxu0 %v2621
  %v2692 = vpop.f32.mrb[0].mxu0
  %v2693 = vadd.f32 0.0, %v2692
  %v2694 = vpop.f32.mrb[0].mxu0
  %v2695 = vadd.f32 0.0, %v2694
  %2696 = vmatprep.mubr.f32.mxu0 0.0
  %2697 = vmatmul.mubr.f32.gmra.mrb[0].mxu0 %v2624
  %v2698 = vpop.f32.mrb[0].mxu0
  %v2699 = vadd.f32 0.0, %v2698
  %v2700 = vpop.f32.mrb[0].mxu0
  %v2701 = vadd.f32 0.0, %v2700
  %2702 = vdwg.mxu0
  %2703 = vmatprep.subr.mxu0 0.0
  %2704 = vmatpush1.msra.mxu0 %v2610
  %2705 = vmatprep.subr.mxu0 0.0
  %2706 = vmatpush1.msra.mxu0 %v2613
  %2707 = vmatprep.subr.mxu0 0.0
  %2708 = vmatpush1.msra.mxu0 0.0
  %2709 = vmatprep.subr.mxu0 0.0
  %2710 = vmatpush1.msra.mxu0 0.0
  %2711 = vmatprep.subr.mxu0 0.0
  %2712 = vmatpush1.msra.mxu0 0.0
  %2713 = vmatprep.subr.mxu0 0.0
  %2714 = vmatpush1.msra.mxu0 0.0
  %2715 = vmatprep.subr.mxu0 0.0
  %2716 = vmatpush1.msra.mxu0 0.0
  %2717 = vmatprep.subr.mxu0 0.0
  %2718 = vmatpush1.msra.mxu0 0.0
  %2719 = vmatprep.subr.mxu0 0.0
  %2720 = vmatpush1.msra.mxu0 0.0
  %2721 = vmatprep.subr.mxu0 0.0
  %2722 = vmatpush1.msra.mxu0 0.0
  %2723 = vmatprep.subr.mxu0 0.0
  %2724 = vmatpush1.msra.mxu0 0.0
  %2725 = vmatprep.subr.mxu0 0.0
  %2726 = vmatpush1.msra.mxu0 0.0
  %2727 = vmatprep.subr.mxu0 0.0
  %2728 = vmatpush1.msra.mxu0 0.0
  %2729 = vmatprep.subr.mxu0 0.0
  %2730 = vmatpush1.msra.mxu0 0.0
  %2731 = vmatprep.subr.mxu0 0.0
  %2732 = vmatpush1.msra.mxu0 0.0
  %2733 = vmatprep.subr.mxu0 0.0
  %2734 = vmatpush1.msra.mxu0 0.0
  %2735 = vmatprep.subr.mxu0 0.0
  %2736 = vmatpush1.msra.mxu0 0.0
  %2737 = vmatprep.subr.mxu0 0.0
  %2738 = vmatpush1.msra.mxu0 0.0
  %2739 = vmatprep.subr.mxu0 0.0
  %2740 = vmatpush1.msra.mxu0 0.0
  %2741 = vmatprep.subr.mxu0 0.0
  %2742 = vmatpush1.msra.mxu0 0.0
  %2743 = vmatprep.subr.mxu0 0.0
  %2744 = vmatpush1.msra.mxu0 0.0
  %2745 = vmatprep.subr.mxu0 0.0
  %2746 = vmatpush1.msra.mxu0 0.0
  %2747 = vmatprep.subr.mxu0 0.0
  %2748 = vmatpush1.msra.mxu0 0.0
  %2749 = vmatprep.subr.mxu0 0.0
  %2750 = vmatpush1.msra.mxu0 0.0
  %2751 = vmatprep.subr.mxu0 0.0
  %2752 = vmatpush1.msra.mxu0 0.0
  %2753 = vmatprep.subr.mxu0 0.0
  %2754 = vmatpush1.msra.mxu0 0.0
  %2755 = vmatprep.subr.mxu0 0.0
  %2756 = vmatpush1.msra.mxu0 0.0
  %2757 = vmatprep.subr.mxu0 0.0
  %2758 = vmatpush1.msra.mxu0 0.0
  %2759 = vmatprep.subr.mxu0 0.0
  %2760 = vmatpush1.msra.mxu0 0.0
  %2761 = vmatprep.subr.mxu0 0.0
  %2762 = vmatpush1.msra.mxu0 0.0
  %2763 = vmatprep.subr.mxu0 0.0
  %2764 = vmatpush1.msra.mxu0 0.0
  %2765 = vmatprep.subr.mxu0 0.0
  %2766 = vmatpush1.msra.mxu0 0.0
  %2767 = vmatprep.mubr.f32.mxu0 0.0
  %2768 = vmatmul.mubr.f32.gmra.mrb[0].mxu0 %v2621
  %v2769 = vpop.f32.mrb[0].mxu0
  %v2770 = vadd.f32 0.0, %v2769
  %v2771 = vpop.f32.mrb[0].mxu0
  %2772 = vmatprep.mubr.f32.mxu0 0.0
  %2773 = vmatmul.mubr.f32.gmra.mrb[0].mxu0 %v2624
  %v2774 = vpop.f32.mrb[0].mxu0
  %v2775 = vadd.f32 0.0, %v2774
  %v2776 = vpop.f32.mrb[0].mxu0
  %2777 = vdwg.mxu0
  %v2778 = vadd.f32 %v2492, %v2693
  %v2779 = vadd.f32 %v2494, %v2695
  %v2780 = vadd.f32 %v2569, %v2770
  %v2781 = vadd.f32 %v2498, %v2699
  %v2782 = vadd.f32 %v2500, %v2701
  %v2783 = vadd.f32 %v2574, %v2775
  %v2784 = vmul.f32 %v773, 0.0
  %v2785 = vmul.f32 %v2170, %v779
  %v2786 = vmul.f32 %v2171, %v780
  %v2787 = vmul.f32 %v2172, %v777
  %v2788 = vmul.f32 %v2173, %v779
  %v2789 = vmul.f32 %v2174, %v780
  %v2790 = vmul.f32 %v2175, %v777
  %s2791 = scalar_lea.vmem %s5, 48
  %v2792 = vld [vmem:[%s2791] sm:$0xff]
  %v2793 = vld [vmem:[%s2791 + $0x8] sm:$0xff]
  %2801 = vrot.lane.b32.xlu0 %v2784, 1
  %v2802 = vpop.permute.xlu0 %2801
  %2803 = vrot.lane.b32.xlu0 %v2785, 1
  %v2804 = vpop.permute.xlu0 %2803
  %2805 = vrot.lane.b32.xlu0 %v2786, 1
  %v2806 = vpop.permute.xlu0 %2805
  %2807 = vrot.lane.b32.xlu0 %v2787, 1
  %v2808 = vpop.permute.xlu0 %2807
  %2809 = vrot.lane.b32.xlu0 %v2788, 1
  %v2810 = vpop.permute.xlu0 %2809
  %2811 = vrot.lane.b32.xlu0 %v2789, 1
  %v2812 = vpop.permute.xlu0 %2811
  %2813 = vrot.lane.b32.xlu0 %v2790, 1
  %v2814 = vpop.permute.xlu0 %2813
  %v2815 = vsel %vm820, %v2802, %v2804
  %v2816 = vsel %vm820, %v2804, %v2806
  %v2817 = vsel %vm820, %v2806, %v2808
  %v2818 = vsel %vm820, %v2802, %v2810
  %v2819 = vsel %vm820, %v2810, %v2812
  %v2820 = vsel %vm820, %v2812, %v2814
  %v2828 = vsel %vm163, %v2792, 0
  %v2831 = vsel %vm163, %v2793, 0
  %2833 = vmatprep.subr.mxu0 %v2816
  %2834 = vmatpush1.msra.mxu0 %v2815
  %2835 = vmatprep.subr.mxu0 %v2819
  %2836 = vmatpush1.msra.mxu0 %v2818
  %2837 = vmatprep.subr.mxu0 0.0
  %2838 = vmatpush1.msra.mxu0 0.0
  %2839 = vmatprep.subr.mxu0 0.0
  %2840 = vmatpush1.msra.mxu0 0.0
  %2841 = vmatprep.subr.mxu0 0.0
  %2842 = vmatpush1.msra.mxu0 0.0
  %2843 = vmatprep.subr.mxu0 0.0
  %2844 = vmatpush1.msra.mxu0 0.0
  %2845 = vmatprep.subr.mxu0 0.0
  %2846 = vmatpush1.msra.mxu0 0.0
  %2847 = vmatprep.subr.mxu0 0.0
  %2848 = vmatpush1.msra.mxu0 0.0
  %2849 = vmatprep.subr.mxu0 0.0
  %2850 = vmatpush1.msra.mxu0 0.0
  %2851 = vmatprep.subr.mxu0 0.0
  %2852 = vmatpush1.msra.mxu0 0.0
  %2853 = vmatprep.subr.mxu0 0.0
  %2854 = vmatpush1.msra.mxu0 0.0
  %2855 = vmatprep.subr.mxu0 0.0
  %2856 = vmatpush1.msra.mxu0 0.0
  %2857 = vmatprep.subr.mxu0 0.0
  %2858 = vmatpush1.msra.mxu0 0.0
  %2859 = vmatprep.subr.mxu0 0.0
  %2860 = vmatpush1.msra.mxu0 0.0
  %2861 = vmatprep.subr.mxu0 0.0
  %2862 = vmatpush1.msra.mxu0 0.0
  %2863 = vmatprep.subr.mxu0 0.0
  %2864 = vmatpush1.msra.mxu0 0.0
  %2865 = vmatprep.subr.mxu0 0.0
  %2866 = vmatpush1.msra.mxu0 0.0
  %2867 = vmatprep.subr.mxu0 0.0
  %2868 = vmatpush1.msra.mxu0 0.0
  %2869 = vmatprep.subr.mxu0 0.0
  %2870 = vmatpush1.msra.mxu0 0.0
  %2871 = vmatprep.subr.mxu0 0.0
  %2872 = vmatpush1.msra.mxu0 0.0
  %2873 = vmatprep.subr.mxu0 0.0
  %2874 = vmatpush1.msra.mxu0 0.0
  %2875 = vmatprep.subr.mxu0 0.0
  %2876 = vmatpush1.msra.mxu0 0.0
  %2877 = vmatprep.subr.mxu0 0.0
  %2878 = vmatpush1.msra.mxu0 0.0
  %2879 = vmatprep.subr.mxu0 0.0
  %2880 = vmatpush1.msra.mxu0 0.0
  %2881 = vmatprep.subr.mxu0 0.0
  %2882 = vmatpush1.msra.mxu0 0.0
  %2883 = vmatprep.subr.mxu0 0.0
  %2884 = vmatpush1.msra.mxu0 0.0
  %2885 = vmatprep.subr.mxu0 0.0
  %2886 = vmatpush1.msra.mxu0 0.0
  %2887 = vmatprep.subr.mxu0 0.0
  %2888 = vmatpush1.msra.mxu0 0.0
  %2889 = vmatprep.subr.mxu0 0.0
  %2890 = vmatpush1.msra.mxu0 0.0
  %2891 = vmatprep.subr.mxu0 0.0
  %2892 = vmatpush1.msra.mxu0 0.0
  %2893 = vmatprep.subr.mxu0 0.0
  %2894 = vmatpush1.msra.mxu0 0.0
  %2895 = vmatprep.subr.mxu0 0.0
  %2896 = vmatpush1.msra.mxu0 0.0
  %2897 = vmatprep.mubr.f32.mxu0 0.0
  %2898 = vmatmul.mubr.f32.gmra.mrb[0].mxu0 %v2828
  %v2899 = vpop.f32.mrb[0].mxu0
  %v2900 = vadd.f32 0.0, %v2899
  %v2901 = vpop.f32.mrb[0].mxu0
  %v2902 = vadd.f32 0.0, %v2901
  %2903 = vmatprep.mubr.f32.mxu0 0.0
  %2904 = vmatmul.mubr.f32.gmra.mrb[0].mxu0 %v2831
  %v2905 = vpop.f32.mrb[0].mxu0
  %v2906 = vadd.f32 0.0, %v2905
  %v2907 = vpop.f32.mrb[0].mxu0
  %v2908 = vadd.f32 0.0, %v2907
  %2909 = vdwg.mxu0
  %2910 = vmatprep.subr.mxu0 0.0
  %2911 = vmatpush1.msra.mxu0 %v2817
  %2912 = vmatprep.subr.mxu0 0.0
  %2913 = vmatpush1.msra.mxu0 %v2820
  %2914 = vmatprep.subr.mxu0 0.0
  %2915 = vmatpush1.msra.mxu0 0.0
  %2916 = vmatprep.subr.mxu0 0.0
  %2917 = vmatpush1.msra.mxu0 0.0
  %2918 = vmatprep.subr.mxu0 0.0
  %2919 = vmatpush1.msra.mxu0 0.0
  %2920 = vmatprep.subr.mxu0 0.0
  %2921 = vmatpush1.msra.mxu0 0.0
  %2922 = vmatprep.subr.mxu0 0.0
  %2923 = vmatpush1.msra.mxu0 0.0
  %2924 = vmatprep.subr.mxu0 0.0
  %2925 = vmatpush1.msra.mxu0 0.0
  %2926 = vmatprep.subr.mxu0 0.0
  %2927 = vmatpush1.msra.mxu0 0.0
  %2928 = vmatprep.subr.mxu0 0.0
  %2929 = vmatpush1.msra.mxu0 0.0
  %2930 = vmatprep.subr.mxu0 0.0
  %2931 = vmatpush1.msra.mxu0 0.0
  %2932 = vmatprep.subr.mxu0 0.0
  %2933 = vmatpush1.msra.mxu0 0.0
  %2934 = vmatprep.subr.mxu0 0.0
  %2935 = vmatpush1.msra.mxu0 0.0
  %2936 = vmatprep.subr.mxu0 0.0
  %2937 = vmatpush1.msra.mxu0 0.0
  %2938 = vmatprep.subr.mxu0 0.0
  %2939 = vmatpush1.msra.mxu0 0.0
  %2940 = vmatprep.subr.mxu0 0.0
  %2941 = vmatpush1.msra.mxu0 0.0
  %2942 = vmatprep.subr.mxu0 0.0
  %2943 = vmatpush1.msra.mxu0 0.0
  %2944 = vmatprep.subr.mxu0 0.0
  %2945 = vmatpush1.msra.mxu0 0.0
  %2946 = vmatprep.subr.mxu0 0.0
  %2947 = vmatpush1.msra.mxu0 0.0
  %2948 = vmatprep.subr.mxu0 0.0
  %2949 = vmatpush1.msra.mxu0 0.0
  %2950 = vmatprep.subr.mxu0 0.0
  %2951 = vmatpush1.msra.mxu0 0.0
  %2952 = vmatprep.subr.mxu0 0.0
  %2953 = vmatpush1.msra.mxu0 0.0
  %2954 = vmatprep.subr.mxu0 0.0
  %2955 = vmatpush1.msra.mxu0 0.0
  %2956 = vmatprep.subr.mxu0 0.0
  %2957 = vmatpush1.msra.mxu0 0.0
  %2958 = vmatprep.subr.mxu0 0.0
  %2959 = vmatpush1.msra.mxu0 0.0
  %2960 = vmatprep.subr.mxu0 0.0
  %2961 = vmatpush1.msra.mxu0 0.0
  %2962 = vmatprep.subr.mxu0 0.0
  %2963 = vmatpush1.msra.mxu0 0.0
  %2964 = vmatprep.subr.mxu0 0.0
  %2965 = vmatpush1.msra.mxu0 0.0
  %2966 = vmatprep.subr.mxu0 0.0
  %2967 = vmatpush1.msra.mxu0 0.0
  %2968 = vmatprep.subr.mxu0 0.0
  %2969 = vmatpush1.msra.mxu0 0.0
  %2970 = vmatprep.subr.mxu0 0.0
  %2971 = vmatpush1.msra.mxu0 0.0
  %2972 = vmatprep.subr.mxu0 0.0
  %2973 = vmatpush1.msra.mxu0 0.0
  %2974 = vmatprep.mubr.f32.mxu0 0.0
  %2975 = vmatmul.mubr.f32.gmra.mrb[0].mxu0 %v2828
  %v2976 = vpop.f32.mrb[0].mxu0
  %v2977 = vadd.f32 0.0, %v2976
  %v2978 = vpop.f32.mrb[0].mxu0
  %2979 = vmatprep.mubr.f32.mxu0 0.0
  %2980 = vmatmul.mubr.f32.gmra.mrb[0].mxu0 %v2831
  %v2981 = vpop.f32.mrb[0].mxu0
  %v2982 = vadd.f32 0.0, %v2981
  %v2983 = vpop.f32.mrb[0].mxu0
  %2984 = vdwg.mxu0
  %v2985 = vadd.f32 %v2778, %v2900
  %v2986 = vadd.f32 %v2779, %v2902
  %v2987 = vadd.f32 %v2780, %v2977
  %v2988 = vadd.f32 %v2781, %v2906
  %v2989 = vadd.f32 %v2782, %v2908
  %v2990 = vadd.f32 %v2783, %v2982
  %v2991 = vmul.f32 %v2170, %v1003
  %v2992 = vmul.f32 %v2171, %v1007
  %v2993 = vmul.f32 %v2172, %v1011
  %v2994 = vmul.f32 %v2173, %v1003
  %v2995 = vmul.f32 %v2174, %v1007
  %v2996 = vmul.f32 %v2175, %v1011
  %s2997 = scalar_lea.vmem %s5, 64
  %v2998 = vld [vmem:[%s2997] sm:$0xff]
  %v2999 = vld [vmem:[%s2997 + $0x8] sm:$0xff]
  %v3001 = vsel %vm163, %v2998, 0
  %v3004 = vsel %vm163, %v2999, 0
  %3006 = vmatprep.subr.mxu0 %v2992
  %3007 = vmatpush1.msra.mxu0 %v2991
  %3008 = vmatprep.subr.mxu0 %v2995
  %3009 = vmatpush1.msra.mxu0 %v2994
  %3010 = vmatprep.subr.mxu0 0.0
  %3011 = vmatpush1.msra.mxu0 0.0
  %3012 = vmatprep.subr.mxu0 0.0
  %3013 = vmatpush1.msra.mxu0 0.0
  %3014 = vmatprep.subr.mxu0 0.0
  %3015 = vmatpush1.msra.mxu0 0.0
  %3016 = vmatprep.subr.mxu0 0.0
  %3017 = vmatpush1.msra.mxu0 0.0
  %3018 = vmatprep.subr.mxu0 0.0
  %3019 = vmatpush1.msra.mxu0 0.0
  %3020 = vmatprep.subr.mxu0 0.0
  %3021 = vmatpush1.msra.mxu0 0.0
  %3022 = vmatprep.subr.mxu0 0.0
  %3023 = vmatpush1.msra.mxu0 0.0
  %3024 = vmatprep.subr.mxu0 0.0
  %3025 = vmatpush1.msra.mxu0 0.0
  %3026 = vmatprep.subr.mxu0 0.0
  %3027 = vmatpush1.msra.mxu0 0.0
  %3028 = vmatprep.subr.mxu0 0.0
  %3029 = vmatpush1.msra.mxu0 0.0
  %3030 = vmatprep.subr.mxu0 0.0
  %3031 = vmatpush1.msra.mxu0 0.0
  %3032 = vmatprep.subr.mxu0 0.0
  %3033 = vmatpush1.msra.mxu0 0.0
  %3034 = vmatprep.subr.mxu0 0.0
  %3035 = vmatpush1.msra.mxu0 0.0
  %3036 = vmatprep.subr.mxu0 0.0
  %3037 = vmatpush1.msra.mxu0 0.0
  %3038 = vmatprep.subr.mxu0 0.0
  %3039 = vmatpush1.msra.mxu0 0.0
  %3040 = vmatprep.subr.mxu0 0.0
  %3041 = vmatpush1.msra.mxu0 0.0
  %3042 = vmatprep.subr.mxu0 0.0
  %3043 = vmatpush1.msra.mxu0 0.0
  %3044 = vmatprep.subr.mxu0 0.0
  %3045 = vmatpush1.msra.mxu0 0.0
  %3046 = vmatprep.subr.mxu0 0.0
  %3047 = vmatpush1.msra.mxu0 0.0
  %3048 = vmatprep.subr.mxu0 0.0
  %3049 = vmatpush1.msra.mxu0 0.0
  %3050 = vmatprep.subr.mxu0 0.0
  %3051 = vmatpush1.msra.mxu0 0.0
  %3052 = vmatprep.subr.mxu0 0.0
  %3053 = vmatpush1.msra.mxu0 0.0
  %3054 = vmatprep.subr.mxu0 0.0
  %3055 = vmatpush1.msra.mxu0 0.0
  %3056 = vmatprep.subr.mxu0 0.0
  %3057 = vmatpush1.msra.mxu0 0.0
  %3058 = vmatprep.subr.mxu0 0.0
  %3059 = vmatpush1.msra.mxu0 0.0
  %3060 = vmatprep.subr.mxu0 0.0
  %3061 = vmatpush1.msra.mxu0 0.0
  %3062 = vmatprep.subr.mxu0 0.0
  %3063 = vmatpush1.msra.mxu0 0.0
  %3064 = vmatprep.subr.mxu0 0.0
  %3065 = vmatpush1.msra.mxu0 0.0
  %3066 = vmatprep.subr.mxu0 0.0
  %3067 = vmatpush1.msra.mxu0 0.0
  %3068 = vmatprep.subr.mxu0 0.0
  %3069 = vmatpush1.msra.mxu0 0.0
  %3070 = vmatprep.mubr.f32.mxu0 0.0
  %3071 = vmatmul.mubr.f32.gmra.mrb[0].mxu0 %v3001
  %v3072 = vpop.f32.mrb[0].mxu0
  %v3073 = vadd.f32 0.0, %v3072
  %v3074 = vpop.f32.mrb[0].mxu0
  %v3075 = vadd.f32 0.0, %v3074
  %3076 = vmatprep.mubr.f32.mxu0 0.0
  %3077 = vmatmul.mubr.f32.gmra.mrb[0].mxu0 %v3004
  %v3078 = vpop.f32.mrb[0].mxu0
  %v3079 = vadd.f32 0.0, %v3078
  %v3080 = vpop.f32.mrb[0].mxu0
  %v3081 = vadd.f32 0.0, %v3080
  %3082 = vdwg.mxu0
  %3083 = vmatprep.subr.mxu0 0.0
  %3084 = vmatpush1.msra.mxu0 %v2993
  %3085 = vmatprep.subr.mxu0 0.0
  %3086 = vmatpush1.msra.mxu0 %v2996
  %3087 = vmatprep.subr.mxu0 0.0
  %3088 = vmatpush1.msra.mxu0 0.0
  %3089 = vmatprep.subr.mxu0 0.0
  %3090 = vmatpush1.msra.mxu0 0.0
  %3091 = vmatprep.subr.mxu0 0.0
  %3092 = vmatpush1.msra.mxu0 0.0
  %3093 = vmatprep.subr.mxu0 0.0
  %3094 = vmatpush1.msra.mxu0 0.0
  %3095 = vmatprep.subr.mxu0 0.0
  %3096 = vmatpush1.msra.mxu0 0.0
  %3097 = vmatprep.subr.mxu0 0.0
  %3098 = vmatpush1.msra.mxu0 0.0
  %3099 = vmatprep.subr.mxu0 0.0
  %3100 = vmatpush1.msra.mxu0 0.0
  %3101 = vmatprep.subr.mxu0 0.0
  %3102 = vmatpush1.msra.mxu0 0.0
  %3103 = vmatprep.subr.mxu0 0.0
  %3104 = vmatpush1.msra.mxu0 0.0
  %3105 = vmatprep.subr.mxu0 0.0
  %3106 = vmatpush1.msra.mxu0 0.0
  %3107 = vmatprep.subr.mxu0 0.0
  %3108 = vmatpush1.msra.mxu0 0.0
  %3109 = vmatprep.subr.mxu0 0.0
  %3110 = vmatpush1.msra.mxu0 0.0
  %3111 = vmatprep.subr.mxu0 0.0
  %3112 = vmatpush1.msra.mxu0 0.0
  %3113 = vmatprep.subr.mxu0 0.0
  %3114 = vmatpush1.msra.mxu0 0.0
  %3115 = vmatprep.subr.mxu0 0.0
  %3116 = vmatpush1.msra.mxu0 0.0
  %3117 = vmatprep.subr.mxu0 0.0
  %3118 = vmatpush1.msra.mxu0 0.0
  %3119 = vmatprep.subr.mxu0 0.0
  %3120 = vmatpush1.msra.mxu0 0.0
  %3121 = vmatprep.subr.mxu0 0.0
  %3122 = vmatpush1.msra.mxu0 0.0
  %3123 = vmatprep.subr.mxu0 0.0
  %3124 = vmatpush1.msra.mxu0 0.0
  %3125 = vmatprep.subr.mxu0 0.0
  %3126 = vmatpush1.msra.mxu0 0.0
  %3127 = vmatprep.subr.mxu0 0.0
  %3128 = vmatpush1.msra.mxu0 0.0
  %3129 = vmatprep.subr.mxu0 0.0
  %3130 = vmatpush1.msra.mxu0 0.0
  %3131 = vmatprep.subr.mxu0 0.0
  %3132 = vmatpush1.msra.mxu0 0.0
  %3133 = vmatprep.subr.mxu0 0.0
  %3134 = vmatpush1.msra.mxu0 0.0
  %3135 = vmatprep.subr.mxu0 0.0
  %3136 = vmatpush1.msra.mxu0 0.0
  %3137 = vmatprep.subr.mxu0 0.0
  %3138 = vmatpush1.msra.mxu0 0.0
  %3139 = vmatprep.subr.mxu0 0.0
  %3140 = vmatpush1.msra.mxu0 0.0
  %3141 = vmatprep.subr.mxu0 0.0
  %3142 = vmatpush1.msra.mxu0 0.0
  %3143 = vmatprep.subr.mxu0 0.0
  %3144 = vmatpush1.msra.mxu0 0.0
  %3145 = vmatprep.subr.mxu0 0.0
  %3146 = vmatpush1.msra.mxu0 0.0
  %3147 = vmatprep.mubr.f32.mxu0 0.0
  %3148 = vmatmul.mubr.f32.gmra.mrb[0].mxu0 %v3001
  %v3149 = vpop.f32.mrb[0].mxu0
  %v3150 = vadd.f32 0.0, %v3149
  %v3151 = vpop.f32.mrb[0].mxu0
  %3152 = vmatprep.mubr.f32.mxu0 0.0
  %3153 = vmatmul.mubr.f32.gmra.mrb[0].mxu0 %v3004
  %v3154 = vpop.f32.mrb[0].mxu0
  %v3155 = vadd.f32 0.0, %v3154
  %v3156 = vpop.f32.mrb[0].mxu0
  %3157 = vdwg.mxu0
  %v3158 = vadd.f32 %v2985, %v3073
  %v3159 = vadd.f32 %v2986, %v3075
  %v3160 = vadd.f32 %v2987, %v3150
  %v3161 = vadd.f32 %v2988, %v3079
  %v3162 = vadd.f32 %v2989, %v3081
  %v3163 = vadd.f32 %v2990, %v3155
  %v3164 = vmul.f32 %v2170, %v1204
  %v3165 = vmul.f32 %v2171, %v1209
  %v3166 = vmul.f32 %v2172, %v1210
  %v3167 = vmul.f32 %v1208, 0.0
  %v3168 = vmul.f32 %v2173, %v1204
  %v3169 = vmul.f32 %v2174, %v1209
  %v3170 = vmul.f32 %v2175, %v1210
  %s3171 = scalar_lea.vmem %s5, 80
  %v3172 = vld [vmem:[%s3171] sm:$0xff]
  %v3173 = vld [vmem:[%s3171 + $0x8] sm:$0xff]
  %3181 = vrot.lane.b32.xlu0 %v3164, 127
  %v3182 = vpop.permute.xlu0 %3181
  %3183 = vrot.lane.b32.xlu0 %v3165, 127
  %v3184 = vpop.permute.xlu0 %3183
  %3185 = vrot.lane.b32.xlu0 %v3166, 127
  %v3186 = vpop.permute.xlu0 %3185
  %3187 = vrot.lane.b32.xlu0 %v3167, 127
  %v3188 = vpop.permute.xlu0 %3187
  %3189 = vrot.lane.b32.xlu0 %v3168, 127
  %v3190 = vpop.permute.xlu0 %3189
  %3191 = vrot.lane.b32.xlu0 %v3169, 127
  %v3192 = vpop.permute.xlu0 %3191
  %3193 = vrot.lane.b32.xlu0 %v3170, 127
  %v3194 = vpop.permute.xlu0 %3193
  %v3195 = vsel %vm778, %v3182, %v3184
  %v3196 = vsel %vm778, %v3184, %v3186
  %v3197 = vsel %vm778, %v3186, %v3188
  %v3198 = vsel %vm778, %v3190, %v3192
  %v3199 = vsel %vm778, %v3192, %v3194
  %v3200 = vsel %vm778, %v3194, %v3188
  %v3208 = vsel %vm163, %v3172, 0
  %v3211 = vsel %vm163, %v3173, 0
  %3213 = vmatprep.subr.mxu0 %v3196
  %3214 = vmatpush1.msra.mxu0 %v3195
  %3215 = vmatprep.subr.mxu0 %v3199
  %3216 = vmatpush1.msra.mxu0 %v3198
  %3217 = vmatprep.subr.mxu0 0.0
  %3218 = vmatpush1.msra.mxu0 0.0
  %3219 = vmatprep.subr.mxu0 0.0
  %3220 = vmatpush1.msra.mxu0 0.0
  %3221 = vmatprep.subr.mxu0 0.0
  %3222 = vmatpush1.msra.mxu0 0.0
  %3223 = vmatprep.subr.mxu0 0.0
  %3224 = vmatpush1.msra.mxu0 0.0
  %3225 = vmatprep.subr.mxu0 0.0
  %3226 = vmatpush1.msra.mxu0 0.0
  %3227 = vmatprep.subr.mxu0 0.0
  %3228 = vmatpush1.msra.mxu0 0.0
  %3229 = vmatprep.subr.mxu0 0.0
  %3230 = vmatpush1.msra.mxu0 0.0
  %3231 = vmatprep.subr.mxu0 0.0
  %3232 = vmatpush1.msra.mxu0 0.0
  %3233 = vmatprep.subr.mxu0 0.0
  %3234 = vmatpush1.msra.mxu0 0.0
  %3235 = vmatprep.subr.mxu0 0.0
  %3236 = vmatpush1.msra.mxu0 0.0
  %3237 = vmatprep.subr.mxu0 0.0
  %3238 = vmatpush1.msra.mxu0 0.0
  %3239 = vmatprep.subr.mxu0 0.0
  %3240 = vmatpush1.msra.mxu0 0.0
  %3241 = vmatprep.subr.mxu0 0.0
  %3242 = vmatpush1.msra.mxu0 0.0
  %3243 = vmatprep.subr.mxu0 0.0
  %3244 = vmatpush1.msra.mxu0 0.0
  %3245 = vmatprep.subr.mxu0 0.0
  %3246 = vmatpush1.msra.mxu0 0.0
  %3247 = vmatprep.subr.mxu0 0.0
  %3248 = vmatpush1.msra.mxu0 0.0
  %3249 = vmatprep.subr.mxu0 0.0
  %3250 = vmatpush1.msra.mxu0 0.0
  %3251 = vmatprep.subr.mxu0 0.0
  %3252 = vmatpush1.msra.mxu0 0.0
  %3253 = vmatprep.subr.mxu0 0.0
  %3254 = vmatpush1.msra.mxu0 0.0
  %3255 = vmatprep.subr.mxu0 0.0
  %3256 = vmatpush1.msra.mxu0 0.0
  %3257 = vmatprep.subr.mxu0 0.0
  %3258 = vmatpush1.msra.mxu0 0.0
  %3259 = vmatprep.subr.mxu0 0.0
  %3260 = vmatpush1.msra.mxu0 0.0
  %3261 = vmatprep.subr.mxu0 0.0
  %3262 = vmatpush1.msra.mxu0 0.0
  %3263 = vmatprep.subr.mxu0 0.0
  %3264 = vmatpush1.msra.mxu0 0.0
  %3265 = vmatprep.subr.mxu0 0.0
  %3266 = vmatpush1.msra.mxu0 0.0
  %3267 = vmatprep.subr.mxu0 0.0
  %3268 = vmatpush1.msra.mxu0 0.0
  %3269 = vmatprep.subr.mxu0 0.0
  %3270 = vmatpush1.msra.mxu0 0.0
  %3271 = vmatprep.subr.mxu0 0.0
  %3272 = vmatpush1.msra.mxu0 0.0
  %3273 = vmatprep.subr.mxu0 0.0
  %3274 = vmatpush1.msra.mxu0 0.0
  %3275 = vmatprep.subr.mxu0 0.0
  %3276 = vmatpush1.msra.mxu0 0.0
  %3277 = vmatprep.mubr.f32.mxu0 0.0
  %3278 = vmatmul.mubr.f32.gmra.mrb[0].mxu0 %v3208
  %v3279 = vpop.f32.mrb[0].mxu0
  %v3280 = vadd.f32 0.0, %v3279
  %v3281 = vpop.f32.mrb[0].mxu0
  %v3282 = vadd.f32 0.0, %v3281
  %3283 = vmatprep.mubr.f32.mxu0 0.0
  %3284 = vmatmul.mubr.f32.gmra.mrb[0].mxu0 %v3211
  %v3285 = vpop.f32.mrb[0].mxu0
  %v3286 = vadd.f32 0.0, %v3285
  %v3287 = vpop.f32.mrb[0].mxu0
  %v3288 = vadd.f32 0.0, %v3287
  %3289 = vdwg.mxu0
  %3290 = vmatprep.subr.mxu0 0.0
  %3291 = vmatpush1.msra.mxu0 %v3197
  %3292 = vmatprep.subr.mxu0 0.0
  %3293 = vmatpush1.msra.mxu0 %v3200
  %3294 = vmatprep.subr.mxu0 0.0
  %3295 = vmatpush1.msra.mxu0 0.0
  %3296 = vmatprep.subr.mxu0 0.0
  %3297 = vmatpush1.msra.mxu0 0.0
  %3298 = vmatprep.subr.mxu0 0.0
  %3299 = vmatpush1.msra.mxu0 0.0
  %3300 = vmatprep.subr.mxu0 0.0
  %3301 = vmatpush1.msra.mxu0 0.0
  %3302 = vmatprep.subr.mxu0 0.0
  %3303 = vmatpush1.msra.mxu0 0.0
  %3304 = vmatprep.subr.mxu0 0.0
  %3305 = vmatpush1.msra.mxu0 0.0
  %3306 = vmatprep.subr.mxu0 0.0
  %3307 = vmatpush1.msra.mxu0 0.0
  %3308 = vmatprep.subr.mxu0 0.0
  %3309 = vmatpush1.msra.mxu0 0.0
  %3310 = vmatprep.subr.mxu0 0.0
  %3311 = vmatpush1.msra.mxu0 0.0
  %3312 = vmatprep.subr.mxu0 0.0
  %3313 = vmatpush1.msra.mxu0 0.0
  %3314 = vmatprep.subr.mxu0 0.0
  %3315 = vmatpush1.msra.mxu0 0.0
  %3316 = vmatprep.subr.mxu0 0.0
  %3317 = vmatpush1.msra.mxu0 0.0
  %3318 = vmatprep.subr.mxu0 0.0
  %3319 = vmatpush1.msra.mxu0 0.0
  %3320 = vmatprep.subr.mxu0 0.0
  %3321 = vmatpush1.msra.mxu0 0.0
  %3322 = vmatprep.subr.mxu0 0.0
  %3323 = vmatpush1.msra.mxu0 0.0
  %3324 = vmatprep.subr.mxu0 0.0
  %3325 = vmatpush1.msra.mxu0 0.0
  %3326 = vmatprep.subr.mxu0 0.0
  %3327 = vmatpush1.msra.mxu0 0.0
  %3328 = vmatprep.subr.mxu0 0.0
  %3329 = vmatpush1.msra.mxu0 0.0
  %3330 = vmatprep.subr.mxu0 0.0
  %3331 = vmatpush1.msra.mxu0 0.0
  %3332 = vmatprep.subr.mxu0 0.0
  %3333 = vmatpush1.msra.mxu0 0.0
  %3334 = vmatprep.subr.mxu0 0.0
  %3335 = vmatpush1.msra.mxu0 0.0
  %3336 = vmatprep.subr.mxu0 0.0
  %3337 = vmatpush1.msra.mxu0 0.0
  %3338 = vmatprep.subr.mxu0 0.0
  %3339 = vmatpush1.msra.mxu0 0.0
  %3340 = vmatprep.subr.mxu0 0.0
  %3341 = vmatpush1.msra.mxu0 0.0
  %3342 = vmatprep.subr.mxu0 0.0
  %3343 = vmatpush1.msra.mxu0 0.0
  %3344 = vmatprep.subr.mxu0 0.0
  %3345 = vmatpush1.msra.mxu0 0.0
  %3346 = vmatprep.subr.mxu0 0.0
  %3347 = vmatpush1.msra.mxu0 0.0
  %3348 = vmatprep.subr.mxu0 0.0
  %3349 = vmatpush1.msra.mxu0 0.0
  %3350 = vmatprep.subr.mxu0 0.0
  %3351 = vmatpush1.msra.mxu0 0.0
  %3352 = vmatprep.subr.mxu0 0.0
  %3353 = vmatpush1.msra.mxu0 0.0
  %3354 = vmatprep.mubr.f32.mxu0 0.0
  %3355 = vmatmul.mubr.f32.gmra.mrb[0].mxu0 %v3208
  %v3356 = vpop.f32.mrb[0].mxu0
  %v3357 = vadd.f32 0.0, %v3356
  %v3358 = vpop.f32.mrb[0].mxu0
  %3359 = vmatprep.mubr.f32.mxu0 0.0
  %3360 = vmatmul.mubr.f32.gmra.mrb[0].mxu0 %v3211
  %v3361 = vpop.f32.mrb[0].mxu0
  %v3362 = vadd.f32 0.0, %v3361
  %v3363 = vpop.f32.mrb[0].mxu0
  %3364 = vdwg.mxu0
  %v3365 = vadd.f32 %v3158, %v3280
  %v3366 = vadd.f32 %v3159, %v3282
  %v3367 = vadd.f32 %v3160, %v3357
  %v3368 = vadd.f32 %v3161, %v3286
  %v3369 = vadd.f32 %v3162, %v3288
  %v3370 = vadd.f32 %v3163, %v3362
  %v3371 = vmul.f32 %v2170, %v1442
  %v3372 = vmul.f32 %v2171, %v1447
  %v3373 = vmul.f32 %v2172, %v1448
  %v3374 = vmul.f32 %v1446, 0.0
  %v3375 = vmul.f32 %v2173, %v1442
  %v3376 = vmul.f32 %v2174, %v1447
  %v3377 = vmul.f32 %v2175, %v1448
  %s3378 = scalar_lea.vmem %s5, 96
  %v3379 = vld [vmem:[%s3378] sm:$0xff]
  %v3380 = vld [vmem:[%s3378 + $0x8] sm:$0xff]
  %3388 = vrot.lane.b32.xlu0 %v3371, 120
  %v3389 = vpop.permute.xlu0 %3388
  %3390 = vrot.lane.b32.xlu0 %v3372, 120
  %v3391 = vpop.permute.xlu0 %3390
  %3392 = vrot.lane.b32.xlu0 %v3373, 120
  %v3393 = vpop.permute.xlu0 %3392
  %3394 = vrot.lane.b32.xlu0 %v3374, 120
  %v3395 = vpop.permute.xlu0 %3394
  %3396 = vrot.lane.b32.xlu0 %v3375, 120
  %v3397 = vpop.permute.xlu0 %3396
  %3398 = vrot.lane.b32.xlu0 %v3376, 120
  %v3399 = vpop.permute.xlu0 %3398
  %3400 = vrot.lane.b32.xlu0 %v3377, 120
  %v3401 = vpop.permute.xlu0 %3400
  %v3402 = vsel %vm538, %v3389, %v3391
  %v3403 = vsel %vm538, %v3391, %v3393
  %v3404 = vsel %vm538, %v3393, %v3395
  %v3405 = vsel %vm538, %v3397, %v3399
  %v3406 = vsel %vm538, %v3399, %v3401
  %v3407 = vsel %vm538, %v3401, %v3395
  %v3415 = vsel %vm163, %v3379, 0
  %v3418 = vsel %vm163, %v3380, 0
  %3420 = vmatprep.subr.mxu0 %v3403
  %3421 = vmatpush1.msra.mxu0 %v3402
  %3422 = vmatprep.subr.mxu0 %v3406
  %3423 = vmatpush1.msra.mxu0 %v3405
  %3424 = vmatprep.subr.mxu0 0.0
  %3425 = vmatpush1.msra.mxu0 0.0
  %3426 = vmatprep.subr.mxu0 0.0
  %3427 = vmatpush1.msra.mxu0 0.0
  %3428 = vmatprep.subr.mxu0 0.0
  %3429 = vmatpush1.msra.mxu0 0.0
  %3430 = vmatprep.subr.mxu0 0.0
  %3431 = vmatpush1.msra.mxu0 0.0
  %3432 = vmatprep.subr.mxu0 0.0
  %3433 = vmatpush1.msra.mxu0 0.0
  %3434 = vmatprep.subr.mxu0 0.0
  %3435 = vmatpush1.msra.mxu0 0.0
  %3436 = vmatprep.subr.mxu0 0.0
  %3437 = vmatpush1.msra.mxu0 0.0
  %3438 = vmatprep.subr.mxu0 0.0
  %3439 = vmatpush1.msra.mxu0 0.0
  %3440 = vmatprep.subr.mxu0 0.0
  %3441 = vmatpush1.msra.mxu0 0.0
  %3442 = vmatprep.subr.mxu0 0.0
  %3443 = vmatpush1.msra.mxu0 0.0
  %3444 = vmatprep.subr.mxu0 0.0
  %3445 = vmatpush1.msra.mxu0 0.0
  %3446 = vmatprep.subr.mxu0 0.0
  %3447 = vmatpush1.msra.mxu0 0.0
  %3448 = vmatprep.subr.mxu0 0.0
  %3449 = vmatpush1.msra.mxu0 0.0
  %3450 = vmatprep.subr.mxu0 0.0
  %3451 = vmatpush1.msra.mxu0 0.0
  %3452 = vmatprep.subr.mxu0 0.0
  %3453 = vmatpush1.msra.mxu0 0.0
  %3454 = vmatprep.subr.mxu0 0.0
  %3455 = vmatpush1.msra.mxu0 0.0
  %3456 = vmatprep.subr.mxu0 0.0
  %3457 = vmatpush1.msra.mxu0 0.0
  %3458 = vmatprep.subr.mxu0 0.0
  %3459 = vmatpush1.msra.mxu0 0.0
  %3460 = vmatprep.subr.mxu0 0.0
  %3461 = vmatpush1.msra.mxu0 0.0
  %3462 = vmatprep.subr.mxu0 0.0
  %3463 = vmatpush1.msra.mxu0 0.0
  %3464 = vmatprep.subr.mxu0 0.0
  %3465 = vmatpush1.msra.mxu0 0.0
  %3466 = vmatprep.subr.mxu0 0.0
  %3467 = vmatpush1.msra.mxu0 0.0
  %3468 = vmatprep.subr.mxu0 0.0
  %3469 = vmatpush1.msra.mxu0 0.0
  %3470 = vmatprep.subr.mxu0 0.0
  %3471 = vmatpush1.msra.mxu0 0.0
  %3472 = vmatprep.subr.mxu0 0.0
  %3473 = vmatpush1.msra.mxu0 0.0
  %3474 = vmatprep.subr.mxu0 0.0
  %3475 = vmatpush1.msra.mxu0 0.0
  %3476 = vmatprep.subr.mxu0 0.0
  %3477 = vmatpush1.msra.mxu0 0.0
  %3478 = vmatprep.subr.mxu0 0.0
  %3479 = vmatpush1.msra.mxu0 0.0
  %3480 = vmatprep.subr.mxu0 0.0
  %3481 = vmatpush1.msra.mxu0 0.0
  %3482 = vmatprep.subr.mxu0 0.0
  %3483 = vmatpush1.msra.mxu0 0.0
  %3484 = vmatprep.mubr.f32.mxu0 0.0
  %3485 = vmatmul.mubr.f32.gmra.mrb[0].mxu0 %v3415
  %v3486 = vpop.f32.mrb[0].mxu0
  %v3487 = vadd.f32 0.0, %v3486
  %v3488 = vpop.f32.mrb[0].mxu0
  %v3489 = vadd.f32 0.0, %v3488
  %3490 = vmatprep.mubr.f32.mxu0 0.0
  %3491 = vmatmul.mubr.f32.gmra.mrb[0].mxu0 %v3418
  %v3492 = vpop.f32.mrb[0].mxu0
  %v3493 = vadd.f32 0.0, %v3492
  %v3494 = vpop.f32.mrb[0].mxu0
  %v3495 = vadd.f32 0.0, %v3494
  %3496 = vdwg.mxu0
  %3497 = vmatprep.subr.mxu0 0.0
  %3498 = vmatpush1.msra.mxu0 %v3404
  %3499 = vmatprep.subr.mxu0 0.0
  %3500 = vmatpush1.msra.mxu0 %v3407
  %3501 = vmatprep.subr.mxu0 0.0
  %3502 = vmatpush1.msra.mxu0 0.0
  %3503 = vmatprep.subr.mxu0 0.0
  %3504 = vmatpush1.msra.mxu0 0.0
  %3505 = vmatprep.subr.mxu0 0.0
  %3506 = vmatpush1.msra.mxu0 0.0
  %3507 = vmatprep.subr.mxu0 0.0
  %3508 = vmatpush1.msra.mxu0 0.0
  %3509 = vmatprep.subr.mxu0 0.0
  %3510 = vmatpush1.msra.mxu0 0.0
  %3511 = vmatprep.subr.mxu0 0.0
  %3512 = vmatpush1.msra.mxu0 0.0
  %3513 = vmatprep.subr.mxu0 0.0
  %3514 = vmatpush1.msra.mxu0 0.0
  %3515 = vmatprep.subr.mxu0 0.0
  %3516 = vmatpush1.msra.mxu0 0.0
  %3517 = vmatprep.subr.mxu0 0.0
  %3518 = vmatpush1.msra.mxu0 0.0
  %3519 = vmatprep.subr.mxu0 0.0
  %3520 = vmatpush1.msra.mxu0 0.0
  %3521 = vmatprep.subr.mxu0 0.0
  %3522 = vmatpush1.msra.mxu0 0.0
  %3523 = vmatprep.subr.mxu0 0.0
  %3524 = vmatpush1.msra.mxu0 0.0
  %3525 = vmatprep.subr.mxu0 0.0
  %3526 = vmatpush1.msra.mxu0 0.0
  %3527 = vmatprep.subr.mxu0 0.0
  %3528 = vmatpush1.msra.mxu0 0.0
  %3529 = vmatprep.subr.mxu0 0.0
  %3530 = vmatpush1.msra.mxu0 0.0
  %3531 = vmatprep.subr.mxu0 0.0
  %3532 = vmatpush1.msra.mxu0 0.0
  %3533 = vmatprep.subr.mxu0 0.0
  %3534 = vmatpush1.msra.mxu0 0.0
  %3535 = vmatprep.subr.mxu0 0.0
  %3536 = vmatpush1.msra.mxu0 0.0
  %3537 = vmatprep.subr.mxu0 0.0
  %3538 = vmatpush1.msra.mxu0 0.0
  %3539 = vmatprep.subr.mxu0 0.0
  %3540 = vmatpush1.msra.mxu0 0.0
  %3541 = vmatprep.subr.mxu0 0.0
  %3542 = vmatpush1.msra.mxu0 0.0
  %3543 = vmatprep.subr.mxu0 0.0
  %3544 = vmatpush1.msra.mxu0 0.0
  %3545 = vmatprep.subr.mxu0 0.0
  %3546 = vmatpush1.msra.mxu0 0.0
  %3547 = vmatprep.subr.mxu0 0.0
  %3548 = vmatpush1.msra.mxu0 0.0
  %3549 = vmatprep.subr.mxu0 0.0
  %3550 = vmatpush1.msra.mxu0 0.0
  %3551 = vmatprep.subr.mxu0 0.0
  %3552 = vmatpush1.msra.mxu0 0.0
  %3553 = vmatprep.subr.mxu0 0.0
  %3554 = vmatpush1.msra.mxu0 0.0
  %3555 = vmatprep.subr.mxu0 0.0
  %3556 = vmatpush1.msra.mxu0 0.0
  %3557 = vmatprep.subr.mxu0 0.0
  %3558 = vmatpush1.msra.mxu0 0.0
  %3559 = vmatprep.subr.mxu0 0.0
  %3560 = vmatpush1.msra.mxu0 0.0
  %3561 = vmatprep.mubr.f32.mxu0 0.0
  %3562 = vmatmul.mubr.f32.gmra.mrb[0].mxu0 %v3415
  %v3563 = vpop.f32.mrb[0].mxu0
  %v3564 = vadd.f32 0.0, %v3563
  %v3565 = vpop.f32.mrb[0].mxu0
  %3566 = vmatprep.mubr.f32.mxu0 0.0
  %3567 = vmatmul.mubr.f32.gmra.mrb[0].mxu0 %v3418
  %v3568 = vpop.f32.mrb[0].mxu0
  %v3569 = vadd.f32 0.0, %v3568
  %v3570 = vpop.f32.mrb[0].mxu0
  %3571 = vdwg.mxu0
  %v3572 = vadd.f32 %v3365, %v3487
  %v3573 = vadd.f32 %v3366, %v3489
  %v3574 = vadd.f32 %v3367, %v3564
  %v3575 = vadd.f32 %v3368, %v3493
  %v3576 = vadd.f32 %v3369, %v3495
  %v3577 = vadd.f32 %v3370, %v3569
  %v3578 = vmul.f32 %v2170, %v1680
  %v3579 = vmul.f32 %v2171, %v1685
  %v3580 = vmul.f32 %v2172, %v1686
  %v3581 = vmul.f32 %v1684, 0.0
  %v3582 = vmul.f32 %v2173, %v1680
  %v3583 = vmul.f32 %v2174, %v1685
  %v3584 = vmul.f32 %v2175, %v1686
  %s3585 = scalar_lea.vmem %s5, 112
  %v3586 = vld [vmem:[%s3585] sm:$0xff]
  %v3587 = vld [vmem:[%s3585 + $0x8] sm:$0xff]
  %3595 = vrot.lane.b32.xlu0 %v3578, 119
  %v3596 = vpop.permute.xlu0 %3595
  %3597 = vrot.lane.b32.xlu0 %v3579, 119
  %v3598 = vpop.permute.xlu0 %3597
  %3599 = vrot.lane.b32.xlu0 %v3580, 119
  %v3600 = vpop.permute.xlu0 %3599
  %3601 = vrot.lane.b32.xlu0 %v3581, 119
  %v3602 = vpop.permute.xlu0 %3601
  %3603 = vrot.lane.b32.xlu0 %v3582, 119
  %v3604 = vpop.permute.xlu0 %3603
  %3605 = vrot.lane.b32.xlu0 %v3583, 119
  %v3606 = vpop.permute.xlu0 %3605
  %3607 = vrot.lane.b32.xlu0 %v3584, 119
  %v3608 = vpop.permute.xlu0 %3607
  %v3609 = vsel %vm108, %v3596, %v3598
  %v3610 = vsel %vm108, %v3598, %v3600
  %v3611 = vsel %vm108, %v3600, %v3602
  %v3612 = vsel %vm108, %v3604, %v3606
  %v3613 = vsel %vm108, %v3606, %v3608
  %v3614 = vsel %vm108, %v3608, %v3602
  %v3622 = vsel %vm163, %v3586, 0
  %v3625 = vsel %vm163, %v3587, 0
  %3627 = vmatprep.subr.mxu0 %v3610
  %3628 = vmatpush1.msra.mxu0 %v3609
  %3629 = vmatprep.subr.mxu0 %v3613
  %3630 = vmatpush1.msra.mxu0 %v3612
  %3631 = vmatprep.subr.mxu0 0.0
  %3632 = vmatpush1.msra.mxu0 0.0
  %3633 = vmatprep.subr.mxu0 0.0
  %3634 = vmatpush1.msra.mxu0 0.0
  %3635 = vmatprep.subr.mxu0 0.0
  %3636 = vmatpush1.msra.mxu0 0.0
  %3637 = vmatprep.subr.mxu0 0.0
  %3638 = vmatpush1.msra.mxu0 0.0
  %3639 = vmatprep.subr.mxu0 0.0
  %3640 = vmatpush1.msra.mxu0 0.0
  %3641 = vmatprep.subr.mxu0 0.0
  %3642 = vmatpush1.msra.mxu0 0.0
  %3643 = vmatprep.subr.mxu0 0.0
  %3644 = vmatpush1.msra.mxu0 0.0
  %3645 = vmatprep.subr.mxu0 0.0
  %3646 = vmatpush1.msra.mxu0 0.0
  %3647 = vmatprep.subr.mxu0 0.0
  %3648 = vmatpush1.msra.mxu0 0.0
  %3649 = vmatprep.subr.mxu0 0.0
  %3650 = vmatpush1.msra.mxu0 0.0
  %3651 = vmatprep.subr.mxu0 0.0
  %3652 = vmatpush1.msra.mxu0 0.0
  %3653 = vmatprep.subr.mxu0 0.0
  %3654 = vmatpush1.msra.mxu0 0.0
  %3655 = vmatprep.subr.mxu0 0.0
  %3656 = vmatpush1.msra.mxu0 0.0
  %3657 = vmatprep.subr.mxu0 0.0
  %3658 = vmatpush1.msra.mxu0 0.0
  %3659 = vmatprep.subr.mxu0 0.0
  %3660 = vmatpush1.msra.mxu0 0.0
  %3661 = vmatprep.subr.mxu0 0.0
  %3662 = vmatpush1.msra.mxu0 0.0
  %3663 = vmatprep.subr.mxu0 0.0
  %3664 = vmatpush1.msra.mxu0 0.0
  %3665 = vmatprep.subr.mxu0 0.0
  %3666 = vmatpush1.msra.mxu0 0.0
  %3667 = vmatprep.subr.mxu0 0.0
  %3668 = vmatpush1.msra.mxu0 0.0
  %3669 = vmatprep.subr.mxu0 0.0
  %3670 = vmatpush1.msra.mxu0 0.0
  %3671 = vmatprep.subr.mxu0 0.0
  %3672 = vmatpush1.msra.mxu0 0.0
  %3673 = vmatprep.subr.mxu0 0.0
  %3674 = vmatpush1.msra.mxu0 0.0
  %3675 = vmatprep.subr.mxu0 0.0
  %3676 = vmatpush1.msra.mxu0 0.0
  %3677 = vmatprep.subr.mxu0 0.0
  %3678 = vmatpush1.msra.mxu0 0.0
  %3679 = vmatprep.subr.mxu0 0.0
  %3680 = vmatpush1.msra.mxu0 0.0
  %3681 = vmatprep.subr.mxu0 0.0
  %3682 = vmatpush1.msra.mxu0 0.0
  %3683 = vmatprep.subr.mxu0 0.0
  %3684 = vmatpush1.msra.mxu0 0.0
  %3685 = vmatprep.subr.mxu0 0.0
  %3686 = vmatpush1.msra.mxu0 0.0
  %3687 = vmatprep.subr.mxu0 0.0
  %3688 = vmatpush1.msra.mxu0 0.0
  %3689 = vmatprep.subr.mxu0 0.0
  %3690 = vmatpush1.msra.mxu0 0.0
  %3691 = vmatprep.mubr.f32.mxu0 0.0
  %3692 = vmatmul.mubr.f32.gmra.mrb[0].mxu0 %v3622
  %v3693 = vpop.f32.mrb[0].mxu0
  %v3694 = vadd.f32 0.0, %v3693
  %v3695 = vpop.f32.mrb[0].mxu0
  %v3696 = vadd.f32 0.0, %v3695
  %3697 = vmatprep.mubr.f32.mxu0 0.0
  %3698 = vmatmul.mubr.f32.gmra.mrb[0].mxu0 %v3625
  %v3699 = vpop.f32.mrb[0].mxu0
  %v3700 = vadd.f32 0.0, %v3699
  %v3701 = vpop.f32.mrb[0].mxu0
  %v3702 = vadd.f32 0.0, %v3701
  %3703 = vdwg.mxu0
  %3704 = vmatprep.subr.mxu0 0.0
  %3705 = vmatpush1.msra.mxu0 %v3611
  %3706 = vmatprep.subr.mxu0 0.0
  %3707 = vmatpush1.msra.mxu0 %v3614
  %3708 = vmatprep.subr.mxu0 0.0
  %3709 = vmatpush1.msra.mxu0 0.0
  %3710 = vmatprep.subr.mxu0 0.0
  %3711 = vmatpush1.msra.mxu0 0.0
  %3712 = vmatprep.subr.mxu0 0.0
  %3713 = vmatpush1.msra.mxu0 0.0
  %3714 = vmatprep.subr.mxu0 0.0
  %3715 = vmatpush1.msra.mxu0 0.0
  %3716 = vmatprep.subr.mxu0 0.0
  %3717 = vmatpush1.msra.mxu0 0.0
  %3718 = vmatprep.subr.mxu0 0.0
  %3719 = vmatpush1.msra.mxu0 0.0
  %3720 = vmatprep.subr.mxu0 0.0
  %3721 = vmatpush1.msra.mxu0 0.0
  %3722 = vmatprep.subr.mxu0 0.0
  %3723 = vmatpush1.msra.mxu0 0.0
  %3724 = vmatprep.subr.mxu0 0.0
  %3725 = vmatpush1.msra.mxu0 0.0
  %3726 = vmatprep.subr.mxu0 0.0
  %3727 = vmatpush1.msra.mxu0 0.0
  %3728 = vmatprep.subr.mxu0 0.0
  %3729 = vmatpush1.msra.mxu0 0.0
  %3730 = vmatprep.subr.mxu0 0.0
  %3731 = vmatpush1.msra.mxu0 0.0
  %3732 = vmatprep.subr.mxu0 0.0
  %3733 = vmatpush1.msra.mxu0 0.0
  %3734 = vmatprep.subr.mxu0 0.0
  %3735 = vmatpush1.msra.mxu0 0.0
  %3736 = vmatprep.subr.mxu0 0.0
  %3737 = vmatpush1.msra.mxu0 0.0
  %3738 = vmatprep.subr.mxu0 0.0
  %3739 = vmatpush1.msra.mxu0 0.0
  %3740 = vmatprep.subr.mxu0 0.0
  %3741 = vmatpush1.msra.mxu0 0.0
  %3742 = vmatprep.subr.mxu0 0.0
  %3743 = vmatpush1.msra.mxu0 0.0
  %3744 = vmatprep.subr.mxu0 0.0
  %3745 = vmatpush1.msra.mxu0 0.0
  %3746 = vmatprep.subr.mxu0 0.0
  %3747 = vmatpush1.msra.mxu0 0.0
  %3748 = vmatprep.subr.mxu0 0.0
  %3749 = vmatpush1.msra.mxu0 0.0
  %3750 = vmatprep.subr.mxu0 0.0
  %3751 = vmatpush1.msra.mxu0 0.0
  %3752 = vmatprep.subr.mxu0 0.0
  %3753 = vmatpush1.msra.mxu0 0.0
  %3754 = vmatprep.subr.mxu0 0.0
  %3755 = vmatpush1.msra.mxu0 0.0
  %3756 = vmatprep.subr.mxu0 0.0
  %3757 = vmatpush1.msra.mxu0 0.0
  %3758 = vmatprep.subr.mxu0 0.0
  %3759 = vmatpush1.msra.mxu0 0.0
  %3760 = vmatprep.subr.mxu0 0.0
  %3761 = vmatpush1.msra.mxu0 0.0
  %3762 = vmatprep.subr.mxu0 0.0
  %3763 = vmatpush1.msra.mxu0 0.0
  %3764 = vmatprep.subr.mxu0 0.0
  %3765 = vmatpush1.msra.mxu0 0.0
  %3766 = vmatprep.subr.mxu0 0.0
  %3767 = vmatpush1.msra.mxu0 0.0
  %3768 = vmatprep.mubr.f32.mxu0 0.0
  %3769 = vmatmul.mubr.f32.gmra.mrb[0].mxu0 %v3622
  %v3770 = vpop.f32.mrb[0].mxu0
  %v3771 = vadd.f32 0.0, %v3770
  %v3772 = vpop.f32.mrb[0].mxu0
  %3773 = vmatprep.mubr.f32.mxu0 0.0
  %3774 = vmatmul.mubr.f32.gmra.mrb[0].mxu0 %v3625
  %v3775 = vpop.f32.mrb[0].mxu0
  %v3776 = vadd.f32 0.0, %v3775
  %v3777 = vpop.f32.mrb[0].mxu0
  %3778 = vdwg.mxu0
  %v3779 = vadd.f32 %v3572, %v3694
  %v3780 = vadd.f32 %v3573, %v3696
  %v3781 = vadd.f32 %v3574, %v3771
  %v3782 = vadd.f32 %v3575, %v3700
  %v3783 = vadd.f32 %v3576, %v3702
  %v3784 = vadd.f32 %v3577, %v3776
  %v3785 = vmul.f32 %v2170, %v1918
  %v3786 = vmul.f32 %v2171, %v1923
  %v3787 = vmul.f32 %v2172, %v1924
  %v3788 = vmul.f32 %v1922, 0.0
  %v3789 = vmul.f32 %v2173, %v1918
  %v3790 = vmul.f32 %v2174, %v1923
  %v3791 = vmul.f32 %v2175, %v1924
  %s3792 = scalar_lea.vmem %s5, 128
  %v3793 = vld [vmem:[%s3792] sm:$0xff]
  %v3794 = vld [vmem:[%s3792 + $0x8] sm:$0xff]
  %3802 = vrot.lane.b32.xlu0 %v3785, 118
  %v3803 = vpop.permute.xlu0 %3802
  %3804 = vrot.lane.b32.xlu0 %v3786, 118
  %v3805 = vpop.permute.xlu0 %3804
  %3806 = vrot.lane.b32.xlu0 %v3787, 118
  %v3807 = vpop.permute.xlu0 %3806
  %3808 = vrot.lane.b32.xlu0 %v3788, 118
  %v3809 = vpop.permute.xlu0 %3808
  %3810 = vrot.lane.b32.xlu0 %v3789, 118
  %v3811 = vpop.permute.xlu0 %3810
  %3812 = vrot.lane.b32.xlu0 %v3790, 118
  %v3813 = vpop.permute.xlu0 %3812
  %3814 = vrot.lane.b32.xlu0 %v3791, 118
  %v3815 = vpop.permute.xlu0 %3814
  %v3816 = vsel %vm70, %v3803, %v3805
  %v3817 = vsel %vm70, %v3805, %v3807
  %v3818 = vsel %vm70, %v3807, %v3809
  %v3819 = vsel %vm70, %v3811, %v3813
  %v3820 = vsel %vm70, %v3813, %v3815
  %v3821 = vsel %vm70, %v3815, %v3809
  %v3829 = vsel %vm163, %v3793, 0
  %v3832 = vsel %vm163, %v3794, 0
  %3834 = vmatprep.subr.mxu0 %v3817
  %3835 = vmatpush1.msra.mxu0 %v3816
  %3836 = vmatprep.subr.mxu0 %v3820
  %3837 = vmatpush1.msra.mxu0 %v3819
  %3838 = vmatprep.subr.mxu0 0.0
  %3839 = vmatpush1.msra.mxu0 0.0
  %3840 = vmatprep.subr.mxu0 0.0
  %3841 = vmatpush1.msra.mxu0 0.0
  %3842 = vmatprep.subr.mxu0 0.0
  %3843 = vmatpush1.msra.mxu0 0.0
  %3844 = vmatprep.subr.mxu0 0.0
  %3845 = vmatpush1.msra.mxu0 0.0
  %3846 = vmatprep.subr.mxu0 0.0
  %3847 = vmatpush1.msra.mxu0 0.0
  %3848 = vmatprep.subr.mxu0 0.0
  %3849 = vmatpush1.msra.mxu0 0.0
  %3850 = vmatprep.subr.mxu0 0.0
  %3851 = vmatpush1.msra.mxu0 0.0
  %3852 = vmatprep.subr.mxu0 0.0
  %3853 = vmatpush1.msra.mxu0 0.0
  %3854 = vmatprep.subr.mxu0 0.0
  %3855 = vmatpush1.msra.mxu0 0.0
  %3856 = vmatprep.subr.mxu0 0.0
  %3857 = vmatpush1.msra.mxu0 0.0
  %3858 = vmatprep.subr.mxu0 0.0
  %3859 = vmatpush1.msra.mxu0 0.0
  %3860 = vmatprep.subr.mxu0 0.0
  %3861 = vmatpush1.msra.mxu0 0.0
  %3862 = vmatprep.subr.mxu0 0.0
  %3863 = vmatpush1.msra.mxu0 0.0
  %3864 = vmatprep.subr.mxu0 0.0
  %3865 = vmatpush1.msra.mxu0 0.0
  %3866 = vmatprep.subr.mxu0 0.0
  %3867 = vmatpush1.msra.mxu0 0.0
  %3868 = vmatprep.subr.mxu0 0.0
  %3869 = vmatpush1.msra.mxu0 0.0
  %3870 = vmatprep.subr.mxu0 0.0
  %3871 = vmatpush1.msra.mxu0 0.0
  %3872 = vmatprep.subr.mxu0 0.0
  %3873 = vmatpush1.msra.mxu0 0.0
  %3874 = vmatprep.subr.mxu0 0.0
  %3875 = vmatpush1.msra.mxu0 0.0
  %3876 = vmatprep.subr.mxu0 0.0
  %3877 = vmatpush1.msra.mxu0 0.0
  %3878 = vmatprep.subr.mxu0 0.0
  %3879 = vmatpush1.msra.mxu0 0.0
  %3880 = vmatprep.subr.mxu0 0.0
  %3881 = vmatpush1.msra.mxu0 0.0
  %3882 = vmatprep.subr.mxu0 0.0
  %3883 = vmatpush1.msra.mxu0 0.0
  %3884 = vmatprep.subr.mxu0 0.0
  %3885 = vmatpush1.msra.mxu0 0.0
  %3886 = vmatprep.subr.mxu0 0.0
  %3887 = vmatpush1.msra.mxu0 0.0
  %3888 = vmatprep.subr.mxu0 0.0
  %3889 = vmatpush1.msra.mxu0 0.0
  %3890 = vmatprep.subr.mxu0 0.0
  %3891 = vmatpush1.msra.mxu0 0.0
  %3892 = vmatprep.subr.mxu0 0.0
  %3893 = vmatpush1.msra.mxu0 0.0
  %3894 = vmatprep.subr.mxu0 0.0
  %3895 = vmatpush1.msra.mxu0 0.0
  %3896 = vmatprep.subr.mxu0 0.0
  %3897 = vmatpush1.msra.mxu0 0.0
  %3898 = vmatprep.mubr.f32.mxu0 0.0
  %3899 = vmatmul.mubr.f32.gmra.mrb[0].mxu0 %v3829
  %v3900 = vpop.f32.mrb[0].mxu0
  %v3901 = vadd.f32 0.0, %v3900
  %v3902 = vpop.f32.mrb[0].mxu0
  %v3903 = vadd.f32 0.0, %v3902
  %3904 = vmatprep.mubr.f32.mxu0 0.0
  %3905 = vmatmul.mubr.f32.gmra.mrb[0].mxu0 %v3832
  %v3906 = vpop.f32.mrb[0].mxu0
  %v3907 = vadd.f32 0.0, %v3906
  %v3908 = vpop.f32.mrb[0].mxu0
  %v3909 = vadd.f32 0.0, %v3908
  %3910 = vdwg.mxu0
  %3911 = vmatprep.subr.mxu0 0.0
  %3912 = vmatpush1.msra.mxu0 %v3818
  %3913 = vmatprep.subr.mxu0 0.0
  %3914 = vmatpush1.msra.mxu0 %v3821
  %3915 = vmatprep.subr.mxu0 0.0
  %3916 = vmatpush1.msra.mxu0 0.0
  %3917 = vmatprep.subr.mxu0 0.0
  %3918 = vmatpush1.msra.mxu0 0.0
  %3919 = vmatprep.subr.mxu0 0.0
  %3920 = vmatpush1.msra.mxu0 0.0
  %3921 = vmatprep.subr.mxu0 0.0
  %3922 = vmatpush1.msra.mxu0 0.0
  %3923 = vmatprep.subr.mxu0 0.0
  %3924 = vmatpush1.msra.mxu0 0.0
  %3925 = vmatprep.subr.mxu0 0.0
  %3926 = vmatpush1.msra.mxu0 0.0
  %3927 = vmatprep.subr.mxu0 0.0
  %3928 = vmatpush1.msra.mxu0 0.0
  %3929 = vmatprep.subr.mxu0 0.0
  %3930 = vmatpush1.msra.mxu0 0.0
  %3931 = vmatprep.subr.mxu0 0.0
  %3932 = vmatpush1.msra.mxu0 0.0
  %3933 = vmatprep.subr.mxu0 0.0
  %3934 = vmatpush1.msra.mxu0 0.0
  %3935 = vmatprep.subr.mxu0 0.0
  %3936 = vmatpush1.msra.mxu0 0.0
  %3937 = vmatprep.subr.mxu0 0.0
  %3938 = vmatpush1.msra.mxu0 0.0
  %3939 = vmatprep.subr.mxu0 0.0
  %3940 = vmatpush1.msra.mxu0 0.0
  %3941 = vmatprep.subr.mxu0 0.0
  %3942 = vmatpush1.msra.mxu0 0.0
  %3943 = vmatprep.subr.mxu0 0.0
  %3944 = vmatpush1.msra.mxu0 0.0
  %3945 = vmatprep.subr.mxu0 0.0
  %3946 = vmatpush1.msra.mxu0 0.0
  %3947 = vmatprep.subr.mxu0 0.0
  %3948 = vmatpush1.msra.mxu0 0.0
  %3949 = vmatprep.subr.mxu0 0.0
  %3950 = vmatpush1.msra.mxu0 0.0
  %3951 = vmatprep.subr.mxu0 0.0
  %3952 = vmatpush1.msra.mxu0 0.0
  %3953 = vmatprep.subr.mxu0 0.0
  %3954 = vmatpush1.msra.mxu0 0.0
  %3955 = vmatprep.subr.mxu0 0.0
  %3956 = vmatpush1.msra.mxu0 0.0
  %3957 = vmatprep.subr.mxu0 0.0
  %3958 = vmatpush1.msra.mxu0 0.0
  %3959 = vmatprep.subr.mxu0 0.0
  %3960 = vmatpush1.msra.mxu0 0.0
  %3961 = vmatprep.subr.mxu0 0.0
  %3962 = vmatpush1.msra.mxu0 0.0
  %3963 = vmatprep.subr.mxu0 0.0
  %3964 = vmatpush1.msra.mxu0 0.0
  %3965 = vmatprep.subr.mxu0 0.0
  %3966 = vmatpush1.msra.mxu0 0.0
  %3967 = vmatprep.subr.mxu0 0.0
  %3968 = vmatpush1.msra.mxu0 0.0
  %3969 = vmatprep.subr.mxu0 0.0
  %3970 = vmatpush1.msra.mxu0 0.0
  %3971 = vmatprep.subr.mxu0 0.0
  %3972 = vmatpush1.msra.mxu0 0.0
  %3973 = vmatprep.subr.mxu0 0.0
  %3974 = vmatpush1.msra.mxu0 0.0
  %3975 = vmatprep.mubr.f32.mxu0 0.0
  %3976 = vmatmul.mubr.f32.gmra.mrb[0].mxu0 %v3829
  %v3977 = vpop.f32.mrb[0].mxu0
  %v3978 = vadd.f32 0.0, %v3977
  %v3979 = vpop.f32.mrb[0].mxu0
  %3980 = vmatprep.mubr.f32.mxu0 0.0
  %3981 = vmatmul.mubr.f32.gmra.mrb[0].mxu0 %v3832
  %v3982 = vpop.f32.mrb[0].mxu0
  %v3983 = vadd.f32 0.0, %v3982
  %v3984 = vpop.f32.mrb[0].mxu0
  %3985 = vdwg.mxu0
  %v3986 = vadd.f32 %v3779, %v3901
  %v3987 = vadd.f32 %v3780, %v3903
  %v3988 = vadd.f32 %v3781, %v3978
  %v3989 = vadd.f32 %v3782, %v3907
  %v3990 = vadd.f32 %v3783, %v3909
  %v3991 = vadd.f32 %v3784, %v3983
  %v3992 = vld [vmem:[%s6] sm:$0xff]
  %v3993 = vld [vmem:[%s6 + $0x8] sm:$0xff]
  %3995 = vset.pattern.permute.xlu0 0
  %3996 = vperm.xlu0 %3995, %v3992
  %v3997 = vpop.permute.xlu0 %3996
  %4000 = vset.pattern.permute.xlu0 0
  %4001 = vperm.xlu0 %4000, %v3993
  %v4002 = vpop.permute.xlu0 %4001
  %v4004 = vadd.f32 %v3986, %v3997
  %v4005 = vadd.f32 %v3987, %v3997
  %v4006 = vadd.f32 %v3988, %v3997
  %v4007 = vadd.f32 %v3989, %v4002
  %v4008 = vadd.f32 %v3990, %v4002
  %v4009 = vadd.f32 %v3991, %v4002
  %v4010 = vadd.f32 %v4004, %v41
  %v4011 = vadd.f32 %v4005, %v42
  %v4012 = vadd.f32 %v4006, %v43
  %v4013 = vadd.f32 %v4007, %v46
  %v4014 = vadd.f32 %v4008, %v47
  %v4015 = vadd.f32 %v4009, %v48
  %v4016 = vld [vmem:[%s1] sm:$0xff]
  %v4017 = vld [vmem:[%s1 + $0x8] sm:$0xff]
  %v4018 = vld [vmem:[%s1 + $0x10] sm:$0xff]
  %v4019 = vld [vmem:[%s1 + $0x18] sm:$0xff]
  %v4020 = vld [vmem:[%s1 + $0x20] sm:$0xff]
  %v4021 = vld [vmem:[%s1 + $0x28] sm:$0xff]
  %v4022 = vld [vmem:[%s1 + $0x30] sm:$0xff]
  %v4023 = vld [vmem:[%s1 + $0x38] sm:$0xff]
  %v4024 = vld [vmem:[%s1 + $0x40] sm:$0xff]
  %v4025 = vld [vmem:[%s1 + $0x48] sm:$0xff]
  %v4026 = vmul.f32 %v4016, %v65
  %v4027 = vmul.f32 %v4017, %v71
  %v4028 = vmul.f32 %v4018, %v72
  %v4029 = vmul.f32 %v4019, %v69
  %v4030 = vmul.f32 %v4021, %v65
  %v4031 = vmul.f32 %v4022, %v71
  %v4032 = vmul.f32 %v4023, %v72
  %v4033 = vmul.f32 %v4024, %v69
  %v4034 = vld [vmem:[%s7] sm:$0xff]
  %v4035 = vld [vmem:[%s7 + $0x8] sm:$0xff]
  %v4036 = vmul.f32 %v4016, %v103
  %v4037 = vmul.f32 %v4017, %v109
  %v4038 = vmul.f32 %v4018, %v110
  %v4039 = vmul.f32 %v4019, %v107
  %v4040 = vmul.f32 %v4021, %v103
  %v4041 = vmul.f32 %v4022, %v109
  %v4042 = vmul.f32 %v4023, %v110
  %v4043 = vmul.f32 %v4024, %v107
  %s4044 = scalar_lea.vmem %s7, 16
  %v4045 = vld [vmem:[%s4044] sm:$0xff]
  %v4046 = vld [vmem:[%s4044 + $0x8] sm:$0xff]
  %4055 = vrot.lane.b32.xlu0 %v4036, 9
  %v4056 = vpop.permute.xlu0 %4055
  %4057 = vrot.lane.b32.xlu0 %v4037, 9
  %v4058 = vpop.permute.xlu0 %4057
  %4059 = vrot.lane.b32.xlu0 %v4038, 9
  %v4060 = vpop.permute.xlu0 %4059
  %4061 = vrot.lane.b32.xlu0 %v4039, 9
  %v4062 = vpop.permute.xlu0 %4061
  %4063 = vrot.lane.b32.xlu0 %v4040, 9
  %v4064 = vpop.permute.xlu0 %4063
  %4065 = vrot.lane.b32.xlu0 %v4041, 9
  %v4066 = vpop.permute.xlu0 %4065
  %4067 = vrot.lane.b32.xlu0 %v4042, 9
  %v4068 = vpop.permute.xlu0 %4067
  %4069 = vrot.lane.b32.xlu0 %v4043, 9
  %v4070 = vpop.permute.xlu0 %4069
  %v4071 = vsel %vm150, %v4056, %v4058
  %v4072 = vsel %vm150, %v4058, %v4060
  %v4073 = vsel %vm150, %v4060, %v4062
  %v4074 = vsel %vm150, %v4064, %v4066
  %v4075 = vsel %vm150, %v4066, %v4068
  %v4076 = vsel %vm150, %v4068, %v4070
  %v4084 = vsel %vm163, %v4045, 0
  %v4087 = vsel %vm163, %v4046, 0
  %4089 = vmatprep.subr.mxu0 %v4072
  %4090 = vmatpush1.msra.mxu0 %v4071
  %4091 = vmatprep.subr.mxu0 %v4075
  %4092 = vmatpush1.msra.mxu0 %v4074
  %4093 = vmatprep.subr.mxu0 0.0
  %4094 = vmatpush1.msra.mxu0 0.0
  %4095 = vmatprep.subr.mxu0 0.0
  %4096 = vmatpush1.msra.mxu0 0.0
  %4097 = vmatprep.subr.mxu0 0.0
  %4098 = vmatpush1.msra.mxu0 0.0
  %4099 = vmatprep.subr.mxu0 0.0
  %4100 = vmatpush1.msra.mxu0 0.0
  %4101 = vmatprep.subr.mxu0 0.0
  %4102 = vmatpush1.msra.mxu0 0.0
  %4103 = vmatprep.subr.mxu0 0.0
  %4104 = vmatpush1.msra.mxu0 0.0
  %4105 = vmatprep.subr.mxu0 0.0
  %4106 = vmatpush1.msra.mxu0 0.0
  %4107 = vmatprep.subr.mxu0 0.0
  %4108 = vmatpush1.msra.mxu0 0.0
  %4109 = vmatprep.subr.mxu0 0.0
  %4110 = vmatpush1.msra.mxu0 0.0
  %4111 = vmatprep.subr.mxu0 0.0
  %4112 = vmatpush1.msra.mxu0 0.0
  %4113 = vmatprep.subr.mxu0 0.0
  %4114 = vmatpush1.msra.mxu0 0.0
  %4115 = vmatprep.subr.mxu0 0.0
  %4116 = vmatpush1.msra.mxu0 0.0
  %4117 = vmatprep.subr.mxu0 0.0
  %4118 = vmatpush1.msra.mxu0 0.0
  %4119 = vmatprep.subr.mxu0 0.0
  %4120 = vmatpush1.msra.mxu0 0.0
  %4121 = vmatprep.subr.mxu0 0.0
  %4122 = vmatpush1.msra.mxu0 0.0
  %4123 = vmatprep.subr.mxu0 0.0
  %4124 = vmatpush1.msra.mxu0 0.0
  %4125 = vmatprep.subr.mxu0 0.0
  %4126 = vmatpush1.msra.mxu0 0.0
  %4127 = vmatprep.subr.mxu0 0.0
  %4128 = vmatpush1.msra.mxu0 0.0
  %4129 = vmatprep.subr.mxu0 0.0
  %4130 = vmatpush1.msra.mxu0 0.0
  %4131 = vmatprep.subr.mxu0 0.0
  %4132 = vmatpush1.msra.mxu0 0.0
  %4133 = vmatprep.subr.mxu0 0.0
  %4134 = vmatpush1.msra.mxu0 0.0
  %4135 = vmatprep.subr.mxu0 0.0
  %4136 = vmatpush1.msra.mxu0 0.0
  %4137 = vmatprep.subr.mxu0 0.0
  %4138 = vmatpush1.msra.mxu0 0.0
  %4139 = vmatprep.subr.mxu0 0.0
  %4140 = vmatpush1.msra.mxu0 0.0
  %4141 = vmatprep.subr.mxu0 0.0
  %4142 = vmatpush1.msra.mxu0 0.0
  %4143 = vmatprep.subr.mxu0 0.0
  %4144 = vmatpush1.msra.mxu0 0.0
  %4145 = vmatprep.subr.mxu0 0.0
  %4146 = vmatpush1.msra.mxu0 0.0
  %4147 = vmatprep.subr.mxu0 0.0
  %4148 = vmatpush1.msra.mxu0 0.0
  %4149 = vmatprep.subr.mxu0 0.0
  %4150 = vmatpush1.msra.mxu0 0.0
  %4151 = vmatprep.subr.mxu0 0.0
  %4152 = vmatpush1.msra.mxu0 0.0
  %4153 = vmatprep.mubr.f32.mxu0 0.0
  %4154 = vmatmul.mubr.f32.gmra.mrb[0].mxu0 %v4084
  %v4155 = vpop.f32.mrb[0].mxu0
  %v4156 = vadd.f32 0.0, %v4155
  %v4157 = vpop.f32.mrb[0].mxu0
  %v4158 = vadd.f32 0.0, %v4157
  %4159 = vmatprep.mubr.f32.mxu0 0.0
  %4160 = vmatmul.mubr.f32.gmra.mrb[0].mxu0 %v4087
  %v4161 = vpop.f32.mrb[0].mxu0
  %v4162 = vadd.f32 0.0, %v4161
  %v4163 = vpop.f32.mrb[0].mxu0
  %v4164 = vadd.f32 0.0, %v4163
  %4165 = vdwg.mxu0
  %4166 = vmatprep.subr.mxu0 0.0
  %4167 = vmatpush1.msra.mxu0 %v4073
  %4168 = vmatprep.subr.mxu0 0.0
  %4169 = vmatpush1.msra.mxu0 %v4076
  %4170 = vmatprep.subr.mxu0 0.0
  %4171 = vmatpush1.msra.mxu0 0.0
  %4172 = vmatprep.subr.mxu0 0.0
  %4173 = vmatpush1.msra.mxu0 0.0
  %4174 = vmatprep.subr.mxu0 0.0
  %4175 = vmatpush1.msra.mxu0 0.0
  %4176 = vmatprep.subr.mxu0 0.0
  %4177 = vmatpush1.msra.mxu0 0.0
  %4178 = vmatprep.subr.mxu0 0.0
  %4179 = vmatpush1.msra.mxu0 0.0
  %4180 = vmatprep.subr.mxu0 0.0
  %4181 = vmatpush1.msra.mxu0 0.0
  %4182 = vmatprep.subr.mxu0 0.0
  %4183 = vmatpush1.msra.mxu0 0.0
  %4184 = vmatprep.subr.mxu0 0.0
  %4185 = vmatpush1.msra.mxu0 0.0
  %4186 = vmatprep.subr.mxu0 0.0
  %4187 = vmatpush1.msra.mxu0 0.0
  %4188 = vmatprep.subr.mxu0 0.0
  %4189 = vmatpush1.msra.mxu0 0.0
  %4190 = vmatprep.subr.mxu0 0.0
  %4191 = vmatpush1.msra.mxu0 0.0
  %4192 = vmatprep.subr.mxu0 0.0
  %4193 = vmatpush1.msra.mxu0 0.0
  %4194 = vmatprep.subr.mxu0 0.0
  %4195 = vmatpush1.msra.mxu0 0.0
  %4196 = vmatprep.subr.mxu0 0.0
  %4197 = vmatpush1.msra.mxu0 0.0
  %4198 = vmatprep.subr.mxu0 0.0
  %4199 = vmatpush1.msra.mxu0 0.0
  %4200 = vmatprep.subr.mxu0 0.0
  %4201 = vmatpush1.msra.mxu0 0.0
  %4202 = vmatprep.subr.mxu0 0.0
  %4203 = vmatpush1.msra.mxu0 0.0
  %4204 = vmatprep.subr.mxu0 0.0
  %4205 = vmatpush1.msra.mxu0 0.0
  %4206 = vmatprep.subr.mxu0 0.0
  %4207 = vmatpush1.msra.mxu0 0.0
  %4208 = vmatprep.subr.mxu0 0.0
  %4209 = vmatpush1.msra.mxu0 0.0
  %4210 = vmatprep.subr.mxu0 0.0
  %4211 = vmatpush1.msra.mxu0 0.0
  %4212 = vmatprep.subr.mxu0 0.0
  %4213 = vmatpush1.msra.mxu0 0.0
  %4214 = vmatprep.subr.mxu0 0.0
  %4215 = vmatpush1.msra.mxu0 0.0
  %4216 = vmatprep.subr.mxu0 0.0
  %4217 = vmatpush1.msra.mxu0 0.0
  %4218 = vmatprep.subr.mxu0 0.0
  %4219 = vmatpush1.msra.mxu0 0.0
  %4220 = vmatprep.subr.mxu0 0.0
  %4221 = vmatpush1.msra.mxu0 0.0
  %4222 = vmatprep.subr.mxu0 0.0
  %4223 = vmatpush1.msra.mxu0 0.0
  %4224 = vmatprep.subr.mxu0 0.0
  %4225 = vmatpush1.msra.mxu0 0.0
  %4226 = vmatprep.subr.mxu0 0.0
  %4227 = vmatpush1.msra.mxu0 0.0
  %4228 = vmatprep.subr.mxu0 0.0
  %4229 = vmatpush1.msra.mxu0 0.0
  %4230 = vmatprep.mubr.f32.mxu0 0.0
  %4231 = vmatmul.mubr.f32.gmra.mrb[0].mxu0 %v4084
  %v4232 = vpop.f32.mrb[0].mxu0
  %v4233 = vadd.f32 0.0, %v4232
  %v4234 = vpop.f32.mrb[0].mxu0
  %4235 = vmatprep.mubr.f32.mxu0 0.0
  %4236 = vmatmul.mubr.f32.gmra.mrb[0].mxu0 %v4087
  %v4237 = vpop.f32.mrb[0].mxu0
  %v4238 = vadd.f32 0.0, %v4237
  %v4239 = vpop.f32.mrb[0].mxu0
  %4240 = vdwg.mxu0
  %4249 = vrot.lane.b32.xlu0 %v4026, 10
  %v4250 = vpop.permute.xlu0 %4249
  %4251 = vrot.lane.b32.xlu0 %v4027, 10
  %v4252 = vpop.permute.xlu0 %4251
  %4253 = vrot.lane.b32.xlu0 %v4028, 10
  %v4254 = vpop.permute.xlu0 %4253
  %4255 = vrot.lane.b32.xlu0 %v4029, 10
  %v4256 = vpop.permute.xlu0 %4255
  %4257 = vrot.lane.b32.xlu0 %v4030, 10
  %v4258 = vpop.permute.xlu0 %4257
  %4259 = vrot.lane.b32.xlu0 %v4031, 10
  %v4260 = vpop.permute.xlu0 %4259
  %4261 = vrot.lane.b32.xlu0 %v4032, 10
  %v4262 = vpop.permute.xlu0 %4261
  %4263 = vrot.lane.b32.xlu0 %v4033, 10
  %v4264 = vpop.permute.xlu0 %4263
  %v4265 = vsel %vm346, %v4250, %v4252
  %v4266 = vsel %vm346, %v4252, %v4254
  %v4267 = vsel %vm346, %v4254, %v4256
  %v4268 = vsel %vm346, %v4258, %v4260
  %v4269 = vsel %vm346, %v4260, %v4262
  %v4270 = vsel %vm346, %v4262, %v4264
  %v4278 = vsel %vm163, %v4034, 0
  %v4281 = vsel %vm163, %v4035, 0
  %4283 = vmatprep.subr.mxu0 %v4266
  %4284 = vmatpush1.msra.mxu0 %v4265
  %4285 = vmatprep.subr.mxu0 %v4269
  %4286 = vmatpush1.msra.mxu0 %v4268
  %4287 = vmatprep.subr.mxu0 0.0
  %4288 = vmatpush1.msra.mxu0 0.0
  %4289 = vmatprep.subr.mxu0 0.0
  %4290 = vmatpush1.msra.mxu0 0.0
  %4291 = vmatprep.subr.mxu0 0.0
  %4292 = vmatpush1.msra.mxu0 0.0
  %4293 = vmatprep.subr.mxu0 0.0
  %4294 = vmatpush1.msra.mxu0 0.0
  %4295 = vmatprep.subr.mxu0 0.0
  %4296 = vmatpush1.msra.mxu0 0.0
  %4297 = vmatprep.subr.mxu0 0.0
  %4298 = vmatpush1.msra.mxu0 0.0
  %4299 = vmatprep.subr.mxu0 0.0
  %4300 = vmatpush1.msra.mxu0 0.0
  %4301 = vmatprep.subr.mxu0 0.0
  %4302 = vmatpush1.msra.mxu0 0.0
  %4303 = vmatprep.subr.mxu0 0.0
  %4304 = vmatpush1.msra.mxu0 0.0
  %4305 = vmatprep.subr.mxu0 0.0
  %4306 = vmatpush1.msra.mxu0 0.0
  %4307 = vmatprep.subr.mxu0 0.0
  %4308 = vmatpush1.msra.mxu0 0.0
  %4309 = vmatprep.subr.mxu0 0.0
  %4310 = vmatpush1.msra.mxu0 0.0
  %4311 = vmatprep.subr.mxu0 0.0
  %4312 = vmatpush1.msra.mxu0 0.0
  %4313 = vmatprep.subr.mxu0 0.0
  %4314 = vmatpush1.msra.mxu0 0.0
  %4315 = vmatprep.subr.mxu0 0.0
  %4316 = vmatpush1.msra.mxu0 0.0
  %4317 = vmatprep.subr.mxu0 0.0
  %4318 = vmatpush1.msra.mxu0 0.0
  %4319 = vmatprep.subr.mxu0 0.0
  %4320 = vmatpush1.msra.mxu0 0.0
  %4321 = vmatprep.subr.mxu0 0.0
  %4322 = vmatpush1.msra.mxu0 0.0
  %4323 = vmatprep.subr.mxu0 0.0
  %4324 = vmatpush1.msra.mxu0 0.0
  %4325 = vmatprep.subr.mxu0 0.0
  %4326 = vmatpush1.msra.mxu0 0.0
  %4327 = vmatprep.subr.mxu0 0.0
  %4328 = vmatpush1.msra.mxu0 0.0
  %4329 = vmatprep.subr.mxu0 0.0
  %4330 = vmatpush1.msra.mxu0 0.0
  %4331 = vmatprep.subr.mxu0 0.0
  %4332 = vmatpush1.msra.mxu0 0.0
  %4333 = vmatprep.subr.mxu0 0.0
  %4334 = vmatpush1.msra.mxu0 0.0
  %4335 = vmatprep.subr.mxu0 0.0
  %4336 = vmatpush1.msra.mxu0 0.0
  %4337 = vmatprep.subr.mxu0 0.0
  %4338 = vmatpush1.msra.mxu0 0.0
  %4339 = vmatprep.subr.mxu0 0.0
  %4340 = vmatpush1.msra.mxu0 0.0
  %4341 = vmatprep.subr.mxu0 0.0
  %4342 = vmatpush1.msra.mxu0 0.0
  %4343 = vmatprep.subr.mxu0 0.0
  %4344 = vmatpush1.msra.mxu0 0.0
  %4345 = vmatprep.subr.mxu0 0.0
  %4346 = vmatpush1.msra.mxu0 0.0
  %4347 = vmatprep.mubr.f32.mxu0 0.0
  %4348 = vmatmul.mubr.f32.gmra.mrb[0].mxu0 %v4278
  %v4349 = vpop.f32.mrb[0].mxu0
  %v4350 = vadd.f32 %v4156, %v4349
  %v4351 = vpop.f32.mrb[0].mxu0
  %v4352 = vadd.f32 %v4158, %v4351
  %4353 = vmatprep.mubr.f32.mxu0 0.0
  %4354 = vmatmul.mubr.f32.gmra.mrb[0].mxu0 %v4281
  %v4355 = vpop.f32.mrb[0].mxu0
  %v4356 = vadd.f32 %v4162, %v4355
  %v4357 = vpop.f32.mrb[0].mxu0
  %v4358 = vadd.f32 %v4164, %v4357
  %4359 = vdwg.mxu0
  %4360 = vmatprep.subr.mxu0 0.0
  %4361 = vmatpush1.msra.mxu0 %v4267
  %4362 = vmatprep.subr.mxu0 0.0
  %4363 = vmatpush1.msra.mxu0 %v4270
  %4364 = vmatprep.subr.mxu0 0.0
  %4365 = vmatpush1.msra.mxu0 0.0
  %4366 = vmatprep.subr.mxu0 0.0
  %4367 = vmatpush1.msra.mxu0 0.0
  %4368 = vmatprep.subr.mxu0 0.0
  %4369 = vmatpush1.msra.mxu0 0.0
  %4370 = vmatprep.subr.mxu0 0.0
  %4371 = vmatpush1.msra.mxu0 0.0
  %4372 = vmatprep.subr.mxu0 0.0
  %4373 = vmatpush1.msra.mxu0 0.0
  %4374 = vmatprep.subr.mxu0 0.0
  %4375 = vmatpush1.msra.mxu0 0.0
  %4376 = vmatprep.subr.mxu0 0.0
  %4377 = vmatpush1.msra.mxu0 0.0
  %4378 = vmatprep.subr.mxu0 0.0
  %4379 = vmatpush1.msra.mxu0 0.0
  %4380 = vmatprep.subr.mxu0 0.0
  %4381 = vmatpush1.msra.mxu0 0.0
  %4382 = vmatprep.subr.mxu0 0.0
  %4383 = vmatpush1.msra.mxu0 0.0
  %4384 = vmatprep.subr.mxu0 0.0
  %4385 = vmatpush1.msra.mxu0 0.0
  %4386 = vmatprep.subr.mxu0 0.0
  %4387 = vmatpush1.msra.mxu0 0.0
  %4388 = vmatprep.subr.mxu0 0.0
  %4389 = vmatpush1.msra.mxu0 0.0
  %4390 = vmatprep.subr.mxu0 0.0
  %4391 = vmatpush1.msra.mxu0 0.0
  %4392 = vmatprep.subr.mxu0 0.0
  %4393 = vmatpush1.msra.mxu0 0.0
  %4394 = vmatprep.subr.mxu0 0.0
  %4395 = vmatpush1.msra.mxu0 0.0
  %4396 = vmatprep.subr.mxu0 0.0
  %4397 = vmatpush1.msra.mxu0 0.0
  %4398 = vmatprep.subr.mxu0 0.0
  %4399 = vmatpush1.msra.mxu0 0.0
  %4400 = vmatprep.subr.mxu0 0.0
  %4401 = vmatpush1.msra.mxu0 0.0
  %4402 = vmatprep.subr.mxu0 0.0
  %4403 = vmatpush1.msra.mxu0 0.0
  %4404 = vmatprep.subr.mxu0 0.0
  %4405 = vmatpush1.msra.mxu0 0.0
  %4406 = vmatprep.subr.mxu0 0.0
  %4407 = vmatpush1.msra.mxu0 0.0
  %4408 = vmatprep.subr.mxu0 0.0
  %4409 = vmatpush1.msra.mxu0 0.0
  %4410 = vmatprep.subr.mxu0 0.0
  %4411 = vmatpush1.msra.mxu0 0.0
  %4412 = vmatprep.subr.mxu0 0.0
  %4413 = vmatpush1.msra.mxu0 0.0
  %4414 = vmatprep.subr.mxu0 0.0
  %4415 = vmatpush1.msra.mxu0 0.0
  %4416 = vmatprep.subr.mxu0 0.0
  %4417 = vmatpush1.msra.mxu0 0.0
  %4418 = vmatprep.subr.mxu0 0.0
  %4419 = vmatpush1.msra.mxu0 0.0
  %4420 = vmatprep.subr.mxu0 0.0
  %4421 = vmatpush1.msra.mxu0 0.0
  %4422 = vmatprep.subr.mxu0 0.0
  %4423 = vmatpush1.msra.mxu0 0.0
  %4424 = vmatprep.mubr.f32.mxu0 0.0
  %4425 = vmatmul.mubr.f32.gmra.mrb[0].mxu0 %v4278
  %v4426 = vpop.f32.mrb[0].mxu0
  %v4427 = vadd.f32 %v4233, %v4426
  %v4428 = vpop.f32.mrb[0].mxu0
  %4429 = vmatprep.mubr.f32.mxu0 0.0
  %4430 = vmatmul.mubr.f32.gmra.mrb[0].mxu0 %v4281
  %v4431 = vpop.f32.mrb[0].mxu0
  %v4432 = vadd.f32 %v4238, %v4431
  %v4433 = vpop.f32.mrb[0].mxu0
  %4434 = vdwg.mxu0
  %v4435 = vmul.f32 %v4016, %v533
  %v4436 = vmul.f32 %v4017, %v539
  %v4437 = vmul.f32 %v4018, %v540
  %v4438 = vmul.f32 %v4019, %v537
  %v4439 = vmul.f32 %v4021, %v533
  %v4440 = vmul.f32 %v4022, %v539
  %v4441 = vmul.f32 %v4023, %v540
  %v4442 = vmul.f32 %v4024, %v537
  %s4443 = scalar_lea.vmem %s7, 32
  %v4444 = vld [vmem:[%s4443] sm:$0xff]
  %v4445 = vld [vmem:[%s4443 + $0x8] sm:$0xff]
  %4454 = vrot.lane.b32.xlu0 %v4435, 8
  %v4455 = vpop.permute.xlu0 %4454
  %4456 = vrot.lane.b32.xlu0 %v4436, 8
  %v4457 = vpop.permute.xlu0 %4456
  %4458 = vrot.lane.b32.xlu0 %v4437, 8
  %v4459 = vpop.permute.xlu0 %4458
  %4460 = vrot.lane.b32.xlu0 %v4438, 8
  %v4461 = vpop.permute.xlu0 %4460
  %4462 = vrot.lane.b32.xlu0 %v4439, 8
  %v4463 = vpop.permute.xlu0 %4462
  %4464 = vrot.lane.b32.xlu0 %v4440, 8
  %v4465 = vpop.permute.xlu0 %4464
  %4466 = vrot.lane.b32.xlu0 %v4441, 8
  %v4467 = vpop.permute.xlu0 %4466
  %4468 = vrot.lane.b32.xlu0 %v4442, 8
  %v4469 = vpop.permute.xlu0 %4468
  %v4470 = vsel %vm580, %v4455, %v4457
  %v4471 = vsel %vm580, %v4457, %v4459
  %v4472 = vsel %vm580, %v4459, %v4461
  %v4473 = vsel %vm580, %v4463, %v4465
  %v4474 = vsel %vm580, %v4465, %v4467
  %v4475 = vsel %vm580, %v4467, %v4469
  %v4483 = vsel %vm163, %v4444, 0
  %v4486 = vsel %vm163, %v4445, 0
  %4488 = vmatprep.subr.mxu0 %v4471
  %4489 = vmatpush1.msra.mxu0 %v4470
  %4490 = vmatprep.subr.mxu0 %v4474
  %4491 = vmatpush1.msra.mxu0 %v4473
  %4492 = vmatprep.subr.mxu0 0.0
  %4493 = vmatpush1.msra.mxu0 0.0
  %4494 = vmatprep.subr.mxu0 0.0
  %4495 = vmatpush1.msra.mxu0 0.0
  %4496 = vmatprep.subr.mxu0 0.0
  %4497 = vmatpush1.msra.mxu0 0.0
  %4498 = vmatprep.subr.mxu0 0.0
  %4499 = vmatpush1.msra.mxu0 0.0
  %4500 = vmatprep.subr.mxu0 0.0
  %4501 = vmatpush1.msra.mxu0 0.0
  %4502 = vmatprep.subr.mxu0 0.0
  %4503 = vmatpush1.msra.mxu0 0.0
  %4504 = vmatprep.subr.mxu0 0.0
  %4505 = vmatpush1.msra.mxu0 0.0
  %4506 = vmatprep.subr.mxu0 0.0
  %4507 = vmatpush1.msra.mxu0 0.0
  %4508 = vmatprep.subr.mxu0 0.0
  %4509 = vmatpush1.msra.mxu0 0.0
  %4510 = vmatprep.subr.mxu0 0.0
  %4511 = vmatpush1.msra.mxu0 0.0
  %4512 = vmatprep.subr.mxu0 0.0
  %4513 = vmatpush1.msra.mxu0 0.0
  %4514 = vmatprep.subr.mxu0 0.0
  %4515 = vmatpush1.msra.mxu0 0.0
  %4516 = vmatprep.subr.mxu0 0.0
  %4517 = vmatpush1.msra.mxu0 0.0
  %4518 = vmatprep.subr.mxu0 0.0
  %4519 = vmatpush1.msra.mxu0 0.0
  %4520 = vmatprep.subr.mxu0 0.0
  %4521 = vmatpush1.msra.mxu0 0.0
  %4522 = vmatprep.subr.mxu0 0.0
  %4523 = vmatpush1.msra.mxu0 0.0
  %4524 = vmatprep.subr.mxu0 0.0
  %4525 = vmatpush1.msra.mxu0 0.0
  %4526 = vmatprep.subr.mxu0 0.0
  %4527 = vmatpush1.msra.mxu0 0.0
  %4528 = vmatprep.subr.mxu0 0.0
  %4529 = vmatpush1.msra.mxu0 0.0
  %4530 = vmatprep.subr.mxu0 0.0
  %4531 = vmatpush1.msra.mxu0 0.0
  %4532 = vmatprep.subr.mxu0 0.0
  %4533 = vmatpush1.msra.mxu0 0.0
  %4534 = vmatprep.subr.mxu0 0.0
  %4535 = vmatpush1.msra.mxu0 0.0
  %4536 = vmatprep.subr.mxu0 0.0
  %4537 = vmatpush1.msra.mxu0 0.0
  %4538 = vmatprep.subr.mxu0 0.0
  %4539 = vmatpush1.msra.mxu0 0.0
  %4540 = vmatprep.subr.mxu0 0.0
  %4541 = vmatpush1.msra.mxu0 0.0
  %4542 = vmatprep.subr.mxu0 0.0
  %4543 = vmatpush1.msra.mxu0 0.0
  %4544 = vmatprep.subr.mxu0 0.0
  %4545 = vmatpush1.msra.mxu0 0.0
  %4546 = vmatprep.subr.mxu0 0.0
  %4547 = vmatpush1.msra.mxu0 0.0
  %4548 = vmatprep.subr.mxu0 0.0
  %4549 = vmatpush1.msra.mxu0 0.0
  %4550 = vmatprep.subr.mxu0 0.0
  %4551 = vmatpush1.msra.mxu0 0.0
  %4552 = vmatprep.mubr.f32.mxu0 0.0
  %4553 = vmatmul.mubr.f32.gmra.mrb[0].mxu0 %v4483
  %v4554 = vpop.f32.mrb[0].mxu0
  %v4555 = vadd.f32 0.0, %v4554
  %v4556 = vpop.f32.mrb[0].mxu0
  %v4557 = vadd.f32 0.0, %v4556
  %4558 = vmatprep.mubr.f32.mxu0 0.0
  %4559 = vmatmul.mubr.f32.gmra.mrb[0].mxu0 %v4486
  %v4560 = vpop.f32.mrb[0].mxu0
  %v4561 = vadd.f32 0.0, %v4560
  %v4562 = vpop.f32.mrb[0].mxu0
  %v4563 = vadd.f32 0.0, %v4562
  %4564 = vdwg.mxu0
  %4565 = vmatprep.subr.mxu0 0.0
  %4566 = vmatpush1.msra.mxu0 %v4472
  %4567 = vmatprep.subr.mxu0 0.0
  %4568 = vmatpush1.msra.mxu0 %v4475
  %4569 = vmatprep.subr.mxu0 0.0
  %4570 = vmatpush1.msra.mxu0 0.0
  %4571 = vmatprep.subr.mxu0 0.0
  %4572 = vmatpush1.msra.mxu0 0.0
  %4573 = vmatprep.subr.mxu0 0.0
  %4574 = vmatpush1.msra.mxu0 0.0
  %4575 = vmatprep.subr.mxu0 0.0
  %4576 = vmatpush1.msra.mxu0 0.0
  %4577 = vmatprep.subr.mxu0 0.0
  %4578 = vmatpush1.msra.mxu0 0.0
  %4579 = vmatprep.subr.mxu0 0.0
  %4580 = vmatpush1.msra.mxu0 0.0
  %4581 = vmatprep.subr.mxu0 0.0
  %4582 = vmatpush1.msra.mxu0 0.0
  %4583 = vmatprep.subr.mxu0 0.0
  %4584 = vmatpush1.msra.mxu0 0.0
  %4585 = vmatprep.subr.mxu0 0.0
  %4586 = vmatpush1.msra.mxu0 0.0
  %4587 = vmatprep.subr.mxu0 0.0
  %4588 = vmatpush1.msra.mxu0 0.0
  %4589 = vmatprep.subr.mxu0 0.0
  %4590 = vmatpush1.msra.mxu0 0.0
  %4591 = vmatprep.subr.mxu0 0.0
  %4592 = vmatpush1.msra.mxu0 0.0
  %4593 = vmatprep.subr.mxu0 0.0
  %4594 = vmatpush1.msra.mxu0 0.0
  %4595 = vmatprep.subr.mxu0 0.0
  %4596 = vmatpush1.msra.mxu0 0.0
  %4597 = vmatprep.subr.mxu0 0.0
  %4598 = vmatpush1.msra.mxu0 0.0
  %4599 = vmatprep.subr.mxu0 0.0
  %4600 = vmatpush1.msra.mxu0 0.0
  %4601 = vmatprep.subr.mxu0 0.0
  %4602 = vmatpush1.msra.mxu0 0.0
  %4603 = vmatprep.subr.mxu0 0.0
  %4604 = vmatpush1.msra.mxu0 0.0
  %4605 = vmatprep.subr.mxu0 0.0
  %4606 = vmatpush1.msra.mxu0 0.0
  %4607 = vmatprep.subr.mxu0 0.0
  %4608 = vmatpush1.msra.mxu0 0.0
  %4609 = vmatprep.subr.mxu0 0.0
  %4610 = vmatpush1.msra.mxu0 0.0
  %4611 = vmatprep.subr.mxu0 0.0
  %4612 = vmatpush1.msra.mxu0 0.0
  %4613 = vmatprep.subr.mxu0 0.0
  %4614 = vmatpush1.msra.mxu0 0.0
  %4615 = vmatprep.subr.mxu0 0.0
  %4616 = vmatpush1.msra.mxu0 0.0
  %4617 = vmatprep.subr.mxu0 0.0
  %4618 = vmatpush1.msra.mxu0 0.0
  %4619 = vmatprep.subr.mxu0 0.0
  %4620 = vmatpush1.msra.mxu0 0.0
  %4621 = vmatprep.subr.mxu0 0.0
  %4622 = vmatpush1.msra.mxu0 0.0
  %4623 = vmatprep.subr.mxu0 0.0
  %4624 = vmatpush1.msra.mxu0 0.0
  %4625 = vmatprep.subr.mxu0 0.0
  %4626 = vmatpush1.msra.mxu0 0.0
  %4627 = vmatprep.subr.mxu0 0.0
  %4628 = vmatpush1.msra.mxu0 0.0
  %4629 = vmatprep.mubr.f32.mxu0 0.0
  %4630 = vmatmul.mubr.f32.gmra.mrb[0].mxu0 %v4483
  %v4631 = vpop.f32.mrb[0].mxu0
  %v4632 = vadd.f32 0.0, %v4631
  %v4633 = vpop.f32.mrb[0].mxu0
  %4634 = vmatprep.mubr.f32.mxu0 0.0
  %4635 = vmatmul.mubr.f32.gmra.mrb[0].mxu0 %v4486
  %v4636 = vpop.f32.mrb[0].mxu0
  %v4637 = vadd.f32 0.0, %v4636
  %v4638 = vpop.f32.mrb[0].mxu0
  %4639 = vdwg.mxu0
  %v4640 = vadd.f32 %v4350, %v4555
  %v4641 = vadd.f32 %v4352, %v4557
  %v4642 = vadd.f32 %v4427, %v4632
  %v4643 = vadd.f32 %v4356, %v4561
  %v4644 = vadd.f32 %v4358, %v4563
  %v4645 = vadd.f32 %v4432, %v4637
  %v4646 = vmul.f32 %v4016, %v773
  %v4647 = vmul.f32 %v4017, %v779
  %v4648 = vmul.f32 %v4018, %v780
  %v4649 = vmul.f32 %v4019, %v777
  %v4650 = vmul.f32 %v4021, %v773
  %v4651 = vmul.f32 %v4022, %v779
  %v4652 = vmul.f32 %v4023, %v780
  %v4653 = vmul.f32 %v4024, %v777
  %s4654 = scalar_lea.vmem %s7, 48
  %v4655 = vld [vmem:[%s4654] sm:$0xff]
  %v4656 = vld [vmem:[%s4654 + $0x8] sm:$0xff]
  %4665 = vrot.lane.b32.xlu0 %v4646, 1
  %v4666 = vpop.permute.xlu0 %4665
  %4667 = vrot.lane.b32.xlu0 %v4647, 1
  %v4668 = vpop.permute.xlu0 %4667
  %4669 = vrot.lane.b32.xlu0 %v4648, 1
  %v4670 = vpop.permute.xlu0 %4669
  %4671 = vrot.lane.b32.xlu0 %v4649, 1
  %v4672 = vpop.permute.xlu0 %4671
  %4673 = vrot.lane.b32.xlu0 %v4650, 1
  %v4674 = vpop.permute.xlu0 %4673
  %4675 = vrot.lane.b32.xlu0 %v4651, 1
  %v4676 = vpop.permute.xlu0 %4675
  %4677 = vrot.lane.b32.xlu0 %v4652, 1
  %v4678 = vpop.permute.xlu0 %4677
  %4679 = vrot.lane.b32.xlu0 %v4653, 1
  %v4680 = vpop.permute.xlu0 %4679
  %v4681 = vsel %vm820, %v4666, %v4668
  %v4682 = vsel %vm820, %v4668, %v4670
  %v4683 = vsel %vm820, %v4670, %v4672
  %v4684 = vsel %vm820, %v4674, %v4676
  %v4685 = vsel %vm820, %v4676, %v4678
  %v4686 = vsel %vm820, %v4678, %v4680
  %v4694 = vsel %vm163, %v4655, 0
  %v4697 = vsel %vm163, %v4656, 0
  %4699 = vmatprep.subr.mxu0 %v4682
  %4700 = vmatpush1.msra.mxu0 %v4681
  %4701 = vmatprep.subr.mxu0 %v4685
  %4702 = vmatpush1.msra.mxu0 %v4684
  %4703 = vmatprep.subr.mxu0 0.0
  %4704 = vmatpush1.msra.mxu0 0.0
  %4705 = vmatprep.subr.mxu0 0.0
  %4706 = vmatpush1.msra.mxu0 0.0
  %4707 = vmatprep.subr.mxu0 0.0
  %4708 = vmatpush1.msra.mxu0 0.0
  %4709 = vmatprep.subr.mxu0 0.0
  %4710 = vmatpush1.msra.mxu0 0.0
  %4711 = vmatprep.subr.mxu0 0.0
  %4712 = vmatpush1.msra.mxu0 0.0
  %4713 = vmatprep.subr.mxu0 0.0
  %4714 = vmatpush1.msra.mxu0 0.0
  %4715 = vmatprep.subr.mxu0 0.0
  %4716 = vmatpush1.msra.mxu0 0.0
  %4717 = vmatprep.subr.mxu0 0.0
  %4718 = vmatpush1.msra.mxu0 0.0
  %4719 = vmatprep.subr.mxu0 0.0
  %4720 = vmatpush1.msra.mxu0 0.0
  %4721 = vmatprep.subr.mxu0 0.0
  %4722 = vmatpush1.msra.mxu0 0.0
  %4723 = vmatprep.subr.mxu0 0.0
  %4724 = vmatpush1.msra.mxu0 0.0
  %4725 = vmatprep.subr.mxu0 0.0
  %4726 = vmatpush1.msra.mxu0 0.0
  %4727 = vmatprep.subr.mxu0 0.0
  %4728 = vmatpush1.msra.mxu0 0.0
  %4729 = vmatprep.subr.mxu0 0.0
  %4730 = vmatpush1.msra.mxu0 0.0
  %4731 = vmatprep.subr.mxu0 0.0
  %4732 = vmatpush1.msra.mxu0 0.0
  %4733 = vmatprep.subr.mxu0 0.0
  %4734 = vmatpush1.msra.mxu0 0.0
  %4735 = vmatprep.subr.mxu0 0.0
  %4736 = vmatpush1.msra.mxu0 0.0
  %4737 = vmatprep.subr.mxu0 0.0
  %4738 = vmatpush1.msra.mxu0 0.0
  %4739 = vmatprep.subr.mxu0 0.0
  %4740 = vmatpush1.msra.mxu0 0.0
  %4741 = vmatprep.subr.mxu0 0.0
  %4742 = vmatpush1.msra.mxu0 0.0
  %4743 = vmatprep.subr.mxu0 0.0
  %4744 = vmatpush1.msra.mxu0 0.0
  %4745 = vmatprep.subr.mxu0 0.0
  %4746 = vmatpush1.msra.mxu0 0.0
  %4747 = vmatprep.subr.mxu0 0.0
  %4748 = vmatpush1.msra.mxu0 0.0
  %4749 = vmatprep.subr.mxu0 0.0
  %4750 = vmatpush1.msra.mxu0 0.0
  %4751 = vmatprep.subr.mxu0 0.0
  %4752 = vmatpush1.msra.mxu0 0.0
  %4753 = vmatprep.subr.mxu0 0.0
  %4754 = vmatpush1.msra.mxu0 0.0
  %4755 = vmatprep.subr.mxu0 0.0
  %4756 = vmatpush1.msra.mxu0 0.0
  %4757 = vmatprep.subr.mxu0 0.0
  %4758 = vmatpush1.msra.mxu0 0.0
  %4759 = vmatprep.subr.mxu0 0.0
  %4760 = vmatpush1.msra.mxu0 0.0
  %4761 = vmatprep.subr.mxu0 0.0
  %4762 = vmatpush1.msra.mxu0 0.0
  %4763 = vmatprep.mubr.f32.mxu0 0.0
  %4764 = vmatmul.mubr.f32.gmra.mrb[0].mxu0 %v4694
  %v4765 = vpop.f32.mrb[0].mxu0
  %v4766 = vadd.f32 0.0, %v4765
  %v4767 = vpop.f32.mrb[0].mxu0
  %v4768 = vadd.f32 0.0, %v4767
  %4769 = vmatprep.mubr.f32.mxu0 0.0
  %4770 = vmatmul.mubr.f32.gmra.mrb[0].mxu0 %v4697
  %v4771 = vpop.f32.mrb[0].mxu0
  %v4772 = vadd.f32 0.0, %v4771
  %v4773 = vpop.f32.mrb[0].mxu0
  %v4774 = vadd.f32 0.0, %v4773
  %4775 = vdwg.mxu0
  %4776 = vmatprep.subr.mxu0 0.0
  %4777 = vmatpush1.msra.mxu0 %v4683
  %4778 = vmatprep.subr.mxu0 0.0
  %4779 = vmatpush1.msra.mxu0 %v4686
  %4780 = vmatprep.subr.mxu0 0.0
  %4781 = vmatpush1.msra.mxu0 0.0
  %4782 = vmatprep.subr.mxu0 0.0
  %4783 = vmatpush1.msra.mxu0 0.0
  %4784 = vmatprep.subr.mxu0 0.0
  %4785 = vmatpush1.msra.mxu0 0.0
  %4786 = vmatprep.subr.mxu0 0.0
  %4787 = vmatpush1.msra.mxu0 0.0
  %4788 = vmatprep.subr.mxu0 0.0
  %4789 = vmatpush1.msra.mxu0 0.0
  %4790 = vmatprep.subr.mxu0 0.0
  %4791 = vmatpush1.msra.mxu0 0.0
  %4792 = vmatprep.subr.mxu0 0.0
  %4793 = vmatpush1.msra.mxu0 0.0
  %4794 = vmatprep.subr.mxu0 0.0
  %4795 = vmatpush1.msra.mxu0 0.0
  %4796 = vmatprep.subr.mxu0 0.0
  %4797 = vmatpush1.msra.mxu0 0.0
  %4798 = vmatprep.subr.mxu0 0.0
  %4799 = vmatpush1.msra.mxu0 0.0
  %4800 = vmatprep.subr.mxu0 0.0
  %4801 = vmatpush1.msra.mxu0 0.0
  %4802 = vmatprep.subr.mxu0 0.0
  %4803 = vmatpush1.msra.mxu0 0.0
  %4804 = vmatprep.subr.mxu0 0.0
  %4805 = vmatpush1.msra.mxu0 0.0
  %4806 = vmatprep.subr.mxu0 0.0
  %4807 = vmatpush1.msra.mxu0 0.0
  %4808 = vmatprep.subr.mxu0 0.0
  %4809 = vmatpush1.msra.mxu0 0.0
  %4810 = vmatprep.subr.mxu0 0.0
  %4811 = vmatpush1.msra.mxu0 0.0
  %4812 = vmatprep.subr.mxu0 0.0
  %4813 = vmatpush1.msra.mxu0 0.0
  %4814 = vmatprep.subr.mxu0 0.0
  %4815 = vmatpush1.msra.mxu0 0.0
  %4816 = vmatprep.subr.mxu0 0.0
  %4817 = vmatpush1.msra.mxu0 0.0
  %4818 = vmatprep.subr.mxu0 0.0
  %4819 = vmatpush1.msra.mxu0 0.0
  %4820 = vmatprep.subr.mxu0 0.0
  %4821 = vmatpush1.msra.mxu0 0.0
  %4822 = vmatprep.subr.mxu0 0.0
  %4823 = vmatpush1.msra.mxu0 0.0
  %4824 = vmatprep.subr.mxu0 0.0
  %4825 = vmatpush1.msra.mxu0 0.0
  %4826 = vmatprep.subr.mxu0 0.0
  %4827 = vmatpush1.msra.mxu0 0.0
  %4828 = vmatprep.subr.mxu0 0.0
  %4829 = vmatpush1.msra.mxu0 0.0
  %4830 = vmatprep.subr.mxu0 0.0
  %4831 = vmatpush1.msra.mxu0 0.0
  %4832 = vmatprep.subr.mxu0 0.0
  %4833 = vmatpush1.msra.mxu0 0.0
  %4834 = vmatprep.subr.mxu0 0.0
  %4835 = vmatpush1.msra.mxu0 0.0
  %4836 = vmatprep.subr.mxu0 0.0
  %4837 = vmatpush1.msra.mxu0 0.0
  %4838 = vmatprep.subr.mxu0 0.0
  %4839 = vmatpush1.msra.mxu0 0.0
  %4840 = vmatprep.mubr.f32.mxu0 0.0
  %4841 = vmatmul.mubr.f32.gmra.mrb[0].mxu0 %v4694
  %v4842 = vpop.f32.mrb[0].mxu0
  %v4843 = vadd.f32 0.0, %v4842
  %v4844 = vpop.f32.mrb[0].mxu0
  %4845 = vmatprep.mubr.f32.mxu0 0.0
  %4846 = vmatmul.mubr.f32.gmra.mrb[0].mxu0 %v4697
  %v4847 = vpop.f32.mrb[0].mxu0
  %v4848 = vadd.f32 0.0, %v4847
  %v4849 = vpop.f32.mrb[0].mxu0
  %4850 = vdwg.mxu0
  %v4851 = vadd.f32 %v4640, %v4766
  %v4852 = vadd.f32 %v4641, %v4768
  %v4853 = vadd.f32 %v4642, %v4843
  %v4854 = vadd.f32 %v4643, %v4772
  %v4855 = vadd.f32 %v4644, %v4774
  %v4856 = vadd.f32 %v4645, %v4848
  %v4857 = vmul.f32 %v4017, %v1003
  %v4858 = vmul.f32 %v4018, %v1007
  %v4859 = vmul.f32 %v4019, %v1011
  %v4860 = vmul.f32 %v4022, %v1003
  %v4861 = vmul.f32 %v4023, %v1007
  %v4862 = vmul.f32 %v4024, %v1011
  %s4863 = scalar_lea.vmem %s7, 64
  %v4864 = vld [vmem:[%s4863] sm:$0xff]
  %v4865 = vld [vmem:[%s4863 + $0x8] sm:$0xff]
  %v4867 = vsel %vm163, %v4864, 0
  %v4870 = vsel %vm163, %v4865, 0
  %4872 = vmatprep.subr.mxu0 %v4858
  %4873 = vmatpush1.msra.mxu0 %v4857
  %4874 = vmatprep.subr.mxu0 %v4861
  %4875 = vmatpush1.msra.mxu0 %v4860
  %4876 = vmatprep.subr.mxu0 0.0
  %4877 = vmatpush1.msra.mxu0 0.0
  %4878 = vmatprep.subr.mxu0 0.0
  %4879 = vmatpush1.msra.mxu0 0.0
  %4880 = vmatprep.subr.mxu0 0.0
  %4881 = vmatpush1.msra.mxu0 0.0
  %4882 = vmatprep.subr.mxu0 0.0
  %4883 = vmatpush1.msra.mxu0 0.0
  %4884 = vmatprep.subr.mxu0 0.0
  %4885 = vmatpush1.msra.mxu0 0.0
  %4886 = vmatprep.subr.mxu0 0.0
  %4887 = vmatpush1.msra.mxu0 0.0
  %4888 = vmatprep.subr.mxu0 0.0
  %4889 = vmatpush1.msra.mxu0 0.0
  %4890 = vmatprep.subr.mxu0 0.0
  %4891 = vmatpush1.msra.mxu0 0.0
  %4892 = vmatprep.subr.mxu0 0.0
  %4893 = vmatpush1.msra.mxu0 0.0
  %4894 = vmatprep.subr.mxu0 0.0
  %4895 = vmatpush1.msra.mxu0 0.0
  %4896 = vmatprep.subr.mxu0 0.0
  %4897 = vmatpush1.msra.mxu0 0.0
  %4898 = vmatprep.subr.mxu0 0.0
  %4899 = vmatpush1.msra.mxu0 0.0
  %4900 = vmatprep.subr.mxu0 0.0
  %4901 = vmatpush1.msra.mxu0 0.0
  %4902 = vmatprep.subr.mxu0 0.0
  %4903 = vmatpush1.msra.mxu0 0.0
  %4904 = vmatprep.subr.mxu0 0.0
  %4905 = vmatpush1.msra.mxu0 0.0
  %4906 = vmatprep.subr.mxu0 0.0
  %4907 = vmatpush1.msra.mxu0 0.0
  %4908 = vmatprep.subr.mxu0 0.0
  %4909 = vmatpush1.msra.mxu0 0.0
  %4910 = vmatprep.subr.mxu0 0.0
  %4911 = vmatpush1.msra.mxu0 0.0
  %4912 = vmatprep.subr.mxu0 0.0
  %4913 = vmatpush1.msra.mxu0 0.0
  %4914 = vmatprep.subr.mxu0 0.0
  %4915 = vmatpush1.msra.mxu0 0.0
  %4916 = vmatprep.subr.mxu0 0.0
  %4917 = vmatpush1.msra.mxu0 0.0
  %4918 = vmatprep.subr.mxu0 0.0
  %4919 = vmatpush1.msra.mxu0 0.0
  %4920 = vmatprep.subr.mxu0 0.0
  %4921 = vmatpush1.msra.mxu0 0.0
  %4922 = vmatprep.subr.mxu0 0.0
  %4923 = vmatpush1.msra.mxu0 0.0
  %4924 = vmatprep.subr.mxu0 0.0
  %4925 = vmatpush1.msra.mxu0 0.0
  %4926 = vmatprep.subr.mxu0 0.0
  %4927 = vmatpush1.msra.mxu0 0.0
  %4928 = vmatprep.subr.mxu0 0.0
  %4929 = vmatpush1.msra.mxu0 0.0
  %4930 = vmatprep.subr.mxu0 0.0
  %4931 = vmatpush1.msra.mxu0 0.0
  %4932 = vmatprep.subr.mxu0 0.0
  %4933 = vmatpush1.msra.mxu0 0.0
  %4934 = vmatprep.subr.mxu0 0.0
  %4935 = vmatpush1.msra.mxu0 0.0
  %4936 = vmatprep.mubr.f32.mxu0 0.0
  %4937 = vmatmul.mubr.f32.gmra.mrb[0].mxu0 %v4867
  %v4938 = vpop.f32.mrb[0].mxu0
  %v4939 = vadd.f32 0.0, %v4938
  %v4940 = vpop.f32.mrb[0].mxu0
  %v4941 = vadd.f32 0.0, %v4940
  %4942 = vmatprep.mubr.f32.mxu0 0.0
  %4943 = vmatmul.mubr.f32.gmra.mrb[0].mxu0 %v4870
  %v4944 = vpop.f32.mrb[0].mxu0
  %v4945 = vadd.f32 0.0, %v4944
  %v4946 = vpop.f32.mrb[0].mxu0
  %v4947 = vadd.f32 0.0, %v4946
  %4948 = vdwg.mxu0
  %4949 = vmatprep.subr.mxu0 0.0
  %4950 = vmatpush1.msra.mxu0 %v4859
  %4951 = vmatprep.subr.mxu0 0.0
  %4952 = vmatpush1.msra.mxu0 %v4862
  %4953 = vmatprep.subr.mxu0 0.0
  %4954 = vmatpush1.msra.mxu0 0.0
  %4955 = vmatprep.subr.mxu0 0.0
  %4956 = vmatpush1.msra.mxu0 0.0
  %4957 = vmatprep.subr.mxu0 0.0
  %4958 = vmatpush1.msra.mxu0 0.0
  %4959 = vmatprep.subr.mxu0 0.0
  %4960 = vmatpush1.msra.mxu0 0.0
  %4961 = vmatprep.subr.mxu0 0.0
  %4962 = vmatpush1.msra.mxu0 0.0
  %4963 = vmatprep.subr.mxu0 0.0
  %4964 = vmatpush1.msra.mxu0 0.0
  %4965 = vmatprep.subr.mxu0 0.0
  %4966 = vmatpush1.msra.mxu0 0.0
  %4967 = vmatprep.subr.mxu0 0.0
  %4968 = vmatpush1.msra.mxu0 0.0
  %4969 = vmatprep.subr.mxu0 0.0
  %4970 = vmatpush1.msra.mxu0 0.0
  %4971 = vmatprep.subr.mxu0 0.0
  %4972 = vmatpush1.msra.mxu0 0.0
  %4973 = vmatprep.subr.mxu0 0.0
  %4974 = vmatpush1.msra.mxu0 0.0
  %4975 = vmatprep.subr.mxu0 0.0
  %4976 = vmatpush1.msra.mxu0 0.0
  %4977 = vmatprep.subr.mxu0 0.0
  %4978 = vmatpush1.msra.mxu0 0.0
  %4979 = vmatprep.subr.mxu0 0.0
  %4980 = vmatpush1.msra.mxu0 0.0
  %4981 = vmatprep.subr.mxu0 0.0
  %4982 = vmatpush1.msra.mxu0 0.0
  %4983 = vmatprep.subr.mxu0 0.0
  %4984 = vmatpush1.msra.mxu0 0.0
  %4985 = vmatprep.subr.mxu0 0.0
  %4986 = vmatpush1.msra.mxu0 0.0
  %4987 = vmatprep.subr.mxu0 0.0
  %4988 = vmatpush1.msra.mxu0 0.0
  %4989 = vmatprep.subr.mxu0 0.0
  %4990 = vmatpush1.msra.mxu0 0.0
  %4991 = vmatprep.subr.mxu0 0.0
  %4992 = vmatpush1.msra.mxu0 0.0
  %4993 = vmatprep.subr.mxu0 0.0
  %4994 = vmatpush1.msra.mxu0 0.0
  %4995 = vmatprep.subr.mxu0 0.0
  %4996 = vmatpush1.msra.mxu0 0.0
  %4997 = vmatprep.subr.mxu0 0.0
  %4998 = vmatpush1.msra.mxu0 0.0
  %4999 = vmatprep.subr.mxu0 0.0
  %5000 = vmatpush1.msra.mxu0 0.0
  %5001 = vmatprep.subr.mxu0 0.0
  %5002 = vmatpush1.msra.mxu0 0.0
  %5003 = vmatprep.subr.mxu0 0.0
  %5004 = vmatpush1.msra.mxu0 0.0
  %5005 = vmatprep.subr.mxu0 0.0
  %5006 = vmatpush1.msra.mxu0 0.0
  %5007 = vmatprep.subr.mxu0 0.0
  %5008 = vmatpush1.msra.mxu0 0.0
  %5009 = vmatprep.subr.mxu0 0.0
  %5010 = vmatpush1.msra.mxu0 0.0
  %5011 = vmatprep.subr.mxu0 0.0
  %5012 = vmatpush1.msra.mxu0 0.0
  %5013 = vmatprep.mubr.f32.mxu0 0.0
  %5014 = vmatmul.mubr.f32.gmra.mrb[0].mxu0 %v4867
  %v5015 = vpop.f32.mrb[0].mxu0
  %v5016 = vadd.f32 0.0, %v5015
  %v5017 = vpop.f32.mrb[0].mxu0
  %5018 = vmatprep.mubr.f32.mxu0 0.0
  %5019 = vmatmul.mubr.f32.gmra.mrb[0].mxu0 %v4870
  %v5020 = vpop.f32.mrb[0].mxu0
  %v5021 = vadd.f32 0.0, %v5020
  %v5022 = vpop.f32.mrb[0].mxu0
  %5023 = vdwg.mxu0
  %v5024 = vadd.f32 %v4851, %v4939
  %v5025 = vadd.f32 %v4852, %v4941
  %v5026 = vadd.f32 %v4853, %v5016
  %v5027 = vadd.f32 %v4854, %v4945
  %v5028 = vadd.f32 %v4855, %v4947
  %v5029 = vadd.f32 %v4856, %v5021
  %v5030 = vmul.f32 %v4017, %v1204
  %v5031 = vmul.f32 %v4018, %v1209
  %v5032 = vmul.f32 %v4019, %v1210
  %v5033 = vmul.f32 %v4020, %v1208
  %v5034 = vmul.f32 %v4022, %v1204
  %v5035 = vmul.f32 %v4023, %v1209
  %v5036 = vmul.f32 %v4024, %v1210
  %v5037 = vmul.f32 %v4025, %v1208
  %s5038 = scalar_lea.vmem %s7, 80
  %v5039 = vld [vmem:[%s5038] sm:$0xff]
  %v5040 = vld [vmem:[%s5038 + $0x8] sm:$0xff]
  %5049 = vrot.lane.b32.xlu0 %v5030, 127
  %v5050 = vpop.permute.xlu0 %5049
  %5051 = vrot.lane.b32.xlu0 %v5031, 127
  %v5052 = vpop.permute.xlu0 %5051
  %5053 = vrot.lane.b32.xlu0 %v5032, 127
  %v5054 = vpop.permute.xlu0 %5053
  %5055 = vrot.lane.b32.xlu0 %v5033, 127
  %v5056 = vpop.permute.xlu0 %5055
  %5057 = vrot.lane.b32.xlu0 %v5034, 127
  %v5058 = vpop.permute.xlu0 %5057
  %5059 = vrot.lane.b32.xlu0 %v5035, 127
  %v5060 = vpop.permute.xlu0 %5059
  %5061 = vrot.lane.b32.xlu0 %v5036, 127
  %v5062 = vpop.permute.xlu0 %5061
  %5063 = vrot.lane.b32.xlu0 %v5037, 127
  %v5064 = vpop.permute.xlu0 %5063
  %v5065 = vsel %vm778, %v5050, %v5052
  %v5066 = vsel %vm778, %v5052, %v5054
  %v5067 = vsel %vm778, %v5054, %v5056
  %v5068 = vsel %vm778, %v5058, %v5060
  %v5069 = vsel %vm778, %v5060, %v5062
  %v5070 = vsel %vm778, %v5062, %v5064
  %v5078 = vsel %vm163, %v5039, 0
  %v5081 = vsel %vm163, %v5040, 0
  %5083 = vmatprep.subr.mxu0 %v5066
  %5084 = vmatpush1.msra.mxu0 %v5065
  %5085 = vmatprep.subr.mxu0 %v5069
  %5086 = vmatpush1.msra.mxu0 %v5068
  %5087 = vmatprep.subr.mxu0 0.0
  %5088 = vmatpush1.msra.mxu0 0.0
  %5089 = vmatprep.subr.mxu0 0.0
  %5090 = vmatpush1.msra.mxu0 0.0
  %5091 = vmatprep.subr.mxu0 0.0
  %5092 = vmatpush1.msra.mxu0 0.0
  %5093 = vmatprep.subr.mxu0 0.0
  %5094 = vmatpush1.msra.mxu0 0.0
  %5095 = vmatprep.subr.mxu0 0.0
  %5096 = vmatpush1.msra.mxu0 0.0
  %5097 = vmatprep.subr.mxu0 0.0
  %5098 = vmatpush1.msra.mxu0 0.0
  %5099 = vmatprep.subr.mxu0 0.0
  %5100 = vmatpush1.msra.mxu0 0.0
  %5101 = vmatprep.subr.mxu0 0.0
  %5102 = vmatpush1.msra.mxu0 0.0
  %5103 = vmatprep.subr.mxu0 0.0
  %5104 = vmatpush1.msra.mxu0 0.0
  %5105 = vmatprep.subr.mxu0 0.0
  %5106 = vmatpush1.msra.mxu0 0.0
  %5107 = vmatprep.subr.mxu0 0.0
  %5108 = vmatpush1.msra.mxu0 0.0
  %5109 = vmatprep.subr.mxu0 0.0
  %5110 = vmatpush1.msra.mxu0 0.0
  %5111 = vmatprep.subr.mxu0 0.0
  %5112 = vmatpush1.msra.mxu0 0.0
  %5113 = vmatprep.subr.mxu0 0.0
  %5114 = vmatpush1.msra.mxu0 0.0
  %5115 = vmatprep.subr.mxu0 0.0
  %5116 = vmatpush1.msra.mxu0 0.0
  %5117 = vmatprep.subr.mxu0 0.0
  %5118 = vmatpush1.msra.mxu0 0.0
  %5119 = vmatprep.subr.mxu0 0.0
  %5120 = vmatpush1.msra.mxu0 0.0
  %5121 = vmatprep.subr.mxu0 0.0
  %5122 = vmatpush1.msra.mxu0 0.0
  %5123 = vmatprep.subr.mxu0 0.0
  %5124 = vmatpush1.msra.mxu0 0.0
  %5125 = vmatprep.subr.mxu0 0.0
  %5126 = vmatpush1.msra.mxu0 0.0
  %5127 = vmatprep.subr.mxu0 0.0
  %5128 = vmatpush1.msra.mxu0 0.0
  %5129 = vmatprep.subr.mxu0 0.0
  %5130 = vmatpush1.msra.mxu0 0.0
  %5131 = vmatprep.subr.mxu0 0.0
  %5132 = vmatpush1.msra.mxu0 0.0
  %5133 = vmatprep.subr.mxu0 0.0
  %5134 = vmatpush1.msra.mxu0 0.0
  %5135 = vmatprep.subr.mxu0 0.0
  %5136 = vmatpush1.msra.mxu0 0.0
  %5137 = vmatprep.subr.mxu0 0.0
  %5138 = vmatpush1.msra.mxu0 0.0
  %5139 = vmatprep.subr.mxu0 0.0
  %5140 = vmatpush1.msra.mxu0 0.0
  %5141 = vmatprep.subr.mxu0 0.0
  %5142 = vmatpush1.msra.mxu0 0.0
  %5143 = vmatprep.subr.mxu0 0.0
  %5144 = vmatpush1.msra.mxu0 0.0
  %5145 = vmatprep.subr.mxu0 0.0
  %5146 = vmatpush1.msra.mxu0 0.0
  %5147 = vmatprep.mubr.f32.mxu0 0.0
  %5148 = vmatmul.mubr.f32.gmra.mrb[0].mxu0 %v5078
  %v5149 = vpop.f32.mrb[0].mxu0
  %v5150 = vadd.f32 0.0, %v5149
  %v5151 = vpop.f32.mrb[0].mxu0
  %v5152 = vadd.f32 0.0, %v5151
  %5153 = vmatprep.mubr.f32.mxu0 0.0
  %5154 = vmatmul.mubr.f32.gmra.mrb[0].mxu0 %v5081
  %v5155 = vpop.f32.mrb[0].mxu0
  %v5156 = vadd.f32 0.0, %v5155
  %v5157 = vpop.f32.mrb[0].mxu0
  %v5158 = vadd.f32 0.0, %v5157
  %5159 = vdwg.mxu0
  %5160 = vmatprep.subr.mxu0 0.0
  %5161 = vmatpush1.msra.mxu0 %v5067
  %5162 = vmatprep.subr.mxu0 0.0
  %5163 = vmatpush1.msra.mxu0 %v5070
  %5164 = vmatprep.subr.mxu0 0.0
  %5165 = vmatpush1.msra.mxu0 0.0
  %5166 = vmatprep.subr.mxu0 0.0
  %5167 = vmatpush1.msra.mxu0 0.0
  %5168 = vmatprep.subr.mxu0 0.0
  %5169 = vmatpush1.msra.mxu0 0.0
  %5170 = vmatprep.subr.mxu0 0.0
  %5171 = vmatpush1.msra.mxu0 0.0
  %5172 = vmatprep.subr.mxu0 0.0
  %5173 = vmatpush1.msra.mxu0 0.0
  %5174 = vmatprep.subr.mxu0 0.0
  %5175 = vmatpush1.msra.mxu0 0.0
  %5176 = vmatprep.subr.mxu0 0.0
  %5177 = vmatpush1.msra.mxu0 0.0
  %5178 = vmatprep.subr.mxu0 0.0
  %5179 = vmatpush1.msra.mxu0 0.0
  %5180 = vmatprep.subr.mxu0 0.0
  %5181 = vmatpush1.msra.mxu0 0.0
  %5182 = vmatprep.subr.mxu0 0.0
  %5183 = vmatpush1.msra.mxu0 0.0
  %5184 = vmatprep.subr.mxu0 0.0
  %5185 = vmatpush1.msra.mxu0 0.0
  %5186 = vmatprep.subr.mxu0 0.0
  %5187 = vmatpush1.msra.mxu0 0.0
  %5188 = vmatprep.subr.mxu0 0.0
  %5189 = vmatpush1.msra.mxu0 0.0
  %5190 = vmatprep.subr.mxu0 0.0
  %5191 = vmatpush1.msra.mxu0 0.0
  %5192 = vmatprep.subr.mxu0 0.0
  %5193 = vmatpush1.msra.mxu0 0.0
  %5194 = vmatprep.subr.mxu0 0.0
  %5195 = vmatpush1.msra.mxu0 0.0
  %5196 = vmatprep.subr.mxu0 0.0
  %5197 = vmatpush1.msra.mxu0 0.0
  %5198 = vmatprep.subr.mxu0 0.0
  %5199 = vmatpush1.msra.mxu0 0.0
  %5200 = vmatprep.subr.mxu0 0.0
  %5201 = vmatpush1.msra.mxu0 0.0
  %5202 = vmatprep.subr.mxu0 0.0
  %5203 = vmatpush1.msra.mxu0 0.0
  %5204 = vmatprep.subr.mxu0 0.0
  %5205 = vmatpush1.msra.mxu0 0.0
  %5206 = vmatprep.subr.mxu0 0.0
  %5207 = vmatpush1.msra.mxu0 0.0
  %5208 = vmatprep.subr.mxu0 0.0
  %5209 = vmatpush1.msra.mxu0 0.0
  %5210 = vmatprep.subr.mxu0 0.0
  %5211 = vmatpush1.msra.mxu0 0.0
  %5212 = vmatprep.subr.mxu0 0.0
  %5213 = vmatpush1.msra.mxu0 0.0
  %5214 = vmatprep.subr.mxu0 0.0
  %5215 = vmatpush1.msra.mxu0 0.0
  %5216 = vmatprep.subr.mxu0 0.0
  %5217 = vmatpush1.msra.mxu0 0.0
  %5218 = vmatprep.subr.mxu0 0.0
  %5219 = vmatpush1.msra.mxu0 0.0
  %5220 = vmatprep.subr.mxu0 0.0
  %5221 = vmatpush1.msra.mxu0 0.0
  %5222 = vmatprep.subr.mxu0 0.0
  %5223 = vmatpush1.msra.mxu0 0.0
  %5224 = vmatprep.mubr.f32.mxu0 0.0
  %5225 = vmatmul.mubr.f32.gmra.mrb[0].mxu0 %v5078
  %v5226 = vpop.f32.mrb[0].mxu0
  %v5227 = vadd.f32 0.0, %v5226
  %v5228 = vpop.f32.mrb[0].mxu0
  %5229 = vmatprep.mubr.f32.mxu0 0.0
  %5230 = vmatmul.mubr.f32.gmra.mrb[0].mxu0 %v5081
  %v5231 = vpop.f32.mrb[0].mxu0
  %v5232 = vadd.f32 0.0, %v5231
  %v5233 = vpop.f32.mrb[0].mxu0
  %5234 = vdwg.mxu0
  %v5235 = vadd.f32 %v5024, %v5150
  %v5236 = vadd.f32 %v5025, %v5152
  %v5237 = vadd.f32 %v5026, %v5227
  %v5238 = vadd.f32 %v5027, %v5156
  %v5239 = vadd.f32 %v5028, %v5158
  %v5240 = vadd.f32 %v5029, %v5232
  %v5241 = vmul.f32 %v4017, %v1442
  %v5242 = vmul.f32 %v4018, %v1447
  %v5243 = vmul.f32 %v4019, %v1448
  %v5244 = vmul.f32 %v4020, %v1446
  %v5245 = vmul.f32 %v4022, %v1442
  %v5246 = vmul.f32 %v4023, %v1447
  %v5247 = vmul.f32 %v4024, %v1448
  %v5248 = vmul.f32 %v4025, %v1446
  %s5249 = scalar_lea.vmem %s7, 96
  %v5250 = vld [vmem:[%s5249] sm:$0xff]
  %v5251 = vld [vmem:[%s5249 + $0x8] sm:$0xff]
  %5260 = vrot.lane.b32.xlu0 %v5241, 120
  %v5261 = vpop.permute.xlu0 %5260
  %5262 = vrot.lane.b32.xlu0 %v5242, 120
  %v5263 = vpop.permute.xlu0 %5262
  %5264 = vrot.lane.b32.xlu0 %v5243, 120
  %v5265 = vpop.permute.xlu0 %5264
  %5266 = vrot.lane.b32.xlu0 %v5244, 120
  %v5267 = vpop.permute.xlu0 %5266
  %5268 = vrot.lane.b32.xlu0 %v5245, 120
  %v5269 = vpop.permute.xlu0 %5268
  %5270 = vrot.lane.b32.xlu0 %v5246, 120
  %v5271 = vpop.permute.xlu0 %5270
  %5272 = vrot.lane.b32.xlu0 %v5247, 120
  %v5273 = vpop.permute.xlu0 %5272
  %5274 = vrot.lane.b32.xlu0 %v5248, 120
  %v5275 = vpop.permute.xlu0 %5274
  %v5276 = vsel %vm538, %v5261, %v5263
  %v5277 = vsel %vm538, %v5263, %v5265
  %v5278 = vsel %vm538, %v5265, %v5267
  %v5279 = vsel %vm538, %v5269, %v5271
  %v5280 = vsel %vm538, %v5271, %v5273
  %v5281 = vsel %vm538, %v5273, %v5275
  %v5289 = vsel %vm163, %v5250, 0
  %v5292 = vsel %vm163, %v5251, 0
  %5294 = vmatprep.subr.mxu0 %v5277
  %5295 = vmatpush1.msra.mxu0 %v5276
  %5296 = vmatprep.subr.mxu0 %v5280
  %5297 = vmatpush1.msra.mxu0 %v5279
  %5298 = vmatprep.subr.mxu0 0.0
  %5299 = vmatpush1.msra.mxu0 0.0
  %5300 = vmatprep.subr.mxu0 0.0
  %5301 = vmatpush1.msra.mxu0 0.0
  %5302 = vmatprep.subr.mxu0 0.0
  %5303 = vmatpush1.msra.mxu0 0.0
  %5304 = vmatprep.subr.mxu0 0.0
  %5305 = vmatpush1.msra.mxu0 0.0
  %5306 = vmatprep.subr.mxu0 0.0
  %5307 = vmatpush1.msra.mxu0 0.0
  %5308 = vmatprep.subr.mxu0 0.0
  %5309 = vmatpush1.msra.mxu0 0.0
  %5310 = vmatprep.subr.mxu0 0.0
  %5311 = vmatpush1.msra.mxu0 0.0
  %5312 = vmatprep.subr.mxu0 0.0
  %5313 = vmatpush1.msra.mxu0 0.0
  %5314 = vmatprep.subr.mxu0 0.0
  %5315 = vmatpush1.msra.mxu0 0.0
  %5316 = vmatprep.subr.mxu0 0.0
  %5317 = vmatpush1.msra.mxu0 0.0
  %5318 = vmatprep.subr.mxu0 0.0
  %5319 = vmatpush1.msra.mxu0 0.0
  %5320 = vmatprep.subr.mxu0 0.0
  %5321 = vmatpush1.msra.mxu0 0.0
  %5322 = vmatprep.subr.mxu0 0.0
  %5323 = vmatpush1.msra.mxu0 0.0
  %5324 = vmatprep.subr.mxu0 0.0
  %5325 = vmatpush1.msra.mxu0 0.0
  %5326 = vmatprep.subr.mxu0 0.0
  %5327 = vmatpush1.msra.mxu0 0.0
  %5328 = vmatprep.subr.mxu0 0.0
  %5329 = vmatpush1.msra.mxu0 0.0
  %5330 = vmatprep.subr.mxu0 0.0
  %5331 = vmatpush1.msra.mxu0 0.0
  %5332 = vmatprep.subr.mxu0 0.0
  %5333 = vmatpush1.msra.mxu0 0.0
  %5334 = vmatprep.subr.mxu0 0.0
  %5335 = vmatpush1.msra.mxu0 0.0
  %5336 = vmatprep.subr.mxu0 0.0
  %5337 = vmatpush1.msra.mxu0 0.0
  %5338 = vmatprep.subr.mxu0 0.0
  %5339 = vmatpush1.msra.mxu0 0.0
  %5340 = vmatprep.subr.mxu0 0.0
  %5341 = vmatpush1.msra.mxu0 0.0
  %5342 = vmatprep.subr.mxu0 0.0
  %5343 = vmatpush1.msra.mxu0 0.0
  %5344 = vmatprep.subr.mxu0 0.0
  %5345 = vmatpush1.msra.mxu0 0.0
  %5346 = vmatprep.subr.mxu0 0.0
  %5347 = vmatpush1.msra.mxu0 0.0
  %5348 = vmatprep.subr.mxu0 0.0
  %5349 = vmatpush1.msra.mxu0 0.0
  %5350 = vmatprep.subr.mxu0 0.0
  %5351 = vmatpush1.msra.mxu0 0.0
  %5352 = vmatprep.subr.mxu0 0.0
  %5353 = vmatpush1.msra.mxu0 0.0
  %5354 = vmatprep.subr.mxu0 0.0
  %5355 = vmatpush1.msra.mxu0 0.0
  %5356 = vmatprep.subr.mxu0 0.0
  %5357 = vmatpush1.msra.mxu0 0.0
  %5358 = vmatprep.mubr.f32.mxu0 0.0
  %5359 = vmatmul.mubr.f32.gmra.mrb[0].mxu0 %v5289
  %v5360 = vpop.f32.mrb[0].mxu0
  %v5361 = vadd.f32 0.0, %v5360
  %v5362 = vpop.f32.mrb[0].mxu0
  %v5363 = vadd.f32 0.0, %v5362
  %5364 = vmatprep.mubr.f32.mxu0 0.0
  %5365 = vmatmul.mubr.f32.gmra.mrb[0].mxu0 %v5292
  %v5366 = vpop.f32.mrb[0].mxu0
  %v5367 = vadd.f32 0.0, %v5366
  %v5368 = vpop.f32.mrb[0].mxu0
  %v5369 = vadd.f32 0.0, %v5368
  %5370 = vdwg.mxu0
  %5371 = vmatprep.subr.mxu0 0.0
  %5372 = vmatpush1.msra.mxu0 %v5278
  %5373 = vmatprep.subr.mxu0 0.0
  %5374 = vmatpush1.msra.mxu0 %v5281
  %5375 = vmatprep.subr.mxu0 0.0
  %5376 = vmatpush1.msra.mxu0 0.0
  %5377 = vmatprep.subr.mxu0 0.0
  %5378 = vmatpush1.msra.mxu0 0.0
  %5379 = vmatprep.subr.mxu0 0.0
  %5380 = vmatpush1.msra.mxu0 0.0
  %5381 = vmatprep.subr.mxu0 0.0
  %5382 = vmatpush1.msra.mxu0 0.0
  %5383 = vmatprep.subr.mxu0 0.0
  %5384 = vmatpush1.msra.mxu0 0.0
  %5385 = vmatprep.subr.mxu0 0.0
  %5386 = vmatpush1.msra.mxu0 0.0
  %5387 = vmatprep.subr.mxu0 0.0
  %5388 = vmatpush1.msra.mxu0 0.0
  %5389 = vmatprep.subr.mxu0 0.0
  %5390 = vmatpush1.msra.mxu0 0.0
  %5391 = vmatprep.subr.mxu0 0.0
  %5392 = vmatpush1.msra.mxu0 0.0
  %5393 = vmatprep.subr.mxu0 0.0
  %5394 = vmatpush1.msra.mxu0 0.0
  %5395 = vmatprep.subr.mxu0 0.0
  %5396 = vmatpush1.msra.mxu0 0.0
  %5397 = vmatprep.subr.mxu0 0.0
  %5398 = vmatpush1.msra.mxu0 0.0
  %5399 = vmatprep.subr.mxu0 0.0
  %5400 = vmatpush1.msra.mxu0 0.0
  %5401 = vmatprep.subr.mxu0 0.0
  %5402 = vmatpush1.msra.mxu0 0.0
  %5403 = vmatprep.subr.mxu0 0.0
  %5404 = vmatpush1.msra.mxu0 0.0
  %5405 = vmatprep.subr.mxu0 0.0
  %5406 = vmatpush1.msra.mxu0 0.0
  %5407 = vmatprep.subr.mxu0 0.0
  %5408 = vmatpush1.msra.mxu0 0.0
  %5409 = vmatprep.subr.mxu0 0.0
  %5410 = vmatpush1.msra.mxu0 0.0
  %5411 = vmatprep.subr.mxu0 0.0
  %5412 = vmatpush1.msra.mxu0 0.0
  %5413 = vmatprep.subr.mxu0 0.0
  %5414 = vmatpush1.msra.mxu0 0.0
  %5415 = vmatprep.subr.mxu0 0.0
  %5416 = vmatpush1.msra.mxu0 0.0
  %5417 = vmatprep.subr.mxu0 0.0
  %5418 = vmatpush1.msra.mxu0 0.0
  %5419 = vmatprep.subr.mxu0 0.0
  %5420 = vmatpush1.msra.mxu0 0.0
  %5421 = vmatprep.subr.mxu0 0.0
  %5422 = vmatpush1.msra.mxu0 0.0
  %5423 = vmatprep.subr.mxu0 0.0
  %5424 = vmatpush1.msra.mxu0 0.0
  %5425 = vmatprep.subr.mxu0 0.0
  %5426 = vmatpush1.msra.mxu0 0.0
  %5427 = vmatprep.subr.mxu0 0.0
  %5428 = vmatpush1.msra.mxu0 0.0
  %5429 = vmatprep.subr.mxu0 0.0
  %5430 = vmatpush1.msra.mxu0 0.0
  %5431 = vmatprep.subr.mxu0 0.0
  %5432 = vmatpush1.msra.mxu0 0.0
  %5433 = vmatprep.subr.mxu0 0.0
  %5434 = vmatpush1.msra.mxu0 0.0
  %5435 = vmatprep.mubr.f32.mxu0 0.0
  %5436 = vmatmul.mubr.f32.gmra.mrb[0].mxu0 %v5289
  %v5437 = vpop.f32.mrb[0].mxu0
  %v5438 = vadd.f32 0.0, %v5437
  %v5439 = vpop.f32.mrb[0].mxu0
  %5440 = vmatprep.mubr.f32.mxu0 0.0
  %5441 = vmatmul.mubr.f32.gmra.mrb[0].mxu0 %v5292
  %v5442 = vpop.f32.mrb[0].mxu0
  %v5443 = vadd.f32 0.0, %v5442
  %v5444 = vpop.f32.mrb[0].mxu0
  %5445 = vdwg.mxu0
  %v5446 = vadd.f32 %v5235, %v5361
  %v5447 = vadd.f32 %v5236, %v5363
  %v5448 = vadd.f32 %v5237, %v5438
  %v5449 = vadd.f32 %v5238, %v5367
  %v5450 = vadd.f32 %v5239, %v5369
  %v5451 = vadd.f32 %v5240, %v5443
  %v5452 = vmul.f32 %v4017, %v1680
  %v5453 = vmul.f32 %v4018, %v1685
  %v5454 = vmul.f32 %v4019, %v1686
  %v5455 = vmul.f32 %v4020, %v1684
  %v5456 = vmul.f32 %v4022, %v1680
  %v5457 = vmul.f32 %v4023, %v1685
  %v5458 = vmul.f32 %v4024, %v1686
  %v5459 = vmul.f32 %v4025, %v1684
  %s5460 = scalar_lea.vmem %s7, 112
  %v5461 = vld [vmem:[%s5460] sm:$0xff]
  %v5462 = vld [vmem:[%s5460 + $0x8] sm:$0xff]
  %5471 = vrot.lane.b32.xlu0 %v5452, 119
  %v5472 = vpop.permute.xlu0 %5471
  %5473 = vrot.lane.b32.xlu0 %v5453, 119
  %v5474 = vpop.permute.xlu0 %5473
  %5475 = vrot.lane.b32.xlu0 %v5454, 119
  %v5476 = vpop.permute.xlu0 %5475
  %5477 = vrot.lane.b32.xlu0 %v5455, 119
  %v5478 = vpop.permute.xlu0 %5477
  %5479 = vrot.lane.b32.xlu0 %v5456, 119
  %v5480 = vpop.permute.xlu0 %5479
  %5481 = vrot.lane.b32.xlu0 %v5457, 119
  %v5482 = vpop.permute.xlu0 %5481
  %5483 = vrot.lane.b32.xlu0 %v5458, 119
  %v5484 = vpop.permute.xlu0 %5483
  %5485 = vrot.lane.b32.xlu0 %v5459, 119
  %v5486 = vpop.permute.xlu0 %5485
  %v5487 = vsel %vm108, %v5472, %v5474
  %v5488 = vsel %vm108, %v5474, %v5476
  %v5489 = vsel %vm108, %v5476, %v5478
  %v5490 = vsel %vm108, %v5480, %v5482
  %v5491 = vsel %vm108, %v5482, %v5484
  %v5492 = vsel %vm108, %v5484, %v5486
  %v5500 = vsel %vm163, %v5461, 0
  %v5503 = vsel %vm163, %v5462, 0
  %5505 = vmatprep.subr.mxu0 %v5488
  %5506 = vmatpush1.msra.mxu0 %v5487
  %5507 = vmatprep.subr.mxu0 %v5491
  %5508 = vmatpush1.msra.mxu0 %v5490
  %5509 = vmatprep.subr.mxu0 0.0
  %5510 = vmatpush1.msra.mxu0 0.0
  %5511 = vmatprep.subr.mxu0 0.0
  %5512 = vmatpush1.msra.mxu0 0.0
  %5513 = vmatprep.subr.mxu0 0.0
  %5514 = vmatpush1.msra.mxu0 0.0
  %5515 = vmatprep.subr.mxu0 0.0
  %5516 = vmatpush1.msra.mxu0 0.0
  %5517 = vmatprep.subr.mxu0 0.0
  %5518 = vmatpush1.msra.mxu0 0.0
  %5519 = vmatprep.subr.mxu0 0.0
  %5520 = vmatpush1.msra.mxu0 0.0
  %5521 = vmatprep.subr.mxu0 0.0
  %5522 = vmatpush1.msra.mxu0 0.0
  %5523 = vmatprep.subr.mxu0 0.0
  %5524 = vmatpush1.msra.mxu0 0.0
  %5525 = vmatprep.subr.mxu0 0.0
  %5526 = vmatpush1.msra.mxu0 0.0
  %5527 = vmatprep.subr.mxu0 0.0
  %5528 = vmatpush1.msra.mxu0 0.0
  %5529 = vmatprep.subr.mxu0 0.0
  %5530 = vmatpush1.msra.mxu0 0.0
  %5531 = vmatprep.subr.mxu0 0.0
  %5532 = vmatpush1.msra.mxu0 0.0
  %5533 = vmatprep.subr.mxu0 0.0
  %5534 = vmatpush1.msra.mxu0 0.0
  %5535 = vmatprep.subr.mxu0 0.0
  %5536 = vmatpush1.msra.mxu0 0.0
  %5537 = vmatprep.subr.mxu0 0.0
  %5538 = vmatpush1.msra.mxu0 0.0
  %5539 = vmatprep.subr.mxu0 0.0
  %5540 = vmatpush1.msra.mxu0 0.0
  %5541 = vmatprep.subr.mxu0 0.0
  %5542 = vmatpush1.msra.mxu0 0.0
  %5543 = vmatprep.subr.mxu0 0.0
  %5544 = vmatpush1.msra.mxu0 0.0
  %5545 = vmatprep.subr.mxu0 0.0
  %5546 = vmatpush1.msra.mxu0 0.0
  %5547 = vmatprep.subr.mxu0 0.0
  %5548 = vmatpush1.msra.mxu0 0.0
  %5549 = vmatprep.subr.mxu0 0.0
  %5550 = vmatpush1.msra.mxu0 0.0
  %5551 = vmatprep.subr.mxu0 0.0
  %5552 = vmatpush1.msra.mxu0 0.0
  %5553 = vmatprep.subr.mxu0 0.0
  %5554 = vmatpush1.msra.mxu0 0.0
  %5555 = vmatprep.subr.mxu0 0.0
  %5556 = vmatpush1.msra.mxu0 0.0
  %5557 = vmatprep.subr.mxu0 0.0
  %5558 = vmatpush1.msra.mxu0 0.0
  %5559 = vmatprep.subr.mxu0 0.0
  %5560 = vmatpush1.msra.mxu0 0.0
  %5561 = vmatprep.subr.mxu0 0.0
  %5562 = vmatpush1.msra.mxu0 0.0
  %5563 = vmatprep.subr.mxu0 0.0
  %5564 = vmatpush1.msra.mxu0 0.0
  %5565 = vmatprep.subr.mxu0 0.0
  %5566 = vmatpush1.msra.mxu0 0.0
  %5567 = vmatprep.subr.mxu0 0.0
  %5568 = vmatpush1.msra.mxu0 0.0
  %5569 = vmatprep.mubr.f32.mxu0 0.0
  %5570 = vmatmul.mubr.f32.gmra.mrb[0].mxu0 %v5500
  %v5571 = vpop.f32.mrb[0].mxu0
  %v5572 = vadd.f32 0.0, %v5571
  %v5573 = vpop.f32.mrb[0].mxu0
  %v5574 = vadd.f32 0.0, %v5573
  %5575 = vmatprep.mubr.f32.mxu0 0.0
  %5576 = vmatmul.mubr.f32.gmra.mrb[0].mxu0 %v5503
  %v5577 = vpop.f32.mrb[0].mxu0
  %v5578 = vadd.f32 0.0, %v5577
  %v5579 = vpop.f32.mrb[0].mxu0
  %v5580 = vadd.f32 0.0, %v5579
  %5581 = vdwg.mxu0
  %5582 = vmatprep.subr.mxu0 0.0
  %5583 = vmatpush1.msra.mxu0 %v5489
  %5584 = vmatprep.subr.mxu0 0.0
  %5585 = vmatpush1.msra.mxu0 %v5492
  %5586 = vmatprep.subr.mxu0 0.0
  %5587 = vmatpush1.msra.mxu0 0.0
  %5588 = vmatprep.subr.mxu0 0.0
  %5589 = vmatpush1.msra.mxu0 0.0
  %5590 = vmatprep.subr.mxu0 0.0
  %5591 = vmatpush1.msra.mxu0 0.0
  %5592 = vmatprep.subr.mxu0 0.0
  %5593 = vmatpush1.msra.mxu0 0.0
  %5594 = vmatprep.subr.mxu0 0.0
  %5595 = vmatpush1.msra.mxu0 0.0
  %5596 = vmatprep.subr.mxu0 0.0
  %5597 = vmatpush1.msra.mxu0 0.0
  %5598 = vmatprep.subr.mxu0 0.0
  %5599 = vmatpush1.msra.mxu0 0.0
  %5600 = vmatprep.subr.mxu0 0.0
  %5601 = vmatpush1.msra.mxu0 0.0
  %5602 = vmatprep.subr.mxu0 0.0
  %5603 = vmatpush1.msra.mxu0 0.0
  %5604 = vmatprep.subr.mxu0 0.0
  %5605 = vmatpush1.msra.mxu0 0.0
  %5606 = vmatprep.subr.mxu0 0.0
  %5607 = vmatpush1.msra.mxu0 0.0
  %5608 = vmatprep.subr.mxu0 0.0
  %5609 = vmatpush1.msra.mxu0 0.0
  %5610 = vmatprep.subr.mxu0 0.0
  %5611 = vmatpush1.msra.mxu0 0.0
  %5612 = vmatprep.subr.mxu0 0.0
  %5613 = vmatpush1.msra.mxu0 0.0
  %5614 = vmatprep.subr.mxu0 0.0
  %5615 = vmatpush1.msra.mxu0 0.0
  %5616 = vmatprep.subr.mxu0 0.0
  %5617 = vmatpush1.msra.mxu0 0.0
  %5618 = vmatprep.subr.mxu0 0.0
  %5619 = vmatpush1.msra.mxu0 0.0
  %5620 = vmatprep.subr.mxu0 0.0
  %5621 = vmatpush1.msra.mxu0 0.0
  %5622 = vmatprep.subr.mxu0 0.0
  %5623 = vmatpush1.msra.mxu0 0.0
  %5624 = vmatprep.subr.mxu0 0.0
  %5625 = vmatpush1.msra.mxu0 0.0
  %5626 = vmatprep.subr.mxu0 0.0
  %5627 = vmatpush1.msra.mxu0 0.0
  %5628 = vmatprep.subr.mxu0 0.0
  %5629 = vmatpush1.msra.mxu0 0.0
  %5630 = vmatprep.subr.mxu0 0.0
  %5631 = vmatpush1.msra.mxu0 0.0
  %5632 = vmatprep.subr.mxu0 0.0
  %5633 = vmatpush1.msra.mxu0 0.0
  %5634 = vmatprep.subr.mxu0 0.0
  %5635 = vmatpush1.msra.mxu0 0.0
  %5636 = vmatprep.subr.mxu0 0.0
  %5637 = vmatpush1.msra.mxu0 0.0
  %5638 = vmatprep.subr.mxu0 0.0
  %5639 = vmatpush1.msra.mxu0 0.0
  %5640 = vmatprep.subr.mxu0 0.0
  %5641 = vmatpush1.msra.mxu0 0.0
  %5642 = vmatprep.subr.mxu0 0.0
  %5643 = vmatpush1.msra.mxu0 0.0
  %5644 = vmatprep.subr.mxu0 0.0
  %5645 = vmatpush1.msra.mxu0 0.0
  %5646 = vmatprep.mubr.f32.mxu0 0.0
  %5647 = vmatmul.mubr.f32.gmra.mrb[0].mxu0 %v5500
  %v5648 = vpop.f32.mrb[0].mxu0
  %v5649 = vadd.f32 0.0, %v5648
  %v5650 = vpop.f32.mrb[0].mxu0
  %5651 = vmatprep.mubr.f32.mxu0 0.0
  %5652 = vmatmul.mubr.f32.gmra.mrb[0].mxu0 %v5503
  %v5653 = vpop.f32.mrb[0].mxu0
  %v5654 = vadd.f32 0.0, %v5653
  %v5655 = vpop.f32.mrb[0].mxu0
  %5656 = vdwg.mxu0
  %v5657 = vadd.f32 %v5446, %v5572
  %v5658 = vadd.f32 %v5447, %v5574
  %v5659 = vadd.f32 %v5448, %v5649
  %v5660 = vadd.f32 %v5449, %v5578
  %v5661 = vadd.f32 %v5450, %v5580
  %v5662 = vadd.f32 %v5451, %v5654
  %v5663 = vmul.f32 %v4017, %v1918
  %v5664 = vmul.f32 %v4018, %v1923
  %v5665 = vmul.f32 %v4019, %v1924
  %v5666 = vmul.f32 %v4020, %v1922
  %v5667 = vmul.f32 %v4022, %v1918
  %v5668 = vmul.f32 %v4023, %v1923
  %v5669 = vmul.f32 %v4024, %v1924
  %v5670 = vmul.f32 %v4025, %v1922
  %s5671 = scalar_lea.vmem %s7, 128
  %v5672 = vld [vmem:[%s5671] sm:$0xff]
  %v5673 = vld [vmem:[%s5671 + $0x8] sm:$0xff]
  %5682 = vrot.lane.b32.xlu0 %v5663, 118
  %v5683 = vpop.permute.xlu0 %5682
  %5684 = vrot.lane.b32.xlu0 %v5664, 118
  %v5685 = vpop.permute.xlu0 %5684
  %5686 = vrot.lane.b32.xlu0 %v5665, 118
  %v5687 = vpop.permute.xlu0 %5686
  %5688 = vrot.lane.b32.xlu0 %v5666, 118
  %v5689 = vpop.permute.xlu0 %5688
  %5690 = vrot.lane.b32.xlu0 %v5667, 118
  %v5691 = vpop.permute.xlu0 %5690
  %5692 = vrot.lane.b32.xlu0 %v5668, 118
  %v5693 = vpop.permute.xlu0 %5692
  %5694 = vrot.lane.b32.xlu0 %v5669, 118
  %v5695 = vpop.permute.xlu0 %5694
  %5696 = vrot.lane.b32.xlu0 %v5670, 118
  %v5697 = vpop.permute.xlu0 %5696
  %v5698 = vsel %vm70, %v5683, %v5685
  %v5699 = vsel %vm70, %v5685, %v5687
  %v5700 = vsel %vm70, %v5687, %v5689
  %v5701 = vsel %vm70, %v5691, %v5693
  %v5702 = vsel %vm70, %v5693, %v5695
  %v5703 = vsel %vm70, %v5695, %v5697
  %v5711 = vsel %vm163, %v5672, 0
  %v5714 = vsel %vm163, %v5673, 0
  %5716 = vmatprep.subr.mxu0 %v5699
  %5717 = vmatpush1.msra.mxu0 %v5698
  %5718 = vmatprep.subr.mxu0 %v5702
  %5719 = vmatpush1.msra.mxu0 %v5701
  %5720 = vmatprep.subr.mxu0 0.0
  %5721 = vmatpush1.msra.mxu0 0.0
  %5722 = vmatprep.subr.mxu0 0.0
  %5723 = vmatpush1.msra.mxu0 0.0
  %5724 = vmatprep.subr.mxu0 0.0
  %5725 = vmatpush1.msra.mxu0 0.0
  %5726 = vmatprep.subr.mxu0 0.0
  %5727 = vmatpush1.msra.mxu0 0.0
  %5728 = vmatprep.subr.mxu0 0.0
  %5729 = vmatpush1.msra.mxu0 0.0
  %5730 = vmatprep.subr.mxu0 0.0
  %5731 = vmatpush1.msra.mxu0 0.0
  %5732 = vmatprep.subr.mxu0 0.0
  %5733 = vmatpush1.msra.mxu0 0.0
  %5734 = vmatprep.subr.mxu0 0.0
  %5735 = vmatpush1.msra.mxu0 0.0
  %5736 = vmatprep.subr.mxu0 0.0
  %5737 = vmatpush1.msra.mxu0 0.0
  %5738 = vmatprep.subr.mxu0 0.0
  %5739 = vmatpush1.msra.mxu0 0.0
  %5740 = vmatprep.subr.mxu0 0.0
  %5741 = vmatpush1.msra.mxu0 0.0
  %5742 = vmatprep.subr.mxu0 0.0
  %5743 = vmatpush1.msra.mxu0 0.0
  %5744 = vmatprep.subr.mxu0 0.0
  %5745 = vmatpush1.msra.mxu0 0.0
  %5746 = vmatprep.subr.mxu0 0.0
  %5747 = vmatpush1.msra.mxu0 0.0
  %5748 = vmatprep.subr.mxu0 0.0
  %5749 = vmatpush1.msra.mxu0 0.0
  %5750 = vmatprep.subr.mxu0 0.0
  %5751 = vmatpush1.msra.mxu0 0.0
  %5752 = vmatprep.subr.mxu0 0.0
  %5753 = vmatpush1.msra.mxu0 0.0
  %5754 = vmatprep.subr.mxu0 0.0
  %5755 = vmatpush1.msra.mxu0 0.0
  %5756 = vmatprep.subr.mxu0 0.0
  %5757 = vmatpush1.msra.mxu0 0.0
  %5758 = vmatprep.subr.mxu0 0.0
  %5759 = vmatpush1.msra.mxu0 0.0
  %5760 = vmatprep.subr.mxu0 0.0
  %5761 = vmatpush1.msra.mxu0 0.0
  %5762 = vmatprep.subr.mxu0 0.0
  %5763 = vmatpush1.msra.mxu0 0.0
  %5764 = vmatprep.subr.mxu0 0.0
  %5765 = vmatpush1.msra.mxu0 0.0
  %5766 = vmatprep.subr.mxu0 0.0
  %5767 = vmatpush1.msra.mxu0 0.0
  %5768 = vmatprep.subr.mxu0 0.0
  %5769 = vmatpush1.msra.mxu0 0.0
  %5770 = vmatprep.subr.mxu0 0.0
  %5771 = vmatpush1.msra.mxu0 0.0
  %5772 = vmatprep.subr.mxu0 0.0
  %5773 = vmatpush1.msra.mxu0 0.0
  %5774 = vmatprep.subr.mxu0 0.0
  %5775 = vmatpush1.msra.mxu0 0.0
  %5776 = vmatprep.subr.mxu0 0.0
  %5777 = vmatpush1.msra.mxu0 0.0
  %5778 = vmatprep.subr.mxu0 0.0
  %5779 = vmatpush1.msra.mxu0 0.0
  %5780 = vmatprep.mubr.f32.mxu0 0.0
  %5781 = vmatmul.mubr.f32.gmra.mrb[0].mxu0 %v5711
  %v5782 = vpop.f32.mrb[0].mxu0
  %v5783 = vadd.f32 0.0, %v5782
  %v5784 = vpop.f32.mrb[0].mxu0
  %v5785 = vadd.f32 0.0, %v5784
  %5786 = vmatprep.mubr.f32.mxu0 0.0
  %5787 = vmatmul.mubr.f32.gmra.mrb[0].mxu0 %v5714
  %v5788 = vpop.f32.mrb[0].mxu0
  %v5789 = vadd.f32 0.0, %v5788
  %v5790 = vpop.f32.mrb[0].mxu0
  %v5791 = vadd.f32 0.0, %v5790
  %5792 = vdwg.mxu0
  %5793 = vmatprep.subr.mxu0 0.0
  %5794 = vmatpush1.msra.mxu0 %v5700
  %5795 = vmatprep.subr.mxu0 0.0
  %5796 = vmatpush1.msra.mxu0 %v5703
  %5797 = vmatprep.subr.mxu0 0.0
  %5798 = vmatpush1.msra.mxu0 0.0
  %5799 = vmatprep.subr.mxu0 0.0
  %5800 = vmatpush1.msra.mxu0 0.0
  %5801 = vmatprep.subr.mxu0 0.0
  %5802 = vmatpush1.msra.mxu0 0.0
  %5803 = vmatprep.subr.mxu0 0.0
  %5804 = vmatpush1.msra.mxu0 0.0
  %5805 = vmatprep.subr.mxu0 0.0
  %5806 = vmatpush1.msra.mxu0 0.0
  %5807 = vmatprep.subr.mxu0 0.0
  %5808 = vmatpush1.msra.mxu0 0.0
  %5809 = vmatprep.subr.mxu0 0.0
  %5810 = vmatpush1.msra.mxu0 0.0
  %5811 = vmatprep.subr.mxu0 0.0
  %5812 = vmatpush1.msra.mxu0 0.0
  %5813 = vmatprep.subr.mxu0 0.0
  %5814 = vmatpush1.msra.mxu0 0.0
  %5815 = vmatprep.subr.mxu0 0.0
  %5816 = vmatpush1.msra.mxu0 0.0
  %5817 = vmatprep.subr.mxu0 0.0
  %5818 = vmatpush1.msra.mxu0 0.0
  %5819 = vmatprep.subr.mxu0 0.0
  %5820 = vmatpush1.msra.mxu0 0.0
  %5821 = vmatprep.subr.mxu0 0.0
  %5822 = vmatpush1.msra.mxu0 0.0
  %5823 = vmatprep.subr.mxu0 0.0
  %5824 = vmatpush1.msra.mxu0 0.0
  %5825 = vmatprep.subr.mxu0 0.0
  %5826 = vmatpush1.msra.mxu0 0.0
  %5827 = vmatprep.subr.mxu0 0.0
  %5828 = vmatpush1.msra.mxu0 0.0
  %5829 = vmatprep.subr.mxu0 0.0
  %5830 = vmatpush1.msra.mxu0 0.0
  %5831 = vmatprep.subr.mxu0 0.0
  %5832 = vmatpush1.msra.mxu0 0.0
  %5833 = vmatprep.subr.mxu0 0.0
  %5834 = vmatpush1.msra.mxu0 0.0
  %5835 = vmatprep.subr.mxu0 0.0
  %5836 = vmatpush1.msra.mxu0 0.0
  %5837 = vmatprep.subr.mxu0 0.0
  %5838 = vmatpush1.msra.mxu0 0.0
  %5839 = vmatprep.subr.mxu0 0.0
  %5840 = vmatpush1.msra.mxu0 0.0
  %5841 = vmatprep.subr.mxu0 0.0
  %5842 = vmatpush1.msra.mxu0 0.0
  %5843 = vmatprep.subr.mxu0 0.0
  %5844 = vmatpush1.msra.mxu0 0.0
  %5845 = vmatprep.subr.mxu0 0.0
  %5846 = vmatpush1.msra.mxu0 0.0
  %5847 = vmatprep.subr.mxu0 0.0
  %5848 = vmatpush1.msra.mxu0 0.0
  %5849 = vmatprep.subr.mxu0 0.0
  %5850 = vmatpush1.msra.mxu0 0.0
  %5851 = vmatprep.subr.mxu0 0.0
  %5852 = vmatpush1.msra.mxu0 0.0
  %5853 = vmatprep.subr.mxu0 0.0
  %5854 = vmatpush1.msra.mxu0 0.0
  %5855 = vmatprep.subr.mxu0 0.0
  %5856 = vmatpush1.msra.mxu0 0.0
  %5857 = vmatprep.mubr.f32.mxu0 0.0
  %5858 = vmatmul.mubr.f32.gmra.mrb[0].mxu0 %v5711
  %v5859 = vpop.f32.mrb[0].mxu0
  %v5860 = vadd.f32 0.0, %v5859
  %v5861 = vpop.f32.mrb[0].mxu0
  %5862 = vmatprep.mubr.f32.mxu0 0.0
  %5863 = vmatmul.mubr.f32.gmra.mrb[0].mxu0 %v5714
  %v5864 = vpop.f32.mrb[0].mxu0
  %v5865 = vadd.f32 0.0, %v5864
  %v5866 = vpop.f32.mrb[0].mxu0
  %5867 = vdwg.mxu0
  %v5868 = vadd.f32 %v5657, %v5783
  %v5869 = vadd.f32 %v5658, %v5785
  %v5870 = vadd.f32 %v5659, %v5860
  %v5871 = vadd.f32 %v5660, %v5789
  %v5872 = vadd.f32 %v5661, %v5791
  %v5873 = vadd.f32 %v5662, %v5865
  %v5874 = vld [vmem:[%s8] sm:$0xff]
  %v5875 = vld [vmem:[%s8 + $0x8] sm:$0xff]
  %5877 = vset.pattern.permute.xlu0 0
  %5878 = vperm.xlu0 %5877, %v5874
  %v5879 = vpop.permute.xlu0 %5878
  %5882 = vset.pattern.permute.xlu0 0
  %5883 = vperm.xlu0 %5882, %v5875
  %v5884 = vpop.permute.xlu0 %5883
  %v5886 = vadd.f32 %v5868, %v5879
  %v5887 = vadd.f32 %v5869, %v5879
  %v5888 = vadd.f32 %v5870, %v5879
  %v5889 = vadd.f32 %v5871, %v5884
  %v5890 = vadd.f32 %v5872, %v5884
  %v5891 = vadd.f32 %v5873, %v5884
  %vm5892 = vcmp.ge.f32.partialorder %v5886, 0.0
  %vm5893 = vcmp.ge.f32.partialorder %v5887, 0.0
  %vm5894 = vcmp.ge.f32.partialorder %v5888, 0.0
  %vm5895 = vcmp.ge.f32.partialorder %v5889, 0.0
  %vm5896 = vcmp.ge.f32.partialorder %v5890, 0.0
  %vm5897 = vcmp.ge.f32.partialorder %v5891, 0.0
  %v5898 = vmul.f32 %v5886, 0.1
  %v5899 = vmul.f32 %v5887, 0.1
  %v5900 = vmul.f32 %v5888, 0.1
  %v5901 = vmul.f32 %v5889, 0.1
  %v5902 = vmul.f32 %v5890, 0.1
  %v5903 = vmul.f32 %v5891, 0.1
  %v5904 = vsel %vm5892, %v5886, %v5898
  %v5905 = vsel %vm5893, %v5887, %v5899
  %v5906 = vsel %vm5894, %v5888, %v5900
  %v5907 = vsel %vm5895, %v5889, %v5901
  %v5908 = vsel %vm5896, %v5890, %v5902
  %v5909 = vsel %vm5897, %v5891, %v5903
  %v5910 = vmul.f32 %v5904, %v71
  %v5911 = vmul.f32 %v5905, %v72
  %v5912 = vmul.f32 %v5906, %v69
  %v5913 = vmul.f32 %v5907, %v71
  %v5914 = vmul.f32 %v5908, %v72
  %v5915 = vmul.f32 %v5909, %v69
  %v5916 = vld [vmem:[%s9] sm:$0xff]
  %v5917 = vld [vmem:[%s9 + $0x8] sm:$0xff]
  %v5918 = vmul.f32 %v5904, %v109
  %v5919 = vmul.f32 %v5905, %v110
  %v5920 = vmul.f32 %v5906, %v107
  %v5921 = vmul.f32 %v5907, %v109
  %v5922 = vmul.f32 %v5908, %v110
  %v5923 = vmul.f32 %v5909, %v107
  %s5924 = scalar_lea.vmem %s9, 16
  %v5925 = vld [vmem:[%s5924] sm:$0xff]
  %v5926 = vld [vmem:[%s5924 + $0x8] sm:$0xff]
  %5933 = vrot.lane.b32.xlu0 %v5918, 9
  %v5934 = vpop.permute.xlu0 %5933
  %5935 = vrot.lane.b32.xlu0 %v5919, 9
  %v5936 = vpop.permute.xlu0 %5935
  %5937 = vrot.lane.b32.xlu0 %v5920, 9
  %v5938 = vpop.permute.xlu0 %5937
  %5939 = vrot.lane.b32.xlu0 %v5921, 9
  %v5940 = vpop.permute.xlu0 %5939
  %5941 = vrot.lane.b32.xlu0 %v5922, 9
  %v5942 = vpop.permute.xlu0 %5941
  %5943 = vrot.lane.b32.xlu0 %v5923, 9
  %v5944 = vpop.permute.xlu0 %5943
  %v5945 = vsel %vm150, %v2203, %v5934
  %v5946 = vsel %vm150, %v5934, %v5936
  %v5947 = vsel %vm150, %v5936, %v5938
  %v5948 = vsel %vm150, %v2203, %v5940
  %v5949 = vsel %vm150, %v5940, %v5942
  %v5950 = vsel %vm150, %v5942, %v5944
  %v5958 = vsel %vm163, %v5925, 0
  %v5961 = vsel %vm163, %v5926, 0
  %5963 = vmatprep.subr.mxu0 %v5946
  %5964 = vmatpush1.msra.mxu0 %v5945
  %5965 = vmatprep.subr.mxu0 %v5949
  %5966 = vmatpush1.msra.mxu0 %v5948
  %5967 = vmatprep.subr.mxu0 0.0
  %5968 = vmatpush1.msra.mxu0 0.0
  %5969 = vmatprep.subr.mxu0 0.0
  %5970 = vmatpush1.msra.mxu0 0.0
  %5971 = vmatprep.subr.mxu0 0.0
  %5972 = vmatpush1.msra.mxu0 0.0
  %5973 = vmatprep.subr.mxu0 0.0
  %5974 = vmatpush1.msra.mxu0 0.0
  %5975 = vmatprep.subr.mxu0 0.0
  %5976 = vmatpush1.msra.mxu0 0.0
  %5977 = vmatprep.subr.mxu0 0.0
  %5978 = vmatpush1.msra.mxu0 0.0
  %5979 = vmatprep.subr.mxu0 0.0
  %5980 = vmatpush1.msra.mxu0 0.0
  %5981 = vmatprep.subr.mxu0 0.0
  %5982 = vmatpush1.msra.mxu0 0.0
  %5983 = vmatprep.subr.mxu0 0.0
  %5984 = vmatpush1.msra.mxu0 0.0
  %5985 = vmatprep.subr.mxu0 0.0
  %5986 = vmatpush1.msra.mxu0 0.0
  %5987 = vmatprep.subr.mxu0 0.0
  %5988 = vmatpush1.msra.mxu0 0.0
  %5989 = vmatprep.subr.mxu0 0.0
  %5990 = vmatpush1.msra.mxu0 0.0
  %5991 = vmatprep.subr.mxu0 0.0
  %5992 = vmatpush1.msra.mxu0 0.0
  %5993 = vmatprep.subr.mxu0 0.0
  %5994 = vmatpush1.msra.mxu0 0.0
  %5995 = vmatprep.subr.mxu0 0.0
  %5996 = vmatpush1.msra.mxu0 0.0
  %5997 = vmatprep.subr.mxu0 0.0
  %5998 = vmatpush1.msra.mxu0 0.0
  %5999 = vmatprep.subr.mxu0 0.0
  %6000 = vmatpush1.msra.mxu0 0.0
  %6001 = vmatprep.subr.mxu0 0.0
  %6002 = vmatpush1.msra.mxu0 0.0
  %6003 = vmatprep.subr.mxu0 0.0
  %6004 = vmatpush1.msra.mxu0 0.0
  %6005 = vmatprep.subr.mxu0 0.0
  %6006 = vmatpush1.msra.mxu0 0.0
  %6007 = vmatprep.subr.mxu0 0.0
  %6008 = vmatpush1.msra.mxu0 0.0
  %6009 = vmatprep.subr.mxu0 0.0
  %6010 = vmatpush1.msra.mxu0 0.0
  %6011 = vmatprep.subr.mxu0 0.0
  %6012 = vmatpush1.msra.mxu0 0.0
  %6013 = vmatprep.subr.mxu0 0.0
  %6014 = vmatpush1.msra.mxu0 0.0
  %6015 = vmatprep.subr.mxu0 0.0
  %6016 = vmatpush1.msra.mxu0 0.0
  %6017 = vmatprep.subr.mxu0 0.0
  %6018 = vmatpush1.msra.mxu0 0.0
  %6019 = vmatprep.subr.mxu0 0.0
  %6020 = vmatpush1.msra.mxu0 0.0
  %6021 = vmatprep.subr.mxu0 0.0
  %6022 = vmatpush1.msra.mxu0 0.0
  %6023 = vmatprep.subr.mxu0 0.0
  %6024 = vmatpush1.msra.mxu0 0.0
  %6025 = vmatprep.subr.mxu0 0.0
  %6026 = vmatpush1.msra.mxu0 0.0
  %6027 = vmatprep.mubr.f32.mxu0 0.0
  %6028 = vmatmul.mubr.f32.gmra.mrb[0].mxu0 %v5958
  %v6029 = vpop.f32.mrb[0].mxu0
  %v6030 = vadd.f32 0.0, %v6029
  %v6031 = vpop.f32.mrb[0].mxu0
  %v6032 = vadd.f32 0.0, %v6031
  %6033 = vmatprep.mubr.f32.mxu0 0.0
  %6034 = vmatmul.mubr.f32.gmra.mrb[0].mxu0 %v5961
  %v6035 = vpop.f32.mrb[0].mxu0
  %v6036 = vadd.f32 0.0, %v6035
  %v6037 = vpop.f32.mrb[0].mxu0
  %v6038 = vadd.f32 0.0, %v6037
  %6039 = vdwg.mxu0
  %6040 = vmatprep.subr.mxu0 0.0
  %6041 = vmatpush1.msra.mxu0 %v5947
  %6042 = vmatprep.subr.mxu0 0.0
  %6043 = vmatpush1.msra.mxu0 %v5950
  %6044 = vmatprep.subr.mxu0 0.0
  %6045 = vmatpush1.msra.mxu0 0.0
  %6046 = vmatprep.subr.mxu0 0.0
  %6047 = vmatpush1.msra.mxu0 0.0
  %6048 = vmatprep.subr.mxu0 0.0
  %6049 = vmatpush1.msra.mxu0 0.0
  %6050 = vmatprep.subr.mxu0 0.0
  %6051 = vmatpush1.msra.mxu0 0.0
  %6052 = vmatprep.subr.mxu0 0.0
  %6053 = vmatpush1.msra.mxu0 0.0
  %6054 = vmatprep.subr.mxu0 0.0
  %6055 = vmatpush1.msra.mxu0 0.0
  %6056 = vmatprep.subr.mxu0 0.0
  %6057 = vmatpush1.msra.mxu0 0.0
  %6058 = vmatprep.subr.mxu0 0.0
  %6059 = vmatpush1.msra.mxu0 0.0
  %6060 = vmatprep.subr.mxu0 0.0
  %6061 = vmatpush1.msra.mxu0 0.0
  %6062 = vmatprep.subr.mxu0 0.0
  %6063 = vmatpush1.msra.mxu0 0.0
  %6064 = vmatprep.subr.mxu0 0.0
  %6065 = vmatpush1.msra.mxu0 0.0
  %6066 = vmatprep.subr.mxu0 0.0
  %6067 = vmatpush1.msra.mxu0 0.0
  %6068 = vmatprep.subr.mxu0 0.0
  %6069 = vmatpush1.msra.mxu0 0.0
  %6070 = vmatprep.subr.mxu0 0.0
  %6071 = vmatpush1.msra.mxu0 0.0
  %6072 = vmatprep.subr.mxu0 0.0
  %6073 = vmatpush1.msra.mxu0 0.0
  %6074 = vmatprep.subr.mxu0 0.0
  %6075 = vmatpush1.msra.mxu0 0.0
  %6076 = vmatprep.subr.mxu0 0.0
  %6077 = vmatpush1.msra.mxu0 0.0
  %6078 = vmatprep.subr.mxu0 0.0
  %6079 = vmatpush1.msra.mxu0 0.0
  %6080 = vmatprep.subr.mxu0 0.0
  %6081 = vmatpush1.msra.mxu0 0.0
  %6082 = vmatprep.subr.mxu0 0.0
  %6083 = vmatpush1.msra.mxu0 0.0
  %6084 = vmatprep.subr.mxu0 0.0
  %6085 = vmatpush1.msra.mxu0 0.0
  %6086 = vmatprep.subr.mxu0 0.0
  %6087 = vmatpush1.msra.mxu0 0.0
  %6088 = vmatprep.subr.mxu0 0.0
  %6089 = vmatpush1.msra.mxu0 0.0
  %6090 = vmatprep.subr.mxu0 0.0
  %6091 = vmatpush1.msra.mxu0 0.0
  %6092 = vmatprep.subr.mxu0 0.0
  %6093 = vmatpush1.msra.mxu0 0.0
  %6094 = vmatprep.subr.mxu0 0.0
  %6095 = vmatpush1.msra.mxu0 0.0
  %6096 = vmatprep.subr.mxu0 0.0
  %6097 = vmatpush1.msra.mxu0 0.0
  %6098 = vmatprep.subr.mxu0 0.0
  %6099 = vmatpush1.msra.mxu0 0.0
  %6100 = vmatprep.subr.mxu0 0.0
  %6101 = vmatpush1.msra.mxu0 0.0
  %6102 = vmatprep.subr.mxu0 0.0
  %6103 = vmatpush1.msra.mxu0 0.0
  %6104 = vmatprep.mubr.f32.mxu0 0.0
  %6105 = vmatmul.mubr.f32.gmra.mrb[0].mxu0 %v5958
  %v6106 = vpop.f32.mrb[0].mxu0
  %v6107 = vadd.f32 0.0, %v6106
  %v6108 = vpop.f32.mrb[0].mxu0
  %6109 = vmatprep.mubr.f32.mxu0 0.0
  %6110 = vmatmul.mubr.f32.gmra.mrb[0].mxu0 %v5961
  %v6111 = vpop.f32.mrb[0].mxu0
  %v6112 = vadd.f32 0.0, %v6111
  %v6113 = vpop.f32.mrb[0].mxu0
  %6114 = vdwg.mxu0
  %6121 = vrot.lane.b32.xlu0 %v5910, 10
  %v6122 = vpop.permute.xlu0 %6121
  %6123 = vrot.lane.b32.xlu0 %v5911, 10
  %v6124 = vpop.permute.xlu0 %6123
  %6125 = vrot.lane.b32.xlu0 %v5912, 10
  %v6126 = vpop.permute.xlu0 %6125
  %6127 = vrot.lane.b32.xlu0 %v5913, 10
  %v6128 = vpop.permute.xlu0 %6127
  %6129 = vrot.lane.b32.xlu0 %v5914, 10
  %v6130 = vpop.permute.xlu0 %6129
  %6131 = vrot.lane.b32.xlu0 %v5915, 10
  %v6132 = vpop.permute.xlu0 %6131
  %v6133 = vsel %vm346, %v2394, %v6122
  %v6134 = vsel %vm346, %v6122, %v6124
  %v6135 = vsel %vm346, %v6124, %v6126
  %v6136 = vsel %vm346, %v2394, %v6128
  %v6137 = vsel %vm346, %v6128, %v6130
  %v6138 = vsel %vm346, %v6130, %v6132
  %v6146 = vsel %vm163, %v5916, 0
  %v6149 = vsel %vm163, %v5917, 0
  %6151 = vmatprep.subr.mxu0 %v6134
  %6152 = vmatpush1.msra.mxu0 %v6133
  %6153 = vmatprep.subr.mxu0 %v6137
  %6154 = vmatpush1.msra.mxu0 %v6136
  %6155 = vmatprep.subr.mxu0 0.0
  %6156 = vmatpush1.msra.mxu0 0.0
  %6157 = vmatprep.subr.mxu0 0.0
  %6158 = vmatpush1.msra.mxu0 0.0
  %6159 = vmatprep.subr.mxu0 0.0
  %6160 = vmatpush1.msra.mxu0 0.0
  %6161 = vmatprep.subr.mxu0 0.0
  %6162 = vmatpush1.msra.mxu0 0.0
  %6163 = vmatprep.subr.mxu0 0.0
  %6164 = vmatpush1.msra.mxu0 0.0
  %6165 = vmatprep.subr.mxu0 0.0
  %6166 = vmatpush1.msra.mxu0 0.0
  %6167 = vmatprep.subr.mxu0 0.0
  %6168 = vmatpush1.msra.mxu0 0.0
  %6169 = vmatprep.subr.mxu0 0.0
  %6170 = vmatpush1.msra.mxu0 0.0
  %6171 = vmatprep.subr.mxu0 0.0
  %6172 = vmatpush1.msra.mxu0 0.0
  %6173 = vmatprep.subr.mxu0 0.0
  %6174 = vmatpush1.msra.mxu0 0.0
  %6175 = vmatprep.subr.mxu0 0.0
  %6176 = vmatpush1.msra.mxu0 0.0
  %6177 = vmatprep.subr.mxu0 0.0
  %6178 = vmatpush1.msra.mxu0 0.0
  %6179 = vmatprep.subr.mxu0 0.0
  %6180 = vmatpush1.msra.mxu0 0.0
  %6181 = vmatprep.subr.mxu0 0.0
  %6182 = vmatpush1.msra.mxu0 0.0
  %6183 = vmatprep.subr.mxu0 0.0
  %6184 = vmatpush1.msra.mxu0 0.0
  %6185 = vmatprep.subr.mxu0 0.0
  %6186 = vmatpush1.msra.mxu0 0.0
  %6187 = vmatprep.subr.mxu0 0.0
  %6188 = vmatpush1.msra.mxu0 0.0
  %6189 = vmatprep.subr.mxu0 0.0
  %6190 = vmatpush1.msra.mxu0 0.0
  %6191 = vmatprep.subr.mxu0 0.0
  %6192 = vmatpush1.msra.mxu0 0.0
  %6193 = vmatprep.subr.mxu0 0.0
  %6194 = vmatpush1.msra.mxu0 0.0
  %6195 = vmatprep.subr.mxu0 0.0
  %6196 = vmatpush1.msra.mxu0 0.0
  %6197 = vmatprep.subr.mxu0 0.0
  %6198 = vmatpush1.msra.mxu0 0.0
  %6199 = vmatprep.subr.mxu0 0.0
  %6200 = vmatpush1.msra.mxu0 0.0
  %6201 = vmatprep.subr.mxu0 0.0
  %6202 = vmatpush1.msra.mxu0 0.0
  %6203 = vmatprep.subr.mxu0 0.0
  %6204 = vmatpush1.msra.mxu0 0.0
  %6205 = vmatprep.subr.mxu0 0.0
  %6206 = vmatpush1.msra.mxu0 0.0
  %6207 = vmatprep.subr.mxu0 0.0
  %6208 = vmatpush1.msra.mxu0 0.0
  %6209 = vmatprep.subr.mxu0 0.0
  %6210 = vmatpush1.msra.mxu0 0.0
  %6211 = vmatprep.subr.mxu0 0.0
  %6212 = vmatpush1.msra.mxu0 0.0
  %6213 = vmatprep.subr.mxu0 0.0
  %6214 = vmatpush1.msra.mxu0 0.0
  %6215 = vmatprep.mubr.f32.mxu0 0.0
  %6216 = vmatmul.mubr.f32.gmra.mrb[0].mxu0 %v6146
  %v6217 = vpop.f32.mrb[0].mxu0
  %v6218 = vadd.f32 %v6030, %v6217
  %v6219 = vpop.f32.mrb[0].mxu0
  %v6220 = vadd.f32 %v6032, %v6219
  %6221 = vmatprep.mubr.f32.mxu0 0.0
  %6222 = vmatmul.mubr.f32.gmra.mrb[0].mxu0 %v6149
  %v6223 = vpop.f32.mrb[0].mxu0
  %v6224 = vadd.f32 %v6036, %v6223
  %v6225 = vpop.f32.mrb[0].mxu0
  %v6226 = vadd.f32 %v6038, %v6225
  %6227 = vdwg.mxu0
  %6228 = vmatprep.subr.mxu0 0.0
  %6229 = vmatpush1.msra.mxu0 %v6135
  %6230 = vmatprep.subr.mxu0 0.0
  %6231 = vmatpush1.msra.mxu0 %v6138
  %6232 = vmatprep.subr.mxu0 0.0
  %6233 = vmatpush1.msra.mxu0 0.0
  %6234 = vmatprep.subr.mxu0 0.0
  %6235 = vmatpush1.msra.mxu0 0.0
  %6236 = vmatprep.subr.mxu0 0.0
  %6237 = vmatpush1.msra.mxu0 0.0
  %6238 = vmatprep.subr.mxu0 0.0
  %6239 = vmatpush1.msra.mxu0 0.0
  %6240 = vmatprep.subr.mxu0 0.0
  %6241 = vmatpush1.msra.mxu0 0.0
  %6242 = vmatprep.subr.mxu0 0.0
  %6243 = vmatpush1.msra.mxu0 0.0
  %6244 = vmatprep.subr.mxu0 0.0
  %6245 = vmatpush1.msra.mxu0 0.0
  %6246 = vmatprep.subr.mxu0 0.0
  %6247 = vmatpush1.msra.mxu0 0.0
  %6248 = vmatprep.subr.mxu0 0.0
  %6249 = vmatpush1.msra.mxu0 0.0
  %6250 = vmatprep.subr.mxu0 0.0
  %6251 = vmatpush1.msra.mxu0 0.0
  %6252 = vmatprep.subr.mxu0 0.0
  %6253 = vmatpush1.msra.mxu0 0.0
  %6254 = vmatprep.subr.mxu0 0.0
  %6255 = vmatpush1.msra.mxu0 0.0
  %6256 = vmatprep.subr.mxu0 0.0
  %6257 = vmatpush1.msra.mxu0 0.0
  %6258 = vmatprep.subr.mxu0 0.0
  %6259 = vmatpush1.msra.mxu0 0.0
  %6260 = vmatprep.subr.mxu0 0.0
  %6261 = vmatpush1.msra.mxu0 0.0
  %6262 = vmatprep.subr.mxu0 0.0
  %6263 = vmatpush1.msra.mxu0 0.0
  %6264 = vmatprep.subr.mxu0 0.0
  %6265 = vmatpush1.msra.mxu0 0.0
  %6266 = vmatprep.subr.mxu0 0.0
  %6267 = vmatpush1.msra.mxu0 0.0
  %6268 = vmatprep.subr.mxu0 0.0
  %6269 = vmatpush1.msra.mxu0 0.0
  %6270 = vmatprep.subr.mxu0 0.0
  %6271 = vmatpush1.msra.mxu0 0.0
  %6272 = vmatprep.subr.mxu0 0.0
  %6273 = vmatpush1.msra.mxu0 0.0
  %6274 = vmatprep.subr.mxu0 0.0
  %6275 = vmatpush1.msra.mxu0 0.0
  %6276 = vmatprep.subr.mxu0 0.0
  %6277 = vmatpush1.msra.mxu0 0.0
  %6278 = vmatprep.subr.mxu0 0.0
  %6279 = vmatpush1.msra.mxu0 0.0
  %6280 = vmatprep.subr.mxu0 0.0
  %6281 = vmatpush1.msra.mxu0 0.0
  %6282 = vmatprep.subr.mxu0 0.0
  %6283 = vmatpush1.msra.mxu0 0.0
  %6284 = vmatprep.subr.mxu0 0.0
  %6285 = vmatpush1.msra.mxu0 0.0
  %6286 = vmatprep.subr.mxu0 0.0
  %6287 = vmatpush1.msra.mxu0 0.0
  %6288 = vmatprep.subr.mxu0 0.0
  %6289 = vmatpush1.msra.mxu0 0.0
  %6290 = vmatprep.subr.mxu0 0.0
  %6291 = vmatpush1.msra.mxu0 0.0
  %6292 = vmatprep.mubr.f32.mxu0 0.0
  %6293 = vmatmul.mubr.f32.gmra.mrb[0].mxu0 %v6146
  %v6294 = vpop.f32.mrb[0].mxu0
  %v6295 = vadd.f32 %v6107, %v6294
  %v6296 = vpop.f32.mrb[0].mxu0
  %6297 = vmatprep.mubr.f32.mxu0 0.0
  %6298 = vmatmul.mubr.f32.gmra.mrb[0].mxu0 %v6149
  %v6299 = vpop.f32.mrb[0].mxu0
  %v6300 = vadd.f32 %v6112, %v6299
  %v6301 = vpop.f32.mrb[0].mxu0
  %6302 = vdwg.mxu0
  %v6303 = vmul.f32 %v5904, %v539
  %v6304 = vmul.f32 %v5905, %v540
  %v6305 = vmul.f32 %v5906, %v537
  %v6306 = vmul.f32 %v5907, %v539
  %v6307 = vmul.f32 %v5908, %v540
  %v6308 = vmul.f32 %v5909, %v537
  %s6309 = scalar_lea.vmem %s9, 32
  %v6310 = vld [vmem:[%s6309] sm:$0xff]
  %v6311 = vld [vmem:[%s6309 + $0x8] sm:$0xff]
  %6318 = vrot.lane.b32.xlu0 %v6303, 8
  %v6319 = vpop.permute.xlu0 %6318
  %6320 = vrot.lane.b32.xlu0 %v6304, 8
  %v6321 = vpop.permute.xlu0 %6320
  %6322 = vrot.lane.b32.xlu0 %v6305, 8
  %v6323 = vpop.permute.xlu0 %6322
  %6324 = vrot.lane.b32.xlu0 %v6306, 8
  %v6325 = vpop.permute.xlu0 %6324
  %6326 = vrot.lane.b32.xlu0 %v6307, 8
  %v6327 = vpop.permute.xlu0 %6326
  %6328 = vrot.lane.b32.xlu0 %v6308, 8
  %v6329 = vpop.permute.xlu0 %6328
  %v6330 = vsel %vm580, %v2595, %v6319
  %v6331 = vsel %vm580, %v6319, %v6321
  %v6332 = vsel %vm580, %v6321, %v6323
  %v6333 = vsel %vm580, %v2595, %v6325
  %v6334 = vsel %vm580, %v6325, %v6327
  %v6335 = vsel %vm580, %v6327, %v6329
  %v6343 = vsel %vm163, %v6310, 0
  %v6346 = vsel %vm163, %v6311, 0
  %6348 = vmatprep.subr.mxu0 %v6331
  %6349 = vmatpush1.msra.mxu0 %v6330
  %6350 = vmatprep.subr.mxu0 %v6334
  %6351 = vmatpush1.msra.mxu0 %v6333
  %6352 = vmatprep.subr.mxu0 0.0
  %6353 = vmatpush1.msra.mxu0 0.0
  %6354 = vmatprep.subr.mxu0 0.0
  %6355 = vmatpush1.msra.mxu0 0.0
  %6356 = vmatprep.subr.mxu0 0.0
  %6357 = vmatpush1.msra.mxu0 0.0
  %6358 = vmatprep.subr.mxu0 0.0
  %6359 = vmatpush1.msra.mxu0 0.0
  %6360 = vmatprep.subr.mxu0 0.0
  %6361 = vmatpush1.msra.mxu0 0.0
  %6362 = vmatprep.subr.mxu0 0.0
  %6363 = vmatpush1.msra.mxu0 0.0
  %6364 = vmatprep.subr.mxu0 0.0
  %6365 = vmatpush1.msra.mxu0 0.0
  %6366 = vmatprep.subr.mxu0 0.0
  %6367 = vmatpush1.msra.mxu0 0.0
  %6368 = vmatprep.subr.mxu0 0.0
  %6369 = vmatpush1.msra.mxu0 0.0
  %6370 = vmatprep.subr.mxu0 0.0
  %6371 = vmatpush1.msra.mxu0 0.0
  %6372 = vmatprep.subr.mxu0 0.0
  %6373 = vmatpush1.msra.mxu0 0.0
  %6374 = vmatprep.subr.mxu0 0.0
  %6375 = vmatpush1.msra.mxu0 0.0
  %6376 = vmatprep.subr.mxu0 0.0
  %6377 = vmatpush1.msra.mxu0 0.0
  %6378 = vmatprep.subr.mxu0 0.0
  %6379 = vmatpush1.msra.mxu0 0.0
  %6380 = vmatprep.subr.mxu0 0.0
  %6381 = vmatpush1.msra.mxu0 0.0
  %6382 = vmatprep.subr.mxu0 0.0
  %6383 = vmatpush1.msra.mxu0 0.0
  %6384 = vmatprep.subr.mxu0 0.0
  %6385 = vmatpush1.msra.mxu0 0.0
  %6386 = vmatprep.subr.mxu0 0.0
  %6387 = vmatpush1.msra.mxu0 0.0
  %6388 = vmatprep.subr.mxu0 0.0
  %6389 = vmatpush1.msra.mxu0 0.0
  %6390 = vmatprep.subr.mxu0 0.0
  %6391 = vmatpush1.msra.mxu0 0.0
  %6392 = vmatprep.subr.mxu0 0.0
  %6393 = vmatpush1.msra.mxu0 0.0
  %6394 = vmatprep.subr.mxu0 0.0
  %6395 = vmatpush1.msra.mxu0 0.0
  %6396 = vmatprep.subr.mxu0 0.0
  %6397 = vmatpush1.msra.mxu0 0.0
  %6398 = vmatprep.subr.mxu0 0.0
  %6399 = vmatpush1.msra.mxu0 0.0
  %6400 = vmatprep.subr.mxu0 0.0
  %6401 = vmatpush1.msra.mxu0 0.0
  %6402 = vmatprep.subr.mxu0 0.0
  %6403 = vmatpush1.msra.mxu0 0.0
  %6404 = vmatprep.subr.mxu0 0.0
  %6405 = vmatpush1.msra.mxu0 0.0
  %6406 = vmatprep.subr.mxu0 0.0
  %6407 = vmatpush1.msra.mxu0 0.0
  %6408 = vmatprep.subr.mxu0 0.0
  %6409 = vmatpush1.msra.mxu0 0.0
  %6410 = vmatprep.subr.mxu0 0.0
  %6411 = vmatpush1.msra.mxu0 0.0
  %6412 = vmatprep.mubr.f32.mxu0 0.0
  %6413 = vmatmul.mubr.f32.gmra.mrb[0].mxu0 %v6343
  %v6414 = vpop.f32.mrb[0].mxu0
  %v6415 = vadd.f32 0.0, %v6414
  %v6416 = vpop.f32.mrb[0].mxu0
  %v6417 = vadd.f32 0.0, %v6416
  %6418 = vmatprep.mubr.f32.mxu0 0.0
  %6419 = vmatmul.mubr.f32.gmra.mrb[0].mxu0 %v6346
  %v6420 = vpop.f32.mrb[0].mxu0
  %v6421 = vadd.f32 0.0, %v6420
  %v6422 = vpop.f32.mrb[0].mxu0
  %v6423 = vadd.f32 0.0, %v6422
  %6424 = vdwg.mxu0
  %6425 = vmatprep.subr.mxu0 0.0
  %6426 = vmatpush1.msra.mxu0 %v6332
  %6427 = vmatprep.subr.mxu0 0.0
  %6428 = vmatpush1.msra.mxu0 %v6335
  %6429 = vmatprep.subr.mxu0 0.0
  %6430 = vmatpush1.msra.mxu0 0.0
  %6431 = vmatprep.subr.mxu0 0.0
  %6432 = vmatpush1.msra.mxu0 0.0
  %6433 = vmatprep.subr.mxu0 0.0
  %6434 = vmatpush1.msra.mxu0 0.0
  %6435 = vmatprep.subr.mxu0 0.0
  %6436 = vmatpush1.msra.mxu0 0.0
  %6437 = vmatprep.subr.mxu0 0.0
  %6438 = vmatpush1.msra.mxu0 0.0
  %6439 = vmatprep.subr.mxu0 0.0
  %6440 = vmatpush1.msra.mxu0 0.0
  %6441 = vmatprep.subr.mxu0 0.0
  %6442 = vmatpush1.msra.mxu0 0.0
  %6443 = vmatprep.subr.mxu0 0.0
  %6444 = vmatpush1.msra.mxu0 0.0
  %6445 = vmatprep.subr.mxu0 0.0
  %6446 = vmatpush1.msra.mxu0 0.0
  %6447 = vmatprep.subr.mxu0 0.0
  %6448 = vmatpush1.msra.mxu0 0.0
  %6449 = vmatprep.subr.mxu0 0.0
  %6450 = vmatpush1.msra.mxu0 0.0
  %6451 = vmatprep.subr.mxu0 0.0
  %6452 = vmatpush1.msra.mxu0 0.0
  %6453 = vmatprep.subr.mxu0 0.0
  %6454 = vmatpush1.msra.mxu0 0.0
  %6455 = vmatprep.subr.mxu0 0.0
  %6456 = vmatpush1.msra.mxu0 0.0
  %6457 = vmatprep.subr.mxu0 0.0
  %6458 = vmatpush1.msra.mxu0 0.0
  %6459 = vmatprep.subr.mxu0 0.0
  %6460 = vmatpush1.msra.mxu0 0.0
  %6461 = vmatprep.subr.mxu0 0.0
  %6462 = vmatpush1.msra.mxu0 0.0
  %6463 = vmatprep.subr.mxu0 0.0
  %6464 = vmatpush1.msra.mxu0 0.0
  %6465 = vmatprep.subr.mxu0 0.0
  %6466 = vmatpush1.msra.mxu0 0.0
  %6467 = vmatprep.subr.mxu0 0.0
  %6468 = vmatpush1.msra.mxu0 0.0
  %6469 = vmatprep.subr.mxu0 0.0
  %6470 = vmatpush1.msra.mxu0 0.0
  %6471 = vmatprep.subr.mxu0 0.0
  %6472 = vmatpush1.msra.mxu0 0.0
  %6473 = vmatprep.subr.mxu0 0.0
  %6474 = vmatpush1.msra.mxu0 0.0
  %6475 = vmatprep.subr.mxu0 0.0
  %6476 = vmatpush1.msra.mxu0 0.0
  %6477 = vmatprep.subr.mxu0 0.0
  %6478 = vmatpush1.msra.mxu0 0.0
  %6479 = vmatprep.subr.mxu0 0.0
  %6480 = vmatpush1.msra.mxu0 0.0
  %6481 = vmatprep.subr.mxu0 0.0
  %6482 = vmatpush1.msra.mxu0 0.0
  %6483 = vmatprep.subr.mxu0 0.0
  %6484 = vmatpush1.msra.mxu0 0.0
  %6485 = vmatprep.subr.mxu0 0.0
  %6486 = vmatpush1.msra.mxu0 0.0
  %6487 = vmatprep.subr.mxu0 0.0
  %6488 = vmatpush1.msra.mxu0 0.0
  %6489 = vmatprep.mubr.f32.mxu0 0.0
  %6490 = vmatmul.mubr.f32.gmra.mrb[0].mxu0 %v6343
  %v6491 = vpop.f32.mrb[0].mxu0
  %v6492 = vadd.f32 0.0, %v6491
  %v6493 = vpop.f32.mrb[0].mxu0
  %6494 = vmatprep.mubr.f32.mxu0 0.0
  %6495 = vmatmul.mubr.f32.gmra.mrb[0].mxu0 %v6346
  %v6496 = vpop.f32.mrb[0].mxu0
  %v6497 = vadd.f32 0.0, %v6496
  %v6498 = vpop.f32.mrb[0].mxu0
  %6499 = vdwg.mxu0
  %v6500 = vadd.f32 %v6218, %v6415
  %v6501 = vadd.f32 %v6220, %v6417
  %v6502 = vadd.f32 %v6295, %v6492
  %v6503 = vadd.f32 %v6224, %v6421
  %v6504 = vadd.f32 %v6226, %v6423
  %v6505 = vadd.f32 %v6300, %v6497
  %v6506 = vmul.f32 %v5904, %v779
  %v6507 = vmul.f32 %v5905, %v780
  %v6508 = vmul.f32 %v5906, %v777
  %v6509 = vmul.f32 %v5907, %v779
  %v6510 = vmul.f32 %v5908, %v780
  %v6511 = vmul.f32 %v5909, %v777
  %s6512 = scalar_lea.vmem %s9, 48
  %v6513 = vld [vmem:[%s6512] sm:$0xff]
  %v6514 = vld [vmem:[%s6512 + $0x8] sm:$0xff]
  %6521 = vrot.lane.b32.xlu0 %v6506, 1
  %v6522 = vpop.permute.xlu0 %6521
  %6523 = vrot.lane.b32.xlu0 %v6507, 1
  %v6524 = vpop.permute.xlu0 %6523
  %6525 = vrot.lane.b32.xlu0 %v6508, 1
  %v6526 = vpop.permute.xlu0 %6525
  %6527 = vrot.lane.b32.xlu0 %v6509, 1
  %v6528 = vpop.permute.xlu0 %6527
  %6529 = vrot.lane.b32.xlu0 %v6510, 1
  %v6530 = vpop.permute.xlu0 %6529
  %6531 = vrot.lane.b32.xlu0 %v6511, 1
  %v6532 = vpop.permute.xlu0 %6531
  %v6533 = vsel %vm820, %v2802, %v6522
  %v6534 = vsel %vm820, %v6522, %v6524
  %v6535 = vsel %vm820, %v6524, %v6526
  %v6536 = vsel %vm820, %v2802, %v6528
  %v6537 = vsel %vm820, %v6528, %v6530
  %v6538 = vsel %vm820, %v6530, %v6532
  %v6546 = vsel %vm163, %v6513, 0
  %v6549 = vsel %vm163, %v6514, 0
  %6551 = vmatprep.subr.mxu0 %v6534
  %6552 = vmatpush1.msra.mxu0 %v6533
  %6553 = vmatprep.subr.mxu0 %v6537
  %6554 = vmatpush1.msra.mxu0 %v6536
  %6555 = vmatprep.subr.mxu0 0.0
  %6556 = vmatpush1.msra.mxu0 0.0
  %6557 = vmatprep.subr.mxu0 0.0
  %6558 = vmatpush1.msra.mxu0 0.0
  %6559 = vmatprep.subr.mxu0 0.0
  %6560 = vmatpush1.msra.mxu0 0.0
  %6561 = vmatprep.subr.mxu0 0.0
  %6562 = vmatpush1.msra.mxu0 0.0
  %6563 = vmatprep.subr.mxu0 0.0
  %6564 = vmatpush1.msra.mxu0 0.0
  %6565 = vmatprep.subr.mxu0 0.0
  %6566 = vmatpush1.msra.mxu0 0.0
  %6567 = vmatprep.subr.mxu0 0.0
  %6568 = vmatpush1.msra.mxu0 0.0
  %6569 = vmatprep.subr.mxu0 0.0
  %6570 = vmatpush1.msra.mxu0 0.0
  %6571 = vmatprep.subr.mxu0 0.0
  %6572 = vmatpush1.msra.mxu0 0.0
  %6573 = vmatprep.subr.mxu0 0.0
  %6574 = vmatpush1.msra.mxu0 0.0
  %6575 = vmatprep.subr.mxu0 0.0
  %6576 = vmatpush1.msra.mxu0 0.0
  %6577 = vmatprep.subr.mxu0 0.0
  %6578 = vmatpush1.msra.mxu0 0.0
  %6579 = vmatprep.subr.mxu0 0.0
  %6580 = vmatpush1.msra.mxu0 0.0
  %6581 = vmatprep.subr.mxu0 0.0
  %6582 = vmatpush1.msra.mxu0 0.0
  %6583 = vmatprep.subr.mxu0 0.0
  %6584 = vmatpush1.msra.mxu0 0.0
  %6585 = vmatprep.subr.mxu0 0.0
  %6586 = vmatpush1.msra.mxu0 0.0
  %6587 = vmatprep.subr.mxu0 0.0
  %6588 = vmatpush1.msra.mxu0 0.0
  %6589 = vmatprep.subr.mxu0 0.0
  %6590 = vmatpush1.msra.mxu0 0.0
  %6591 = vmatprep.subr.mxu0 0.0
  %6592 = vmatpush1.msra.mxu0 0.0
  %6593 = vmatprep.subr.mxu0 0.0
  %6594 = vmatpush1.msra.mxu0 0.0
  %6595 = vmatprep.subr.mxu0 0.0
  %6596 = vmatpush1.msra.mxu0 0.0
  %6597 = vmatprep.subr.mxu0 0.0
  %6598 = vmatpush1.msra.mxu0 0.0
  %6599 = vmatprep.subr.mxu0 0.0
  %6600 = vmatpush1.msra.mxu0 0.0
  %6601 = vmatprep.subr.mxu0 0.0
  %6602 = vmatpush1.msra.mxu0 0.0
  %6603 = vmatprep.subr.mxu0 0.0
  %6604 = vmatpush1.msra.mxu0 0.0
  %6605 = vmatprep.subr.mxu0 0.0
  %6606 = vmatpush1.msra.mxu0 0.0
  %6607 = vmatprep.subr.mxu0 0.0
  %6608 = vmatpush1.msra.mxu0 0.0
  %6609 = vmatprep.subr.mxu0 0.0
  %6610 = vmatpush1.msra.mxu0 0.0
  %6611 = vmatprep.subr.mxu0 0.0
  %6612 = vmatpush1.msra.mxu0 0.0
  %6613 = vmatprep.subr.mxu0 0.0
  %6614 = vmatpush1.msra.mxu0 0.0
  %6615 = vmatprep.mubr.f32.mxu0 0.0
  %6616 = vmatmul.mubr.f32.gmra.mrb[0].mxu0 %v6546
  %v6617 = vpop.f32.mrb[0].mxu0
  %v6618 = vadd.f32 0.0, %v6617
  %v6619 = vpop.f32.mrb[0].mxu0
  %v6620 = vadd.f32 0.0, %v6619
  %6621 = vmatprep.mubr.f32.mxu0 0.0
  %6622 = vmatmul.mubr.f32.gmra.mrb[0].mxu0 %v6549
  %v6623 = vpop.f32.mrb[0].mxu0
  %v6624 = vadd.f32 0.0, %v6623
  %v6625 = vpop.f32.mrb[0].mxu0
  %v6626 = vadd.f32 0.0, %v6625
  %6627 = vdwg.mxu0
  %6628 = vmatprep.subr.mxu0 0.0
  %6629 = vmatpush1.msra.mxu0 %v6535
  %6630 = vmatprep.subr.mxu0 0.0
  %6631 = vmatpush1.msra.mxu0 %v6538
  %6632 = vmatprep.subr.mxu0 0.0
  %6633 = vmatpush1.msra.mxu0 0.0
  %6634 = vmatprep.subr.mxu0 0.0
  %6635 = vmatpush1.msra.mxu0 0.0
  %6636 = vmatprep.subr.mxu0 0.0
  %6637 = vmatpush1.msra.mxu0 0.0
  %6638 = vmatprep.subr.mxu0 0.0
  %6639 = vmatpush1.msra.mxu0 0.0
  %6640 = vmatprep.subr.mxu0 0.0
  %6641 = vmatpush1.msra.mxu0 0.0
  %6642 = vmatprep.subr.mxu0 0.0
  %6643 = vmatpush1.msra.mxu0 0.0
  %6644 = vmatprep.subr.mxu0 0.0
  %6645 = vmatpush1.msra.mxu0 0.0
  %6646 = vmatprep.subr.mxu0 0.0
  %6647 = vmatpush1.msra.mxu0 0.0
  %6648 = vmatprep.subr.mxu0 0.0
  %6649 = vmatpush1.msra.mxu0 0.0
  %6650 = vmatprep.subr.mxu0 0.0
  %6651 = vmatpush1.msra.mxu0 0.0
  %6652 = vmatprep.subr.mxu0 0.0
  %6653 = vmatpush1.msra.mxu0 0.0
  %6654 = vmatprep.subr.mxu0 0.0
  %6655 = vmatpush1.msra.mxu0 0.0
  %6656 = vmatprep.subr.mxu0 0.0
  %6657 = vmatpush1.msra.mxu0 0.0
  %6658 = vmatprep.subr.mxu0 0.0
  %6659 = vmatpush1.msra.mxu0 0.0
  %6660 = vmatprep.subr.mxu0 0.0
  %6661 = vmatpush1.msra.mxu0 0.0
  %6662 = vmatprep.subr.mxu0 0.0
  %6663 = vmatpush1.msra.mxu0 0.0
  %6664 = vmatprep.subr.mxu0 0.0
  %6665 = vmatpush1.msra.mxu0 0.0
  %6666 = vmatprep.subr.mxu0 0.0
  %6667 = vmatpush1.msra.mxu0 0.0
  %6668 = vmatprep.subr.mxu0 0.0
  %6669 = vmatpush1.msra.mxu0 0.0
  %6670 = vmatprep.subr.mxu0 0.0
  %6671 = vmatpush1.msra.mxu0 0.0
  %6672 = vmatprep.subr.mxu0 0.0
  %6673 = vmatpush1.msra.mxu0 0.0
  %6674 = vmatprep.subr.mxu0 0.0
  %6675 = vmatpush1.msra.mxu0 0.0
  %6676 = vmatprep.subr.mxu0 0.0
  %6677 = vmatpush1.msra.mxu0 0.0
  %6678 = vmatprep.subr.mxu0 0.0
  %6679 = vmatpush1.msra.mxu0 0.0
  %6680 = vmatprep.subr.mxu0 0.0
  %6681 = vmatpush1.msra.mxu0 0.0
  %6682 = vmatprep.subr.mxu0 0.0
  %6683 = vmatpush1.msra.mxu0 0.0
  %6684 = vmatprep.subr.mxu0 0.0
  %6685 = vmatpush1.msra.mxu0 0.0
  %6686 = vmatprep.subr.mxu0 0.0
  %6687 = vmatpush1.msra.mxu0 0.0
  %6688 = vmatprep.subr.mxu0 0.0
  %6689 = vmatpush1.msra.mxu0 0.0
  %6690 = vmatprep.subr.mxu0 0.0
  %6691 = vmatpush1.msra.mxu0 0.0
  %6692 = vmatprep.mubr.f32.mxu0 0.0
  %6693 = vmatmul.mubr.f32.gmra.mrb[0].mxu0 %v6546
  %v6694 = vpop.f32.mrb[0].mxu0
  %v6695 = vadd.f32 0.0, %v6694
  %v6696 = vpop.f32.mrb[0].mxu0
  %6697 = vmatprep.mubr.f32.mxu0 0.0
  %6698 = vmatmul.mubr.f32.gmra.mrb[0].mxu0 %v6549
  %v6699 = vpop.f32.mrb[0].mxu0
  %v6700 = vadd.f32 0.0, %v6699
  %v6701 = vpop.f32.mrb[0].mxu0
  %6702 = vdwg.mxu0
  %v6703 = vadd.f32 %v6500, %v6618
  %v6704 = vadd.f32 %v6501, %v6620
  %v6705 = vadd.f32 %v6502, %v6695
  %v6706 = vadd.f32 %v6503, %v6624
  %v6707 = vadd.f32 %v6504, %v6626
  %v6708 = vadd.f32 %v6505, %v6700
  %v6709 = vmul.f32 %v5904, %v1003
  %v6710 = vmul.f32 %v5905, %v1007
  %v6711 = vmul.f32 %v5906, %v1011
  %v6712 = vmul.f32 %v5907, %v1003
  %v6713 = vmul.f32 %v5908, %v1007
  %v6714 = vmul.f32 %v5909, %v1011
  %s6715 = scalar_lea.vmem %s9, 64
  %v6716 = vld [vmem:[%s6715] sm:$0xff]
  %v6717 = vld [vmem:[%s6715 + $0x8] sm:$0xff]
  %v6719 = vsel %vm163, %v6716, 0
  %v6722 = vsel %vm163, %v6717, 0
  %6724 = vmatprep.subr.mxu0 %v6710
  %6725 = vmatpush1.msra.mxu0 %v6709
  %6726 = vmatprep.subr.mxu0 %v6713
  %6727 = vmatpush1.msra.mxu0 %v6712
  %6728 = vmatprep.subr.mxu0 0.0
  %6729 = vmatpush1.msra.mxu0 0.0
  %6730 = vmatprep.subr.mxu0 0.0
  %6731 = vmatpush1.msra.mxu0 0.0
  %6732 = vmatprep.subr.mxu0 0.0
  %6733 = vmatpush1.msra.mxu0 0.0
  %6734 = vmatprep.subr.mxu0 0.0
  %6735 = vmatpush1.msra.mxu0 0.0
  %6736 = vmatprep.subr.mxu0 0.0
  %6737 = vmatpush1.msra.mxu0 0.0
  %6738 = vmatprep.subr.mxu0 0.0
  %6739 = vmatpush1.msra.mxu0 0.0
  %6740 = vmatprep.subr.mxu0 0.0
  %6741 = vmatpush1.msra.mxu0 0.0
  %6742 = vmatprep.subr.mxu0 0.0
  %6743 = vmatpush1.msra.mxu0 0.0
  %6744 = vmatprep.subr.mxu0 0.0
  %6745 = vmatpush1.msra.mxu0 0.0
  %6746 = vmatprep.subr.mxu0 0.0
  %6747 = vmatpush1.msra.mxu0 0.0
  %6748 = vmatprep.subr.mxu0 0.0
  %6749 = vmatpush1.msra.mxu0 0.0
  %6750 = vmatprep.subr.mxu0 0.0
  %6751 = vmatpush1.msra.mxu0 0.0
  %6752 = vmatprep.subr.mxu0 0.0
  %6753 = vmatpush1.msra.mxu0 0.0
  %6754 = vmatprep.subr.mxu0 0.0
  %6755 = vmatpush1.msra.mxu0 0.0
  %6756 = vmatprep.subr.mxu0 0.0
  %6757 = vmatpush1.msra.mxu0 0.0
  %6758 = vmatprep.subr.mxu0 0.0
  %6759 = vmatpush1.msra.mxu0 0.0
  %6760 = vmatprep.subr.mxu0 0.0
  %6761 = vmatpush1.msra.mxu0 0.0
  %6762 = vmatprep.subr.mxu0 0.0
  %6763 = vmatpush1.msra.mxu0 0.0
  %6764 = vmatprep.subr.mxu0 0.0
  %6765 = vmatpush1.msra.mxu0 0.0
  %6766 = vmatprep.subr.mxu0 0.0
  %6767 = vmatpush1.msra.mxu0 0.0
  %6768 = vmatprep.subr.mxu0 0.0
  %6769 = vmatpush1.msra.mxu0 0.0
  %6770 = vmatprep.subr.mxu0 0.0
  %6771 = vmatpush1.msra.mxu0 0.0
  %6772 = vmatprep.subr.mxu0 0.0
  %6773 = vmatpush1.msra.mxu0 0.0
  %6774 = vmatprep.subr.mxu0 0.0
  %6775 = vmatpush1.msra.mxu0 0.0
  %6776 = vmatprep.subr.mxu0 0.0
  %6777 = vmatpush1.msra.mxu0 0.0
  %6778 = vmatprep.subr.mxu0 0.0
  %6779 = vmatpush1.msra.mxu0 0.0
  %6780 = vmatprep.subr.mxu0 0.0
  %6781 = vmatpush1.msra.mxu0 0.0
  %6782 = vmatprep.subr.mxu0 0.0
  %6783 = vmatpush1.msra.mxu0 0.0
  %6784 = vmatprep.subr.mxu0 0.0
  %6785 = vmatpush1.msra.mxu0 0.0
  %6786 = vmatprep.subr.mxu0 0.0
  %6787 = vmatpush1.msra.mxu0 0.0
  %6788 = vmatprep.mubr.f32.mxu0 0.0
  %6789 = vmatmul.mubr.f32.gmra.mrb[0].mxu0 %v6719
  %v6790 = vpop.f32.mrb[0].mxu0
  %v6791 = vadd.f32 0.0, %v6790
  %v6792 = vpop.f32.mrb[0].mxu0
  %v6793 = vadd.f32 0.0, %v6792
  %6794 = vmatprep.mubr.f32.mxu0 0.0
  %6795 = vmatmul.mubr.f32.gmra.mrb[0].mxu0 %v6722
  %v6796 = vpop.f32.mrb[0].mxu0
  %v6797 = vadd.f32 0.0, %v6796
  %v6798 = vpop.f32.mrb[0].mxu0
  %v6799 = vadd.f32 0.0, %v6798
  %6800 = vdwg.mxu0
  %6801 = vmatprep.subr.mxu0 0.0
  %6802 = vmatpush1.msra.mxu0 %v6711
  %6803 = vmatprep.subr.mxu0 0.0
  %6804 = vmatpush1.msra.mxu0 %v6714
  %6805 = vmatprep.subr.mxu0 0.0
  %6806 = vmatpush1.msra.mxu0 0.0
  %6807 = vmatprep.subr.mxu0 0.0
  %6808 = vmatpush1.msra.mxu0 0.0
  %6809 = vmatprep.subr.mxu0 0.0
  %6810 = vmatpush1.msra.mxu0 0.0
  %6811 = vmatprep.subr.mxu0 0.0
  %6812 = vmatpush1.msra.mxu0 0.0
  %6813 = vmatprep.subr.mxu0 0.0
  %6814 = vmatpush1.msra.mxu0 0.0
  %6815 = vmatprep.subr.mxu0 0.0
  %6816 = vmatpush1.msra.mxu0 0.0
  %6817 = vmatprep.subr.mxu0 0.0
  %6818 = vmatpush1.msra.mxu0 0.0
  %6819 = vmatprep.subr.mxu0 0.0
  %6820 = vmatpush1.msra.mxu0 0.0
  %6821 = vmatprep.subr.mxu0 0.0
  %6822 = vmatpush1.msra.mxu0 0.0
  %6823 = vmatprep.subr.mxu0 0.0
  %6824 = vmatpush1.msra.mxu0 0.0
  %6825 = vmatprep.subr.mxu0 0.0
  %6826 = vmatpush1.msra.mxu0 0.0
  %6827 = vmatprep.subr.mxu0 0.0
  %6828 = vmatpush1.msra.mxu0 0.0
  %6829 = vmatprep.subr.mxu0 0.0
  %6830 = vmatpush1.msra.mxu0 0.0
  %6831 = vmatprep.subr.mxu0 0.0
  %6832 = vmatpush1.msra.mxu0 0.0
  %6833 = vmatprep.subr.mxu0 0.0
  %6834 = vmatpush1.msra.mxu0 0.0
  %6835 = vmatprep.subr.mxu0 0.0
  %6836 = vmatpush1.msra.mxu0 0.0
  %6837 = vmatprep.subr.mxu0 0.0
  %6838 = vmatpush1.msra.mxu0 0.0
  %6839 = vmatprep.subr.mxu0 0.0
  %6840 = vmatpush1.msra.mxu0 0.0
  %6841 = vmatprep.subr.mxu0 0.0
  %6842 = vmatpush1.msra.mxu0 0.0
  %6843 = vmatprep.subr.mxu0 0.0
  %6844 = vmatpush1.msra.mxu0 0.0
  %6845 = vmatprep.subr.mxu0 0.0
  %6846 = vmatpush1.msra.mxu0 0.0
  %6847 = vmatprep.subr.mxu0 0.0
  %6848 = vmatpush1.msra.mxu0 0.0
  %6849 = vmatprep.subr.mxu0 0.0
  %6850 = vmatpush1.msra.mxu0 0.0
  %6851 = vmatprep.subr.mxu0 0.0
  %6852 = vmatpush1.msra.mxu0 0.0
  %6853 = vmatprep.subr.mxu0 0.0
  %6854 = vmatpush1.msra.mxu0 0.0
  %6855 = vmatprep.subr.mxu0 0.0
  %6856 = vmatpush1.msra.mxu0 0.0
  %6857 = vmatprep.subr.mxu0 0.0
  %6858 = vmatpush1.msra.mxu0 0.0
  %6859 = vmatprep.subr.mxu0 0.0
  %6860 = vmatpush1.msra.mxu0 0.0
  %6861 = vmatprep.subr.mxu0 0.0
  %6862 = vmatpush1.msra.mxu0 0.0
  %6863 = vmatprep.subr.mxu0 0.0
  %6864 = vmatpush1.msra.mxu0 0.0
  %6865 = vmatprep.mubr.f32.mxu0 0.0
  %6866 = vmatmul.mubr.f32.gmra.mrb[0].mxu0 %v6719
  %v6867 = vpop.f32.mrb[0].mxu0
  %v6868 = vadd.f32 0.0, %v6867
  %v6869 = vpop.f32.mrb[0].mxu0
  %6870 = vmatprep.mubr.f32.mxu0 0.0
  %6871 = vmatmul.mubr.f32.gmra.mrb[0].mxu0 %v6722
  %v6872 = vpop.f32.mrb[0].mxu0
  %v6873 = vadd.f32 0.0, %v6872
  %v6874 = vpop.f32.mrb[0].mxu0
  %6875 = vdwg.mxu0
  %v6876 = vadd.f32 %v6703, %v6791
  %v6877 = vadd.f32 %v6704, %v6793
  %v6878 = vadd.f32 %v6705, %v6868
  %v6879 = vadd.f32 %v6706, %v6797
  %v6880 = vadd.f32 %v6707, %v6799
  %v6881 = vadd.f32 %v6708, %v6873
  %v6882 = vmul.f32 %v5904, %v1204
  %v6883 = vmul.f32 %v5905, %v1209
  %v6884 = vmul.f32 %v5906, %v1210
  %v6885 = vmul.f32 %v5907, %v1204
  %v6886 = vmul.f32 %v5908, %v1209
  %v6887 = vmul.f32 %v5909, %v1210
  %s6888 = scalar_lea.vmem %s9, 80
  %v6889 = vld [vmem:[%s6888] sm:$0xff]
  %v6890 = vld [vmem:[%s6888 + $0x8] sm:$0xff]
  %6897 = vrot.lane.b32.xlu0 %v6882, 127
  %v6898 = vpop.permute.xlu0 %6897
  %6899 = vrot.lane.b32.xlu0 %v6883, 127
  %v6900 = vpop.permute.xlu0 %6899
  %6901 = vrot.lane.b32.xlu0 %v6884, 127
  %v6902 = vpop.permute.xlu0 %6901
  %6903 = vrot.lane.b32.xlu0 %v6885, 127
  %v6904 = vpop.permute.xlu0 %6903
  %6905 = vrot.lane.b32.xlu0 %v6886, 127
  %v6906 = vpop.permute.xlu0 %6905
  %6907 = vrot.lane.b32.xlu0 %v6887, 127
  %v6908 = vpop.permute.xlu0 %6907
  %v6909 = vsel %vm778, %v6898, %v6900
  %v6910 = vsel %vm778, %v6900, %v6902
  %v6911 = vsel %vm778, %v6902, %v3188
  %v6912 = vsel %vm778, %v6904, %v6906
  %v6913 = vsel %vm778, %v6906, %v6908
  %v6914 = vsel %vm778, %v6908, %v3188
  %v6922 = vsel %vm163, %v6889, 0
  %v6925 = vsel %vm163, %v6890, 0
  %6927 = vmatprep.subr.mxu0 %v6910
  %6928 = vmatpush1.msra.mxu0 %v6909
  %6929 = vmatprep.subr.mxu0 %v6913
  %6930 = vmatpush1.msra.mxu0 %v6912
  %6931 = vmatprep.subr.mxu0 0.0
  %6932 = vmatpush1.msra.mxu0 0.0
  %6933 = vmatprep.subr.mxu0 0.0
  %6934 = vmatpush1.msra.mxu0 0.0
  %6935 = vmatprep.subr.mxu0 0.0
  %6936 = vmatpush1.msra.mxu0 0.0
  %6937 = vmatprep.subr.mxu0 0.0
  %6938 = vmatpush1.msra.mxu0 0.0
  %6939 = vmatprep.subr.mxu0 0.0
  %6940 = vmatpush1.msra.mxu0 0.0
  %6941 = vmatprep.subr.mxu0 0.0
  %6942 = vmatpush1.msra.mxu0 0.0
  %6943 = vmatprep.subr.mxu0 0.0
  %6944 = vmatpush1.msra.mxu0 0.0
  %6945 = vmatprep.subr.mxu0 0.0
  %6946 = vmatpush1.msra.mxu0 0.0
  %6947 = vmatprep.subr.mxu0 0.0
  %6948 = vmatpush1.msra.mxu0 0.0
  %6949 = vmatprep.subr.mxu0 0.0
  %6950 = vmatpush1.msra.mxu0 0.0
  %6951 = vmatprep.subr.mxu0 0.0
  %6952 = vmatpush1.msra.mxu0 0.0
  %6953 = vmatprep.subr.mxu0 0.0
  %6954 = vmatpush1.msra.mxu0 0.0
  %6955 = vmatprep.subr.mxu0 0.0
  %6956 = vmatpush1.msra.mxu0 0.0
  %6957 = vmatprep.subr.mxu0 0.0
  %6958 = vmatpush1.msra.mxu0 0.0
  %6959 = vmatprep.subr.mxu0 0.0
  %6960 = vmatpush1.msra.mxu0 0.0
  %6961 = vmatprep.subr.mxu0 0.0
  %6962 = vmatpush1.msra.mxu0 0.0
  %6963 = vmatprep.subr.mxu0 0.0
  %6964 = vmatpush1.msra.mxu0 0.0
  %6965 = vmatprep.subr.mxu0 0.0
  %6966 = vmatpush1.msra.mxu0 0.0
  %6967 = vmatprep.subr.mxu0 0.0
  %6968 = vmatpush1.msra.mxu0 0.0
  %6969 = vmatprep.subr.mxu0 0.0
  %6970 = vmatpush1.msra.mxu0 0.0
  %6971 = vmatprep.subr.mxu0 0.0
  %6972 = vmatpush1.msra.mxu0 0.0
  %6973 = vmatprep.subr.mxu0 0.0
  %6974 = vmatpush1.msra.mxu0 0.0
  %6975 = vmatprep.subr.mxu0 0.0
  %6976 = vmatpush1.msra.mxu0 0.0
  %6977 = vmatprep.subr.mxu0 0.0
  %6978 = vmatpush1.msra.mxu0 0.0
  %6979 = vmatprep.subr.mxu0 0.0
  %6980 = vmatpush1.msra.mxu0 0.0
  %6981 = vmatprep.subr.mxu0 0.0
  %6982 = vmatpush1.msra.mxu0 0.0
  %6983 = vmatprep.subr.mxu0 0.0
  %6984 = vmatpush1.msra.mxu0 0.0
  %6985 = vmatprep.subr.mxu0 0.0
  %6986 = vmatpush1.msra.mxu0 0.0
  %6987 = vmatprep.subr.mxu0 0.0
  %6988 = vmatpush1.msra.mxu0 0.0
  %6989 = vmatprep.subr.mxu0 0.0
  %6990 = vmatpush1.msra.mxu0 0.0
  %6991 = vmatprep.mubr.f32.mxu0 0.0
  %6992 = vmatmul.mubr.f32.gmra.mrb[0].mxu0 %v6922
  %v6993 = vpop.f32.mrb[0].mxu0
  %v6994 = vadd.f32 0.0, %v6993
  %v6995 = vpop.f32.mrb[0].mxu0
  %v6996 = vadd.f32 0.0, %v6995
  %6997 = vmatprep.mubr.f32.mxu0 0.0
  %6998 = vmatmul.mubr.f32.gmra.mrb[0].mxu0 %v6925
  %v6999 = vpop.f32.mrb[0].mxu0
  %v7000 = vadd.f32 0.0, %v6999
  %v7001 = vpop.f32.mrb[0].mxu0
  %v7002 = vadd.f32 0.0, %v7001
  %7003 = vdwg.mxu0
  %7004 = vmatprep.subr.mxu0 0.0
  %7005 = vmatpush1.msra.mxu0 %v6911
  %7006 = vmatprep.subr.mxu0 0.0
  %7007 = vmatpush1.msra.mxu0 %v6914
  %7008 = vmatprep.subr.mxu0 0.0
  %7009 = vmatpush1.msra.mxu0 0.0
  %7010 = vmatprep.subr.mxu0 0.0
  %7011 = vmatpush1.msra.mxu0 0.0
  %7012 = vmatprep.subr.mxu0 0.0
  %7013 = vmatpush1.msra.mxu0 0.0
  %7014 = vmatprep.subr.mxu0 0.0
  %7015 = vmatpush1.msra.mxu0 0.0
  %7016 = vmatprep.subr.mxu0 0.0
  %7017 = vmatpush1.msra.mxu0 0.0
  %7018 = vmatprep.subr.mxu0 0.0
  %7019 = vmatpush1.msra.mxu0 0.0
  %7020 = vmatprep.subr.mxu0 0.0
  %7021 = vmatpush1.msra.mxu0 0.0
  %7022 = vmatprep.subr.mxu0 0.0
  %7023 = vmatpush1.msra.mxu0 0.0
  %7024 = vmatprep.subr.mxu0 0.0
  %7025 = vmatpush1.msra.mxu0 0.0
  %7026 = vmatprep.subr.mxu0 0.0
  %7027 = vmatpush1.msra.mxu0 0.0
  %7028 = vmatprep.subr.mxu0 0.0
  %7029 = vmatpush1.msra.mxu0 0.0
  %7030 = vmatprep.subr.mxu0 0.0
  %7031 = vmatpush1.msra.mxu0 0.0
  %7032 = vmatprep.subr.mxu0 0.0
  %7033 = vmatpush1.msra.mxu0 0.0
  %7034 = vmatprep.subr.mxu0 0.0
  %7035 = vmatpush1.msra.mxu0 0.0
  %7036 = vmatprep.subr.mxu0 0.0
  %7037 = vmatpush1.msra.mxu0 0.0
  %7038 = vmatprep.subr.mxu0 0.0
  %7039 = vmatpush1.msra.mxu0 0.0
  %7040 = vmatprep.subr.mxu0 0.0
  %7041 = vmatpush1.msra.mxu0 0.0
  %7042 = vmatprep.subr.mxu0 0.0
  %7043 = vmatpush1.msra.mxu0 0.0
  %7044 = vmatprep.subr.mxu0 0.0
  %7045 = vmatpush1.msra.mxu0 0.0
  %7046 = vmatprep.subr.mxu0 0.0
  %7047 = vmatpush1.msra.mxu0 0.0
  %7048 = vmatprep.subr.mxu0 0.0
  %7049 = vmatpush1.msra.mxu0 0.0
  %7050 = vmatprep.subr.mxu0 0.0
  %7051 = vmatpush1.msra.mxu0 0.0
  %7052 = vmatprep.subr.mxu0 0.0
  %7053 = vmatpush1.msra.mxu0 0.0
  %7054 = vmatprep.subr.mxu0 0.0
  %7055 = vmatpush1.msra.mxu0 0.0
  %7056 = vmatprep.subr.mxu0 0.0
  %7057 = vmatpush1.msra.mxu0 0.0
  %7058 = vmatprep.subr.mxu0 0.0
  %7059 = vmatpush1.msra.mxu0 0.0
  %7060 = vmatprep.subr.mxu0 0.0
  %7061 = vmatpush1.msra.mxu0 0.0
  %7062 = vmatprep.subr.mxu0 0.0
  %7063 = vmatpush1.msra.mxu0 0.0
  %7064 = vmatprep.subr.mxu0 0.0
  %7065 = vmatpush1.msra.mxu0 0.0
  %7066 = vmatprep.subr.mxu0 0.0
  %7067 = vmatpush1.msra.mxu0 0.0
  %7068 = vmatprep.mubr.f32.mxu0 0.0
  %7069 = vmatmul.mubr.f32.gmra.mrb[0].mxu0 %v6922
  %v7070 = vpop.f32.mrb[0].mxu0
  %v7071 = vadd.f32 0.0, %v7070
  %v7072 = vpop.f32.mrb[0].mxu0
  %7073 = vmatprep.mubr.f32.mxu0 0.0
  %7074 = vmatmul.mubr.f32.gmra.mrb[0].mxu0 %v6925
  %v7075 = vpop.f32.mrb[0].mxu0
  %v7076 = vadd.f32 0.0, %v7075
  %v7077 = vpop.f32.mrb[0].mxu0
  %7078 = vdwg.mxu0
  %v7079 = vadd.f32 %v6876, %v6994
  %v7080 = vadd.f32 %v6877, %v6996
  %v7081 = vadd.f32 %v6878, %v7071
  %v7082 = vadd.f32 %v6879, %v7000
  %v7083 = vadd.f32 %v6880, %v7002
  %v7084 = vadd.f32 %v6881, %v7076
  %v7085 = vmul.f32 %v5904, %v1442
  %v7086 = vmul.f32 %v5905, %v1447
  %v7087 = vmul.f32 %v5906, %v1448
  %v7088 = vmul.f32 %v5907, %v1442
  %v7089 = vmul.f32 %v5908, %v1447
  %v7090 = vmul.f32 %v5909, %v1448
  %s7091 = scalar_lea.vmem %s9, 96
  %v7092 = vld [vmem:[%s7091] sm:$0xff]
  %v7093 = vld [vmem:[%s7091 + $0x8] sm:$0xff]
  %7100 = vrot.lane.b32.xlu0 %v7085, 120
  %v7101 = vpop.permute.xlu0 %7100
  %7102 = vrot.lane.b32.xlu0 %v7086, 120
  %v7103 = vpop.permute.xlu0 %7102
  %7104 = vrot.lane.b32.xlu0 %v7087, 120
  %v7105 = vpop.permute.xlu0 %7104
  %7106 = vrot.lane.b32.xlu0 %v7088, 120
  %v7107 = vpop.permute.xlu0 %7106
  %7108 = vrot.lane.b32.xlu0 %v7089, 120
  %v7109 = vpop.permute.xlu0 %7108
  %7110 = vrot.lane.b32.xlu0 %v7090, 120
  %v7111 = vpop.permute.xlu0 %7110
  %v7112 = vsel %vm538, %v7101, %v7103
  %v7113 = vsel %vm538, %v7103, %v7105
  %v7114 = vsel %vm538, %v7105, %v3395
  %v7115 = vsel %vm538, %v7107, %v7109
  %v7116 = vsel %vm538, %v7109, %v7111
  %v7117 = vsel %vm538, %v7111, %v3395
  %v7125 = vsel %vm163, %v7092, 0
  %v7128 = vsel %vm163, %v7093, 0
  %7130 = vmatprep.subr.mxu0 %v7113
  %7131 = vmatpush1.msra.mxu0 %v7112
  %7132 = vmatprep.subr.mxu0 %v7116
  %7133 = vmatpush1.msra.mxu0 %v7115
  %7134 = vmatprep.subr.mxu0 0.0
  %7135 = vmatpush1.msra.mxu0 0.0
  %7136 = vmatprep.subr.mxu0 0.0
  %7137 = vmatpush1.msra.mxu0 0.0
  %7138 = vmatprep.subr.mxu0 0.0
  %7139 = vmatpush1.msra.mxu0 0.0
  %7140 = vmatprep.subr.mxu0 0.0
  %7141 = vmatpush1.msra.mxu0 0.0
  %7142 = vmatprep.subr.mxu0 0.0
  %7143 = vmatpush1.msra.mxu0 0.0
  %7144 = vmatprep.subr.mxu0 0.0
  %7145 = vmatpush1.msra.mxu0 0.0
  %7146 = vmatprep.subr.mxu0 0.0
  %7147 = vmatpush1.msra.mxu0 0.0
  %7148 = vmatprep.subr.mxu0 0.0
  %7149 = vmatpush1.msra.mxu0 0.0
  %7150 = vmatprep.subr.mxu0 0.0
  %7151 = vmatpush1.msra.mxu0 0.0
  %7152 = vmatprep.subr.mxu0 0.0
  %7153 = vmatpush1.msra.mxu0 0.0
  %7154 = vmatprep.subr.mxu0 0.0
  %7155 = vmatpush1.msra.mxu0 0.0
  %7156 = vmatprep.subr.mxu0 0.0
  %7157 = vmatpush1.msra.mxu0 0.0
  %7158 = vmatprep.subr.mxu0 0.0
  %7159 = vmatpush1.msra.mxu0 0.0
  %7160 = vmatprep.subr.mxu0 0.0
  %7161 = vmatpush1.msra.mxu0 0.0
  %7162 = vmatprep.subr.mxu0 0.0
  %7163 = vmatpush1.msra.mxu0 0.0
  %7164 = vmatprep.subr.mxu0 0.0
  %7165 = vmatpush1.msra.mxu0 0.0
  %7166 = vmatprep.subr.mxu0 0.0
  %7167 = vmatpush1.msra.mxu0 0.0
  %7168 = vmatprep.subr.mxu0 0.0
  %7169 = vmatpush1.msra.mxu0 0.0
  %7170 = vmatprep.subr.mxu0 0.0
  %7171 = vmatpush1.msra.mxu0 0.0
  %7172 = vmatprep.subr.mxu0 0.0
  %7173 = vmatpush1.msra.mxu0 0.0
  %7174 = vmatprep.subr.mxu0 0.0
  %7175 = vmatpush1.msra.mxu0 0.0
  %7176 = vmatprep.subr.mxu0 0.0
  %7177 = vmatpush1.msra.mxu0 0.0
  %7178 = vmatprep.subr.mxu0 0.0
  %7179 = vmatpush1.msra.mxu0 0.0
  %7180 = vmatprep.subr.mxu0 0.0
  %7181 = vmatpush1.msra.mxu0 0.0
  %7182 = vmatprep.subr.mxu0 0.0
  %7183 = vmatpush1.msra.mxu0 0.0
  %7184 = vmatprep.subr.mxu0 0.0
  %7185 = vmatpush1.msra.mxu0 0.0
  %7186 = vmatprep.subr.mxu0 0.0
  %7187 = vmatpush1.msra.mxu0 0.0
  %7188 = vmatprep.subr.mxu0 0.0
  %7189 = vmatpush1.msra.mxu0 0.0
  %7190 = vmatprep.subr.mxu0 0.0
  %7191 = vmatpush1.msra.mxu0 0.0
  %7192 = vmatprep.subr.mxu0 0.0
  %7193 = vmatpush1.msra.mxu0 0.0
  %7194 = vmatprep.mubr.f32.mxu0 0.0
  %7195 = vmatmul.mubr.f32.gmra.mrb[0].mxu0 %v7125
  %v7196 = vpop.f32.mrb[0].mxu0
  %v7197 = vadd.f32 0.0, %v7196
  %v7198 = vpop.f32.mrb[0].mxu0
  %v7199 = vadd.f32 0.0, %v7198
  %7200 = vmatprep.mubr.f32.mxu0 0.0
  %7201 = vmatmul.mubr.f32.gmra.mrb[0].mxu0 %v7128
  %v7202 = vpop.f32.mrb[0].mxu0
  %v7203 = vadd.f32 0.0, %v7202
  %v7204 = vpop.f32.mrb[0].mxu0
  %v7205 = vadd.f32 0.0, %v7204
  %7206 = vdwg.mxu0
  %7207 = vmatprep.subr.mxu0 0.0
  %7208 = vmatpush1.msra.mxu0 %v7114
  %7209 = vmatprep.subr.mxu0 0.0
  %7210 = vmatpush1.msra.mxu0 %v7117
  %7211 = vmatprep.subr.mxu0 0.0
  %7212 = vmatpush1.msra.mxu0 0.0
  %7213 = vmatprep.subr.mxu0 0.0
  %7214 = vmatpush1.msra.mxu0 0.0
  %7215 = vmatprep.subr.mxu0 0.0
  %7216 = vmatpush1.msra.mxu0 0.0
  %7217 = vmatprep.subr.mxu0 0.0
  %7218 = vmatpush1.msra.mxu0 0.0
  %7219 = vmatprep.subr.mxu0 0.0
  %7220 = vmatpush1.msra.mxu0 0.0
  %7221 = vmatprep.subr.mxu0 0.0
  %7222 = vmatpush1.msra.mxu0 0.0
  %7223 = vmatprep.subr.mxu0 0.0
  %7224 = vmatpush1.msra.mxu0 0.0
  %7225 = vmatprep.subr.mxu0 0.0
  %7226 = vmatpush1.msra.mxu0 0.0
  %7227 = vmatprep.subr.mxu0 0.0
  %7228 = vmatpush1.msra.mxu0 0.0
  %7229 = vmatprep.subr.mxu0 0.0
  %7230 = vmatpush1.msra.mxu0 0.0
  %7231 = vmatprep.subr.mxu0 0.0
  %7232 = vmatpush1.msra.mxu0 0.0
  %7233 = vmatprep.subr.mxu0 0.0
  %7234 = vmatpush1.msra.mxu0 0.0
  %7235 = vmatprep.subr.mxu0 0.0
  %7236 = vmatpush1.msra.mxu0 0.0
  %7237 = vmatprep.subr.mxu0 0.0
  %7238 = vmatpush1.msra.mxu0 0.0
  %7239 = vmatprep.subr.mxu0 0.0
  %7240 = vmatpush1.msra.mxu0 0.0
  %7241 = vmatprep.subr.mxu0 0.0
  %7242 = vmatpush1.msra.mxu0 0.0
  %7243 = vmatprep.subr.mxu0 0.0
  %7244 = vmatpush1.msra.mxu0 0.0
  %7245 = vmatprep.subr.mxu0 0.0
  %7246 = vmatpush1.msra.mxu0 0.0
  %7247 = vmatprep.subr.mxu0 0.0
  %7248 = vmatpush1.msra.mxu0 0.0
  %7249 = vmatprep.subr.mxu0 0.0
  %7250 = vmatpush1.msra.mxu0 0.0
  %7251 = vmatprep.subr.mxu0 0.0
  %7252 = vmatpush1.msra.mxu0 0.0
  %7253 = vmatprep.subr.mxu0 0.0
  %7254 = vmatpush1.msra.mxu0 0.0
  %7255 = vmatprep.subr.mxu0 0.0
  %7256 = vmatpush1.msra.mxu0 0.0
  %7257 = vmatprep.subr.mxu0 0.0
  %7258 = vmatpush1.msra.mxu0 0.0
  %7259 = vmatprep.subr.mxu0 0.0
  %7260 = vmatpush1.msra.mxu0 0.0
  %7261 = vmatprep.subr.mxu0 0.0
  %7262 = vmatpush1.msra.mxu0 0.0
  %7263 = vmatprep.subr.mxu0 0.0
  %7264 = vmatpush1.msra.mxu0 0.0
  %7265 = vmatprep.subr.mxu0 0.0
  %7266 = vmatpush1.msra.mxu0 0.0
  %7267 = vmatprep.subr.mxu0 0.0
  %7268 = vmatpush1.msra.mxu0 0.0
  %7269 = vmatprep.subr.mxu0 0.0
  %7270 = vmatpush1.msra.mxu0 0.0
  %7271 = vmatprep.mubr.f32.mxu0 0.0
  %7272 = vmatmul.mubr.f32.gmra.mrb[0].mxu0 %v7125
  %v7273 = vpop.f32.mrb[0].mxu0
  %v7274 = vadd.f32 0.0, %v7273
  %v7275 = vpop.f32.mrb[0].mxu0
  %7276 = vmatprep.mubr.f32.mxu0 0.0
  %7277 = vmatmul.mubr.f32.gmra.mrb[0].mxu0 %v7128
  %v7278 = vpop.f32.mrb[0].mxu0
  %v7279 = vadd.f32 0.0, %v7278
  %v7280 = vpop.f32.mrb[0].mxu0
  %7281 = vdwg.mxu0
  %v7282 = vadd.f32 %v7079, %v7197
  %v7283 = vadd.f32 %v7080, %v7199
  %v7284 = vadd.f32 %v7081, %v7274
  %v7285 = vadd.f32 %v7082, %v7203
  %v7286 = vadd.f32 %v7083, %v7205
  %v7287 = vadd.f32 %v7084, %v7279
  %v7288 = vmul.f32 %v5904, %v1680
  %v7289 = vmul.f32 %v5905, %v1685
  %v7290 = vmul.f32 %v5906, %v1686
  %v7291 = vmul.f32 %v5907, %v1680
  %v7292 = vmul.f32 %v5908, %v1685
  %v7293 = vmul.f32 %v5909, %v1686
  %s7294 = scalar_lea.vmem %s9, 112
  %v7295 = vld [vmem:[%s7294] sm:$0xff]
  %v7296 = vld [vmem:[%s7294 + $0x8] sm:$0xff]
  %7303 = vrot.lane.b32.xlu0 %v7288, 119
  %v7304 = vpop.permute.xlu0 %7303
  %7305 = vrot.lane.b32.xlu0 %v7289, 119
  %v7306 = vpop.permute.xlu0 %7305
  %7307 = vrot.lane.b32.xlu0 %v7290, 119
  %v7308 = vpop.permute.xlu0 %7307
  %7309 = vrot.lane.b32.xlu0 %v7291, 119
  %v7310 = vpop.permute.xlu0 %7309
  %7311 = vrot.lane.b32.xlu0 %v7292, 119
  %v7312 = vpop.permute.xlu0 %7311
  %7313 = vrot.lane.b32.xlu0 %v7293, 119
  %v7314 = vpop.permute.xlu0 %7313
  %v7315 = vsel %vm108, %v7304, %v7306
  %v7316 = vsel %vm108, %v7306, %v7308
  %v7317 = vsel %vm108, %v7308, %v3602
  %v7318 = vsel %vm108, %v7310, %v7312
  %v7319 = vsel %vm108, %v7312, %v7314
  %v7320 = vsel %vm108, %v7314, %v3602
  %v7328 = vsel %vm163, %v7295, 0
  %v7331 = vsel %vm163, %v7296, 0
  %7333 = vmatprep.subr.mxu0 %v7316
  %7334 = vmatpush1.msra.mxu0 %v7315
  %7335 = vmatprep.subr.mxu0 %v7319
  %7336 = vmatpush1.msra.mxu0 %v7318
  %7337 = vmatprep.subr.mxu0 0.0
  %7338 = vmatpush1.msra.mxu0 0.0
  %7339 = vmatprep.subr.mxu0 0.0
  %7340 = vmatpush1.msra.mxu0 0.0
  %7341 = vmatprep.subr.mxu0 0.0
  %7342 = vmatpush1.msra.mxu0 0.0
  %7343 = vmatprep.subr.mxu0 0.0
  %7344 = vmatpush1.msra.mxu0 0.0
  %7345 = vmatprep.subr.mxu0 0.0
  %7346 = vmatpush1.msra.mxu0 0.0
  %7347 = vmatprep.subr.mxu0 0.0
  %7348 = vmatpush1.msra.mxu0 0.0
  %7349 = vmatprep.subr.mxu0 0.0
  %7350 = vmatpush1.msra.mxu0 0.0
  %7351 = vmatprep.subr.mxu0 0.0
  %7352 = vmatpush1.msra.mxu0 0.0
  %7353 = vmatprep.subr.mxu0 0.0
  %7354 = vmatpush1.msra.mxu0 0.0
  %7355 = vmatprep.subr.mxu0 0.0
  %7356 = vmatpush1.msra.mxu0 0.0
  %7357 = vmatprep.subr.mxu0 0.0
  %7358 = vmatpush1.msra.mxu0 0.0
  %7359 = vmatprep.subr.mxu0 0.0
  %7360 = vmatpush1.msra.mxu0 0.0
  %7361 = vmatprep.subr.mxu0 0.0
  %7362 = vmatpush1.msra.mxu0 0.0
  %7363 = vmatprep.subr.mxu0 0.0
  %7364 = vmatpush1.msra.mxu0 0.0
  %7365 = vmatprep.subr.mxu0 0.0
  %7366 = vmatpush1.msra.mxu0 0.0
  %7367 = vmatprep.subr.mxu0 0.0
  %7368 = vmatpush1.msra.mxu0 0.0
  %7369 = vmatprep.subr.mxu0 0.0
  %7370 = vmatpush1.msra.mxu0 0.0
  %7371 = vmatprep.subr.mxu0 0.0
  %7372 = vmatpush1.msra.mxu0 0.0
  %7373 = vmatprep.subr.mxu0 0.0
  %7374 = vmatpush1.msra.mxu0 0.0
  %7375 = vmatprep.subr.mxu0 0.0
  %7376 = vmatpush1.msra.mxu0 0.0
  %7377 = vmatprep.subr.mxu0 0.0
  %7378 = vmatpush1.msra.mxu0 0.0
  %7379 = vmatprep.subr.mxu0 0.0
  %7380 = vmatpush1.msra.mxu0 0.0
  %7381 = vmatprep.subr.mxu0 0.0
  %7382 = vmatpush1.msra.mxu0 0.0
  %7383 = vmatprep.subr.mxu0 0.0
  %7384 = vmatpush1.msra.mxu0 0.0
  %7385 = vmatprep.subr.mxu0 0.0
  %7386 = vmatpush1.msra.mxu0 0.0
  %7387 = vmatprep.subr.mxu0 0.0
  %7388 = vmatpush1.msra.mxu0 0.0
  %7389 = vmatprep.subr.mxu0 0.0
  %7390 = vmatpush1.msra.mxu0 0.0
  %7391 = vmatprep.subr.mxu0 0.0
  %7392 = vmatpush1.msra.mxu0 0.0
  %7393 = vmatprep.subr.mxu0 0.0
  %7394 = vmatpush1.msra.mxu0 0.0
  %7395 = vmatprep.subr.mxu0 0.0
  %7396 = vmatpush1.msra.mxu0 0.0
  %7397 = vmatprep.mubr.f32.mxu0 0.0
  %7398 = vmatmul.mubr.f32.gmra.mrb[0].mxu0 %v7328
  %v7399 = vpop.f32.mrb[0].mxu0
  %v7400 = vadd.f32 0.0, %v7399
  %v7401 = vpop.f32.mrb[0].mxu0
  %v7402 = vadd.f32 0.0, %v7401
  %7403 = vmatprep.mubr.f32.mxu0 0.0
  %7404 = vmatmul.mubr.f32.gmra.mrb[0].mxu0 %v7331
  %v7405 = vpop.f32.mrb[0].mxu0
  %v7406 = vadd.f32 0.0, %v7405
  %v7407 = vpop.f32.mrb[0].mxu0
  %v7408 = vadd.f32 0.0, %v7407
  %7409 = vdwg.mxu0
  %7410 = vmatprep.subr.mxu0 0.0
  %7411 = vmatpush1.msra.mxu0 %v7317
  %7412 = vmatprep.subr.mxu0 0.0
  %7413 = vmatpush1.msra.mxu0 %v7320
  %7414 = vmatprep.subr.mxu0 0.0
  %7415 = vmatpush1.msra.mxu0 0.0
  %7416 = vmatprep.subr.mxu0 0.0
  %7417 = vmatpush1.msra.mxu0 0.0
  %7418 = vmatprep.subr.mxu0 0.0
  %7419 = vmatpush1.msra.mxu0 0.0
  %7420 = vmatprep.subr.mxu0 0.0
  %7421 = vmatpush1.msra.mxu0 0.0
  %7422 = vmatprep.subr.mxu0 0.0
  %7423 = vmatpush1.msra.mxu0 0.0
  %7424 = vmatprep.subr.mxu0 0.0
  %7425 = vmatpush1.msra.mxu0 0.0
  %7426 = vmatprep.subr.mxu0 0.0
  %7427 = vmatpush1.msra.mxu0 0.0
  %7428 = vmatprep.subr.mxu0 0.0
  %7429 = vmatpush1.msra.mxu0 0.0
  %7430 = vmatprep.subr.mxu0 0.0
  %7431 = vmatpush1.msra.mxu0 0.0
  %7432 = vmatprep.subr.mxu0 0.0
  %7433 = vmatpush1.msra.mxu0 0.0
  %7434 = vmatprep.subr.mxu0 0.0
  %7435 = vmatpush1.msra.mxu0 0.0
  %7436 = vmatprep.subr.mxu0 0.0
  %7437 = vmatpush1.msra.mxu0 0.0
  %7438 = vmatprep.subr.mxu0 0.0
  %7439 = vmatpush1.msra.mxu0 0.0
  %7440 = vmatprep.subr.mxu0 0.0
  %7441 = vmatpush1.msra.mxu0 0.0
  %7442 = vmatprep.subr.mxu0 0.0
  %7443 = vmatpush1.msra.mxu0 0.0
  %7444 = vmatprep.subr.mxu0 0.0
  %7445 = vmatpush1.msra.mxu0 0.0
  %7446 = vmatprep.subr.mxu0 0.0
  %7447 = vmatpush1.msra.mxu0 0.0
  %7448 = vmatprep.subr.mxu0 0.0
  %7449 = vmatpush1.msra.mxu0 0.0
  %7450 = vmatprep.subr.mxu0 0.0
  %7451 = vmatpush1.msra.mxu0 0.0
  %7452 = vmatprep.subr.mxu0 0.0
  %7453 = vmatpush1.msra.mxu0 0.0
  %7454 = vmatprep.subr.mxu0 0.0
  %7455 = vmatpush1.msra.mxu0 0.0
  %7456 = vmatprep.subr.mxu0 0.0
  %7457 = vmatpush1.msra.mxu0 0.0
  %7458 = vmatprep.subr.mxu0 0.0
  %7459 = vmatpush1.msra.mxu0 0.0
  %7460 = vmatprep.subr.mxu0 0.0
  %7461 = vmatpush1.msra.mxu0 0.0
  %7462 = vmatprep.subr.mxu0 0.0
  %7463 = vmatpush1.msra.mxu0 0.0
  %7464 = vmatprep.subr.mxu0 0.0
  %7465 = vmatpush1.msra.mxu0 0.0
  %7466 = vmatprep.subr.mxu0 0.0
  %7467 = vmatpush1.msra.mxu0 0.0
  %7468 = vmatprep.subr.mxu0 0.0
  %7469 = vmatpush1.msra.mxu0 0.0
  %7470 = vmatprep.subr.mxu0 0.0
  %7471 = vmatpush1.msra.mxu0 0.0
  %7472 = vmatprep.subr.mxu0 0.0
  %7473 = vmatpush1.msra.mxu0 0.0
  %7474 = vmatprep.mubr.f32.mxu0 0.0
  %7475 = vmatmul.mubr.f32.gmra.mrb[0].mxu0 %v7328
  %v7476 = vpop.f32.mrb[0].mxu0
  %v7477 = vadd.f32 0.0, %v7476
  %v7478 = vpop.f32.mrb[0].mxu0
  %7479 = vmatprep.mubr.f32.mxu0 0.0
  %7480 = vmatmul.mubr.f32.gmra.mrb[0].mxu0 %v7331
  %v7481 = vpop.f32.mrb[0].mxu0
  %v7482 = vadd.f32 0.0, %v7481
  %v7483 = vpop.f32.mrb[0].mxu0
  %7484 = vdwg.mxu0
  %v7485 = vadd.f32 %v7282, %v7400
  %v7486 = vadd.f32 %v7283, %v7402
  %v7487 = vadd.f32 %v7284, %v7477
  %v7488 = vadd.f32 %v7285, %v7406
  %v7489 = vadd.f32 %v7286, %v7408
  %v7490 = vadd.f32 %v7287, %v7482
  %v7491 = vmul.f32 %v5904, %v1918
  %v7492 = vmul.f32 %v5905, %v1923
  %v7493 = vmul.f32 %v5906, %v1924
  %v7494 = vmul.f32 %v5907, %v1918
  %v7495 = vmul.f32 %v5908, %v1923
  %v7496 = vmul.f32 %v5909, %v1924
  %s7497 = scalar_lea.vmem %s9, 128
  %v7498 = vld [vmem:[%s7497] sm:$0xff]
  %v7499 = vld [vmem:[%s7497 + $0x8] sm:$0xff]
  %7506 = vrot.lane.b32.xlu0 %v7491, 118
  %v7507 = vpop.permute.xlu0 %7506
  %7508 = vrot.lane.b32.xlu0 %v7492, 118
  %v7509 = vpop.permute.xlu0 %7508
  %7510 = vrot.lane.b32.xlu0 %v7493, 118
  %v7511 = vpop.permute.xlu0 %7510
  %7512 = vrot.lane.b32.xlu0 %v7494, 118
  %v7513 = vpop.permute.xlu0 %7512
  %7514 = vrot.lane.b32.xlu0 %v7495, 118
  %v7515 = vpop.permute.xlu0 %7514
  %7516 = vrot.lane.b32.xlu0 %v7496, 118
  %v7517 = vpop.permute.xlu0 %7516
  %v7518 = vsel %vm70, %v7507, %v7509
  %v7519 = vsel %vm70, %v7509, %v7511
  %v7520 = vsel %vm70, %v7511, %v3809
  %v7521 = vsel %vm70, %v7513, %v7515
  %v7522 = vsel %vm70, %v7515, %v7517
  %v7523 = vsel %vm70, %v7517, %v3809
  %v7531 = vsel %vm163, %v7498, 0
  %v7534 = vsel %vm163, %v7499, 0
  %7536 = vmatprep.subr.mxu0 %v7519
  %7537 = vmatpush1.msra.mxu0 %v7518
  %7538 = vmatprep.subr.mxu0 %v7522
  %7539 = vmatpush1.msra.mxu0 %v7521
  %7540 = vmatprep.subr.mxu0 0.0
  %7541 = vmatpush1.msra.mxu0 0.0
  %7542 = vmatprep.subr.mxu0 0.0
  %7543 = vmatpush1.msra.mxu0 0.0
  %7544 = vmatprep.subr.mxu0 0.0
  %7545 = vmatpush1.msra.mxu0 0.0
  %7546 = vmatprep.subr.mxu0 0.0
  %7547 = vmatpush1.msra.mxu0 0.0
  %7548 = vmatprep.subr.mxu0 0.0
  %7549 = vmatpush1.msra.mxu0 0.0
  %7550 = vmatprep.subr.mxu0 0.0
  %7551 = vmatpush1.msra.mxu0 0.0
  %7552 = vmatprep.subr.mxu0 0.0
  %7553 = vmatpush1.msra.mxu0 0.0
  %7554 = vmatprep.subr.mxu0 0.0
  %7555 = vmatpush1.msra.mxu0 0.0
  %7556 = vmatprep.subr.mxu0 0.0
  %7557 = vmatpush1.msra.mxu0 0.0
  %7558 = vmatprep.subr.mxu0 0.0
  %7559 = vmatpush1.msra.mxu0 0.0
  %7560 = vmatprep.subr.mxu0 0.0
  %7561 = vmatpush1.msra.mxu0 0.0
  %7562 = vmatprep.subr.mxu0 0.0
  %7563 = vmatpush1.msra.mxu0 0.0
  %7564 = vmatprep.subr.mxu0 0.0
  %7565 = vmatpush1.msra.mxu0 0.0
  %7566 = vmatprep.subr.mxu0 0.0
  %7567 = vmatpush1.msra.mxu0 0.0
  %7568 = vmatprep.subr.mxu0 0.0
  %7569 = vmatpush1.msra.mxu0 0.0
  %7570 = vmatprep.subr.mxu0 0.0
  %7571 = vmatpush1.msra.mxu0 0.0
  %7572 = vmatprep.subr.mxu0 0.0
  %7573 = vmatpush1.msra.mxu0 0.0
  %7574 = vmatprep.subr.mxu0 0.0
  %7575 = vmatpush1.msra.mxu0 0.0
  %7576 = vmatprep.subr.mxu0 0.0
  %7577 = vmatpush1.msra.mxu0 0.0
  %7578 = vmatprep.subr.mxu0 0.0
  %7579 = vmatpush1.msra.mxu0 0.0
  %7580 = vmatprep.subr.mxu0 0.0
  %7581 = vmatpush1.msra.mxu0 0.0
  %7582 = vmatprep.subr.mxu0 0.0
  %7583 = vmatpush1.msra.mxu0 0.0
  %7584 = vmatprep.subr.mxu0 0.0
  %7585 = vmatpush1.msra.mxu0 0.0
  %7586 = vmatprep.subr.mxu0 0.0
  %7587 = vmatpush1.msra.mxu0 0.0
  %7588 = vmatprep.subr.mxu0 0.0
  %7589 = vmatpush1.msra.mxu0 0.0
  %7590 = vmatprep.subr.mxu0 0.0
  %7591 = vmatpush1.msra.mxu0 0.0
  %7592 = vmatprep.subr.mxu0 0.0
  %7593 = vmatpush1.msra.mxu0 0.0
  %7594 = vmatprep.subr.mxu0 0.0
  %7595 = vmatpush1.msra.mxu0 0.0
  %7596 = vmatprep.subr.mxu0 0.0
  %7597 = vmatpush1.msra.mxu0 0.0
  %7598 = vmatprep.subr.mxu0 0.0
  %7599 = vmatpush1.msra.mxu0 0.0
  %7600 = vmatprep.mubr.f32.mxu0 0.0
  %7601 = vmatmul.mubr.f32.gmra.mrb[0].mxu0 %v7531
  %v7602 = vpop.f32.mrb[0].mxu0
  %v7603 = vadd.f32 0.0, %v7602
  %v7604 = vpop.f32.mrb[0].mxu0
  %v7605 = vadd.f32 0.0, %v7604
  %7606 = vmatprep.mubr.f32.mxu0 0.0
  %7607 = vmatmul.mubr.f32.gmra.mrb[0].mxu0 %v7534
  %v7608 = vpop.f32.mrb[0].mxu0
  %v7609 = vadd.f32 0.0, %v7608
  %v7610 = vpop.f32.mrb[0].mxu0
  %v7611 = vadd.f32 0.0, %v7610
  %7612 = vdwg.mxu0
  %7613 = vmatprep.subr.mxu0 0.0
  %7614 = vmatpush1.msra.mxu0 %v7520
  %7615 = vmatprep.subr.mxu0 0.0
  %7616 = vmatpush1.msra.mxu0 %v7523
  %7617 = vmatprep.subr.mxu0 0.0
  %7618 = vmatpush1.msra.mxu0 0.0
  %7619 = vmatprep.subr.mxu0 0.0
  %7620 = vmatpush1.msra.mxu0 0.0
  %7621 = vmatprep.subr.mxu0 0.0
  %7622 = vmatpush1.msra.mxu0 0.0
  %7623 = vmatprep.subr.mxu0 0.0
  %7624 = vmatpush1.msra.mxu0 0.0
  %7625 = vmatprep.subr.mxu0 0.0
  %7626 = vmatpush1.msra.mxu0 0.0
  %7627 = vmatprep.subr.mxu0 0.0
  %7628 = vmatpush1.msra.mxu0 0.0
  %7629 = vmatprep.subr.mxu0 0.0
  %7630 = vmatpush1.msra.mxu0 0.0
  %7631 = vmatprep.subr.mxu0 0.0
  %7632 = vmatpush1.msra.mxu0 0.0
  %7633 = vmatprep.subr.mxu0 0.0
  %7634 = vmatpush1.msra.mxu0 0.0
  %7635 = vmatprep.subr.mxu0 0.0
  %7636 = vmatpush1.msra.mxu0 0.0
  %7637 = vmatprep.subr.mxu0 0.0
  %7638 = vmatpush1.msra.mxu0 0.0
  %7639 = vmatprep.subr.mxu0 0.0
  %7640 = vmatpush1.msra.mxu0 0.0
  %7641 = vmatprep.subr.mxu0 0.0
  %7642 = vmatpush1.msra.mxu0 0.0
  %7643 = vmatprep.subr.mxu0 0.0
  %7644 = vmatpush1.msra.mxu0 0.0
  %7645 = vmatprep.subr.mxu0 0.0
  %7646 = vmatpush1.msra.mxu0 0.0
  %7647 = vmatprep.subr.mxu0 0.0
  %7648 = vmatpush1.msra.mxu0 0.0
  %7649 = vmatprep.subr.mxu0 0.0
  %7650 = vmatpush1.msra.mxu0 0.0
  %7651 = vmatprep.subr.mxu0 0.0
  %7652 = vmatpush1.msra.mxu0 0.0
  %7653 = vmatprep.subr.mxu0 0.0
  %7654 = vmatpush1.msra.mxu0 0.0
  %7655 = vmatprep.subr.mxu0 0.0
  %7656 = vmatpush1.msra.mxu0 0.0
  %7657 = vmatprep.subr.mxu0 0.0
  %7658 = vmatpush1.msra.mxu0 0.0
  %7659 = vmatprep.subr.mxu0 0.0
  %7660 = vmatpush1.msra.mxu0 0.0
  %7661 = vmatprep.subr.mxu0 0.0
  %7662 = vmatpush1.msra.mxu0 0.0
  %7663 = vmatprep.subr.mxu0 0.0
  %7664 = vmatpush1.msra.mxu0 0.0
  %7665 = vmatprep.subr.mxu0 0.0
  %7666 = vmatpush1.msra.mxu0 0.0
  %7667 = vmatprep.subr.mxu0 0.0
  %7668 = vmatpush1.msra.mxu0 0.0
  %7669 = vmatprep.subr.mxu0 0.0
  %7670 = vmatpush1.msra.mxu0 0.0
  %7671 = vmatprep.subr.mxu0 0.0
  %7672 = vmatpush1.msra.mxu0 0.0
  %7673 = vmatprep.subr.mxu0 0.0
  %7674 = vmatpush1.msra.mxu0 0.0
  %7675 = vmatprep.subr.mxu0 0.0
  %7676 = vmatpush1.msra.mxu0 0.0
  %7677 = vmatprep.mubr.f32.mxu0 0.0
  %7678 = vmatmul.mubr.f32.gmra.mrb[0].mxu0 %v7531
  %v7679 = vpop.f32.mrb[0].mxu0
  %v7680 = vadd.f32 0.0, %v7679
  %v7681 = vpop.f32.mrb[0].mxu0
  %7682 = vmatprep.mubr.f32.mxu0 0.0
  %7683 = vmatmul.mubr.f32.gmra.mrb[0].mxu0 %v7534
  %v7684 = vpop.f32.mrb[0].mxu0
  %v7685 = vadd.f32 0.0, %v7684
  %v7686 = vpop.f32.mrb[0].mxu0
  %7687 = vdwg.mxu0
  %v7688 = vadd.f32 %v7485, %v7603
  %v7689 = vadd.f32 %v7486, %v7605
  %v7690 = vadd.f32 %v7487, %v7680
  %v7691 = vadd.f32 %v7488, %v7609
  %v7692 = vadd.f32 %v7489, %v7611
  %v7693 = vadd.f32 %v7490, %v7685
  %v7694 = vld [vmem:[%s10] sm:$0xff]
  %v7695 = vld [vmem:[%s10 + $0x8] sm:$0xff]
  %7697 = vset.pattern.permute.xlu0 0
  %7698 = vperm.xlu0 %7697, %v7694
  %v7699 = vpop.permute.xlu0 %7698
  %7702 = vset.pattern.permute.xlu0 0
  %7703 = vperm.xlu0 %7702, %v7695
  %v7704 = vpop.permute.xlu0 %7703
  %v7706 = vadd.f32 %v7688, %v7699
  %v7707 = vadd.f32 %v7689, %v7699
  %v7708 = vadd.f32 %v7690, %v7699
  %v7709 = vadd.f32 %v7691, %v7704
  %v7710 = vadd.f32 %v7692, %v7704
  %v7711 = vadd.f32 %v7693, %v7704
  %v7712 = vadd.f32 %v7706, %v4017
  %v7713 = vadd.f32 %v7707, %v4018
  %v7714 = vadd.f32 %v7708, %v4019
  %v7715 = vadd.f32 %v7709, %v4022
  %v7716 = vadd.f32 %v7710, %v4023
  %v7717 = vadd.f32 %v7711, %v4024
  %v7718 = vand.u32 2147483647, %v7712
  %vm7719 = vcmp.le.f32.partialorder %v7718, 0.7853982
  %vm7720 = vcmp.lt.s32.totalorder %v7712, 0
  %v7721 = vand.u32 %v7712, 2139095040
  %v7722 = vshrl.u32 %v7721, 23
  %v7723 = vsub.s32 %v7722, 127
  %v7724 = vand.u32 2147483647, %v7712
  %v7725 = vand.u32 %v7724, 8388607
  %v7726 = vor.u32 %v7725, 8388608
  %v7727 = vsub.s32 0, %v7726
  %v7728 = vadd.s32 %v7723, 1
  %vm7729 = vcmp.gt.s32.totalorder %v7728, 0
  %v7730 = vsel %vm7729, %v7728, 0
  %v7731 = vshrl.u32 %v7730, 5
  %v7732 = vand.u32 %v7730, 31
  %v7733 = vsub.s32 32, %v7732
  %v7734 = vshrl.u32 683565275, %v7733
  %v7735 = vshll.u32 683565275, %v7732
  %v7736 = vshrl.u32 2475754826, %v7733
  %v7737 = vor.u32 %v7735, %v7736
  %v7738 = vshll.u32 2475754826, %v7732
  %v7739 = vshrl.u32 2131351028, %v7733
  %v7740 = vor.u32 %v7738, %v7739
  %v7741 = vshll.u32 2131351028, %v7732
  %v7742 = vshrl.u32 2102212464, %v7733
  %v7743 = vor.u32 %v7741, %v7742
  %v7744 = vshll.u32 2102212464, %v7732
  %v7745 = vshrl.u32 920167782, %v7733
  %v7746 = vor.u32 %v7744, %v7745
  %v7747 = vshll.u32 920167782, %v7732
  %v7748 = vshrl.u32 1326507024, %v7733
  %v7749 = vor.u32 %v7747, %v7748
  %vm7750 = vcmp.lt.s32.totalorder %v7731, 1
  %vm7751 = vcmp.lt.s32.totalorder %v7731, 2
  %vm7752 = vcmp.lt.s32.totalorder %v7731, 3
  %vm7753 = vcmp.lt.s32.totalorder %v7731, 4
  %v7754 = vsel %vm7750, %v7734, %v7737
  %v7755 = vsel %vm7753, %v7743, 2102212464
  %v7756 = vsel %vm7752, %v7740, %v7755
  %v7757 = vsel %vm7751, %v7754, %v7756
  %v7758 = vsel %vm7750, %v7737, %v7740
  %v7759 = vsel %vm7753, %v7746, 920167782
  %v7760 = vsel %vm7752, %v7743, %v7759
  %v7761 = vsel %vm7751, %v7758, %v7760
  %v7762 = vsel %vm7750, %v7740, %v7743
  %v7763 = vsel %vm7753, %v7749, 1326507024
  %v7764 = vsel %vm7752, %v7746, %v7763
  %v7765 = vsel %vm7751, %v7762, %v7764
  %v7766 = vshll.u32 %v7726, 8
  %v7767 = vmul.u32.u64.compose %v7766, %v7765
  %v7768 = vextract.low.u32 %v7767
  %v7769 = vextract.high.u32 %v7767
  %v7770 = vmul.u32.u64.compose %v7766, %v7761
  %v7771 = vextract.low.u32 %v7770
  %v7772 = vextract.high.u32 %v7770
  %v7773 = vmul.u32 %v7766, %v7757
  %v7774 = vadd.s32 %v7769, %v7771
  %vm7775 = vc.u32 %v7769, %v7771
  %v7776 = vadd.s32 %v7772, 1
  %v7777 = vsel %vm7775, %v7776, %v7772
  %v7778 = vadd.s32 %v7773, %v7777
  %v7779 = vadd.s32 %v7778, 536870912
  %v7780 = vshrl.u32 %v7779, 30
  %v7781 = vshll.u32 %v7780, 30
  %v7782 = vsub.s32 %v7778, %v7781
  %vm7783 = vcmp.lt.s32.totalorder %v7782, 0
  %v7784 = vsub.s32 0, %v7782
  %v7785 = vsel %vm7783, %v7784, %v7782
  %v7786 = vclz %v7785
  %v7787 = vsub.s32 %v7786, 2
  %vm7788 = vcmp.gt.s32.totalorder 0, %v7787
  %v7789 = vsel %vm7788, 0, %v7787
  %v7790 = vsub.s32 32, %v7789
  %v7791 = vshll.u32 %v7782, %v7789
  %v7792 = vshrl.u32 %v7774, %v7790
  %v7793 = vor.u32 %v7791, %v7792
  %v7794 = vsub.s32 4294967266, %v7789
  %v7795 = vadd.s32 %v7794, 127
  %v7796 = vshll.u32 %v7795, 23
  %v7797 = vor.u32 4788187, %v7796
  %v7798 = vand.u32 2147483647, %v7797
  %v7800 = vcvt.s32.f32 %v7793
  %v7801 = vmul.f32 %v7800, %v7798
  %v7802 = vxor.u32 %v7801, 2147483648
  %v7803 = vsel %vm7720, %v7802, %v7801
  %v7804 = vsub.s32 4, %v7780
  %v7805 = vsel %vm7720, %v7804, %v7780
  %v7806 = vsel %vm7719, %v7712, %v7803
  %v7807 = vsel %vm7719, 0, %v7805
  %v7808 = vcosq.f32.pop %v7806
  %v7809 = vsinq.f32.pop %v7806
  %vm7810 = vweird.f32 %v7712
  %v7811 = vand.u32 %v7807, 3
  %vm7812 = vcmp.lt.s32.totalorder %v7811, 2
  %vm7813 = vcmp.eq.s32.totalorder %v7811, 0
  %v7814 = vxor.u32 %v7809, 2147483648
  %v7815 = vsel %vm7813, %v7808, %v7814
  %vm7816 = vcmp.eq.s32.totalorder %v7811, 2
  %v7817 = vxor.u32 %v7808, 2147483648
  %v7818 = vsel %vm7816, %v7817, %v7809
  %v7819 = vsel %vm7812, %v7815, %v7818
  %v7820 = vsel %vm7810, nan, %v7819
  %v7821 = vand.u32 2147483647, %v7713
  %vm7822 = vcmp.le.f32.partialorder %v7821, 0.7853982
  %vm7823 = vcmp.lt.s32.totalorder %v7713, 0
  %v7824 = vand.u32 %v7713, 2139095040
  %v7825 = vshrl.u32 %v7824, 23
  %v7826 = vsub.s32 %v7825, 127
  %v7827 = vand.u32 2147483647, %v7713
  %v7828 = vand.u32 %v7827, 8388607
  %v7829 = vor.u32 %v7828, 8388608
  %v7830 = vsub.s32 0, %v7829
  %v7831 = vadd.s32 %v7826, 1
  %vm7832 = vcmp.gt.s32.totalorder %v7831, 0
  %v7833 = vsel %vm7832, %v7831, 0
  %v7834 = vshrl.u32 %v7833, 5
  %v7835 = vand.u32 %v7833, 31
  %v7836 = vsub.s32 32, %v7835
  %v7837 = vshrl.u32 683565275, %v7836
  %v7838 = vshll.u32 683565275, %v7835
  %v7839 = vshrl.u32 2475754826, %v7836
  %v7840 = vor.u32 %v7838, %v7839
  %v7841 = vshll.u32 2475754826, %v7835
  %v7842 = vshrl.u32 2131351028, %v7836
  %v7843 = vor.u32 %v7841, %v7842
  %v7844 = vshll.u32 2131351028, %v7835
  %v7845 = vshrl.u32 2102212464, %v7836
  %v7846 = vor.u32 %v7844, %v7845
  %v7847 = vshll.u32 2102212464, %v7835
  %v7848 = vshrl.u32 920167782, %v7836
  %v7849 = vor.u32 %v7847, %v7848
  %v7850 = vshll.u32 920167782, %v7835
  %v7851 = vshrl.u32 1326507024, %v7836
  %v7852 = vor.u32 %v7850, %v7851
  %vm7853 = vcmp.lt.s32.totalorder %v7834, 1
  %vm7854 = vcmp.lt.s32.totalorder %v7834, 2
  %vm7855 = vcmp.lt.s32.totalorder %v7834, 3
  %vm7856 = vcmp.lt.s32.totalorder %v7834, 4
  %v7857 = vsel %vm7853, %v7837, %v7840
  %v7858 = vsel %vm7856, %v7846, 2102212464
  %v7859 = vsel %vm7855, %v7843, %v7858
  %v7860 = vsel %vm7854, %v7857, %v7859
  %v7861 = vsel %vm7853, %v7840, %v7843
  %v7862 = vsel %vm7856, %v7849, 920167782
  %v7863 = vsel %vm7855, %v7846, %v7862
  %v7864 = vsel %vm7854, %v7861, %v7863
  %v7865 = vsel %vm7853, %v7843, %v7846
  %v7866 = vsel %vm7856, %v7852, 1326507024
  %v7867 = vsel %vm7855, %v7849, %v7866
  %v7868 = vsel %vm7854, %v7865, %v7867
  %v7869 = vshll.u32 %v7829, 8
  %v7870 = vmul.u32.u64.compose %v7869, %v7868
  %v7871 = vextract.low.u32 %v7870
  %v7872 = vextract.high.u32 %v7870
  %v7873 = vmul.u32.u64.compose %v7869, %v7864
  %v7874 = vextract.low.u32 %v7873
  %v7875 = vextract.high.u32 %v7873
  %v7876 = vmul.u32 %v7869, %v7860
  %v7877 = vadd.s32 %v7872, %v7874
  %vm7878 = vc.u32 %v7872, %v7874
  %v7879 = vadd.s32 %v7875, 1
  %v7880 = vsel %vm7878, %v7879, %v7875
  %v7881 = vadd.s32 %v7876, %v7880
  %v7882 = vadd.s32 %v7881, 536870912
  %v7883 = vshrl.u32 %v7882, 30
  %v7884 = vshll.u32 %v7883, 30
  %v7885 = vsub.s32 %v7881, %v7884
  %vm7886 = vcmp.lt.s32.totalorder %v7885, 0
  %v7887 = vsub.s32 0, %v7885
  %v7888 = vsel %vm7886, %v7887, %v7885
  %v7889 = vclz %v7888
  %v7890 = vsub.s32 %v7889, 2
  %vm7891 = vcmp.gt.s32.totalorder 0, %v7890
  %v7892 = vsel %vm7891, 0, %v7890
  %v7893 = vsub.s32 32, %v7892
  %v7894 = vshll.u32 %v7885, %v7892
  %v7895 = vshrl.u32 %v7877, %v7893
  %v7896 = vor.u32 %v7894, %v7895
  %v7897 = vsub.s32 4294967266, %v7892
  %v7898 = vadd.s32 %v7897, 127
  %v7899 = vshll.u32 %v7898, 23
  %v7900 = vor.u32 4788187, %v7899
  %v7901 = vand.u32 2147483647, %v7900
  %v7903 = vcvt.s32.f32 %v7896
  %v7904 = vmul.f32 %v7903, %v7901
  %v7905 = vxor.u32 %v7904, 2147483648
  %v7906 = vsel %vm7823, %v7905, %v7904
  %v7907 = vsub.s32 4, %v7883
  %v7908 = vsel %vm7823, %v7907, %v7883
  %v7909 = vsel %vm7822, %v7713, %v7906
  %v7910 = vsel %vm7822, 0, %v7908
  %v7911 = vcosq.f32.pop %v7909
  %v7912 = vsinq.f32.pop %v7909
  %vm7913 = vweird.f32 %v7713
  %v7914 = vand.u32 %v7910, 3
  %vm7915 = vcmp.lt.s32.totalorder %v7914, 2
  %vm7916 = vcmp.eq.s32.totalorder %v7914, 0
  %v7917 = vxor.u32 %v7912, 2147483648
  %v7918 = vsel %vm7916, %v7911, %v7917
  %vm7919 = vcmp.eq.s32.totalorder %v7914, 2
  %v7920 = vxor.u32 %v7911, 2147483648
  %v7921 = vsel %vm7919, %v7920, %v7912
  %v7922 = vsel %vm7915, %v7918, %v7921
  %v7923 = vsel %vm7913, nan, %v7922
  %v7924 = vand.u32 2147483647, %v7714
  %vm7925 = vcmp.le.f32.partialorder %v7924, 0.7853982
  %vm7926 = vcmp.lt.s32.totalorder %v7714, 0
  %v7927 = vand.u32 %v7714, 2139095040
  %v7928 = vshrl.u32 %v7927, 23
  %v7929 = vsub.s32 %v7928, 127
  %v7930 = vand.u32 2147483647, %v7714
  %v7931 = vand.u32 %v7930, 8388607
  %v7932 = vor.u32 %v7931, 8388608
  %v7933 = vsub.s32 0, %v7932
  %v7934 = vadd.s32 %v7929, 1
  %vm7935 = vcmp.gt.s32.totalorder %v7934, 0
  %v7936 = vsel %vm7935, %v7934, 0
  %v7937 = vshrl.u32 %v7936, 5
  %v7938 = vand.u32 %v7936, 31
  %v7939 = vsub.s32 32, %v7938
  %v7940 = vshrl.u32 683565275, %v7939
  %v7941 = vshll.u32 683565275, %v7938
  %v7942 = vshrl.u32 2475754826, %v7939
  %v7943 = vor.u32 %v7941, %v7942
  %v7944 = vshll.u32 2475754826, %v7938
  %v7945 = vshrl.u32 2131351028, %v7939
  %v7946 = vor.u32 %v7944, %v7945
  %v7947 = vshll.u32 2131351028, %v7938
  %v7948 = vshrl.u32 2102212464, %v7939
  %v7949 = vor.u32 %v7947, %v7948
  %v7950 = vshll.u32 2102212464, %v7938
  %v7951 = vshrl.u32 920167782, %v7939
  %v7952 = vor.u32 %v7950, %v7951
  %v7953 = vshll.u32 920167782, %v7938
  %v7954 = vshrl.u32 1326507024, %v7939
  %v7955 = vor.u32 %v7953, %v7954
  %vm7956 = vcmp.lt.s32.totalorder %v7937, 1
  %vm7957 = vcmp.lt.s32.totalorder %v7937, 2
  %vm7958 = vcmp.lt.s32.totalorder %v7937, 3
  %vm7959 = vcmp.lt.s32.totalorder %v7937, 4
  %v7960 = vsel %vm7956, %v7940, %v7943
  %v7961 = vsel %vm7959, %v7949, 2102212464
  %v7962 = vsel %vm7958, %v7946, %v7961
  %v7963 = vsel %vm7957, %v7960, %v7962
  %v7964 = vsel %vm7956, %v7943, %v7946
  %v7965 = vsel %vm7959, %v7952, 920167782
  %v7966 = vsel %vm7958, %v7949, %v7965
  %v7967 = vsel %vm7957, %v7964, %v7966
  %v7968 = vsel %vm7956, %v7946, %v7949
  %v7969 = vsel %vm7959, %v7955, 1326507024
  %v7970 = vsel %vm7958, %v7952, %v7969
  %v7971 = vsel %vm7957, %v7968, %v7970
  %v7972 = vshll.u32 %v7932, 8
  %v7973 = vmul.u32.u64.compose %v7972, %v7971
  %v7974 = vextract.low.u32 %v7973
  %v7975 = vextract.high.u32 %v7973
  %v7976 = vmul.u32.u64.compose %v7972, %v7967
  %v7977 = vextract.low.u32 %v7976
  %v7978 = vextract.high.u32 %v7976
  %v7979 = vmul.u32 %v7972, %v7963
  %v7980 = vadd.s32 %v7975, %v7977
  %vm7981 = vc.u32 %v7975, %v7977
  %v7982 = vadd.s32 %v7978, 1
  %v7983 = vsel %vm7981, %v7982, %v7978
  %v7984 = vadd.s32 %v7979, %v7983
  %v7985 = vadd.s32 %v7984, 536870912
  %v7986 = vshrl.u32 %v7985, 30
  %v7987 = vshll.u32 %v7986, 30
  %v7988 = vsub.s32 %v7984, %v7987
  %vm7989 = vcmp.lt.s32.totalorder %v7988, 0
  %v7990 = vsub.s32 0, %v7988
  %v7991 = vsel %vm7989, %v7990, %v7988
  %v7992 = vclz %v7991
  %v7993 = vsub.s32 %v7992, 2
  %vm7994 = vcmp.gt.s32.totalorder 0, %v7993
  %v7995 = vsel %vm7994, 0, %v7993
  %v7996 = vsub.s32 32, %v7995
  %v7997 = vshll.u32 %v7988, %v7995
  %v7998 = vshrl.u32 %v7980, %v7996
  %v7999 = vor.u32 %v7997, %v7998
  %v8000 = vsub.s32 4294967266, %v7995
  %v8001 = vadd.s32 %v8000, 127
  %v8002 = vshll.u32 %v8001, 23
  %v8003 = vor.u32 4788187, %v8002
  %v8004 = vand.u32 2147483647, %v8003
  %v8006 = vcvt.s32.f32 %v7999
  %v8007 = vmul.f32 %v8006, %v8004
  %v8008 = vxor.u32 %v8007, 2147483648
  %v8009 = vsel %vm7926, %v8008, %v8007
  %v8010 = vsub.s32 4, %v7986
  %v8011 = vsel %vm7926, %v8010, %v7986
  %v8012 = vsel %vm7925, %v7714, %v8009
  %v8013 = vsel %vm7925, 0, %v8011
  %v8014 = vcosq.f32.pop %v8012
  %v8015 = vsinq.f32.pop %v8012
  %vm8016 = vweird.f32 %v7714
  %v8017 = vand.u32 %v8013, 3
  %vm8018 = vcmp.lt.s32.totalorder %v8017, 2
  %vm8019 = vcmp.eq.s32.totalorder %v8017, 0
  %v8020 = vxor.u32 %v8015, 2147483648
  %v8021 = vsel %vm8019, %v8014, %v8020
  %vm8022 = vcmp.eq.s32.totalorder %v8017, 2
  %v8023 = vxor.u32 %v8014, 2147483648
  %v8024 = vsel %vm8022, %v8023, %v8015
  %v8025 = vsel %vm8018, %v8021, %v8024
  %v8026 = vsel %vm8016, nan, %v8025
  %v8027 = vand.u32 2147483647, %v7715
  %vm8028 = vcmp.le.f32.partialorder %v8027, 0.7853982
  %vm8029 = vcmp.lt.s32.totalorder %v7715, 0
  %v8030 = vand.u32 %v7715, 2139095040
  %v8031 = vshrl.u32 %v8030, 23
  %v8032 = vsub.s32 %v8031, 127
  %v8033 = vand.u32 2147483647, %v7715
  %v8034 = vand.u32 %v8033, 8388607
  %v8035 = vor.u32 %v8034, 8388608
  %v8036 = vsub.s32 0, %v8035
  %v8037 = vadd.s32 %v8032, 1
  %vm8038 = vcmp.gt.s32.totalorder %v8037, 0
  %v8039 = vsel %vm8038, %v8037, 0
  %v8040 = vshrl.u32 %v8039, 5
  %v8041 = vand.u32 %v8039, 31
  %v8042 = vsub.s32 32, %v8041
  %v8043 = vshrl.u32 683565275, %v8042
  %v8044 = vshll.u32 683565275, %v8041
  %v8045 = vshrl.u32 2475754826, %v8042
  %v8046 = vor.u32 %v8044, %v8045
  %v8047 = vshll.u32 2475754826, %v8041
  %v8048 = vshrl.u32 2131351028, %v8042
  %v8049 = vor.u32 %v8047, %v8048
  %v8050 = vshll.u32 2131351028, %v8041
  %v8051 = vshrl.u32 2102212464, %v8042
  %v8052 = vor.u32 %v8050, %v8051
  %v8053 = vshll.u32 2102212464, %v8041
  %v8054 = vshrl.u32 920167782, %v8042
  %v8055 = vor.u32 %v8053, %v8054
  %v8056 = vshll.u32 920167782, %v8041
  %v8057 = vshrl.u32 1326507024, %v8042
  %v8058 = vor.u32 %v8056, %v8057
  %vm8059 = vcmp.lt.s32.totalorder %v8040, 1
  %vm8060 = vcmp.lt.s32.totalorder %v8040, 2
  %vm8061 = vcmp.lt.s32.totalorder %v8040, 3
  %vm8062 = vcmp.lt.s32.totalorder %v8040, 4
  %v8063 = vsel %vm8059, %v8043, %v8046
  %v8064 = vsel %vm8062, %v8052, 2102212464
  %v8065 = vsel %vm8061, %v8049, %v8064
  %v8066 = vsel %vm8060, %v8063, %v8065
  %v8067 = vsel %vm8059, %v8046, %v8049
  %v8068 = vsel %vm8062, %v8055, 920167782
  %v8069 = vsel %vm8061, %v8052, %v8068
  %v8070 = vsel %vm8060, %v8067, %v8069
  %v8071 = vsel %vm8059, %v8049, %v8052
  %v8072 = vsel %vm8062, %v8058, 1326507024
  %v8073 = vsel %vm8061, %v8055, %v8072
  %v8074 = vsel %vm8060, %v8071, %v8073
  %v8075 = vshll.u32 %v8035, 8
  %v8076 = vmul.u32.u64.compose %v8075, %v8074
  %v8077 = vextract.low.u32 %v8076
  %v8078 = vextract.high.u32 %v8076
  %v8079 = vmul.u32.u64.compose %v8075, %v8070
  %v8080 = vextract.low.u32 %v8079
  %v8081 = vextract.high.u32 %v8079
  %v8082 = vmul.u32 %v8075, %v8066
  %v8083 = vadd.s32 %v8078, %v8080
  %vm8084 = vc.u32 %v8078, %v8080
  %v8085 = vadd.s32 %v8081, 1
  %v8086 = vsel %vm8084, %v8085, %v8081
  %v8087 = vadd.s32 %v8082, %v8086
  %v8088 = vadd.s32 %v8087, 536870912
  %v8089 = vshrl.u32 %v8088, 30
  %v8090 = vshll.u32 %v8089, 30
  %v8091 = vsub.s32 %v8087, %v8090
  %vm8092 = vcmp.lt.s32.totalorder %v8091, 0
  %v8093 = vsub.s32 0, %v8091
  %v8094 = vsel %vm8092, %v8093, %v8091
  %v8095 = vclz %v8094
  %v8096 = vsub.s32 %v8095, 2
  %vm8097 = vcmp.gt.s32.totalorder 0, %v8096
  %v8098 = vsel %vm8097, 0, %v8096
  %v8099 = vsub.s32 32, %v8098
  %v8100 = vshll.u32 %v8091, %v8098
  %v8101 = vshrl.u32 %v8083, %v8099
  %v8102 = vor.u32 %v8100, %v8101
  %v8103 = vsub.s32 4294967266, %v8098
  %v8104 = vadd.s32 %v8103, 127
  %v8105 = vshll.u32 %v8104, 23
  %v8106 = vor.u32 4788187, %v8105
  %v8107 = vand.u32 2147483647, %v8106
  %v8109 = vcvt.s32.f32 %v8102
  %v8110 = vmul.f32 %v8109, %v8107
  %v8111 = vxor.u32 %v8110, 2147483648
  %v8112 = vsel %vm8029, %v8111, %v8110
  %v8113 = vsub.s32 4, %v8089
  %v8114 = vsel %vm8029, %v8113, %v8089
  %v8115 = vsel %vm8028, %v7715, %v8112
  %v8116 = vsel %vm8028, 0, %v8114
  %v8117 = vcosq.f32.pop %v8115
  %v8118 = vsinq.f32.pop %v8115
  %vm8119 = vweird.f32 %v7715
  %v8120 = vand.u32 %v8116, 3
  %vm8121 = vcmp.lt.s32.totalorder %v8120, 2
  %vm8122 = vcmp.eq.s32.totalorder %v8120, 0
  %v8123 = vxor.u32 %v8118, 2147483648
  %v8124 = vsel %vm8122, %v8117, %v8123
  %vm8125 = vcmp.eq.s32.totalorder %v8120, 2
  %v8126 = vxor.u32 %v8117, 2147483648
  %v8127 = vsel %vm8125, %v8126, %v8118
  %v8128 = vsel %vm8121, %v8124, %v8127
  %v8129 = vsel %vm8119, nan, %v8128
  %v8130 = vand.u32 2147483647, %v7716
  %vm8131 = vcmp.le.f32.partialorder %v8130, 0.7853982
  %vm8132 = vcmp.lt.s32.totalorder %v7716, 0
  %v8133 = vand.u32 %v7716, 2139095040
  %v8134 = vshrl.u32 %v8133, 23
  %v8135 = vsub.s32 %v8134, 127
  %v8136 = vand.u32 2147483647, %v7716
  %v8137 = vand.u32 %v8136, 8388607
  %v8138 = vor.u32 %v8137, 8388608
  %v8139 = vsub.s32 0, %v8138
  %v8140 = vadd.s32 %v8135, 1
  %vm8141 = vcmp.gt.s32.totalorder %v8140, 0
  %v8142 = vsel %vm8141, %v8140, 0
  %v8143 = vshrl.u32 %v8142, 5
  %v8144 = vand.u32 %v8142, 31
  %v8145 = vsub.s32 32, %v8144
  %v8146 = vshrl.u32 683565275, %v8145
  %v8147 = vshll.u32 683565275, %v8144
  %v8148 = vshrl.u32 2475754826, %v8145
  %v8149 = vor.u32 %v8147, %v8148
  %v8150 = vshll.u32 2475754826, %v8144
  %v8151 = vshrl.u32 2131351028, %v8145
  %v8152 = vor.u32 %v8150, %v8151
  %v8153 = vshll.u32 2131351028, %v8144
  %v8154 = vshrl.u32 2102212464, %v8145
  %v8155 = vor.u32 %v8153, %v8154
  %v8156 = vshll.u32 2102212464, %v8144
  %v8157 = vshrl.u32 920167782, %v8145
  %v8158 = vor.u32 %v8156, %v8157
  %v8159 = vshll.u32 920167782, %v8144
  %v8160 = vshrl.u32 1326507024, %v8145
  %v8161 = vor.u32 %v8159, %v8160
  %vm8162 = vcmp.lt.s32.totalorder %v8143, 1
  %vm8163 = vcmp.lt.s32.totalorder %v8143, 2
  %vm8164 = vcmp.lt.s32.totalorder %v8143, 3
  %vm8165 = vcmp.lt.s32.totalorder %v8143, 4
  %v8166 = vsel %vm8162, %v8146, %v8149
  %v8167 = vsel %vm8165, %v8155, 2102212464
  %v8168 = vsel %vm8164, %v8152, %v8167
  %v8169 = vsel %vm8163, %v8166, %v8168
  %v8170 = vsel %vm8162, %v8149, %v8152
  %v8171 = vsel %vm8165, %v8158, 920167782
  %v8172 = vsel %vm8164, %v8155, %v8171
  %v8173 = vsel %vm8163, %v8170, %v8172
  %v8174 = vsel %vm8162, %v8152, %v8155
  %v8175 = vsel %vm8165, %v8161, 1326507024
  %v8176 = vsel %vm8164, %v8158, %v8175
  %v8177 = vsel %vm8163, %v8174, %v8176
  %v8178 = vshll.u32 %v8138, 8
  %v8179 = vmul.u32.u64.compose %v8178, %v8177
  %v8180 = vextract.low.u32 %v8179
  %v8181 = vextract.high.u32 %v8179
  %v8182 = vmul.u32.u64.compose %v8178, %v8173
  %v8183 = vextract.low.u32 %v8182
  %v8184 = vextract.high.u32 %v8182
  %v8185 = vmul.u32 %v8178, %v8169
  %v8186 = vadd.s32 %v8181, %v8183
  %vm8187 = vc.u32 %v8181, %v8183
  %v8188 = vadd.s32 %v8184, 1
  %v8189 = vsel %vm8187, %v8188, %v8184
  %v8190 = vadd.s32 %v8185, %v8189
  %v8191 = vadd.s32 %v8190, 536870912
  %v8192 = vshrl.u32 %v8191, 30
  %v8193 = vshll.u32 %v8192, 30
  %v8194 = vsub.s32 %v8190, %v8193
  %vm8195 = vcmp.lt.s32.totalorder %v8194, 0
  %v8196 = vsub.s32 0, %v8194
  %v8197 = vsel %vm8195, %v8196, %v8194
  %v8198 = vclz %v8197
  %v8199 = vsub.s32 %v8198, 2
  %vm8200 = vcmp.gt.s32.totalorder 0, %v8199
  %v8201 = vsel %vm8200, 0, %v8199
  %v8202 = vsub.s32 32, %v8201
  %v8203 = vshll.u32 %v8194, %v8201
  %v8204 = vshrl.u32 %v8186, %v8202
  %v8205 = vor.u32 %v8203, %v8204
  %v8206 = vsub.s32 4294967266, %v8201
  %v8207 = vadd.s32 %v8206, 127
  %v8208 = vshll.u32 %v8207, 23
  %v8209 = vor.u32 4788187, %v8208
  %v8210 = vand.u32 2147483647, %v8209
  %v8212 = vcvt.s32.f32 %v8205
  %v8213 = vmul.f32 %v8212, %v8210
  %v8214 = vxor.u32 %v8213, 2147483648
  %v8215 = vsel %vm8132, %v8214, %v8213
  %v8216 = vsub.s32 4, %v8192
  %v8217 = vsel %vm8132, %v8216, %v8192
  %v8218 = vsel %vm8131, %v7716, %v8215
  %v8219 = vsel %vm8131, 0, %v8217
  %v8220 = vcosq.f32.pop %v8218
  %v8221 = vsinq.f32.pop %v8218
  %vm8222 = vweird.f32 %v7716
  %v8223 = vand.u32 %v8219, 3
  %vm8224 = vcmp.lt.s32.totalorder %v8223, 2
  %vm8225 = vcmp.eq.s32.totalorder %v8223, 0
  %v8226 = vxor.u32 %v8221, 2147483648
  %v8227 = vsel %vm8225, %v8220, %v8226
  %vm8228 = vcmp.eq.s32.totalorder %v8223, 2
  %v8229 = vxor.u32 %v8220, 2147483648
  %v8230 = vsel %vm8228, %v8229, %v8221
  %v8231 = vsel %vm8224, %v8227, %v8230
  %v8232 = vsel %vm8222, nan, %v8231
  %v8233 = vand.u32 2147483647, %v7717
  %vm8234 = vcmp.le.f32.partialorder %v8233, 0.7853982
  %vm8235 = vcmp.lt.s32.totalorder %v7717, 0
  %v8236 = vand.u32 %v7717, 2139095040
  %v8237 = vshrl.u32 %v8236, 23
  %v8238 = vsub.s32 %v8237, 127
  %v8239 = vand.u32 2147483647, %v7717
  %v8240 = vand.u32 %v8239, 8388607
  %v8241 = vor.u32 %v8240, 8388608
  %v8242 = vsub.s32 0, %v8241
  %v8243 = vadd.s32 %v8238, 1
  %vm8244 = vcmp.gt.s32.totalorder %v8243, 0
  %v8245 = vsel %vm8244, %v8243, 0
  %v8246 = vshrl.u32 %v8245, 5
  %v8247 = vand.u32 %v8245, 31
  %v8248 = vsub.s32 32, %v8247
  %v8249 = vshrl.u32 683565275, %v8248
  %v8250 = vshll.u32 683565275, %v8247
  %v8251 = vshrl.u32 2475754826, %v8248
  %v8252 = vor.u32 %v8250, %v8251
  %v8253 = vshll.u32 2475754826, %v8247
  %v8254 = vshrl.u32 2131351028, %v8248
  %v8255 = vor.u32 %v8253, %v8254
  %v8256 = vshll.u32 2131351028, %v8247
  %v8257 = vshrl.u32 2102212464, %v8248
  %v8258 = vor.u32 %v8256, %v8257
  %v8259 = vshll.u32 2102212464, %v8247
  %v8260 = vshrl.u32 920167782, %v8248
  %v8261 = vor.u32 %v8259, %v8260
  %v8262 = vshll.u32 920167782, %v8247
  %v8263 = vshrl.u32 1326507024, %v8248
  %v8264 = vor.u32 %v8262, %v8263
  %vm8265 = vcmp.lt.s32.totalorder %v8246, 1
  %vm8266 = vcmp.lt.s32.totalorder %v8246, 2
  %vm8267 = vcmp.lt.s32.totalorder %v8246, 3
  %vm8268 = vcmp.lt.s32.totalorder %v8246, 4
  %v8269 = vsel %vm8265, %v8249, %v8252
  %v8270 = vsel %vm8268, %v8258, 2102212464
  %v8271 = vsel %vm8267, %v8255, %v8270
  %v8272 = vsel %vm8266, %v8269, %v8271
  %v8273 = vsel %vm8265, %v8252, %v8255
  %v8274 = vsel %vm8268, %v8261, 920167782
  %v8275 = vsel %vm8267, %v8258, %v8274
  %v8276 = vsel %vm8266, %v8273, %v8275
  %v8277 = vsel %vm8265, %v8255, %v8258
  %v8278 = vsel %vm8268, %v8264, 1326507024
  %v8279 = vsel %vm8267, %v8261, %v8278
  %v8280 = vsel %vm8266, %v8277, %v8279
  %v8281 = vshll.u32 %v8241, 8
  %v8282 = vmul.u32.u64.compose %v8281, %v8280
  %v8283 = vextract.low.u32 %v8282
  %v8284 = vextract.high.u32 %v8282
  %v8285 = vmul.u32.u64.compose %v8281, %v8276
  %v8286 = vextract.low.u32 %v8285
  %v8287 = vextract.high.u32 %v8285
  %v8288 = vmul.u32 %v8281, %v8272
  %v8289 = vadd.s32 %v8284, %v8286
  %vm8290 = vc.u32 %v8284, %v8286
  %v8291 = vadd.s32 %v8287, 1
  %v8292 = vsel %vm8290, %v8291, %v8287
  %v8293 = vadd.s32 %v8288, %v8292
  %v8294 = vadd.s32 %v8293, 536870912
  %v8295 = vshrl.u32 %v8294, 30
  %v8296 = vshll.u32 %v8295, 30
  %v8297 = vsub.s32 %v8293, %v8296
  %vm8298 = vcmp.lt.s32.totalorder %v8297, 0
  %v8299 = vsub.s32 0, %v8297
  %v8300 = vsel %vm8298, %v8299, %v8297
  %v8301 = vclz %v8300
  %v8302 = vsub.s32 %v8301, 2
  %vm8303 = vcmp.gt.s32.totalorder 0, %v8302
  %v8304 = vsel %vm8303, 0, %v8302
  %v8305 = vsub.s32 32, %v8304
  %v8306 = vshll.u32 %v8297, %v8304
  %v8307 = vshrl.u32 %v8289, %v8305
  %v8308 = vor.u32 %v8306, %v8307
  %v8309 = vsub.s32 4294967266, %v8304
  %v8310 = vadd.s32 %v8309, 127
  %v8311 = vshll.u32 %v8310, 23
  %v8312 = vor.u32 4788187, %v8311
  %v8313 = vand.u32 2147483647, %v8312
  %v8315 = vcvt.s32.f32 %v8308
  %v8316 = vmul.f32 %v8315, %v8313
  %v8317 = vxor.u32 %v8316, 2147483648
  %v8318 = vsel %vm8235, %v8317, %v8316
  %v8319 = vsub.s32 4, %v8295
  %v8320 = vsel %vm8235, %v8319, %v8295
  %v8321 = vsel %vm8234, %v7717, %v8318
  %v8322 = vsel %vm8234, 0, %v8320
  %v8323 = vcosq.f32.pop %v8321
  %v8324 = vsinq.f32.pop %v8321
  %vm8325 = vweird.f32 %v7717
  %v8326 = vand.u32 %v8322, 3
  %vm8327 = vcmp.lt.s32.totalorder %v8326, 2
  %vm8328 = vcmp.eq.s32.totalorder %v8326, 0
  %v8329 = vxor.u32 %v8324, 2147483648
  %v8330 = vsel %vm8328, %v8323, %v8329
  %vm8331 = vcmp.eq.s32.totalorder %v8326, 2
  %v8332 = vxor.u32 %v8323, 2147483648
  %v8333 = vsel %vm8331, %v8332, %v8324
  %v8334 = vsel %vm8327, %v8330, %v8333
  %v8335 = vsel %vm8325, nan, %v8334
  %v8336 = vmul.f32 %v4010, %v7820
  %v8337 = vmul.f32 %v4011, %v7923
  %v8338 = vmul.f32 %v4012, %v8026
  %v8339 = vmul.f32 %v4013, %v8129
  %v8340 = vmul.f32 %v4014, %v8232
  %v8341 = vmul.f32 %v4015, %v8335
  %8342 = vst [vmem:[%s11] sm:$0xff] %v8336
  %8343 = vst [vmem:[%s11 + $0x8] sm:$0xff] %v8337
  %8344 = vst [vmem:[%s11 + $0x10] sm:$0xff] %v8338
  %8345 = vst [vmem:[%s11 + $0x18] sm:$0xff] %v8339
  %8346 = vst [vmem:[%s11 + $0x20] sm:$0xff] %v8340
  %8347 = vst [vmem:[%s11 + $0x28] sm:$0xff] %v8341
  %v8348 = vand.u32 2147483647, %v7712
  %vm8349 = vcmp.le.f32.partialorder %v8348, 0.7853982
  %vm8350 = vcmp.lt.s32.totalorder %v7712, 0
  %v8351 = vand.u32 %v7712, 2139095040
  %v8352 = vshrl.u32 %v8351, 23
  %v8353 = vsub.s32 %v8352, 127
  %v8354 = vand.u32 2147483647, %v7712
  %v8355 = vand.u32 %v8354, 8388607
  %v8356 = vor.u32 %v8355, 8388608
  %v8357 = vsub.s32 0, %v8356
  %v8358 = vadd.s32 %v8353, 1
  %vm8359 = vcmp.gt.s32.totalorder %v8358, 0
  %v8360 = vsel %vm8359, %v8358, 0
  %v8361 = vshrl.u32 %v8360, 5
  %v8362 = vand.u32 %v8360, 31
  %v8363 = vsub.s32 32, %v8362
  %v8364 = vshrl.u32 683565275, %v8363
  %v8365 = vshll.u32 683565275, %v8362
  %v8366 = vshrl.u32 2475754826, %v8363
  %v8367 = vor.u32 %v8365, %v8366
  %v8368 = vshll.u32 2475754826, %v8362
  %v8369 = vshrl.u32 2131351028, %v8363
  %v8370 = vor.u32 %v8368, %v8369
  %v8371 = vshll.u32 2131351028, %v8362
  %v8372 = vshrl.u32 2102212464, %v8363
  %v8373 = vor.u32 %v8371, %v8372
  %v8374 = vshll.u32 2102212464, %v8362
  %v8375 = vshrl.u32 920167782, %v8363
  %v8376 = vor.u32 %v8374, %v8375
  %v8377 = vshll.u32 920167782, %v8362
  %v8378 = vshrl.u32 1326507024, %v8363
  %v8379 = vor.u32 %v8377, %v8378
  %vm8380 = vcmp.lt.s32.totalorder %v8361, 1
  %vm8381 = vcmp.lt.s32.totalorder %v8361, 2
  %vm8382 = vcmp.lt.s32.totalorder %v8361, 3
  %vm8383 = vcmp.lt.s32.totalorder %v8361, 4
  %v8384 = vsel %vm8380, %v8364, %v8367
  %v8385 = vsel %vm8383, %v8373, 2102212464
  %v8386 = vsel %vm8382, %v8370, %v8385
  %v8387 = vsel %vm8381, %v8384, %v8386
  %v8388 = vsel %vm8380, %v8367, %v8370
  %v8389 = vsel %vm8383, %v8376, 920167782
  %v8390 = vsel %vm8382, %v8373, %v8389
  %v8391 = vsel %vm8381, %v8388, %v8390
  %v8392 = vsel %vm8380, %v8370, %v8373
  %v8393 = vsel %vm8383, %v8379, 1326507024
  %v8394 = vsel %vm8382, %v8376, %v8393
  %v8395 = vsel %vm8381, %v8392, %v8394
  %v8396 = vshll.u32 %v8356, 8
  %v8397 = vmul.u32.u64.compose %v8396, %v8395
  %v8398 = vextract.low.u32 %v8397
  %v8399 = vextract.high.u32 %v8397
  %v8400 = vmul.u32.u64.compose %v8396, %v8391
  %v8401 = vextract.low.u32 %v8400
  %v8402 = vextract.high.u32 %v8400
  %v8403 = vmul.u32 %v8396, %v8387
  %v8404 = vadd.s32 %v8399, %v8401
  %vm8405 = vc.u32 %v8399, %v8401
  %v8406 = vadd.s32 %v8402, 1
  %v8407 = vsel %vm8405, %v8406, %v8402
  %v8408 = vadd.s32 %v8403, %v8407
  %v8409 = vadd.s32 %v8408, 536870912
  %v8410 = vshrl.u32 %v8409, 30
  %v8411 = vshll.u32 %v8410, 30
  %v8412 = vsub.s32 %v8408, %v8411
  %vm8413 = vcmp.lt.s32.totalorder %v8412, 0
  %v8414 = vsub.s32 0, %v8412
  %v8415 = vsel %vm8413, %v8414, %v8412
  %v8416 = vclz %v8415
  %v8417 = vsub.s32 %v8416, 2
  %vm8418 = vcmp.gt.s32.totalorder 0, %v8417
  %v8419 = vsel %vm8418, 0, %v8417
  %v8420 = vsub.s32 32, %v8419
  %v8421 = vshll.u32 %v8412, %v8419
  %v8422 = vshrl.u32 %v8404, %v8420
  %v8423 = vor.u32 %v8421, %v8422
  %v8424 = vsub.s32 4294967266, %v8419
  %v8425 = vadd.s32 %v8424, 127
  %v8426 = vshll.u32 %v8425, 23
  %v8427 = vor.u32 4788187, %v8426
  %v8428 = vand.u32 2147483647, %v8427
  %v8430 = vcvt.s32.f32 %v8423
  %v8431 = vmul.f32 %v8430, %v8428
  %v8432 = vxor.u32 %v8431, 2147483648
  %v8433 = vsel %vm8350, %v8432, %v8431
  %v8434 = vsub.s32 4, %v8410
  %v8435 = vsel %vm8350, %v8434, %v8410
  %v8436 = vsel %vm8349, %v7712, %v8433
  %v8437 = vsel %vm8349, 0, %v8435
  %v8438 = vcosq.f32.pop %v8436
  %v8439 = vsinq.f32.pop %v8436
  %vm8440 = vweird.f32 %v7712
  %v8441 = vadd.s32 %v8437, 3
  %v8442 = vand.u32 %v8441, 3
  %vm8443 = vcmp.lt.s32.totalorder %v8442, 2
  %vm8444 = vcmp.eq.s32.totalorder %v8442, 0
  %v8445 = vxor.u32 %v8439, 2147483648
  %v8446 = vsel %vm8444, %v8438, %v8445
  %vm8447 = vcmp.eq.s32.totalorder %v8442, 2
  %v8448 = vxor.u32 %v8438, 2147483648
  %v8449 = vsel %vm8447, %v8448, %v8439
  %v8450 = vsel %vm8443, %v8446, %v8449
  %v8451 = vsel %vm8440, nan, %v8450
  %v8452 = vand.u32 2147483647, %v7713
  %vm8453 = vcmp.le.f32.partialorder %v8452, 0.7853982
  %vm8454 = vcmp.lt.s32.totalorder %v7713, 0
  %v8455 = vand.u32 %v7713, 2139095040
  %v8456 = vshrl.u32 %v8455, 23
  %v8457 = vsub.s32 %v8456, 127
  %v8458 = vand.u32 2147483647, %v7713
  %v8459 = vand.u32 %v8458, 8388607
  %v8460 = vor.u32 %v8459, 8388608
  %v8461 = vsub.s32 0, %v8460
  %v8462 = vadd.s32 %v8457, 1
  %vm8463 = vcmp.gt.s32.totalorder %v8462, 0
  %v8464 = vsel %vm8463, %v8462, 0
  %v8465 = vshrl.u32 %v8464, 5
  %v8466 = vand.u32 %v8464, 31
  %v8467 = vsub.s32 32, %v8466
  %v8468 = vshrl.u32 683565275, %v8467
  %v8469 = vshll.u32 683565275, %v8466
  %v8470 = vshrl.u32 2475754826, %v8467
  %v8471 = vor.u32 %v8469, %v8470
  %v8472 = vshll.u32 2475754826, %v8466
  %v8473 = vshrl.u32 2131351028, %v8467
  %v8474 = vor.u32 %v8472, %v8473
  %v8475 = vshll.u32 2131351028, %v8466
  %v8476 = vshrl.u32 2102212464, %v8467
  %v8477 = vor.u32 %v8475, %v8476
  %v8478 = vshll.u32 2102212464, %v8466
  %v8479 = vshrl.u32 920167782, %v8467
  %v8480 = vor.u32 %v8478, %v8479
  %v8481 = vshll.u32 920167782, %v8466
  %v8482 = vshrl.u32 1326507024, %v8467
  %v8483 = vor.u32 %v8481, %v8482
  %vm8484 = vcmp.lt.s32.totalorder %v8465, 1
  %vm8485 = vcmp.lt.s32.totalorder %v8465, 2
  %vm8486 = vcmp.lt.s32.totalorder %v8465, 3
  %vm8487 = vcmp.lt.s32.totalorder %v8465, 4
  %v8488 = vsel %vm8484, %v8468, %v8471
  %v8489 = vsel %vm8487, %v8477, 2102212464
  %v8490 = vsel %vm8486, %v8474, %v8489
  %v8491 = vsel %vm8485, %v8488, %v8490
  %v8492 = vsel %vm8484, %v8471, %v8474
  %v8493 = vsel %vm8487, %v8480, 920167782
  %v8494 = vsel %vm8486, %v8477, %v8493
  %v8495 = vsel %vm8485, %v8492, %v8494
  %v8496 = vsel %vm8484, %v8474, %v8477
  %v8497 = vsel %vm8487, %v8483, 1326507024
  %v8498 = vsel %vm8486, %v8480, %v8497
  %v8499 = vsel %vm8485, %v8496, %v8498
  %v8500 = vshll.u32 %v8460, 8
  %v8501 = vmul.u32.u64.compose %v8500, %v8499
  %v8502 = vextract.low.u32 %v8501
  %v8503 = vextract.high.u32 %v8501
  %v8504 = vmul.u32.u64.compose %v8500, %v8495
  %v8505 = vextract.low.u32 %v8504
  %v8506 = vextract.high.u32 %v8504
  %v8507 = vmul.u32 %v8500, %v8491
  %v8508 = vadd.s32 %v8503, %v8505
  %vm8509 = vc.u32 %v8503, %v8505
  %v8510 = vadd.s32 %v8506, 1
  %v8511 = vsel %vm8509, %v8510, %v8506
  %v8512 = vadd.s32 %v8507, %v8511
  %v8513 = vadd.s32 %v8512, 536870912
  %v8514 = vshrl.u32 %v8513, 30
  %v8515 = vshll.u32 %v8514, 30
  %v8516 = vsub.s32 %v8512, %v8515
  %vm8517 = vcmp.lt.s32.totalorder %v8516, 0
  %v8518 = vsub.s32 0, %v8516
  %v8519 = vsel %vm8517, %v8518, %v8516
  %v8520 = vclz %v8519
  %v8521 = vsub.s32 %v8520, 2
  %vm8522 = vcmp.gt.s32.totalorder 0, %v8521
  %v8523 = vsel %vm8522, 0, %v8521
  %v8524 = vsub.s32 32, %v8523
  %v8525 = vshll.u32 %v8516, %v8523
  %v8526 = vshrl.u32 %v8508, %v8524
  %v8527 = vor.u32 %v8525, %v8526
  %v8528 = vsub.s32 4294967266, %v8523
  %v8529 = vadd.s32 %v8528, 127
  %v8530 = vshll.u32 %v8529, 23
  %v8531 = vor.u32 4788187, %v8530
  %v8532 = vand.u32 2147483647, %v8531
  %v8534 = vcvt.s32.f32 %v8527
  %v8535 = vmul.f32 %v8534, %v8532
  %v8536 = vxor.u32 %v8535, 2147483648
  %v8537 = vsel %vm8454, %v8536, %v8535
  %v8538 = vsub.s32 4, %v8514
  %v8539 = vsel %vm8454, %v8538, %v8514
  %v8540 = vsel %vm8453, %v7713, %v8537
  %v8541 = vsel %vm8453, 0, %v8539
  %v8542 = vcosq.f32.pop %v8540
  %v8543 = vsinq.f32.pop %v8540
  %vm8544 = vweird.f32 %v7713
  %v8545 = vadd.s32 %v8541, 3
  %v8546 = vand.u32 %v8545, 3
  %vm8547 = vcmp.lt.s32.totalorder %v8546, 2
  %vm8548 = vcmp.eq.s32.totalorder %v8546, 0
  %v8549 = vxor.u32 %v8543, 2147483648
  %v8550 = vsel %vm8548, %v8542, %v8549
  %vm8551 = vcmp.eq.s32.totalorder %v8546, 2
  %v8552 = vxor.u32 %v8542, 2147483648
  %v8553 = vsel %vm8551, %v8552, %v8543
  %v8554 = vsel %vm8547, %v8550, %v8553
  %v8555 = vsel %vm8544, nan, %v8554
  %v8556 = vand.u32 2147483647, %v7714
  %vm8557 = vcmp.le.f32.partialorder %v8556, 0.7853982
  %vm8558 = vcmp.lt.s32.totalorder %v7714, 0
  %v8559 = vand.u32 %v7714, 2139095040
  %v8560 = vshrl.u32 %v8559, 23
  %v8561 = vsub.s32 %v8560, 127
  %v8562 = vand.u32 2147483647, %v7714
  %v8563 = vand.u32 %v8562, 8388607
  %v8564 = vor.u32 %v8563, 8388608
  %v8565 = vsub.s32 0, %v8564
  %v8566 = vadd.s32 %v8561, 1
  %vm8567 = vcmp.gt.s32.totalorder %v8566, 0
  %v8568 = vsel %vm8567, %v8566, 0
  %v8569 = vshrl.u32 %v8568, 5
  %v8570 = vand.u32 %v8568, 31
  %v8571 = vsub.s32 32, %v8570
  %v8572 = vshrl.u32 683565275, %v8571
  %v8573 = vshll.u32 683565275, %v8570
  %v8574 = vshrl.u32 2475754826, %v8571
  %v8575 = vor.u32 %v8573, %v8574
  %v8576 = vshll.u32 2475754826, %v8570
  %v8577 = vshrl.u32 2131351028, %v8571
  %v8578 = vor.u32 %v8576, %v8577
  %v8579 = vshll.u32 2131351028, %v8570
  %v8580 = vshrl.u32 2102212464, %v8571
  %v8581 = vor.u32 %v8579, %v8580
  %v8582 = vshll.u32 2102212464, %v8570
  %v8583 = vshrl.u32 920167782, %v8571
  %v8584 = vor.u32 %v8582, %v8583
  %v8585 = vshll.u32 920167782, %v8570
  %v8586 = vshrl.u32 1326507024, %v8571
  %v8587 = vor.u32 %v8585, %v8586
  %vm8588 = vcmp.lt.s32.totalorder %v8569, 1
  %vm8589 = vcmp.lt.s32.totalorder %v8569, 2
  %vm8590 = vcmp.lt.s32.totalorder %v8569, 3
  %vm8591 = vcmp.lt.s32.totalorder %v8569, 4
  %v8592 = vsel %vm8588, %v8572, %v8575
  %v8593 = vsel %vm8591, %v8581, 2102212464
  %v8594 = vsel %vm8590, %v8578, %v8593
  %v8595 = vsel %vm8589, %v8592, %v8594
  %v8596 = vsel %vm8588, %v8575, %v8578
  %v8597 = vsel %vm8591, %v8584, 920167782
  %v8598 = vsel %vm8590, %v8581, %v8597
  %v8599 = vsel %vm8589, %v8596, %v8598
  %v8600 = vsel %vm8588, %v8578, %v8581
  %v8601 = vsel %vm8591, %v8587, 1326507024
  %v8602 = vsel %vm8590, %v8584, %v8601
  %v8603 = vsel %vm8589, %v8600, %v8602
  %v8604 = vshll.u32 %v8564, 8
  %v8605 = vmul.u32.u64.compose %v8604, %v8603
  %v8606 = vextract.low.u32 %v8605
  %v8607 = vextract.high.u32 %v8605
  %v8608 = vmul.u32.u64.compose %v8604, %v8599
  %v8609 = vextract.low.u32 %v8608
  %v8610 = vextract.high.u32 %v8608
  %v8611 = vmul.u32 %v8604, %v8595
  %v8612 = vadd.s32 %v8607, %v8609
  %vm8613 = vc.u32 %v8607, %v8609
  %v8614 = vadd.s32 %v8610, 1
  %v8615 = vsel %vm8613, %v8614, %v8610
  %v8616 = vadd.s32 %v8611, %v8615
  %v8617 = vadd.s32 %v8616, 536870912
  %v8618 = vshrl.u32 %v8617, 30
  %v8619 = vshll.u32 %v8618, 30
  %v8620 = vsub.s32 %v8616, %v8619
  %vm8621 = vcmp.lt.s32.totalorder %v8620, 0
  %v8622 = vsub.s32 0, %v8620
  %v8623 = vsel %vm8621, %v8622, %v8620
  %v8624 = vclz %v8623
  %v8625 = vsub.s32 %v8624, 2
  %vm8626 = vcmp.gt.s32.totalorder 0, %v8625
  %v8627 = vsel %vm8626, 0, %v8625
  %v8628 = vsub.s32 32, %v8627
  %v8629 = vshll.u32 %v8620, %v8627
  %v8630 = vshrl.u32 %v8612, %v8628
  %v8631 = vor.u32 %v8629, %v8630
  %v8632 = vsub.s32 4294967266, %v8627
  %v8633 = vadd.s32 %v8632, 127
  %v8634 = vshll.u32 %v8633, 23
  %v8635 = vor.u32 4788187, %v8634
  %v8636 = vand.u32 2147483647, %v8635
  %v8638 = vcvt.s32.f32 %v8631
  %v8639 = vmul.f32 %v8638, %v8636
  %v8640 = vxor.u32 %v8639, 2147483648
  %v8641 = vsel %vm8558, %v8640, %v8639
  %v8642 = vsub.s32 4, %v8618
  %v8643 = vsel %vm8558, %v8642, %v8618
  %v8644 = vsel %vm8557, %v7714, %v8641
  %v8645 = vsel %vm8557, 0, %v8643
  %v8646 = vcosq.f32.pop %v8644
  %v8647 = vsinq.f32.pop %v8644
  %vm8648 = vweird.f32 %v7714
  %v8649 = vadd.s32 %v8645, 3
  %v8650 = vand.u32 %v8649, 3
  %vm8651 = vcmp.lt.s32.totalorder %v8650, 2
  %vm8652 = vcmp.eq.s32.totalorder %v8650, 0
  %v8653 = vxor.u32 %v8647, 2147483648
  %v8654 = vsel %vm8652, %v8646, %v8653
  %vm8655 = vcmp.eq.s32.totalorder %v8650, 2
  %v8656 = vxor.u32 %v8646, 2147483648
  %v8657 = vsel %vm8655, %v8656, %v8647
  %v8658 = vsel %vm8651, %v8654, %v8657
  %v8659 = vsel %vm8648, nan, %v8658
  %v8660 = vand.u32 2147483647, %v7715
  %vm8661 = vcmp.le.f32.partialorder %v8660, 0.7853982
  %vm8662 = vcmp.lt.s32.totalorder %v7715, 0
  %v8663 = vand.u32 %v7715, 2139095040
  %v8664 = vshrl.u32 %v8663, 23
  %v8665 = vsub.s32 %v8664, 127
  %v8666 = vand.u32 2147483647, %v7715
  %v8667 = vand.u32 %v8666, 8388607
  %v8668 = vor.u32 %v8667, 8388608
  %v8669 = vsub.s32 0, %v8668
  %v8670 = vadd.s32 %v8665, 1
  %vm8671 = vcmp.gt.s32.totalorder %v8670, 0
  %v8672 = vsel %vm8671, %v8670, 0
  %v8673 = vshrl.u32 %v8672, 5
  %v8674 = vand.u32 %v8672, 31
  %v8675 = vsub.s32 32, %v8674
  %v8676 = vshrl.u32 683565275, %v8675
  %v8677 = vshll.u32 683565275, %v8674
  %v8678 = vshrl.u32 2475754826, %v8675
  %v8679 = vor.u32 %v8677, %v8678
  %v8680 = vshll.u32 2475754826, %v8674
  %v8681 = vshrl.u32 2131351028, %v8675
  %v8682 = vor.u32 %v8680, %v8681
  %v8683 = vshll.u32 2131351028, %v8674
  %v8684 = vshrl.u32 2102212464, %v8675
  %v8685 = vor.u32 %v8683, %v8684
  %v8686 = vshll.u32 2102212464, %v8674
  %v8687 = vshrl.u32 920167782, %v8675
  %v8688 = vor.u32 %v8686, %v8687
  %v8689 = vshll.u32 920167782, %v8674
  %v8690 = vshrl.u32 1326507024, %v8675
  %v8691 = vor.u32 %v8689, %v8690
  %vm8692 = vcmp.lt.s32.totalorder %v8673, 1
  %vm8693 = vcmp.lt.s32.totalorder %v8673, 2
  %vm8694 = vcmp.lt.s32.totalorder %v8673, 3
  %vm8695 = vcmp.lt.s32.totalorder %v8673, 4
  %v8696 = vsel %vm8692, %v8676, %v8679
  %v8697 = vsel %vm8695, %v8685, 2102212464
  %v8698 = vsel %vm8694, %v8682, %v8697
  %v8699 = vsel %vm8693, %v8696, %v8698
  %v8700 = vsel %vm8692, %v8679, %v8682
  %v8701 = vsel %vm8695, %v8688, 920167782
  %v8702 = vsel %vm8694, %v8685, %v8701
  %v8703 = vsel %vm8693, %v8700, %v8702
  %v8704 = vsel %vm8692, %v8682, %v8685
  %v8705 = vsel %vm8695, %v8691, 1326507024
  %v8706 = vsel %vm8694, %v8688, %v8705
  %v8707 = vsel %vm8693, %v8704, %v8706
  %v8708 = vshll.u32 %v8668, 8
  %v8709 = vmul.u32.u64.compose %v8708, %v8707
  %v8710 = vextract.low.u32 %v8709
  %v8711 = vextract.high.u32 %v8709
  %v8712 = vmul.u32.u64.compose %v8708, %v8703
  %v8713 = vextract.low.u32 %v8712
  %v8714 = vextract.high.u32 %v8712
  %v8715 = vmul.u32 %v8708, %v8699
  %v8716 = vadd.s32 %v8711, %v8713
  %vm8717 = vc.u32 %v8711, %v8713
  %v8718 = vadd.s32 %v8714, 1
  %v8719 = vsel %vm8717, %v8718, %v8714
  %v8720 = vadd.s32 %v8715, %v8719
  %v8721 = vadd.s32 %v8720, 536870912
  %v8722 = vshrl.u32 %v8721, 30
  %v8723 = vshll.u32 %v8722, 30
  %v8724 = vsub.s32 %v8720, %v8723
  %vm8725 = vcmp.lt.s32.totalorder %v8724, 0
  %v8726 = vsub.s32 0, %v8724
  %v8727 = vsel %vm8725, %v8726, %v8724
  %v8728 = vclz %v8727
  %v8729 = vsub.s32 %v8728, 2
  %vm8730 = vcmp.gt.s32.totalorder 0, %v8729
  %v8731 = vsel %vm8730, 0, %v8729
  %v8732 = vsub.s32 32, %v8731
  %v8733 = vshll.u32 %v8724, %v8731
  %v8734 = vshrl.u32 %v8716, %v8732
  %v8735 = vor.u32 %v8733, %v8734
  %v8736 = vsub.s32 4294967266, %v8731
  %v8737 = vadd.s32 %v8736, 127
  %v8738 = vshll.u32 %v8737, 23
  %v8739 = vor.u32 4788187, %v8738
  %v8740 = vand.u32 2147483647, %v8739
  %v8742 = vcvt.s32.f32 %v8735
  %v8743 = vmul.f32 %v8742, %v8740
  %v8744 = vxor.u32 %v8743, 2147483648
  %v8745 = vsel %vm8662, %v8744, %v8743
  %v8746 = vsub.s32 4, %v8722
  %v8747 = vsel %vm8662, %v8746, %v8722
  %v8748 = vsel %vm8661, %v7715, %v8745
  %v8749 = vsel %vm8661, 0, %v8747
  %v8750 = vcosq.f32.pop %v8748
  %v8751 = vsinq.f32.pop %v8748
  %vm8752 = vweird.f32 %v7715
  %v8753 = vadd.s32 %v8749, 3
  %v8754 = vand.u32 %v8753, 3
  %vm8755 = vcmp.lt.s32.totalorder %v8754, 2
  %vm8756 = vcmp.eq.s32.totalorder %v8754, 0
  %v8757 = vxor.u32 %v8751, 2147483648
  %v8758 = vsel %vm8756, %v8750, %v8757
  %vm8759 = vcmp.eq.s32.totalorder %v8754, 2
  %v8760 = vxor.u32 %v8750, 2147483648
  %v8761 = vsel %vm8759, %v8760, %v8751
  %v8762 = vsel %vm8755, %v8758, %v8761
  %v8763 = vsel %vm8752, nan, %v8762
  %v8764 = vand.u32 2147483647, %v7716
  %vm8765 = vcmp.le.f32.partialorder %v8764, 0.7853982
  %vm8766 = vcmp.lt.s32.totalorder %v7716, 0
  %v8767 = vand.u32 %v7716, 2139095040
  %v8768 = vshrl.u32 %v8767, 23
  %v8769 = vsub.s32 %v8768, 127
  %v8770 = vand.u32 2147483647, %v7716
  %v8771 = vand.u32 %v8770, 8388607
  %v8772 = vor.u32 %v8771, 8388608
  %v8773 = vsub.s32 0, %v8772
  %v8774 = vadd.s32 %v8769, 1
  %vm8775 = vcmp.gt.s32.totalorder %v8774, 0
  %v8776 = vsel %vm8775, %v8774, 0
  %v8777 = vshrl.u32 %v8776, 5
  %v8778 = vand.u32 %v8776, 31
  %v8779 = vsub.s32 32, %v8778
  %v8780 = vshrl.u32 683565275, %v8779
  %v8781 = vshll.u32 683565275, %v8778
  %v8782 = vshrl.u32 2475754826, %v8779
  %v8783 = vor.u32 %v8781, %v8782
  %v8784 = vshll.u32 2475754826, %v8778
  %v8785 = vshrl.u32 2131351028, %v8779
  %v8786 = vor.u32 %v8784, %v8785
  %v8787 = vshll.u32 2131351028, %v8778
  %v8788 = vshrl.u32 2102212464, %v8779
  %v8789 = vor.u32 %v8787, %v8788
  %v8790 = vshll.u32 2102212464, %v8778
  %v8791 = vshrl.u32 920167782, %v8779
  %v8792 = vor.u32 %v8790, %v8791
  %v8793 = vshll.u32 920167782, %v8778
  %v8794 = vshrl.u32 1326507024, %v8779
  %v8795 = vor.u32 %v8793, %v8794
  %vm8796 = vcmp.lt.s32.totalorder %v8777, 1
  %vm8797 = vcmp.lt.s32.totalorder %v8777, 2
  %vm8798 = vcmp.lt.s32.totalorder %v8777, 3
  %vm8799 = vcmp.lt.s32.totalorder %v8777, 4
  %v8800 = vsel %vm8796, %v8780, %v8783
  %v8801 = vsel %vm8799, %v8789, 2102212464
  %v8802 = vsel %vm8798, %v8786, %v8801
  %v8803 = vsel %vm8797, %v8800, %v8802
  %v8804 = vsel %vm8796, %v8783, %v8786
  %v8805 = vsel %vm8799, %v8792, 920167782
  %v8806 = vsel %vm8798, %v8789, %v8805
  %v8807 = vsel %vm8797, %v8804, %v8806
  %v8808 = vsel %vm8796, %v8786, %v8789
  %v8809 = vsel %vm8799, %v8795, 1326507024
  %v8810 = vsel %vm8798, %v8792, %v8809
  %v8811 = vsel %vm8797, %v8808, %v8810
  %v8812 = vshll.u32 %v8772, 8
  %v8813 = vmul.u32.u64.compose %v8812, %v8811
  %v8814 = vextract.low.u32 %v8813
  %v8815 = vextract.high.u32 %v8813
  %v8816 = vmul.u32.u64.compose %v8812, %v8807
  %v8817 = vextract.low.u32 %v8816
  %v8818 = vextract.high.u32 %v8816
  %v8819 = vmul.u32 %v8812, %v8803
  %v8820 = vadd.s32 %v8815, %v8817
  %vm8821 = vc.u32 %v8815, %v8817
  %v8822 = vadd.s32 %v8818, 1
  %v8823 = vsel %vm8821, %v8822, %v8818
  %v8824 = vadd.s32 %v8819, %v8823
  %v8825 = vadd.s32 %v8824, 536870912
  %v8826 = vshrl.u32 %v8825, 30
  %v8827 = vshll.u32 %v8826, 30
  %v8828 = vsub.s32 %v8824, %v8827
  %vm8829 = vcmp.lt.s32.totalorder %v8828, 0
  %v8830 = vsub.s32 0, %v8828
  %v8831 = vsel %vm8829, %v8830, %v8828
  %v8832 = vclz %v8831
  %v8833 = vsub.s32 %v8832, 2
  %vm8834 = vcmp.gt.s32.totalorder 0, %v8833
  %v8835 = vsel %vm8834, 0, %v8833
  %v8836 = vsub.s32 32, %v8835
  %v8837 = vshll.u32 %v8828, %v8835
  %v8838 = vshrl.u32 %v8820, %v8836
  %v8839 = vor.u32 %v8837, %v8838
  %v8840 = vsub.s32 4294967266, %v8835
  %v8841 = vadd.s32 %v8840, 127
  %v8842 = vshll.u32 %v8841, 23
  %v8843 = vor.u32 4788187, %v8842
  %v8844 = vand.u32 2147483647, %v8843
  %v8846 = vcvt.s32.f32 %v8839
  %v8847 = vmul.f32 %v8846, %v8844
  %v8848 = vxor.u32 %v8847, 2147483648
  %v8849 = vsel %vm8766, %v8848, %v8847
  %v8850 = vsub.s32 4, %v8826
  %v8851 = vsel %vm8766, %v8850, %v8826
  %v8852 = vsel %vm8765, %v7716, %v8849
  %v8853 = vsel %vm8765, 0, %v8851
  %v8854 = vcosq.f32.pop %v8852
  %v8855 = vsinq.f32.pop %v8852
  %vm8856 = vweird.f32 %v7716
  %v8857 = vadd.s32 %v8853, 3
  %v8858 = vand.u32 %v8857, 3
  %vm8859 = vcmp.lt.s32.totalorder %v8858, 2
  %vm8860 = vcmp.eq.s32.totalorder %v8858, 0
  %v8861 = vxor.u32 %v8855, 2147483648
  %v8862 = vsel %vm8860, %v8854, %v8861
  %vm8863 = vcmp.eq.s32.totalorder %v8858, 2
  %v8864 = vxor.u32 %v8854, 2147483648
  %v8865 = vsel %vm8863, %v8864, %v8855
  %v8866 = vsel %vm8859, %v8862, %v8865
  %v8867 = vsel %vm8856, nan, %v8866
  %v8868 = vand.u32 2147483647, %v7717
  %vm8869 = vcmp.le.f32.partialorder %v8868, 0.7853982
  %vm8870 = vcmp.lt.s32.totalorder %v7717, 0
  %v8871 = vand.u32 %v7717, 2139095040
  %v8872 = vshrl.u32 %v8871, 23
  %v8873 = vsub.s32 %v8872, 127
  %v8874 = vand.u32 2147483647, %v7717
  %v8875 = vand.u32 %v8874, 8388607
  %v8876 = vor.u32 %v8875, 8388608
  %v8877 = vsub.s32 0, %v8876
  %v8878 = vadd.s32 %v8873, 1
  %vm8879 = vcmp.gt.s32.totalorder %v8878, 0
  %v8880 = vsel %vm8879, %v8878, 0
  %v8881 = vshrl.u32 %v8880, 5
  %v8882 = vand.u32 %v8880, 31
  %v8883 = vsub.s32 32, %v8882
  %v8884 = vshrl.u32 683565275, %v8883
  %v8885 = vshll.u32 683565275, %v8882
  %v8886 = vshrl.u32 2475754826, %v8883
  %v8887 = vor.u32 %v8885, %v8886
  %v8888 = vshll.u32 2475754826, %v8882
  %v8889 = vshrl.u32 2131351028, %v8883
  %v8890 = vor.u32 %v8888, %v8889
  %v8891 = vshll.u32 2131351028, %v8882
  %v8892 = vshrl.u32 2102212464, %v8883
  %v8893 = vor.u32 %v8891, %v8892
  %v8894 = vshll.u32 2102212464, %v8882
  %v8895 = vshrl.u32 920167782, %v8883
  %v8896 = vor.u32 %v8894, %v8895
  %v8897 = vshll.u32 920167782, %v8882
  %v8898 = vshrl.u32 1326507024, %v8883
  %v8899 = vor.u32 %v8897, %v8898
  %vm8900 = vcmp.lt.s32.totalorder %v8881, 1
  %vm8901 = vcmp.lt.s32.totalorder %v8881, 2
  %vm8902 = vcmp.lt.s32.totalorder %v8881, 3
  %vm8903 = vcmp.lt.s32.totalorder %v8881, 4
  %v8904 = vsel %vm8900, %v8884, %v8887
  %v8905 = vsel %vm8903, %v8893, 2102212464
  %v8906 = vsel %vm8902, %v8890, %v8905
  %v8907 = vsel %vm8901, %v8904, %v8906
  %v8908 = vsel %vm8900, %v8887, %v8890
  %v8909 = vsel %vm8903, %v8896, 920167782
  %v8910 = vsel %vm8902, %v8893, %v8909
  %v8911 = vsel %vm8901, %v8908, %v8910
  %v8912 = vsel %vm8900, %v8890, %v8893
  %v8913 = vsel %vm8903, %v8899, 1326507024
  %v8914 = vsel %vm8902, %v8896, %v8913
  %v8915 = vsel %vm8901, %v8912, %v8914
  %v8916 = vshll.u32 %v8876, 8
  %v8917 = vmul.u32.u64.compose %v8916, %v8915
  %v8918 = vextract.low.u32 %v8917
  %v8919 = vextract.high.u32 %v8917
  %v8920 = vmul.u32.u64.compose %v8916, %v8911
  %v8921 = vextract.low.u32 %v8920
  %v8922 = vextract.high.u32 %v8920
  %v8923 = vmul.u32 %v8916, %v8907
  %v8924 = vadd.s32 %v8919, %v8921
  %vm8925 = vc.u32 %v8919, %v8921
  %v8926 = vadd.s32 %v8922, 1
  %v8927 = vsel %vm8925, %v8926, %v8922
  %v8928 = vadd.s32 %v8923, %v8927
  %v8929 = vadd.s32 %v8928, 536870912
  %v8930 = vshrl.u32 %v8929, 30
  %v8931 = vshll.u32 %v8930, 30
  %v8932 = vsub.s32 %v8928, %v8931
  %vm8933 = vcmp.lt.s32.totalorder %v8932, 0
  %v8934 = vsub.s32 0, %v8932
  %v8935 = vsel %vm8933, %v8934, %v8932
  %v8936 = vclz %v8935
  %v8937 = vsub.s32 %v8936, 2
  %vm8938 = vcmp.gt.s32.totalorder 0, %v8937
  %v8939 = vsel %vm8938, 0, %v8937
  %v8940 = vsub.s32 32, %v8939
  %v8941 = vshll.u32 %v8932, %v8939
  %v8942 = vshrl.u32 %v8924, %v8940
  %v8943 = vor.u32 %v8941, %v8942
  %v8944 = vsub.s32 4294967266, %v8939
  %v8945 = vadd.s32 %v8944, 127
  %v8946 = vshll.u32 %v8945, 23
  %v8947 = vor.u32 4788187, %v8946
  %v8948 = vand.u32 2147483647, %v8947
  %v8950 = vcvt.s32.f32 %v8943
  %v8951 = vmul.f32 %v8950, %v8948
  %v8952 = vxor.u32 %v8951, 2147483648
  %v8953 = vsel %vm8870, %v8952, %v8951
  %v8954 = vsub.s32 4, %v8930
  %v8955 = vsel %vm8870, %v8954, %v8930
  %v8956 = vsel %vm8869, %v7717, %v8953
  %v8957 = vsel %vm8869, 0, %v8955
  %v8958 = vcosq.f32.pop %v8956
  %v8959 = vsinq.f32.pop %v8956
  %vm8960 = vweird.f32 %v7717
  %v8961 = vadd.s32 %v8957, 3
  %v8962 = vand.u32 %v8961, 3
  %vm8963 = vcmp.lt.s32.totalorder %v8962, 2
  %vm8964 = vcmp.eq.s32.totalorder %v8962, 0
  %v8965 = vxor.u32 %v8959, 2147483648
  %v8966 = vsel %vm8964, %v8958, %v8965
  %vm8967 = vcmp.eq.s32.totalorder %v8962, 2
  %v8968 = vxor.u32 %v8958, 2147483648
  %v8969 = vsel %vm8967, %v8968, %v8959
  %v8970 = vsel %vm8963, %v8966, %v8969
  %v8971 = vsel %vm8960, nan, %v8970
  %v8972 = vmul.f32 %v4010, %v8451
  %v8973 = vmul.f32 %v4011, %v8555
  %v8974 = vmul.f32 %v4012, %v8659
  %v8975 = vmul.f32 %v4013, %v8763
  %v8976 = vmul.f32 %v4014, %v8867
  %v8977 = vmul.f32 %v4015, %v8971
  %8978 = vst [vmem:[%s12] sm:$0xff] %v8972
  %8979 = vst [vmem:[%s12 + $0x8] sm:$0xff] %v8973
  %8980 = vst [vmem:[%s12 + $0x10] sm:$0xff] %v8974
  %8981 = vst [vmem:[%s12 + $0x18] sm:$0xff] %v8975
  %8982 = vst [vmem:[%s12 + $0x20] sm:$0xff] %v8976
  %8983 = vst [vmem:[%s12 + $0x28] sm:$0xff] %v8977
  // Predicated region
  $region46: #{freblock_chaattn_pallas.4} parent=0 // pred_check
    _
  $region47: #{freblock_chaattn_pallas.4} parent=0 // pred_check_branch
    %8985 = sbr.rel (0) target = $region49
  $region48: #{freblock_chaattn_pallas.4} parent=0 // pred_region
    _
  $region49: #{freblock_chaattn_pallas.4} parent=0 // pred_fallthru
    _
  // Predicated region
  $region50: #{freblock_chaattn_pallas.4} parent=0 // pred_check
    _
  $region51: #{freblock_chaattn_pallas.4} parent=0 // pred_check_branch
    %8987 = sbr.rel (0) target = $region53
  $region52: #{freblock_chaattn_pallas.4} parent=0 // pred_region
    _
  $region53: #{freblock_chaattn_pallas.4} parent=0 // pred_fallthru
    _
  // Predicated region
  $region54: #{freblock_chaattn_pallas.4} parent=0 // pred_check
    _
  $region55: #{freblock_chaattn_pallas.4} parent=0 // pred_check_branch
    %8989 = sbr.rel (0) target = $region57
  $region56: #{freblock_chaattn_pallas.4} parent=0 // pred_region
    _
  $region57: #{freblock_chaattn_pallas.4} parent=0 // pred_fallthru
    _
  // Predicated region
  $region58: #{freblock_chaattn_pallas.4} parent=0 // pred_check
    _
  $region59: #{freblock_chaattn_pallas.4} parent=0 // pred_check_branch
    %8991 = sbr.rel (0) target = $region61
  $region60: #{freblock_chaattn_pallas.4} parent=0 // pred_region
    _
  $region61: #{freblock_chaattn_pallas.4} parent=0 // pred_fallthru
    _

// kernel: freblock_chaattn_pallas.5
$region0: #{freblock_chaattn_pallas.5}
  #allocation0 [shape = 'u32[]', space=smem, size = 0x4, offset = 0x4, fixed_abs, tag = 'smem constant byte address 0x4 - core index']
  #allocation1 [shape = 'u32[144,128]{1,0:T(1,128)}', space=vmem, size = 0x12000, scoped, tag = 'internal scratch']
  #allocation2 [shape = 'f32[1,1]{1,0:T(1,128)S(1)}', space=vmem, size = 0x200, scoped, tag = 'scoped memory for freblock_chaattn_pallas.5']
  %s0 = inlined_call_operand.vmem [shape: f32[16,512], index: 0, kind: input, shape index: {}]
  %s1 = inlined_call_operand.vmem [shape: f32[16,768], index: 1, kind: input, shape index: {}]
  %s2 = inlined_call_operand.vmem [shape: f32[16,16], index: 2, kind: input, shape index: {}]
  %s3 = inlined_call_operand.vmem [shape: f32[16,1], index: 3, kind: input, shape index: {}]
  %s4 = inlined_call_operand.<no memory space> [shape: f32[1,1], index: 4, kind: input, shape index: {}]
  %s5 = inlined_call_operand.vmem [shape: f32[16,512], index: 5, kind: output, shape index: {}]
  %s6 = sld [smem:[#allocation0]]
  $region30: #{freblock_chaattn_pallas.5} parent=0
    _
  %s8 = ssub.s32 1, %s6
  %s9 = scalar_select 0, %s8, %s6
  %v10 = vstv %s4
  %11 = vst [vmem:[#allocation2] sm:$0x1] %v10
  // Predicated region
  $region2: #{freblock_chaattn_pallas.5} parent=0 // pred_check
    _
  $region3: #{freblock_chaattn_pallas.5} parent=0 // pred_check_branch
    %13 = sbr.rel (0) target = $region5
  $region4: #{freblock_chaattn_pallas.5} parent=0 // pred_region
    _
  $region5: #{freblock_chaattn_pallas.5} parent=0 // pred_fallthru
    _
  // Predicated region
  $region6: #{freblock_chaattn_pallas.5} parent=0 // pred_check
    _
  $region7: #{freblock_chaattn_pallas.5} parent=0 // pred_check_branch
    %15 = sbr.rel (0) target = $region9
  $region8: #{freblock_chaattn_pallas.5} parent=0 // pred_region
    _
  $region9: #{freblock_chaattn_pallas.5} parent=0 // pred_fallthru
    _
  // Predicated region
  $region10: #{freblock_chaattn_pallas.5} parent=0 // pred_check
    _
  $region11: #{freblock_chaattn_pallas.5} parent=0 // pred_check_branch
    %17 = sbr.rel (0) target = $region13
  $region12: #{freblock_chaattn_pallas.5} parent=0 // pred_region
    _
  $region13: #{freblock_chaattn_pallas.5} parent=0 // pred_fallthru
    _
  // Predicated region
  $region14: #{freblock_chaattn_pallas.5} parent=0 // pred_check
    _
  $region15: #{freblock_chaattn_pallas.5} parent=0 // pred_check_branch
    %19 = sbr.rel (0) target = $region17
  $region16: #{freblock_chaattn_pallas.5} parent=0 // pred_region
    _
  $region17: #{freblock_chaattn_pallas.5} parent=0 // pred_fallthru
    _
  // Predicated region
  $region18: #{freblock_chaattn_pallas.5} parent=0 // pred_check
    _
  $region19: #{freblock_chaattn_pallas.5} parent=0 // pred_check_branch
    %21 = sbr.rel (0) target = $region21
  $region20: #{freblock_chaattn_pallas.5} parent=0 // pred_region
    _
  $region21: #{freblock_chaattn_pallas.5} parent=0 // pred_fallthru
    _
  %v22 = vld [vmem:[%s0] sm:$0xff]
  %v23 = vld [vmem:[%s0 + $0x8] sm:$0xff]
  %v24 = vld [vmem:[%s0 + $0x10] sm:$0xff]
  %v25 = vld [vmem:[%s0 + $0x18] sm:$0xff]
  %v26 = vld [vmem:[%s0 + $0x20] sm:$0xff]
  %v27 = vld [vmem:[%s0 + $0x28] sm:$0xff]
  %v28 = vld [vmem:[%s0 + $0x30] sm:$0xff]
  %v29 = vld [vmem:[%s0 + $0x38] sm:$0xff]
  %v30 = vand.u32 2147483647, %v22
  %v31 = vand.u32 2147483647, %v23
  %v32 = vand.u32 2147483647, %v24
  %v33 = vand.u32 2147483647, %v25
  %v34 = vand.u32 2147483647, %v26
  %v35 = vand.u32 2147483647, %v27
  %v36 = vand.u32 2147483647, %v28
  %v37 = vand.u32 2147483647, %v29
  %v38 = vld [vmem:[%s2] sm:$0xff]
  %v39 = vld [vmem:[%s2 + $0x8] sm:$0xff]
  %v40 = vld [vmem:[%s3] sm:$0xff]
  %v41 = vld [vmem:[%s3 + $0x8] sm:$0xff]
  %43 = vset.pattern.permute.xlu0 0
  %44 = vperm.xlu0 %43, %v40
  %v45 = vpop.permute.xlu0 %44
  %48 = vset.pattern.permute.xlu0 0
  %49 = vperm.xlu0 %48, %v41
  %v50 = vpop.permute.xlu0 %49
  %vm52 = vcmask 130048
  %v54 = vsel %vm52, %v38, 0
  %v57 = vsel %vm52, %v39, 0
  %59 = vmatprep.subr.mxu0 %v31
  %60 = vmatpush1.msra.mxu0 %v30
  %61 = vmatprep.subr.mxu0 %v35
  %62 = vmatpush1.msra.mxu0 %v34
  %63 = vmatprep.subr.mxu0 0.0
  %64 = vmatpush1.msra.mxu0 0.0
  %65 = vmatprep.subr.mxu0 0.0
  %66 = vmatpush1.msra.mxu0 0.0
  %67 = vmatprep.subr.mxu0 0.0
  %68 = vmatpush1.msra.mxu0 0.0
  %69 = vmatprep.subr.mxu0 0.0
  %70 = vmatpush1.msra.mxu0 0.0
  %71 = vmatprep.subr.mxu0 0.0
  %72 = vmatpush1.msra.mxu0 0.0
  %73 = vmatprep.subr.mxu0 0.0
  %74 = vmatpush1.msra.mxu0 0.0
  %75 = vmatprep.subr.mxu0 0.0
  %76 = vmatpush1.msra.mxu0 0.0
  %77 = vmatprep.subr.mxu0 0.0
  %78 = vmatpush1.msra.mxu0 0.0
  %79 = vmatprep.subr.mxu0 0.0
  %80 = vmatpush1.msra.mxu0 0.0
  %81 = vmatprep.subr.mxu0 0.0
  %82 = vmatpush1.msra.mxu0 0.0
  %83 = vmatprep.subr.mxu0 0.0
  %84 = vmatpush1.msra.mxu0 0.0
  %85 = vmatprep.subr.mxu0 0.0
  %86 = vmatpush1.msra.mxu0 0.0
  %87 = vmatprep.subr.mxu0 0.0
  %88 = vmatpush1.msra.mxu0 0.0
  %89 = vmatprep.subr.mxu0 0.0
  %90 = vmatpush1.msra.mxu0 0.0
  %91 = vmatprep.subr.mxu0 0.0
  %92 = vmatpush1.msra.mxu0 0.0
  %93 = vmatprep.subr.mxu0 0.0
  %94 = vmatpush1.msra.mxu0 0.0
  %95 = vmatprep.subr.mxu0 0.0
  %96 = vmatpush1.msra.mxu0 0.0
  %97 = vmatprep.subr.mxu0 0.0
  %98 = vmatpush1.msra.mxu0 0.0
  %99 = vmatprep.subr.mxu0 0.0
  %100 = vmatpush1.msra.mxu0 0.0
  %101 = vmatprep.subr.mxu0 0.0
  %102 = vmatpush1.msra.mxu0 0.0
  %103 = vmatprep.subr.mxu0 0.0
  %104 = vmatpush1.msra.mxu0 0.0
  %105 = vmatprep.subr.mxu0 0.0
  %106 = vmatpush1.msra.mxu0 0.0
  %107 = vmatprep.subr.mxu0 0.0
  %108 = vmatpush1.msra.mxu0 0.0
  %109 = vmatprep.subr.mxu0 0.0
  %110 = vmatpush1.msra.mxu0 0.0
  %111 = vmatprep.subr.mxu0 0.0
  %112 = vmatpush1.msra.mxu0 0.0
  %113 = vmatprep.subr.mxu0 0.0
  %114 = vmatpush1.msra.mxu0 0.0
  %115 = vmatprep.subr.mxu0 0.0
  %116 = vmatpush1.msra.mxu0 0.0
  %117 = vmatprep.subr.mxu0 0.0
  %118 = vmatpush1.msra.mxu0 0.0
  %119 = vmatprep.subr.mxu0 0.0
  %120 = vmatpush1.msra.mxu0 0.0
  %121 = vmatprep.subr.mxu0 0.0
  %122 = vmatpush1.msra.mxu0 0.0
  %123 = vmatprep.mubr.f32.mxu0 0.0
  %124 = vmatmul.mubr.f32.gmra.mrb[0].mxu0 %v54
  %v125 = vpop.f32.mrb[0].mxu0
  %v126 = vadd.f32 %v45, %v125
  %v127 = vpop.f32.mrb[0].mxu0
  %v128 = vadd.f32 %v45, %v127
  %129 = vmatprep.mubr.f32.mxu0 0.0
  %130 = vmatmul.mubr.f32.gmra.mrb[0].mxu0 %v57
  %v131 = vpop.f32.mrb[0].mxu0
  %v132 = vadd.f32 %v50, %v131
  %v133 = vpop.f32.mrb[0].mxu0
  %v134 = vadd.f32 %v50, %v133
  %135 = vdwg.mxu0
  %136 = vmatprep.subr.mxu0 %v33
  %137 = vmatpush1.msra.mxu0 %v32
  %138 = vmatprep.subr.mxu0 %v37
  %139 = vmatpush1.msra.mxu0 %v36
  %140 = vmatprep.subr.mxu0 0.0
  %141 = vmatpush1.msra.mxu0 0.0
  %142 = vmatprep.subr.mxu0 0.0
  %143 = vmatpush1.msra.mxu0 0.0
  %144 = vmatprep.subr.mxu0 0.0
  %145 = vmatpush1.msra.mxu0 0.0
  %146 = vmatprep.subr.mxu0 0.0
  %147 = vmatpush1.msra.mxu0 0.0
  %148 = vmatprep.subr.mxu0 0.0
  %149 = vmatpush1.msra.mxu0 0.0
  %150 = vmatprep.subr.mxu0 0.0
  %151 = vmatpush1.msra.mxu0 0.0
  %152 = vmatprep.subr.mxu0 0.0
  %153 = vmatpush1.msra.mxu0 0.0
  %154 = vmatprep.subr.mxu0 0.0
  %155 = vmatpush1.msra.mxu0 0.0
  %156 = vmatprep.subr.mxu0 0.0
  %157 = vmatpush1.msra.mxu0 0.0
  %158 = vmatprep.subr.mxu0 0.0
  %159 = vmatpush1.msra.mxu0 0.0
  %160 = vmatprep.subr.mxu0 0.0
  %161 = vmatpush1.msra.mxu0 0.0
  %162 = vmatprep.subr.mxu0 0.0
  %163 = vmatpush1.msra.mxu0 0.0
  %164 = vmatprep.subr.mxu0 0.0
  %165 = vmatpush1.msra.mxu0 0.0
  %166 = vmatprep.subr.mxu0 0.0
  %167 = vmatpush1.msra.mxu0 0.0
  %168 = vmatprep.subr.mxu0 0.0
  %169 = vmatpush1.msra.mxu0 0.0
  %170 = vmatprep.subr.mxu0 0.0
  %171 = vmatpush1.msra.mxu0 0.0
  %172 = vmatprep.subr.mxu0 0.0
  %173 = vmatpush1.msra.mxu0 0.0
  %174 = vmatprep.subr.mxu0 0.0
  %175 = vmatpush1.msra.mxu0 0.0
  %176 = vmatprep.subr.mxu0 0.0
  %177 = vmatpush1.msra.mxu0 0.0
  %178 = vmatprep.subr.mxu0 0.0
  %179 = vmatpush1.msra.mxu0 0.0
  %180 = vmatprep.subr.mxu0 0.0
  %181 = vmatpush1.msra.mxu0 0.0
  %182 = vmatprep.subr.mxu0 0.0
  %183 = vmatpush1.msra.mxu0 0.0
  %184 = vmatprep.subr.mxu0 0.0
  %185 = vmatpush1.msra.mxu0 0.0
  %186 = vmatprep.subr.mxu0 0.0
  %187 = vmatpush1.msra.mxu0 0.0
  %188 = vmatprep.subr.mxu0 0.0
  %189 = vmatpush1.msra.mxu0 0.0
  %190 = vmatprep.subr.mxu0 0.0
  %191 = vmatpush1.msra.mxu0 0.0
  %192 = vmatprep.subr.mxu0 0.0
  %193 = vmatpush1.msra.mxu0 0.0
  %194 = vmatprep.subr.mxu0 0.0
  %195 = vmatpush1.msra.mxu0 0.0
  %196 = vmatprep.subr.mxu0 0.0
  %197 = vmatpush1.msra.mxu0 0.0
  %198 = vmatprep.subr.mxu0 0.0
  %199 = vmatpush1.msra.mxu0 0.0
  %200 = vmatprep.mubr.f32.mxu0 0.0
  %201 = vmatmul.mubr.f32.gmra.mrb[0].mxu0 %v54
  %v202 = vpop.f32.mrb[0].mxu0
  %v203 = vadd.f32 %v45, %v202
  %v204 = vpop.f32.mrb[0].mxu0
  %v205 = vadd.f32 %v45, %v204
  %206 = vmatprep.mubr.f32.mxu0 0.0
  %207 = vmatmul.mubr.f32.gmra.mrb[0].mxu0 %v57
  %v208 = vpop.f32.mrb[0].mxu0
  %v209 = vadd.f32 %v50, %v208
  %v210 = vpop.f32.mrb[0].mxu0
  %v211 = vadd.f32 %v50, %v210
  %212 = vdwg.mxu0
  %v213 = vld [vmem:[%s1 + $0x8] sm:$0xff]
  %v214 = vld [vmem:[%s1 + $0x10] sm:$0xff]
  %v215 = vld [vmem:[%s1 + $0x18] sm:$0xff]
  %v216 = vld [vmem:[%s1 + $0x20] sm:$0xff]
  %v217 = vld [vmem:[%s1 + $0x38] sm:$0xff]
  %v218 = vld [vmem:[%s1 + $0x40] sm:$0xff]
  %v219 = vld [vmem:[%s1 + $0x48] sm:$0xff]
  %v220 = vld [vmem:[%s1 + $0x50] sm:$0xff]
  %v221 = vld [vmem:[#allocation2] sm:$0x1]
  %v223 = vlaneseq
  %v224 = vshrl.u32 %v223, 7
  %v225 = vsub.s32 0, %v224
  %v226 = vrot.slane %v221, %v225
  %227 = vset.pattern.permute.xlu0 0
  %228 = vperm.xlu0 %227, %v226
  %v229 = vpop.permute.xlu0 %228
  %v231 = vmul.f32 %v229, %v213
  %v232 = vmul.f32 %v229, %v214
  %v233 = vmul.f32 %v229, %v215
  %v234 = vmul.f32 %v229, %v216
  %v235 = vmul.f32 %v229, %v217
  %v236 = vmul.f32 %v229, %v218
  %v237 = vmul.f32 %v229, %v219
  %v238 = vmul.f32 %v229, %v220
  %v239 = vadd.f32 %v126, %v231
  %v240 = vadd.f32 %v128, %v232
  %v241 = vadd.f32 %v203, %v233
  %v242 = vadd.f32 %v205, %v234
  %v243 = vadd.f32 %v132, %v235
  %v244 = vadd.f32 %v134, %v236
  %v245 = vadd.f32 %v209, %v237
  %v246 = vadd.f32 %v211, %v238
  %vm247 = vcmp.eq.f32.partialorder %v239, %v239
  %vm248 = vcmp.eq.f32.partialorder %v240, %v240
  %vm249 = vcmp.eq.f32.partialorder %v241, %v241
  %vm250 = vcmp.eq.f32.partialorder %v242, %v242
  %vm251 = vcmp.eq.f32.partialorder %v243, %v243
  %vm252 = vcmp.eq.f32.partialorder %v244, %v244
  %vm253 = vcmp.eq.f32.partialorder %v245, %v245
  %vm254 = vcmp.eq.f32.partialorder %v246, %v246
  %v255 = vand.u32 2147483647, %v239
  %v256 = vand.u32 2147483647, %v240
  %v257 = vand.u32 2147483647, %v241
  %v258 = vand.u32 2147483647, %v242
  %v259 = vand.u32 2147483647, %v243
  %v260 = vand.u32 2147483647, %v244
  %v261 = vand.u32 2147483647, %v245
  %v262 = vand.u32 2147483647, %v246
  %vm263 = vcmp.le.f32.partialorder %v255, 3.4028235e+38
  %vm264 = vcmp.le.f32.partialorder %v256, 3.4028235e+38
  %vm265 = vcmp.le.f32.partialorder %v257, 3.4028235e+38
  %vm266 = vcmp.le.f32.partialorder %v258, 3.4028235e+38
  %vm267 = vcmp.le.f32.partialorder %v259, 3.4028235e+38
  %vm268 = vcmp.le.f32.partialorder %v260, 3.4028235e+38
  %vm269 = vcmp.le.f32.partialorder %v261, 3.4028235e+38
  %vm270 = vcmp.le.f32.partialorder %v262, 3.4028235e+38
  %vm271 = vmand %vm247, %vm263
  %vm272 = vmand %vm248, %vm264
  %vm273 = vmand %vm249, %vm265
  %vm274 = vmand %vm250, %vm266
  %vm275 = vmand %vm251, %vm267
  %vm276 = vmand %vm252, %vm268
  %vm277 = vmand %vm253, %vm269
  %vm278 = vmand %vm254, %vm270
  %v279 = vsel %vm271, %v239, 1e-05
  %v280 = vsel %vm272, %v240, 1e-05
  %v281 = vsel %vm273, %v241, 1e-05
  %v282 = vsel %vm274, %v242, 1e-05
  %v283 = vsel %vm275, %v243, 1e-05
  %v284 = vsel %vm276, %v244, 1e-05
  %v285 = vsel %vm277, %v245, 1e-05
  %v286 = vsel %vm278, %v246, 1e-05
  %287 = vst [vmem:[%s5] sm:$0xff] %v279
  %288 = vst [vmem:[%s5 + $0x8] sm:$0xff] %v280
  %289 = vst [vmem:[%s5 + $0x10] sm:$0xff] %v281
  %290 = vst [vmem:[%s5 + $0x18] sm:$0xff] %v282
  %291 = vst [vmem:[%s5 + $0x20] sm:$0xff] %v283
  %292 = vst [vmem:[%s5 + $0x28] sm:$0xff] %v284
  %293 = vst [vmem:[%s5 + $0x30] sm:$0xff] %v285
  %294 = vst [vmem:[%s5 + $0x38] sm:$0xff] %v286
  // Predicated region
  $region22: #{freblock_chaattn_pallas.5} parent=0 // pred_check
    _
  $region23: #{freblock_chaattn_pallas.5} parent=0 // pred_check_branch
    %296 = sbr.rel (0) target = $region25
  $region24: #{freblock_chaattn_pallas.5} parent=0 // pred_region
    _
  $region25: #{freblock_chaattn_pallas.5} parent=0 // pred_fallthru
    _
  // Predicated region
  $region26: #{freblock_chaattn_pallas.5} parent=0 // pred_check
    _
  $region27: #{freblock_chaattn_pallas.5} parent=0 // pred_check_branch
    %298 = sbr.rel (0) target = $region29
  $region28: #{freblock_chaattn_pallas.5} parent=0 // pred_region
    _
  $region29: #{freblock_chaattn_pallas.5} parent=0 // pred_fallthru
    _

</llo_original>
